<compile_context>
chip_gen: v7x
topology: tpu7x:2x2x1
jax: 0.10.0
libtpu: 0.0.40
codegen_flags: <defaults>
</compile_context>

<pallas_src>
import functools

import jax
import jax.numpy as jnp
from jax.experimental import pallas as pl
from jax.experimental.pallas import tpu as pltpu

EPS = 1e-5
_VMEM_LIMIT = 32 * 1024 * 1024  # safe on v5e/v6e (128 MiB) and v7x (64 MiB physical)


def _round_up(x, m):
    return (x + m - 1) // m * m


# ----------------------------- Pallas kernels ------------------------------------------------

def _matmul_bias_act_kernel(a_ref, w_ref, b_ref, o_ref, *, act):
    acc = jnp.dot(a_ref[...], w_ref[...], preferred_element_type=jnp.float32)
    acc = acc + b_ref[...]
    if act == "relu":
        acc = jnp.maximum(acc, 0.0)
    elif act == "sigmoid":
        acc = jax.nn.sigmoid(acc)
    o_ref[...] = acc.astype(o_ref.dtype)


def matmul_bias_act(a, w, b, act="none", out_dtype=jnp.bfloat16):
    """act(a @ w + b); a:(M,K), w:(K,N) fp32 folded weights, b:(N,) fp32. bf16 MXU, fp32 acc."""
    M, K = a.shape
    K2, N = w.shape
    assert K == K2
    if M >= 1024:
        TM = 512
    elif M >= 256:
        TM = 256
    elif M >= 128:
        TM = 128
    else:
        TM = _round_up(M, 8)
    Mp = _round_up(M, TM)

    a = a.astype(jnp.bfloat16)
    if Mp != M:
        a = jnp.pad(a, ((0, Mp - M), (0, 0)))

    out = pl.pallas_call(
        functools.partial(_matmul_bias_act_kernel, act=act),
        out_shape=jax.ShapeDtypeStruct((Mp, N), out_dtype),
        grid=(Mp // TM,),
        in_specs=[
            pl.BlockSpec((TM, K), lambda i: (i, 0)),
            pl.BlockSpec((K, N), lambda i: (0, 0)),
            pl.BlockSpec((1, N), lambda i: (0, 0)),
        ],
        out_specs=pl.BlockSpec((TM, N), lambda i: (i, 0)),
        compiler_params=pltpu.CompilerParams(
            dimension_semantics=("parallel",),
            vmem_limit_bytes=_VMEM_LIMIT),
    )(a, w.astype(jnp.bfloat16), b.reshape(1, N).astype(jnp.float32))
    return out[:M] if Mp != M else out


def _dwconv3x3_s1_kernel(x_ref, w_ref, b_ref, o_ref):
    # x_ref: (1, H+2, W+2, C) padded input block; w_ref: (9, 1, C); b_ref: (1, C)
    _, H, W, C = o_ref.shape
    x = x_ref[0].astype(jnp.float32)                   # (H+2, W+2, C), fp32 accumulation path
    acc = jnp.zeros((H, W, C), jnp.float32)
    for kh in range(3):
        for kw in range(3):
            tap = x[kh:kh + H, kw:kw + W, :]
            acc = acc + tap * w_ref[kh * 3 + kw]
    o_ref[0] = (acc + b_ref[...]).astype(o_ref.dtype)


def _dwconv3x3_s2_kernel(sub_ref, w_ref, b_ref, o_ref):
    # sub_ref: (4, Ho+1, Wo+1, C) parity sub-images (ph-major, pw-minor) of the padded input.
    _, Ho, Wo, C = o_ref.shape
    acc = jnp.zeros((Ho, Wo, C), jnp.float32)
    for kh in range(3):
        for kw in range(3):
            p = 2 * (kh % 2) + (kw % 2)
            sub = sub_ref[p].astype(jnp.float32)       # (Ho+1, Wo+1, C)
            tap = sub[kh // 2:kh // 2 + Ho, kw // 2:kw // 2 + Wo, :]
            acc = acc + tap * w_ref[kh * 3 + kw]
    o_ref[0] = (acc + b_ref[...]).astype(o_ref.dtype)


def _maxpool3x3_s2_kernel(sub_ref, o_ref):
    _, Ho, Wo, C = o_ref.shape
    r = jnp.full((Ho, Wo, C), -jnp.inf, jnp.float32)
    for kh in range(3):
        for kw in range(3):
            p = 2 * (kh % 2) + (kw % 2)
            sub = sub_ref[p].astype(jnp.float32)
            tap = sub[kh // 2:kh // 2 + Ho, kw // 2:kw // 2 + Wo, :]
            r = jnp.maximum(r, tap)
    o_ref[0] = r.astype(o_ref.dtype)


def _pool_fc_sigmoid_kernel(x_ref, w_ref, b_ref, o_ref):
    # x: (N, HW, C); w: (1, C); b: (1, 1); o: (N, 1)
    pooled = jnp.mean(x_ref[...].astype(jnp.float32), axis=1)          # (N, C)
    logits = jnp.sum(pooled * w_ref[...], axis=-1, keepdims=True) + b_ref[...]
    o_ref[...] = jax.nn.sigmoid(logits).astype(o_ref.dtype)


# ----------------------------- Glue: conv building blocks ------------------------------------

def _fold_bn(gamma, beta, mean, var):
    scale = gamma / jnp.sqrt(var + EPS)                 # fold in fp32, cast later
    return scale, beta - mean * scale


def _parity_subimages(x, pad_value):
    """x:(N,H,W,C) -> (N*4, Ho+1, Wo+1, C) parity sub-images of the 1-padded input
    (k=3, stride=2, pad=1). Parity order: (h_even,w_even),(h_even,w_odd),(h_odd,w_even),(h_odd,w_odd)."""
    N, H, W, C = x.shape
    Ho = (H - 1) // 2 + 1
    Wo = (W - 1) // 2 + 1
    xp = jnp.pad(x, ((0, 0), (1, 1 + (H % 2)), (1, 1 + (W % 2)), (0, 0)),
                 constant_values=pad_value)
    subs = [xp[:, ph::2, pw::2, :][:, :Ho + 1, :Wo + 1, :]
            for ph in (0, 1) for pw in (0, 1)]
    sub = jnp.stack(subs, axis=1).reshape(N * 4, Ho + 1, Wo + 1, C)
    return sub, Ho, Wo


def _extract_taps(x, ksize, stride, pad):
    """Only used for conv1 (Cin=3): im2col taps (k*k, N*Ho*Wo, C) in (kh, kw) order."""
    N, H, W, C = x.shape
    xp = jnp.pad(x, ((0, 0), (pad, pad), (pad, pad), (0, 0)))
    Ho = (H + 2 * pad - ksize) // stride + 1
    Wo = (W + 2 * pad - ksize) // stride + 1
    taps = []
    for kh in range(ksize):
        for kw in range(ksize):
            t = xp[:, kh:kh + (Ho - 1) * stride + 1:stride,
                      kw:kw + (Wo - 1) * stride + 1:stride, :]
            taps.append(t.reshape(N * Ho * Wo, C))
    return jnp.stack(taps, axis=0), Ho, Wo


def conv1x1_bn(x, p, act="relu"):
    w, gamma, beta, mean, var = p                       # w:(Cin,Cout)
    scale, bias = _fold_bn(gamma, beta, mean, var)
    N, H, W, Cin = x.shape
    y = matmul_bias_act(x.reshape(N * H * W, Cin), w * scale[None, :], bias, act=act)
    return y.reshape(N, H, W, -1)


def conv3x3_bn_relu(x, p, stride):
    # conv1 only (Cin=3): XLA im2col (cheap at 3 channels) + bf16 MXU matmul.
    w, gamma, beta, mean, var = p                       # w:(3,3,Cin,Cout)
    scale, bias = _fold_bn(gamma, beta, mean, var)
    N, H, W, Cin = x.shape
    Cout = w.shape[-1]
    taps, Ho, Wo = _extract_taps(x, 3, stride, 1)       # (9, M, Cin)
    M = taps.shape[1]
    a = jnp.transpose(taps, (1, 0, 2)).reshape(M, 9 * Cin)
    w_mat = w.reshape(9 * Cin, Cout) * scale[None, :]
    y = matmul_bias_act(a, w_mat, bias, act="relu")
    return y.reshape(N, Ho, Wo, Cout)


def dwconv3x3_bn(x, p, stride):
    w, gamma, beta, mean, var = p                       # w:(3,3,C)
    scale, bias = _fold_bn(gamma, beta, mean, var)
    N, H, W, C = x.shape
    w_f = (w * scale[None, None, :]).reshape(9, 1, C).astype(jnp.float32)
    b_f = bias.reshape(1, C).astype(jnp.float32)
    cparams = pltpu.CompilerParams(dimension_semantics=("parallel",),
                                   vmem_limit_bytes=_VMEM_LIMIT)
    if stride == 1:
        xp = jnp.pad(x, ((0, 0), (1, 1), (1, 1), (0, 0)))
        return pl.pallas_call(
            _dwconv3x3_s1_kernel,
            out_shape=jax.ShapeDtypeStruct((N, H, W, C), x.dtype),
            grid=(N,),
            in_specs=[
                pl.BlockSpec((1, H + 2, W + 2, C), lambda n: (n, 0, 0, 0)),
                pl.BlockSpec((9, 1, C), lambda n: (0, 0, 0)),
                pl.BlockSpec((1, C), lambda n: (0, 0)),
            ],
            out_specs=pl.BlockSpec((1, H, W, C), lambda n: (n, 0, 0, 0)),
            compiler_params=cparams,
        )(xp, w_f, b_f)
    else:
        sub, Ho, Wo = _parity_subimages(x, 0.0)
        return pl.pallas_call(
            _dwconv3x3_s2_kernel,
            out_shape=jax.ShapeDtypeStruct((N, Ho, Wo, C), x.dtype),
            grid=(N,),
            in_specs=[
                pl.BlockSpec((4, Ho + 1, Wo + 1, C), lambda n: (n, 0, 0, 0)),
                pl.BlockSpec((9, 1, C), lambda n: (0, 0, 0)),
                pl.BlockSpec((1, C), lambda n: (0, 0)),
            ],
            out_specs=pl.BlockSpec((1, Ho, Wo, C), lambda n: (n, 0, 0, 0)),
            compiler_params=cparams,
        )(sub, w_f, b_f)


def maxpool3x3_s2p1(x):
    N, H, W, C = x.shape
    sub, Ho, Wo = _parity_subimages(x, -jnp.inf)
    return pl.pallas_call(
        _maxpool3x3_s2_kernel,
        out_shape=jax.ShapeDtypeStruct((N, Ho, Wo, C), x.dtype),
        grid=(N,),
        in_specs=[pl.BlockSpec((4, Ho + 1, Wo + 1, C), lambda n: (n, 0, 0, 0))],
        out_specs=pl.BlockSpec((1, Ho, Wo, C), lambda n: (n, 0, 0, 0)),
        compiler_params=pltpu.CompilerParams(dimension_semantics=("parallel",),
                                             vmem_limit_bytes=_VMEM_LIMIT),
    )(sub)


def pool_fc_sigmoid(x, fc):
    # x: (N, HW, C) bf16 -> (N, 1) fp32. Tiny; single fused kernel (mean + linear + sigmoid).
    w_fc, b_fc = fc                                     # (C,1), (1,)
    N, HW, C = x.shape
    return pl.pallas_call(
        _pool_fc_sigmoid_kernel,
        out_shape=jax.ShapeDtypeStruct((N, 1), jnp.float32),
    )(x, w_fc.reshape(1, C).astype(jnp.float32), b_fc.reshape(1, 1).astype(jnp.float32))


def channel_shuffle(x, groups=2):
    N, H, W, C = x.shape
    x = x.reshape(N, H, W, groups, C // groups)
    x = jnp.transpose(x, (0, 1, 2, 4, 3))
    return x.reshape(N, H, W, C)


def inverted_residual(x, p, stride):
    if stride == 1:
        C = x.shape[-1]
        x1, x2 = x[..., :C // 2], x[..., C // 2:]
        b2 = conv1x1_bn(x2, p["b2_pw1"], act="relu")
        b2 = dwconv3x3_bn(b2, p["b2_dw"], stride=1)
        b2 = conv1x1_bn(b2, p["b2_pw2"], act="relu")
        out = jnp.concatenate([x1, b2], axis=-1)
    else:
        b1 = dwconv3x3_bn(x, p["b1_dw"], stride=stride)
        b1 = conv1x1_bn(b1, p["b1_pw"], act="relu")
        b2 = conv1x1_bn(x, p["b2_pw1"], act="relu")
        b2 = dwconv3x3_bn(b2, p["b2_dw"], stride=stride)
        b2 = conv1x1_bn(b2, p["b2_pw2"], act="relu")
        out = jnp.concatenate([b1, b2], axis=-1)
    return channel_shuffle(out, 2)


# ----------------------------- Parameter construction (synthetic, deterministic) -------------

class KeyGen:
    def __init__(self, key):
        self._key = key

    def __call__(self):
        self._key, sub = jax.random.split(self._key)
        return sub


def _init_conv(kg, shape, fan_in):
    return jax.random.normal(kg(), shape, jnp.float32) * (2.0 / fan_in) ** 0.5


def _init_bn(kg, c):
    gamma = 1.0 + 0.1 * jax.random.normal(kg(), (c,), jnp.float32)
    beta = 0.1 * jax.random.normal(kg(), (c,), jnp.float32)
    mean = 0.1 * jax.random.normal(kg(), (c,), jnp.float32)
    var = jax.random.uniform(kg(), (c,), jnp.float32, minval=0.5, maxval=1.5)
    return gamma, beta, mean, var


def _conv_bn(kg, wshape, fan_in, c_out):
    return (_init_conv(kg, wshape, fan_in),) + _init_bn(kg, c_out)


def build_params(key):
    kg = KeyGen(key)
    stages_repeats = [4, 8, 4]
    stages_out = [24, 116, 232, 464, 1024]              # shufflenet_v2_x1_0

    params = {}
    params["conv1"] = _conv_bn(kg, (3, 3, 3, stages_out[0]), 3 * 9, stages_out[0])

    c_in = stages_out[0]
    stages = []
    for reps, c_out in zip(stages_repeats, stages_out[1:4]):
        bf = c_out // 2
        blocks = []
        blocks.append({  # stride-2 block
            "b1_dw": _conv_bn(kg, (3, 3, c_in), 9, c_in),
            "b1_pw": _conv_bn(kg, (c_in, bf), c_in, bf),
            "b2_pw1": _conv_bn(kg, (c_in, bf), c_in, bf),
            "b2_dw": _conv_bn(kg, (3, 3, bf), 9, bf),
            "b2_pw2": _conv_bn(kg, (bf, bf), bf, bf),
        })
        for _ in range(reps - 1):                        # stride-1 blocks
            blocks.append({
                "b2_pw1": _conv_bn(kg, (bf, bf), bf, bf),
                "b2_dw": _conv_bn(kg, (3, 3, bf), 9, bf),
                "b2_pw2": _conv_bn(kg, (bf, bf), bf, bf),
            })
        stages.append(blocks)
        c_in = c_out
    params["stages"] = stages

    params["conv5"] = _conv_bn(kg, (c_in, stages_out[4]), c_in, stages_out[4])
    params["fc"] = (
        jax.random.normal(kg(), (stages_out[4], 1), jnp.float32) * (1.0 / stages_out[4]) ** 0.5,
        0.01 * jax.random.normal(kg(), (1,), jnp.float32),
    )
    return params


# ----------------------------- Full forward --------------------------------------------------

@jax.jit
def reranking_shufflenet_forward(merged_imgs_nchw, params):
    """Equivalent of rerankingShuffleNet.forward: sigmoid(fc(shufflenet_v2_x1_0 features))."""
    x = jnp.transpose(merged_imgs_nchw, (0, 2, 3, 1)).astype(jnp.bfloat16)   # NCHW -> NHWC
    x = conv3x3_bn_relu(x, params["conv1"], stride=2)
    x = maxpool3x3_s2p1(x)
    for stage in params["stages"]:
        for bi, blk in enumerate(stage):
            x = inverted_residual(x, blk, stride=2 if bi == 0 else 1)
    x = conv1x1_bn(x, params["conv5"], act="relu")
    N, H, W, C = x.shape
    out = pool_fc_sigmoid(x.reshape(N, H * W, C), params["fc"])              # (N, 1) in (0, 1)
    return out


if __name__ == "__main__":
    key = jax.random.PRNGKey(0)
    pkey, xkey = jax.random.split(key)
    params = build_params(pkey)
    # Small NCHW RGB input; 32x32 keeps the total /32 stride of the backbone valid.
    merged_imgs = jax.random.normal(xkey, (2, 3, 32, 32), jnp.float32)
    out = reranking_shufflenet_forward(merged_imgs, params)
    out = jax.block_until_ready(out)
    assert out.shape == (2, 1), out.shape
    assert bool(jnp.all(jnp.isfinite(out))) and bool(jnp.all((out >= 0.0) & (out <= 1.0)))
    print("KERNEL_OK")
</pallas_src>

<mosaic_0001>
module attributes {stable_mosaic.version = 11 : i64} {
  func.func @_matmul_bias_act_kernel(%arg0: i32, %arg1: memref<256x27xbf16, #tpu.memory_space<vmem>>, %arg2: memref<27x24xbf16, #tpu.memory_space<vmem>>, %arg3: memref<1x24xf32, #tpu.memory_space<vmem>>, %arg4: memref<256x24xbf16, #tpu.memory_space<vmem>>) attributes {dimension_semantics = [#tpu.dimension_semantics<parallel>], iteration_bounds = array<i64: 2>, scalar_prefetch = 0 : i64, scratch_operands = 0 : i64, tpu.core_type = #tpu.core_type<tc>, window_params = [{transform_indices = @transform_0, window_bounds = array<i64: 256, 27>}, {pipeline_mode = #tpu.pipeline_mode<synchronous>, transform_indices = @transform_1, window_bounds = array<i64: 27, 24>}, {pipeline_mode = #tpu.pipeline_mode<synchronous>, transform_indices = @transform_2, window_bounds = array<i64: 1, 24>}, {transform_indices = @transform_3, window_bounds = array<i64: 256, 24>}]} {
    %c0 = arith.constant 0 : index
    %c0_0 = arith.constant 0 : index
    %0 = vector.load %arg1[%c0, %c0_0] : memref<256x27xbf16, #tpu.memory_space<vmem>>, vector<256x27xbf16>
    %c0_1 = arith.constant 0 : index
    %c0_2 = arith.constant 0 : index
    %1 = vector.load %arg2[%c0_1, %c0_2] : memref<27x24xbf16, #tpu.memory_space<vmem>>, vector<27x24xbf16>
    %cst = arith.constant dense<0.000000e+00> : vector<256x24xf32>
    %2 = tpu.matmul %0, %1, %cst {dimension_numbers = #tpu.dot_dimension_numbers<[1], [0], [0], [1], [0, 0, 1, 1], [], []>} : vector<256x27xbf16>, vector<27x24xbf16>, vector<256x24xf32> -> vector<256x24xf32>
    %c0_3 = arith.constant 0 : index
    %c0_4 = arith.constant 0 : index
    %3 = vector.load %arg3[%c0_3, %c0_4] : memref<1x24xf32, #tpu.memory_space<vmem>>, vector<1x24xf32>
    %4 = vector.broadcast %3 : vector<1x24xf32> to vector<256x24xf32>
    %5 = arith.addf %2, %4 : vector<256x24xf32>
    %cst_5 = arith.constant 0.000000e+00 : f32
    %6 = vector.broadcast %cst_5 : f32 to vector<256x24xf32>
    %7 = arith.maximumf %5, %6 : vector<256x24xf32>
    %8 = arith.truncf %7 : vector<256x24xf32> to vector<256x24xbf16>
    %c0_6 = arith.constant 0 : index
    %c0_7 = arith.constant 0 : index
    %9 = vector.load %arg4[%c0_6, %c0_7] : memref<256x24xbf16, #tpu.memory_space<vmem>>, vector<256x24xbf16>
    tpu.vector_store %arg4[%c0_6, %c0_7], %8 {strides = array<i32>} : memref<256x24xbf16, #tpu.memory_space<vmem>>, vector<256x24xbf16>,
    return
  }
  func.func @transform_0(%arg0: i32) -> (i32, i32) {
    %c0_i32 = arith.constant 0 : i32
    %c0_i32_0 = arith.constant 0 : i32
    return %arg0, %c0_i32 : i32, i32
  }
  func.func @transform_1(%arg0: i32) -> (i32, i32) {
    %c0_i32 = arith.constant 0 : i32
    %c0_i32_0 = arith.constant 0 : i32
    %c0_i32_1 = arith.constant 0 : i32
    return %c0_i32, %c0_i32_0 : i32, i32
  }
  func.func @transform_2(%arg0: i32) -> (i32, i32) {
    %c0_i32 = arith.constant 0 : i32
    %c0_i32_0 = arith.constant 0 : i32
    %c0_i32_1 = arith.constant 0 : i32
    return %c0_i32, %c0_i32_0 : i32, i32
  }
  func.func @transform_3(%arg0: i32) -> (i32, i32) {
    %c0_i32 = arith.constant 0 : i32
    %c0_i32_0 = arith.constant 0 : i32
    return %arg0, %c0_i32 : i32, i32
  }
}

module attributes {stable_mosaic.version = 11 : i64} {
  func.func @_matmul_bias_act_kernel(%arg0: i32, %arg1: memref<128x24xbf16, #tpu.memory_space<vmem>>, %arg2: memref<24x58xbf16, #tpu.memory_space<vmem>>, %arg3: memref<1x58xf32, #tpu.memory_space<vmem>>, %arg4: memref<128x58xbf16, #tpu.memory_space<vmem>>) attributes {dimension_semantics = [#tpu.dimension_semantics<parallel>], iteration_bounds = array<i64: 1>, scalar_prefetch = 0 : i64, scratch_operands = 0 : i64, tpu.core_type = #tpu.core_type<tc>, window_params = [{transform_indices = @transform_0, window_bounds = array<i64: 128, 24>}, {pipeline_mode = #tpu.pipeline_mode<synchronous>, transform_indices = @transform_1, window_bounds = array<i64: 24, 58>}, {pipeline_mode = #tpu.pipeline_mode<synchronous>, transform_indices = @transform_2, window_bounds = array<i64: 1, 58>}, {transform_indices = @transform_3, window_bounds = array<i64: 128, 58>}]} {
    %c0 = arith.constant 0 : index
    %c0_0 = arith.constant 0 : index
    %0 = vector.load %arg1[%c0, %c0_0] : memref<128x24xbf16, #tpu.memory_space<vmem>>, vector<128x24xbf16>
    %c0_1 = arith.constant 0 : index
    %c0_2 = arith.constant 0 : index
    %1 = vector.load %arg2[%c0_1, %c0_2] : memref<24x58xbf16, #tpu.memory_space<vmem>>, vector<24x58xbf16>
    %cst = arith.constant dense<0.000000e+00> : vector<128x58xf32>
    %2 = tpu.matmul %0, %1, %cst {dimension_numbers = #tpu.dot_dimension_numbers<[1], [0], [0], [1], [0, 0, 1, 1], [], []>} : vector<128x24xbf16>, vector<24x58xbf16>, vector<128x58xf32> -> vector<128x58xf32>
    %c0_3 = arith.constant 0 : index
    %c0_4 = arith.constant 0 : index
    %3 = vector.load %arg3[%c0_3, %c0_4] : memref<1x58xf32, #tpu.memory_space<vmem>>, vector<1x58xf32>
    %4 = vector.broadcast %3 : vector<1x58xf32> to vector<128x58xf32>
    %5 = arith.addf %2, %4 : vector<128x58xf32>
    %cst_5 = arith.constant 0.000000e+00 : f32
    %6 = vector.broadcast %cst_5 : f32 to vector<128x58xf32>
    %7 = arith.maximumf %5, %6 : vector<128x58xf32>
    %8 = arith.truncf %7 : vector<128x58xf32> to vector<128x58xbf16>
    %c0_6 = arith.constant 0 : index
    %c0_7 = arith.constant 0 : index
    %9 = vector.load %arg4[%c0_6, %c0_7] : memref<128x58xbf16, #tpu.memory_space<vmem>>, vector<128x58xbf16>
    tpu.vector_store %arg4[%c0_6, %c0_7], %8 {strides = array<i32>} : memref<128x58xbf16, #tpu.memory_space<vmem>>, vector<128x58xbf16>,
    return
  }
  func.func @transform_0(%arg0: i32) -> (i32, i32) {
    %c0_i32 = arith.constant 0 : i32
    %c0_i32_0 = arith.constant 0 : i32
    return %arg0, %c0_i32 : i32, i32
  }
  func.func @transform_1(%arg0: i32) -> (i32, i32) {
    %c0_i32 = arith.constant 0 : i32
    %c0_i32_0 = arith.constant 0 : i32
    %c0_i32_1 = arith.constant 0 : i32
    return %c0_i32, %c0_i32_0 : i32, i32
  }
  func.func @transform_2(%arg0: i32) -> (i32, i32) {
    %c0_i32 = arith.constant 0 : i32
    %c0_i32_0 = arith.constant 0 : i32
    %c0_i32_1 = arith.constant 0 : i32
    return %c0_i32, %c0_i32_0 : i32, i32
  }
  func.func @transform_3(%arg0: i32) -> (i32, i32) {
    %c0_i32 = arith.constant 0 : i32
    %c0_i32_0 = arith.constant 0 : i32
    return %arg0, %c0_i32 : i32, i32
  }
}

module attributes {stable_mosaic.version = 11 : i64} {
  func.func @_maxpool3x3_s2_kernel(%arg0: i32, %arg1: memref<4x9x9x24xbf16, #tpu.memory_space<vmem>>, %arg2: memref<1x8x8x24xbf16, #tpu.memory_space<vmem>>) attributes {dimension_semantics = [#tpu.dimension_semantics<parallel>], iteration_bounds = array<i64: 2>, scalar_prefetch = 0 : i64, scratch_operands = 0 : i64, tpu.core_type = #tpu.core_type<tc>, window_params = [{transform_indices = @transform_0, window_bounds = array<i64: 4, 9, 9, 24>}, {transform_indices = @transform_1, window_bounds = array<i64: 1, 8, 8, 24>}]} {
    %cst = arith.constant 0xFF800000 : f32
    %0 = vector.broadcast %cst : f32 to vector<8x8x24xf32>
    %c0 = arith.constant 0 : index
    %c0_0 = arith.constant 0 : index
    %c0_1 = arith.constant 0 : index
    %c0_2 = arith.constant 0 : index
    %1 = vector.load %arg1[%c0, %c0_0, %c0_1, %c0_2] : memref<4x9x9x24xbf16, #tpu.memory_space<vmem>>, vector<1x9x9x24xbf16>
    %2 = vector.shape_cast %1 : vector<1x9x9x24xbf16> to vector<9x9x24xbf16>
    %3 = arith.extf %2 : vector<9x9x24xbf16> to vector<9x9x24xf32>
    %4 = vector.extract_strided_slice %3 {offsets = [0, 0, 0], sizes = [8, 8, 24], strides = [1, 1, 1]} : vector<9x9x24xf32> to vector<8x8x24xf32>
    %5 = arith.maximumf %0, %4 : vector<8x8x24xf32>
    %c1 = arith.constant 1 : index
    %c0_3 = arith.constant 0 : index
    %c0_4 = arith.constant 0 : index
    %c0_5 = arith.constant 0 : index
    %6 = vector.load %arg1[%c1, %c0_3, %c0_4, %c0_5] : memref<4x9x9x24xbf16, #tpu.memory_space<vmem>>, vector<1x9x9x24xbf16>
    %7 = vector.shape_cast %6 : vector<1x9x9x24xbf16> to vector<9x9x24xbf16>
    %8 = arith.extf %7 : vector<9x9x24xbf16> to vector<9x9x24xf32>
    %9 = vector.extract_strided_slice %8 {offsets = [0, 0, 0], sizes = [8, 8, 24], strides = [1, 1, 1]} : vector<9x9x24xf32> to vector<8x8x24xf32>
    %10 = arith.maximumf %5, %9 : vector<8x8x24xf32>
    %c0_6 = arith.constant 0 : index
    %c0_7 = arith.constant 0 : index
    %c0_8 = arith.constant 0 : index
    %c0_9 = arith.constant 0 : index
    %11 = vector.load %arg1[%c0_6, %c0_7, %c0_8, %c0_9] : memref<4x9x9x24xbf16, #tpu.memory_space<vmem>>, vector<1x9x9x24xbf16>
    %12 = vector.shape_cast %11 : vector<1x9x9x24xbf16> to vector<9x9x24xbf16>
    %13 = arith.extf %12 : vector<9x9x24xbf16> to vector<9x9x24xf32>
    %14 = vector.extract_strided_slice %13 {offsets = [0, 1, 0], sizes = [8, 8, 24], strides = [1, 1, 1]} : vector<9x9x24xf32> to vector<8x8x24xf32>
    %15 = arith.maximumf %10, %14 : vector<8x8x24xf32>
    %c2 = arith.constant 2 : index
    %c0_10 = arith.constant 0 : index
    %c0_11 = arith.constant 0 : index
    %c0_12 = arith.constant 0 : index
    %16 = vector.load %arg1[%c2, %c0_10, %c0_11, %c0_12] : memref<4x9x9x24xbf16, #tpu.memory_space<vmem>>, vector<1x9x9x24xbf16>
    %17 = vector.shape_cast %16 : vector<1x9x9x24xbf16> to vector<9x9x24xbf16>
    %18 = arith.extf %17 : vector<9x9x24xbf16> to vector<9x9x24xf32>
    %19 = vector.extract_strided_slice %18 {offsets = [0, 0, 0], sizes = [8, 8, 24], strides = [1, 1, 1]} : vector<9x9x24xf32> to vector<8x8x24xf32>
    %20 = arith.maximumf %15, %19 : vector<8x8x24xf32>
    %c3 = arith.constant 3 : index
    %c0_13 = arith.constant 0 : index
    %c0_14 = arith.constant 0 : index
    %c0_15 = arith.constant 0 : index
    %21 = vector.load %arg1[%c3, %c0_13, %c0_14, %c0_15] : memref<4x9x9x24xbf16, #tpu.memory_space<vmem>>, vector<1x9x9x24xbf16>
    %22 = vector.shape_cast %21 : vector<1x9x9x24xbf16> to vector<9x9x24xbf16>
    %23 = arith.extf %22 : vector<9x9x24xbf16> to vector<9x9x24xf32>
    %24 = vector.extract_strided_slice %23 {offsets = [0, 0, 0], sizes = [8, 8, 24], strides = [1, 1, 1]} : vector<9x9x24xf32> to vector<8x8x24xf32>
    %25 = arith.maximumf %20, %24 : vector<8x8x24xf32>
    %c2_16 = arith.constant 2 : index
    %c0_17 = arith.constant 0 : index
    %c0_18 = arith.constant 0 : index
    %c0_19 = arith.constant 0 : index
    %26 = vector.load %arg1[%c2_16, %c0_17, %c0_18, %c0_19] : memref<4x9x9x24xbf16, #tpu.memory_space<vmem>>, vector<1x9x9x24xbf16>
    %27 = vector.shape_cast %26 : vector<1x9x9x24xbf16> to vector<9x9x24xbf16>
    %28 = arith.extf %27 : vector<9x9x24xbf16> to vector<9x9x24xf32>
    %29 = vector.extract_strided_slice %28 {offsets = [0, 1, 0], sizes = [8, 8, 24], strides = [1, 1, 1]} : vector<9x9x24xf32> to vector<8x8x24xf32>
    %30 = arith.maximumf %25, %29 : vector<8x8x24xf32>
    %c0_20 = arith.constant 0 : index
    %c0_21 = arith.constant 0 : index
    %c0_22 = arith.constant 0 : index
    %c0_23 = arith.constant 0 : index
    %31 = vector.load %arg1[%c0_20, %c0_21, %c0_22, %c0_23] : memref<4x9x9x24xbf16, #tpu.memory_space<vmem>>, vector<1x9x9x24xbf16>
    %32 = vector.shape_cast %31 : vector<1x9x9x24xbf16> to vector<9x9x24xbf16>
    %33 = arith.extf %32 : vector<9x9x24xbf16> to vector<9x9x24xf32>
    %34 = vector.extract_strided_slice %33 {offsets = [1, 0, 0], sizes = [8, 8, 24], strides = [1, 1, 1]} : vector<9x9x24xf32> to vector<8x8x24xf32>
    %35 = arith.maximumf %30, %34 : vector<8x8x24xf32>
    %c1_24 = arith.constant 1 : index
    %c0_25 = arith.constant 0 : index
    %c0_26 = arith.constant 0 : index
    %c0_27 = arith.constant 0 : index
    %36 = vector.load %arg1[%c1_24, %c0_25, %c0_26, %c0_27] : memref<4x9x9x24xbf16, #tpu.memory_space<vmem>>, vector<1x9x9x24xbf16>
    %37 = vector.shape_cast %36 : vector<1x9x9x24xbf16> to vector<9x9x24xbf16>
    %38 = arith.extf %37 : vector<9x9x24xbf16> to vector<9x9x24xf32>
    %39 = vector.extract_strided_slice %38 {offsets = [1, 0, 0], sizes = [8, 8, 24], strides = [1, 1, 1]} : vector<9x9x24xf32> to vector<8x8x24xf32>
    %40 = arith.maximumf %35, %39 : vector<8x8x24xf32>
    %c0_28 = arith.constant 0 : index
    %c0_29 = arith.constant 0 : index
    %c0_30 = arith.constant 0 : index
    %c0_31 = arith.constant 0 : index
    %41 = vector.load %arg1[%c0_28, %c0_29, %c0_30, %c0_31] : memref<4x9x9x24xbf16, #tpu.memory_space<vmem>>, vector<1x9x9x24xbf16>
    %42 = vector.shape_cast %41 : vector<1x9x9x24xbf16> to vector<9x9x24xbf16>
    %43 = arith.extf %42 : vector<9x9x24xbf16> to vector<9x9x24xf32>
    %44 = vector.extract_strided_slice %43 {offsets = [1, 1, 0], sizes = [8, 8, 24], strides = [1, 1, 1]} : vector<9x9x24xf32> to vector<8x8x24xf32>
    %45 = arith.maximumf %40, %44 : vector<8x8x24xf32>
    %46 = arith.truncf %45 : vector<8x8x24xf32> to vector<8x8x24xbf16>
    %c0_32 = arith.constant 0 : index
    %c0_33 = arith.constant 0 : index
    %c0_34 = arith.constant 0 : index
    %c0_35 = arith.constant 0 : index
    %47 = vector.load %arg2[%c0_32, %c0_33, %c0_34, %c0_35] : memref<1x8x8x24xbf16, #tpu.memory_space<vmem>>, vector<1x8x8x24xbf16>
    %48 = vector.shape_cast %47 : vector<1x8x8x24xbf16> to vector<8x8x24xbf16>
    %49 = vector.shape_cast %46 : vector<8x8x24xbf16> to vector<1x8x8x24xbf16>
    tpu.vector_store %arg2[%c0_32, %c0_33, %c0_34, %c0_35], %49 {strides = array<i32>} : memref<1x8x8x24xbf16, #tpu.memory_space<vmem>>, vector<1x8x8x24xbf16>,
    return
  }
  func.func @transform_0(%arg0: i32) -> (i32, i32, i32, i32) {
    %c0_i32 = arith.constant 0 : i32
    %c0_i32_0 = arith.constant 0 : i32
    %c0_i32_1 = arith.constant 0 : i32
    %c0_i32_2 = arith.constant 0 : i32
    return %arg0, %c0_i32, %c0_i32_0, %c0_i32_1 : i32, i32, i32, i32
  }
  func.func @transform_1(%arg0: i32) -> (i32, i32, i32, i32) {
    %c0_i32 = arith.constant 0 : i32
    %c0_i32_0 = arith.constant 0 : i32
    %c0_i32_1 = arith.constant 0 : i32
    %c0_i32_2 = arith.constant 0 : i32
    return %arg0, %c0_i32, %c0_i32_0, %c0_i32_1 : i32, i32, i32, i32
  }
}

module attributes {stable_mosaic.version = 11 : i64} {
  func.func @_matmul_bias_act_kernel(%arg0: i32, %arg1: memref<32x58xbf16, #tpu.memory_space<vmem>>, %arg2: memref<58x58xbf16, #tpu.memory_space<vmem>>, %arg3: memref<1x58xf32, #tpu.memory_space<vmem>>, %arg4: memref<32x58xbf16, #tpu.memory_space<vmem>>) attributes {dimension_semantics = [#tpu.dimension_semantics<parallel>], iteration_bounds = array<i64: 1>, scalar_prefetch = 0 : i64, scratch_operands = 0 : i64, tpu.core_type = #tpu.core_type<tc>, window_params = [{transform_indices = @transform_0, window_bounds = array<i64: 32, 58>}, {pipeline_mode = #tpu.pipeline_mode<synchronous>, transform_indices = @transform_1, window_bounds = array<i64: 58, 58>}, {pipeline_mode = #tpu.pipeline_mode<synchronous>, transform_indices = @transform_2, window_bounds = array<i64: 1, 58>}, {transform_indices = @transform_3, window_bounds = array<i64: 32, 58>}]} {
    %c0 = arith.constant 0 : index
    %c0_0 = arith.constant 0 : index
    %0 = vector.load %arg1[%c0, %c0_0] : memref<32x58xbf16, #tpu.memory_space<vmem>>, vector<32x58xbf16>
    %c0_1 = arith.constant 0 : index
    %c0_2 = arith.constant 0 : index
    %1 = vector.load %arg2[%c0_1, %c0_2] : memref<58x58xbf16, #tpu.memory_space<vmem>>, vector<58x58xbf16>
    %cst = arith.constant dense<0.000000e+00> : vector<32x58xf32>
    %2 = tpu.matmul %0, %1, %cst {dimension_numbers = #tpu.dot_dimension_numbers<[1], [0], [0], [1], [0, 0, 1, 1], [], []>} : vector<32x58xbf16>, vector<58x58xbf16>, vector<32x58xf32> -> vector<32x58xf32>
    %c0_3 = arith.constant 0 : index
    %c0_4 = arith.constant 0 : index
    %3 = vector.load %arg3[%c0_3, %c0_4] : memref<1x58xf32, #tpu.memory_space<vmem>>, vector<1x58xf32>
    %4 = vector.broadcast %3 : vector<1x58xf32> to vector<32x58xf32>
    %5 = arith.addf %2, %4 : vector<32x58xf32>
    %cst_5 = arith.constant 0.000000e+00 : f32
    %6 = vector.broadcast %cst_5 : f32 to vector<32x58xf32>
    %7 = arith.maximumf %5, %6 : vector<32x58xf32>
    %8 = arith.truncf %7 : vector<32x58xf32> to vector<32x58xbf16>
    %c0_6 = arith.constant 0 : index
    %c0_7 = arith.constant 0 : index
    %9 = vector.load %arg4[%c0_6, %c0_7] : memref<32x58xbf16, #tpu.memory_space<vmem>>, vector<32x58xbf16>
    tpu.vector_store %arg4[%c0_6, %c0_7], %8 {strides = array<i32>} : memref<32x58xbf16, #tpu.memory_space<vmem>>, vector<32x58xbf16>,
    return
  }
  func.func @transform_0(%arg0: i32) -> (i32, i32) {
    %c0_i32 = arith.constant 0 : i32
    %c0_i32_0 = arith.constant 0 : i32
    return %arg0, %c0_i32 : i32, i32
  }
  func.func @transform_1(%arg0: i32) -> (i32, i32) {
    %c0_i32 = arith.constant 0 : i32
    %c0_i32_0 = arith.constant 0 : i32
    %c0_i32_1 = arith.constant 0 : i32
    return %c0_i32, %c0_i32_0 : i32, i32
  }
  func.func @transform_2(%arg0: i32) -> (i32, i32) {
    %c0_i32 = arith.constant 0 : i32
    %c0_i32_0 = arith.constant 0 : i32
    %c0_i32_1 = arith.constant 0 : i32
    return %c0_i32, %c0_i32_0 : i32, i32
  }
  func.func @transform_3(%arg0: i32) -> (i32, i32) {
    %c0_i32 = arith.constant 0 : i32
    %c0_i32_0 = arith.constant 0 : i32
    return %arg0, %c0_i32 : i32, i32
  }
}

module attributes {stable_mosaic.version = 11 : i64} {
  func.func @_dwconv3x3_s2_kernel(%arg0: i32, %arg1: memref<4x5x5x58xbf16, #tpu.memory_space<vmem>>, %arg2: memref<9x1x58xf32, #tpu.memory_space<vmem>>, %arg3: memref<1x58xf32, #tpu.memory_space<vmem>>, %arg4: memref<1x4x4x58xbf16, #tpu.memory_space<vmem>>) attributes {dimension_semantics = [#tpu.dimension_semantics<parallel>], iteration_bounds = array<i64: 2>, scalar_prefetch = 0 : i64, scratch_operands = 0 : i64, tpu.core_type = #tpu.core_type<tc>, window_params = [{transform_indices = @transform_0, window_bounds = array<i64: 4, 5, 5, 58>}, {pipeline_mode = #tpu.pipeline_mode<synchronous>, transform_indices = @transform_1, window_bounds = array<i64: 9, 1, 58>}, {pipeline_mode = #tpu.pipeline_mode<synchronous>, transform_indices = @transform_2, window_bounds = array<i64: 1, 58>}, {transform_indices = @transform_3, window_bounds = array<i64: 1, 4, 4, 58>}]} {
    %cst = arith.constant 0.000000e+00 : f32
    %0 = vector.broadcast %cst : f32 to vector<4x4x58xf32>
    %c0 = arith.constant 0 : index
    %c0_0 = arith.constant 0 : index
    %c0_1 = arith.constant 0 : index
    %c0_2 = arith.constant 0 : index
    %1 = vector.load %arg1[%c0, %c0_0, %c0_1, %c0_2] : memref<4x5x5x58xbf16, #tpu.memory_space<vmem>>, vector<1x5x5x58xbf16>
    %2 = vector.shape_cast %1 : vector<1x5x5x58xbf16> to vector<5x5x58xbf16>
    %3 = arith.extf %2 : vector<5x5x58xbf16> to vector<5x5x58xf32>
    %4 = vector.extract_strided_slice %3 {offsets = [0, 0, 0], sizes = [4, 4, 58], strides = [1, 1, 1]} : vector<5x5x58xf32> to vector<4x4x58xf32>
    %c0_3 = arith.constant 0 : index
    %c0_4 = arith.constant 0 : index
    %c0_5 = arith.constant 0 : index
    %5 = vector.load %arg2[%c0_3, %c0_4, %c0_5] : memref<9x1x58xf32, #tpu.memory_space<vmem>>, vector<1x1x58xf32>
    %6 = vector.shape_cast %5 : vector<1x1x58xf32> to vector<1x58xf32>
    %7 = vector.shape_cast %6 : vector<1x58xf32> to vector<1x1x58xf32>
    %8 = vector.broadcast %7 : vector<1x1x58xf32> to vector<4x4x58xf32>
    %9 = arith.mulf %4, %8 : vector<4x4x58xf32>
    %10 = arith.addf %0, %9 : vector<4x4x58xf32>
    %c1 = arith.constant 1 : index
    %c0_6 = arith.constant 0 : index
    %c0_7 = arith.constant 0 : index
    %c0_8 = arith.constant 0 : index
    %11 = vector.load %arg1[%c1, %c0_6, %c0_7, %c0_8] : memref<4x5x5x58xbf16, #tpu.memory_space<vmem>>, vector<1x5x5x58xbf16>
    %12 = vector.shape_cast %11 : vector<1x5x5x58xbf16> to vector<5x5x58xbf16>
    %13 = arith.extf %12 : vector<5x5x58xbf16> to vector<5x5x58xf32>
    %14 = vector.extract_strided_slice %13 {offsets = [0, 0, 0], sizes = [4, 4, 58], strides = [1, 1, 1]} : vector<5x5x58xf32> to vector<4x4x58xf32>
    %c1_9 = arith.constant 1 : index
    %c0_10 = arith.constant 0 : index
    %c0_11 = arith.constant 0 : index
    %15 = vector.load %arg2[%c1_9, %c0_10, %c0_11] : memref<9x1x58xf32, #tpu.memory_space<vmem>>, vector<1x1x58xf32>
    %16 = vector.shape_cast %15 : vector<1x1x58xf32> to vector<1x58xf32>
    %17 = vector.shape_cast %16 : vector<1x58xf32> to vector<1x1x58xf32>
    %18 = vector.broadcast %17 : vector<1x1x58xf32> to vector<4x4x58xf32>
    %19 = arith.mulf %14, %18 : vector<4x4x58xf32>
    %20 = arith.addf %10, %19 : vector<4x4x58xf32>
    %c0_12 = arith.constant 0 : index
    %c0_13 = arith.constant 0 : index
    %c0_14 = arith.constant 0 : index
    %c0_15 = arith.constant 0 : index
    %21 = vector.load %arg1[%c0_12, %c0_13, %c0_14, %c0_15] : memref<4x5x5x58xbf16, #tpu.memory_space<vmem>>, vector<1x5x5x58xbf16>
    %22 = vector.shape_cast %21 : vector<1x5x5x58xbf16> to vector<5x5x58xbf16>
    %23 = arith.extf %22 : vector<5x5x58xbf16> to vector<5x5x58xf32>
    %24 = vector.extract_strided_slice %23 {offsets = [0, 1, 0], sizes = [4, 4, 58], strides = [1, 1, 1]} : vector<5x5x58xf32> to vector<4x4x58xf32>
    %c2 = arith.constant 2 : index
    %c0_16 = arith.constant 0 : index
    %c0_17 = arith.constant 0 : index
    %25 = vector.load %arg2[%c2, %c0_16, %c0_17] : memref<9x1x58xf32, #tpu.memory_space<vmem>>, vector<1x1x58xf32>
    %26 = vector.shape_cast %25 : vector<1x1x58xf32> to vector<1x58xf32>
    %27 = vector.shape_cast %26 : vector<1x58xf32> to vector<1x1x58xf32>
    %28 = vector.broadcast %27 : vector<1x1x58xf32> to vector<4x4x58xf32>
    %29 = arith.mulf %24, %28 : vector<4x4x58xf32>
    %30 = arith.addf %20, %29 : vector<4x4x58xf32>
    %c2_18 = arith.constant 2 : index
    %c0_19 = arith.constant 0 : index
    %c0_20 = arith.constant 0 : index
    %c0_21 = arith.constant 0 : index
    %31 = vector.load %arg1[%c2_18, %c0_19, %c0_20, %c0_21] : memref<4x5x5x58xbf16, #tpu.memory_space<vmem>>, vector<1x5x5x58xbf16>
    %32 = vector.shape_cast %31 : vector<1x5x5x58xbf16> to vector<5x5x58xbf16>
    %33 = arith.extf %32 : vector<5x5x58xbf16> to vector<5x5x58xf32>
    %34 = vector.extract_strided_slice %33 {offsets = [0, 0, 0], sizes = [4, 4, 58], strides = [1, 1, 1]} : vector<5x5x58xf32> to vector<4x4x58xf32>
    %c3 = arith.constant 3 : index
    %c0_22 = arith.constant 0 : index
    %c0_23 = arith.constant 0 : index
    %35 = vector.load %arg2[%c3, %c0_22, %c0_23] : memref<9x1x58xf32, #tpu.memory_space<vmem>>, vector<1x1x58xf32>
    %36 = vector.shape_cast %35 : vector<1x1x58xf32> to vector<1x58xf32>
    %37 = vector.shape_cast %36 : vector<1x58xf32> to vector<1x1x58xf32>
    %38 = vector.broadcast %37 : vector<1x1x58xf32> to vector<4x4x58xf32>
    %39 = arith.mulf %34, %38 : vector<4x4x58xf32>
    %40 = arith.addf %30, %39 : vector<4x4x58xf32>
    %c3_24 = arith.constant 3 : index
    %c0_25 = arith.constant 0 : index
    %c0_26 = arith.constant 0 : index
    %c0_27 = arith.constant 0 : index
    %41 = vector.load %arg1[%c3_24, %c0_25, %c0_26, %c0_27] : memref<4x5x5x58xbf16, #tpu.memory_space<vmem>>, vector<1x5x5x58xbf16>
    %42 = vector.shape_cast %41 : vector<1x5x5x58xbf16> to vector<5x5x58xbf16>
    %43 = arith.extf %42 : vector<5x5x58xbf16> to vector<5x5x58xf32>
    %44 = vector.extract_strided_slice %43 {offsets = [0, 0, 0], sizes = [4, 4, 58], strides = [1, 1, 1]} : vector<5x5x58xf32> to vector<4x4x58xf32>
    %c4 = arith.constant 4 : index
    %c0_28 = arith.constant 0 : index
    %c0_29 = arith.constant 0 : index
    %45 = vector.load %arg2[%c4, %c0_28, %c0_29] : memref<9x1x58xf32, #tpu.memory_space<vmem>>, vector<1x1x58xf32>
    %46 = vector.shape_cast %45 : vector<1x1x58xf32> to vector<1x58xf32>
    %47 = vector.shape_cast %46 : vector<1x58xf32> to vector<1x1x58xf32>
    %48 = vector.broadcast %47 : vector<1x1x58xf32> to vector<4x4x58xf32>
    %49 = arith.mulf %44, %48 : vector<4x4x58xf32>
    %50 = arith.addf %40, %49 : vector<4x4x58xf32>
    %c2_30 = arith.constant 2 : index
    %c0_31 = arith.constant 0 : index
    %c0_32 = arith.constant 0 : index
    %c0_33 = arith.constant 0 : index
    %51 = vector.load %arg1[%c2_30, %c0_31, %c0_32, %c0_33] : memref<4x5x5x58xbf16, #tpu.memory_space<vmem>>, vector<1x5x5x58xbf16>
    %52 = vector.shape_cast %51 : vector<1x5x5x58xbf16> to vector<5x5x58xbf16>
    %53 = arith.extf %52 : vector<5x5x58xbf16> to vector<5x5x58xf32>
    %54 = vector.extract_strided_slice %53 {offsets = [0, 1, 0], sizes = [4, 4, 58], strides = [1, 1, 1]} : vector<5x5x58xf32> to vector<4x4x58xf32>
    %c5 = arith.constant 5 : index
    %c0_34 = arith.constant 0 : index
    %c0_35 = arith.constant 0 : index
    %55 = vector.load %arg2[%c5, %c0_34, %c0_35] : memref<9x1x58xf32, #tpu.memory_space<vmem>>, vector<1x1x58xf32>
    %56 = vector.shape_cast %55 : vector<1x1x58xf32> to vector<1x58xf32>
    %57 = vector.shape_cast %56 : vector<1x58xf32> to vector<1x1x58xf32>
    %58 = vector.broadcast %57 : vector<1x1x58xf32> to vector<4x4x58xf32>
    %59 = arith.mulf %54, %58 : vector<4x4x58xf32>
    %60 = arith.addf %50, %59 : vector<4x4x58xf32>
    %c0_36 = arith.constant 0 : index
    %c0_37 = arith.constant 0 : index
    %c0_38 = arith.constant 0 : index
    %c0_39 = arith.constant 0 : index
    %61 = vector.load %arg1[%c0_36, %c0_37, %c0_38, %c0_39] : memref<4x5x5x58xbf16, #tpu.memory_space<vmem>>, vector<1x5x5x58xbf16>
    %62 = vector.shape_cast %61 : vector<1x5x5x58xbf16> to vector<5x5x58xbf16>
    %63 = arith.extf %62 : vector<5x5x58xbf16> to vector<5x5x58xf32>
    %64 = vector.extract_strided_slice %63 {offsets = [1, 0, 0], sizes = [4, 4, 58], strides = [1, 1, 1]} : vector<5x5x58xf32> to vector<4x4x58xf32>
    %c6 = arith.constant 6 : index
    %c0_40 = arith.constant 0 : index
    %c0_41 = arith.constant 0 : index
    %65 = vector.load %arg2[%c6, %c0_40, %c0_41] : memref<9x1x58xf32, #tpu.memory_space<vmem>>, vector<1x1x58xf32>
    %66 = vector.shape_cast %65 : vector<1x1x58xf32> to vector<1x58xf32>
    %67 = vector.shape_cast %66 : vector<1x58xf32> to vector<1x1x58xf32>
    %68 = vector.broadcast %67 : vector<1x1x58xf32> to vector<4x4x58xf32>
    %69 = arith.mulf %64, %68 : vector<4x4x58xf32>
    %70 = arith.addf %60, %69 : vector<4x4x58xf32>
    %c1_42 = arith.constant 1 : index
    %c0_43 = arith.constant 0 : index
    %c0_44 = arith.constant 0 : index
    %c0_45 = arith.constant 0 : index
    %71 = vector.load %arg1[%c1_42, %c0_43, %c0_44, %c0_45] : memref<4x5x5x58xbf16, #tpu.memory_space<vmem>>, vector<1x5x5x58xbf16>
    %72 = vector.shape_cast %71 : vector<1x5x5x58xbf16> to vector<5x5x58xbf16>
    %73 = arith.extf %72 : vector<5x5x58xbf16> to vector<5x5x58xf32>
    %74 = vector.extract_strided_slice %73 {offsets = [1, 0, 0], sizes = [4, 4, 58], strides = [1, 1, 1]} : vector<5x5x58xf32> to vector<4x4x58xf32>
    %c7 = arith.constant 7 : index
    %c0_46 = arith.constant 0 : index
    %c0_47 = arith.constant 0 : index
    %75 = vector.load %arg2[%c7, %c0_46, %c0_47] : memref<9x1x58xf32, #tpu.memory_space<vmem>>, vector<1x1x58xf32>
    %76 = vector.shape_cast %75 : vector<1x1x58xf32> to vector<1x58xf32>
    %77 = vector.shape_cast %76 : vector<1x58xf32> to vector<1x1x58xf32>
    %78 = vector.broadcast %77 : vector<1x1x58xf32> to vector<4x4x58xf32>
    %79 = arith.mulf %74, %78 : vector<4x4x58xf32>
    %80 = arith.addf %70, %79 : vector<4x4x58xf32>
    %c0_48 = arith.constant 0 : index
    %c0_49 = arith.constant 0 : index
    %c0_50 = arith.constant 0 : index
    %c0_51 = arith.constant 0 : index
    %81 = vector.load %arg1[%c0_48, %c0_49, %c0_50, %c0_51] : memref<4x5x5x58xbf16, #tpu.memory_space<vmem>>, vector<1x5x5x58xbf16>
    %82 = vector.shape_cast %81 : vector<1x5x5x58xbf16> to vector<5x5x58xbf16>
    %83 = arith.extf %82 : vector<5x5x58xbf16> to vector<5x5x58xf32>
    %84 = vector.extract_strided_slice %83 {offsets = [1, 1, 0], sizes = [4, 4, 58], strides = [1, 1, 1]} : vector<5x5x58xf32> to vector<4x4x58xf32>
    %c8 = arith.constant 8 : index
    %c0_52 = arith.constant 0 : index
    %c0_53 = arith.constant 0 : index
    %85 = vector.load %arg2[%c8, %c0_52, %c0_53] : memref<9x1x58xf32, #tpu.memory_space<vmem>>, vector<1x1x58xf32>
    %86 = vector.shape_cast %85 : vector<1x1x58xf32> to vector<1x58xf32>
    %87 = vector.shape_cast %86 : vector<1x58xf32> to vector<1x1x58xf32>
    %88 = vector.broadcast %87 : vector<1x1x58xf32> to vector<4x4x58xf32>
    %89 = arith.mulf %84, %88 : vector<4x4x58xf32>
    %90 = arith.addf %80, %89 : vector<4x4x58xf32>
    %c0_54 = arith.constant 0 : index
    %c0_55 = arith.constant 0 : index
    %91 = vector.load %arg3[%c0_54, %c0_55] : memref<1x58xf32, #tpu.memory_space<vmem>>, vector<1x58xf32>
    %92 = vector.shape_cast %91 : vector<1x58xf32> to vector<1x1x58xf32>
    %93 = vector.broadcast %92 : vector<1x1x58xf32> to vector<4x4x58xf32>
    %94 = arith.addf %90, %93 : vector<4x4x58xf32>
    %95 = arith.truncf %94 : vector<4x4x58xf32> to vector<4x4x58xbf16>
    %c0_56 = arith.constant 0 : index
    %c0_57 = arith.constant 0 : index
    %c0_58 = arith.constant 0 : index
    %c0_59 = arith.constant 0 : index
    %96 = vector.load %arg4[%c0_56, %c0_57, %c0_58, %c0_59] : memref<1x4x4x58xbf16, #tpu.memory_space<vmem>>, vector<1x4x4x58xbf16>
    %97 = vector.shape_cast %96 : vector<1x4x4x58xbf16> to vector<4x4x58xbf16>
    %98 = vector.shape_cast %95 : vector<4x4x58xbf16> to vector<1x4x4x58xbf16>
    tpu.vector_store %arg4[%c0_56, %c0_57, %c0_58, %c0_59], %98 {strides = array<i32>} : memref<1x4x4x58xbf16, #tpu.memory_space<vmem>>, vector<1x4x4x58xbf16>,
    return
  }
  func.func @transform_0(%arg0: i32) -> (i32, i32, i32, i32) {
    %c0_i32 = arith.constant 0 : i32
    %c0_i32_0 = arith.constant 0 : i32
    %c0_i32_1 = arith.constant 0 : i32
    %c0_i32_2 = arith.constant 0 : i32
    return %arg0, %c0_i32, %c0_i32_0, %c0_i32_1 : i32, i32, i32, i32
  }
  func.func @transform_1(%arg0: i32) -> (i32, i32, i32) {
    %c0_i32 = arith.constant 0 : i32
    %c0_i32_0 = arith.constant 0 : i32
    %c0_i32_1 = arith.constant 0 : i32
    %c0_i32_2 = arith.constant 0 : i32
    return %c0_i32, %c0_i32_0, %c0_i32_1 : i32, i32, i32
  }
  func.func @transform_2(%arg0: i32) -> (i32, i32) {
    %c0_i32 = arith.constant 0 : i32
    %c0_i32_0 = arith.constant 0 : i32
    %c0_i32_1 = arith.constant 0 : i32
    return %c0_i32, %c0_i32_0 : i32, i32
  }
  func.func @transform_3(%arg0: i32) -> (i32, i32, i32, i32) {
    %c0_i32 = arith.constant 0 : i32
    %c0_i32_0 = arith.constant 0 : i32
    %c0_i32_1 = arith.constant 0 : i32
    %c0_i32_2 = arith.constant 0 : i32
    return %arg0, %c0_i32, %c0_i32_0, %c0_i32_1 : i32, i32, i32, i32
  }
}

module attributes {stable_mosaic.version = 11 : i64} {
  func.func @_matmul_bias_act_kernel(%arg0: i32, %arg1: memref<32x24xbf16, #tpu.memory_space<vmem>>, %arg2: memref<24x58xbf16, #tpu.memory_space<vmem>>, %arg3: memref<1x58xf32, #tpu.memory_space<vmem>>, %arg4: memref<32x58xbf16, #tpu.memory_space<vmem>>) attributes {dimension_semantics = [#tpu.dimension_semantics<parallel>], iteration_bounds = array<i64: 1>, scalar_prefetch = 0 : i64, scratch_operands = 0 : i64, tpu.core_type = #tpu.core_type<tc>, window_params = [{transform_indices = @transform_0, window_bounds = array<i64: 32, 24>}, {pipeline_mode = #tpu.pipeline_mode<synchronous>, transform_indices = @transform_1, window_bounds = array<i64: 24, 58>}, {pipeline_mode = #tpu.pipeline_mode<synchronous>, transform_indices = @transform_2, window_bounds = array<i64: 1, 58>}, {transform_indices = @transform_3, window_bounds = array<i64: 32, 58>}]} {
    %c0 = arith.constant 0 : index
    %c0_0 = arith.constant 0 : index
    %0 = vector.load %arg1[%c0, %c0_0] : memref<32x24xbf16, #tpu.memory_space<vmem>>, vector<32x24xbf16>
    %c0_1 = arith.constant 0 : index
    %c0_2 = arith.constant 0 : index
    %1 = vector.load %arg2[%c0_1, %c0_2] : memref<24x58xbf16, #tpu.memory_space<vmem>>, vector<24x58xbf16>
    %cst = arith.constant dense<0.000000e+00> : vector<32x58xf32>
    %2 = tpu.matmul %0, %1, %cst {dimension_numbers = #tpu.dot_dimension_numbers<[1], [0], [0], [1], [0, 0, 1, 1], [], []>} : vector<32x24xbf16>, vector<24x58xbf16>, vector<32x58xf32> -> vector<32x58xf32>
    %c0_3 = arith.constant 0 : index
    %c0_4 = arith.constant 0 : index
    %3 = vector.load %arg3[%c0_3, %c0_4] : memref<1x58xf32, #tpu.memory_space<vmem>>, vector<1x58xf32>
    %4 = vector.broadcast %3 : vector<1x58xf32> to vector<32x58xf32>
    %5 = arith.addf %2, %4 : vector<32x58xf32>
    %cst_5 = arith.constant 0.000000e+00 : f32
    %6 = vector.broadcast %cst_5 : f32 to vector<32x58xf32>
    %7 = arith.maximumf %5, %6 : vector<32x58xf32>
    %8 = arith.truncf %7 : vector<32x58xf32> to vector<32x58xbf16>
    %c0_6 = arith.constant 0 : index
    %c0_7 = arith.constant 0 : index
    %9 = vector.load %arg4[%c0_6, %c0_7] : memref<32x58xbf16, #tpu.memory_space<vmem>>, vector<32x58xbf16>
    tpu.vector_store %arg4[%c0_6, %c0_7], %8 {strides = array<i32>} : memref<32x58xbf16, #tpu.memory_space<vmem>>, vector<32x58xbf16>,
    return
  }
  func.func @transform_0(%arg0: i32) -> (i32, i32) {
    %c0_i32 = arith.constant 0 : i32
    %c0_i32_0 = arith.constant 0 : i32
    return %arg0, %c0_i32 : i32, i32
  }
  func.func @transform_1(%arg0: i32) -> (i32, i32) {
    %c0_i32 = arith.constant 0 : i32
    %c0_i32_0 = arith.constant 0 : i32
    %c0_i32_1 = arith.constant 0 : i32
    return %c0_i32, %c0_i32_0 : i32, i32
  }
  func.func @transform_2(%arg0: i32) -> (i32, i32) {
    %c0_i32 = arith.constant 0 : i32
    %c0_i32_0 = arith.constant 0 : i32
    %c0_i32_1 = arith.constant 0 : i32
    return %c0_i32, %c0_i32_0 : i32, i32
  }
  func.func @transform_3(%arg0: i32) -> (i32, i32) {
    %c0_i32 = arith.constant 0 : i32
    %c0_i32_0 = arith.constant 0 : i32
    return %arg0, %c0_i32 : i32, i32
  }
}

module attributes {stable_mosaic.version = 11 : i64} {
  func.func @_dwconv3x3_s2_kernel(%arg0: i32, %arg1: memref<4x5x5x24xbf16, #tpu.memory_space<vmem>>, %arg2: memref<9x1x24xf32, #tpu.memory_space<vmem>>, %arg3: memref<1x24xf32, #tpu.memory_space<vmem>>, %arg4: memref<1x4x4x24xbf16, #tpu.memory_space<vmem>>) attributes {dimension_semantics = [#tpu.dimension_semantics<parallel>], iteration_bounds = array<i64: 2>, scalar_prefetch = 0 : i64, scratch_operands = 0 : i64, tpu.core_type = #tpu.core_type<tc>, window_params = [{transform_indices = @transform_0, window_bounds = array<i64: 4, 5, 5, 24>}, {pipeline_mode = #tpu.pipeline_mode<synchronous>, transform_indices = @transform_1, window_bounds = array<i64: 9, 1, 24>}, {pipeline_mode = #tpu.pipeline_mode<synchronous>, transform_indices = @transform_2, window_bounds = array<i64: 1, 24>}, {transform_indices = @transform_3, window_bounds = array<i64: 1, 4, 4, 24>}]} {
    %cst = arith.constant 0.000000e+00 : f32
    %0 = vector.broadcast %cst : f32 to vector<4x4x24xf32>
    %c0 = arith.constant 0 : index
    %c0_0 = arith.constant 0 : index
    %c0_1 = arith.constant 0 : index
    %c0_2 = arith.constant 0 : index
    %1 = vector.load %arg1[%c0, %c0_0, %c0_1, %c0_2] : memref<4x5x5x24xbf16, #tpu.memory_space<vmem>>, vector<1x5x5x24xbf16>
    %2 = vector.shape_cast %1 : vector<1x5x5x24xbf16> to vector<5x5x24xbf16>
    %3 = arith.extf %2 : vector<5x5x24xbf16> to vector<5x5x24xf32>
    %4 = vector.extract_strided_slice %3 {offsets = [0, 0, 0], sizes = [4, 4, 24], strides = [1, 1, 1]} : vector<5x5x24xf32> to vector<4x4x24xf32>
    %c0_3 = arith.constant 0 : index
    %c0_4 = arith.constant 0 : index
    %c0_5 = arith.constant 0 : index
    %5 = vector.load %arg2[%c0_3, %c0_4, %c0_5] : memref<9x1x24xf32, #tpu.memory_space<vmem>>, vector<1x1x24xf32>
    %6 = vector.shape_cast %5 : vector<1x1x24xf32> to vector<1x24xf32>
    %7 = vector.shape_cast %6 : vector<1x24xf32> to vector<1x1x24xf32>
    %8 = vector.broadcast %7 : vector<1x1x24xf32> to vector<4x4x24xf32>
    %9 = arith.mulf %4, %8 : vector<4x4x24xf32>
    %10 = arith.addf %0, %9 : vector<4x4x24xf32>
    %c1 = arith.constant 1 : index
    %c0_6 = arith.constant 0 : index
    %c0_7 = arith.constant 0 : index
    %c0_8 = arith.constant 0 : index
    %11 = vector.load %arg1[%c1, %c0_6, %c0_7, %c0_8] : memref<4x5x5x24xbf16, #tpu.memory_space<vmem>>, vector<1x5x5x24xbf16>
    %12 = vector.shape_cast %11 : vector<1x5x5x24xbf16> to vector<5x5x24xbf16>
    %13 = arith.extf %12 : vector<5x5x24xbf16> to vector<5x5x24xf32>
    %14 = vector.extract_strided_slice %13 {offsets = [0, 0, 0], sizes = [4, 4, 24], strides = [1, 1, 1]} : vector<5x5x24xf32> to vector<4x4x24xf32>
    %c1_9 = arith.constant 1 : index
    %c0_10 = arith.constant 0 : index
    %c0_11 = arith.constant 0 : index
    %15 = vector.load %arg2[%c1_9, %c0_10, %c0_11] : memref<9x1x24xf32, #tpu.memory_space<vmem>>, vector<1x1x24xf32>
    %16 = vector.shape_cast %15 : vector<1x1x24xf32> to vector<1x24xf32>
    %17 = vector.shape_cast %16 : vector<1x24xf32> to vector<1x1x24xf32>
    %18 = vector.broadcast %17 : vector<1x1x24xf32> to vector<4x4x24xf32>
    %19 = arith.mulf %14, %18 : vector<4x4x24xf32>
    %20 = arith.addf %10, %19 : vector<4x4x24xf32>
    %c0_12 = arith.constant 0 : index
    %c0_13 = arith.constant 0 : index
    %c0_14 = arith.constant 0 : index
    %c0_15 = arith.constant 0 : index
    %21 = vector.load %arg1[%c0_12, %c0_13, %c0_14, %c0_15] : memref<4x5x5x24xbf16, #tpu.memory_space<vmem>>, vector<1x5x5x24xbf16>
    %22 = vector.shape_cast %21 : vector<1x5x5x24xbf16> to vector<5x5x24xbf16>
    %23 = arith.extf %22 : vector<5x5x24xbf16> to vector<5x5x24xf32>
    %24 = vector.extract_strided_slice %23 {offsets = [0, 1, 0], sizes = [4, 4, 24], strides = [1, 1, 1]} : vector<5x5x24xf32> to vector<4x4x24xf32>
    %c2 = arith.constant 2 : index
    %c0_16 = arith.constant 0 : index
    %c0_17 = arith.constant 0 : index
    %25 = vector.load %arg2[%c2, %c0_16, %c0_17] : memref<9x1x24xf32, #tpu.memory_space<vmem>>, vector<1x1x24xf32>
    %26 = vector.shape_cast %25 : vector<1x1x24xf32> to vector<1x24xf32>
    %27 = vector.shape_cast %26 : vector<1x24xf32> to vector<1x1x24xf32>
    %28 = vector.broadcast %27 : vector<1x1x24xf32> to vector<4x4x24xf32>
    %29 = arith.mulf %24, %28 : vector<4x4x24xf32>
    %30 = arith.addf %20, %29 : vector<4x4x24xf32>
    %c2_18 = arith.constant 2 : index
    %c0_19 = arith.constant 0 : index
    %c0_20 = arith.constant 0 : index
    %c0_21 = arith.constant 0 : index
    %31 = vector.load %arg1[%c2_18, %c0_19, %c0_20, %c0_21] : memref<4x5x5x24xbf16, #tpu.memory_space<vmem>>, vector<1x5x5x24xbf16>
    %32 = vector.shape_cast %31 : vector<1x5x5x24xbf16> to vector<5x5x24xbf16>
    %33 = arith.extf %32 : vector<5x5x24xbf16> to vector<5x5x24xf32>
    %34 = vector.extract_strided_slice %33 {offsets = [0, 0, 0], sizes = [4, 4, 24], strides = [1, 1, 1]} : vector<5x5x24xf32> to vector<4x4x24xf32>
    %c3 = arith.constant 3 : index
    %c0_22 = arith.constant 0 : index
    %c0_23 = arith.constant 0 : index
    %35 = vector.load %arg2[%c3, %c0_22, %c0_23] : memref<9x1x24xf32, #tpu.memory_space<vmem>>, vector<1x1x24xf32>
    %36 = vector.shape_cast %35 : vector<1x1x24xf32> to vector<1x24xf32>
    %37 = vector.shape_cast %36 : vector<1x24xf32> to vector<1x1x24xf32>
    %38 = vector.broadcast %37 : vector<1x1x24xf32> to vector<4x4x24xf32>
    %39 = arith.mulf %34, %38 : vector<4x4x24xf32>
    %40 = arith.addf %30, %39 : vector<4x4x24xf32>
    %c3_24 = arith.constant 3 : index
    %c0_25 = arith.constant 0 : index
    %c0_26 = arith.constant 0 : index
    %c0_27 = arith.constant 0 : index
    %41 = vector.load %arg1[%c3_24, %c0_25, %c0_26, %c0_27] : memref<4x5x5x24xbf16, #tpu.memory_space<vmem>>, vector<1x5x5x24xbf16>
    %42 = vector.shape_cast %41 : vector<1x5x5x24xbf16> to vector<5x5x24xbf16>
    %43 = arith.extf %42 : vector<5x5x24xbf16> to vector<5x5x24xf32>
    %44 = vector.extract_strided_slice %43 {offsets = [0, 0, 0], sizes = [4, 4, 24], strides = [1, 1, 1]} : vector<5x5x24xf32> to vector<4x4x24xf32>
    %c4 = arith.constant 4 : index
    %c0_28 = arith.constant 0 : index
    %c0_29 = arith.constant 0 : index
    %45 = vector.load %arg2[%c4, %c0_28, %c0_29] : memref<9x1x24xf32, #tpu.memory_space<vmem>>, vector<1x1x24xf32>
    %46 = vector.shape_cast %45 : vector<1x1x24xf32> to vector<1x24xf32>
    %47 = vector.shape_cast %46 : vector<1x24xf32> to vector<1x1x24xf32>
    %48 = vector.broadcast %47 : vector<1x1x24xf32> to vector<4x4x24xf32>
    %49 = arith.mulf %44, %48 : vector<4x4x24xf32>
    %50 = arith.addf %40, %49 : vector<4x4x24xf32>
    %c2_30 = arith.constant 2 : index
    %c0_31 = arith.constant 0 : index
    %c0_32 = arith.constant 0 : index
    %c0_33 = arith.constant 0 : index
    %51 = vector.load %arg1[%c2_30, %c0_31, %c0_32, %c0_33] : memref<4x5x5x24xbf16, #tpu.memory_space<vmem>>, vector<1x5x5x24xbf16>
    %52 = vector.shape_cast %51 : vector<1x5x5x24xbf16> to vector<5x5x24xbf16>
    %53 = arith.extf %52 : vector<5x5x24xbf16> to vector<5x5x24xf32>
    %54 = vector.extract_strided_slice %53 {offsets = [0, 1, 0], sizes = [4, 4, 24], strides = [1, 1, 1]} : vector<5x5x24xf32> to vector<4x4x24xf32>
    %c5 = arith.constant 5 : index
    %c0_34 = arith.constant 0 : index
    %c0_35 = arith.constant 0 : index
    %55 = vector.load %arg2[%c5, %c0_34, %c0_35] : memref<9x1x24xf32, #tpu.memory_space<vmem>>, vector<1x1x24xf32>
    %56 = vector.shape_cast %55 : vector<1x1x24xf32> to vector<1x24xf32>
    %57 = vector.shape_cast %56 : vector<1x24xf32> to vector<1x1x24xf32>
    %58 = vector.broadcast %57 : vector<1x1x24xf32> to vector<4x4x24xf32>
    %59 = arith.mulf %54, %58 : vector<4x4x24xf32>
    %60 = arith.addf %50, %59 : vector<4x4x24xf32>
    %c0_36 = arith.constant 0 : index
    %c0_37 = arith.constant 0 : index
    %c0_38 = arith.constant 0 : index
    %c0_39 = arith.constant 0 : index
    %61 = vector.load %arg1[%c0_36, %c0_37, %c0_38, %c0_39] : memref<4x5x5x24xbf16, #tpu.memory_space<vmem>>, vector<1x5x5x24xbf16>
    %62 = vector.shape_cast %61 : vector<1x5x5x24xbf16> to vector<5x5x24xbf16>
    %63 = arith.extf %62 : vector<5x5x24xbf16> to vector<5x5x24xf32>
    %64 = vector.extract_strided_slice %63 {offsets = [1, 0, 0], sizes = [4, 4, 24], strides = [1, 1, 1]} : vector<5x5x24xf32> to vector<4x4x24xf32>
    %c6 = arith.constant 6 : index
    %c0_40 = arith.constant 0 : index
    %c0_41 = arith.constant 0 : index
    %65 = vector.load %arg2[%c6, %c0_40, %c0_41] : memref<9x1x24xf32, #tpu.memory_space<vmem>>, vector<1x1x24xf32>
    %66 = vector.shape_cast %65 : vector<1x1x24xf32> to vector<1x24xf32>
    %67 = vector.shape_cast %66 : vector<1x24xf32> to vector<1x1x24xf32>
    %68 = vector.broadcast %67 : vector<1x1x24xf32> to vector<4x4x24xf32>
    %69 = arith.mulf %64, %68 : vector<4x4x24xf32>
    %70 = arith.addf %60, %69 : vector<4x4x24xf32>
    %c1_42 = arith.constant 1 : index
    %c0_43 = arith.constant 0 : index
    %c0_44 = arith.constant 0 : index
    %c0_45 = arith.constant 0 : index
    %71 = vector.load %arg1[%c1_42, %c0_43, %c0_44, %c0_45] : memref<4x5x5x24xbf16, #tpu.memory_space<vmem>>, vector<1x5x5x24xbf16>
    %72 = vector.shape_cast %71 : vector<1x5x5x24xbf16> to vector<5x5x24xbf16>
    %73 = arith.extf %72 : vector<5x5x24xbf16> to vector<5x5x24xf32>
    %74 = vector.extract_strided_slice %73 {offsets = [1, 0, 0], sizes = [4, 4, 24], strides = [1, 1, 1]} : vector<5x5x24xf32> to vector<4x4x24xf32>
    %c7 = arith.constant 7 : index
    %c0_46 = arith.constant 0 : index
    %c0_47 = arith.constant 0 : index
    %75 = vector.load %arg2[%c7, %c0_46, %c0_47] : memref<9x1x24xf32, #tpu.memory_space<vmem>>, vector<1x1x24xf32>
    %76 = vector.shape_cast %75 : vector<1x1x24xf32> to vector<1x24xf32>
    %77 = vector.shape_cast %76 : vector<1x24xf32> to vector<1x1x24xf32>
    %78 = vector.broadcast %77 : vector<1x1x24xf32> to vector<4x4x24xf32>
    %79 = arith.mulf %74, %78 : vector<4x4x24xf32>
    %80 = arith.addf %70, %79 : vector<4x4x24xf32>
    %c0_48 = arith.constant 0 : index
    %c0_49 = arith.constant 0 : index
    %c0_50 = arith.constant 0 : index
    %c0_51 = arith.constant 0 : index
    %81 = vector.load %arg1[%c0_48, %c0_49, %c0_50, %c0_51] : memref<4x5x5x24xbf16, #tpu.memory_space<vmem>>, vector<1x5x5x24xbf16>
    %82 = vector.shape_cast %81 : vector<1x5x5x24xbf16> to vector<5x5x24xbf16>
    %83 = arith.extf %82 : vector<5x5x24xbf16> to vector<5x5x24xf32>
    %84 = vector.extract_strided_slice %83 {offsets = [1, 1, 0], sizes = [4, 4, 24], strides = [1, 1, 1]} : vector<5x5x24xf32> to vector<4x4x24xf32>
    %c8 = arith.constant 8 : index
    %c0_52 = arith.constant 0 : index
    %c0_53 = arith.constant 0 : index
    %85 = vector.load %arg2[%c8, %c0_52, %c0_53] : memref<9x1x24xf32, #tpu.memory_space<vmem>>, vector<1x1x24xf32>
    %86 = vector.shape_cast %85 : vector<1x1x24xf32> to vector<1x24xf32>
    %87 = vector.shape_cast %86 : vector<1x24xf32> to vector<1x1x24xf32>
    %88 = vector.broadcast %87 : vector<1x1x24xf32> to vector<4x4x24xf32>
    %89 = arith.mulf %84, %88 : vector<4x4x24xf32>
    %90 = arith.addf %80, %89 : vector<4x4x24xf32>
    %c0_54 = arith.constant 0 : index
    %c0_55 = arith.constant 0 : index
    %91 = vector.load %arg3[%c0_54, %c0_55] : memref<1x24xf32, #tpu.memory_space<vmem>>, vector<1x24xf32>
    %92 = vector.shape_cast %91 : vector<1x24xf32> to vector<1x1x24xf32>
    %93 = vector.broadcast %92 : vector<1x1x24xf32> to vector<4x4x24xf32>
    %94 = arith.addf %90, %93 : vector<4x4x24xf32>
    %95 = arith.truncf %94 : vector<4x4x24xf32> to vector<4x4x24xbf16>
    %c0_56 = arith.constant 0 : index
    %c0_57 = arith.constant 0 : index
    %c0_58 = arith.constant 0 : index
    %c0_59 = arith.constant 0 : index
    %96 = vector.load %arg4[%c0_56, %c0_57, %c0_58, %c0_59] : memref<1x4x4x24xbf16, #tpu.memory_space<vmem>>, vector<1x4x4x24xbf16>
    %97 = vector.shape_cast %96 : vector<1x4x4x24xbf16> to vector<4x4x24xbf16>
    %98 = vector.shape_cast %95 : vector<4x4x24xbf16> to vector<1x4x4x24xbf16>
    tpu.vector_store %arg4[%c0_56, %c0_57, %c0_58, %c0_59], %98 {strides = array<i32>} : memref<1x4x4x24xbf16, #tpu.memory_space<vmem>>, vector<1x4x4x24xbf16>,
    return
  }
  func.func @transform_0(%arg0: i32) -> (i32, i32, i32, i32) {
    %c0_i32 = arith.constant 0 : i32
    %c0_i32_0 = arith.constant 0 : i32
    %c0_i32_1 = arith.constant 0 : i32
    %c0_i32_2 = arith.constant 0 : i32
    return %arg0, %c0_i32, %c0_i32_0, %c0_i32_1 : i32, i32, i32, i32
  }
  func.func @transform_1(%arg0: i32) -> (i32, i32, i32) {
    %c0_i32 = arith.constant 0 : i32
    %c0_i32_0 = arith.constant 0 : i32
    %c0_i32_1 = arith.constant 0 : i32
    %c0_i32_2 = arith.constant 0 : i32
    return %c0_i32, %c0_i32_0, %c0_i32_1 : i32, i32, i32
  }
  func.func @transform_2(%arg0: i32) -> (i32, i32) {
    %c0_i32 = arith.constant 0 : i32
    %c0_i32_0 = arith.constant 0 : i32
    %c0_i32_1 = arith.constant 0 : i32
    return %c0_i32, %c0_i32_0 : i32, i32
  }
  func.func @transform_3(%arg0: i32) -> (i32, i32, i32, i32) {
    %c0_i32 = arith.constant 0 : i32
    %c0_i32_0 = arith.constant 0 : i32
    %c0_i32_1 = arith.constant 0 : i32
    %c0_i32_2 = arith.constant 0 : i32
    return %arg0, %c0_i32, %c0_i32_0, %c0_i32_1 : i32, i32, i32, i32
  }
}

module attributes {stable_mosaic.version = 11 : i64} {
  func.func @_dwconv3x3_s1_kernel(%arg0: i32, %arg1: memref<1x6x6x58xbf16, #tpu.memory_space<vmem>>, %arg2: memref<9x1x58xf32, #tpu.memory_space<vmem>>, %arg3: memref<1x58xf32, #tpu.memory_space<vmem>>, %arg4: memref<1x4x4x58xbf16, #tpu.memory_space<vmem>>) attributes {dimension_semantics = [#tpu.dimension_semantics<parallel>], iteration_bounds = array<i64: 2>, scalar_prefetch = 0 : i64, scratch_operands = 0 : i64, tpu.core_type = #tpu.core_type<tc>, window_params = [{transform_indices = @transform_0, window_bounds = array<i64: 1, 6, 6, 58>}, {pipeline_mode = #tpu.pipeline_mode<synchronous>, transform_indices = @transform_1, window_bounds = array<i64: 9, 1, 58>}, {pipeline_mode = #tpu.pipeline_mode<synchronous>, transform_indices = @transform_2, window_bounds = array<i64: 1, 58>}, {transform_indices = @transform_3, window_bounds = array<i64: 1, 4, 4, 58>}]} {
    %c0 = arith.constant 0 : index
    %c0_0 = arith.constant 0 : index
    %c0_1 = arith.constant 0 : index
    %c0_2 = arith.constant 0 : index
    %0 = vector.load %arg1[%c0, %c0_0, %c0_1, %c0_2] : memref<1x6x6x58xbf16, #tpu.memory_space<vmem>>, vector<1x6x6x58xbf16>
    %1 = vector.shape_cast %0 : vector<1x6x6x58xbf16> to vector<6x6x58xbf16>
    %2 = arith.extf %1 : vector<6x6x58xbf16> to vector<6x6x58xf32>
    %cst = arith.constant 0.000000e+00 : f32
    %3 = vector.broadcast %cst : f32 to vector<4x4x58xf32>
    %4 = vector.extract_strided_slice %2 {offsets = [0, 0, 0], sizes = [4, 4, 58], strides = [1, 1, 1]} : vector<6x6x58xf32> to vector<4x4x58xf32>
    %c0_3 = arith.constant 0 : index
    %c0_4 = arith.constant 0 : index
    %c0_5 = arith.constant 0 : index
    %5 = vector.load %arg2[%c0_3, %c0_4, %c0_5] : memref<9x1x58xf32, #tpu.memory_space<vmem>>, vector<1x1x58xf32>
    %6 = vector.shape_cast %5 : vector<1x1x58xf32> to vector<1x58xf32>
    %7 = vector.shape_cast %6 : vector<1x58xf32> to vector<1x1x58xf32>
    %8 = vector.broadcast %7 : vector<1x1x58xf32> to vector<4x4x58xf32>
    %9 = arith.mulf %4, %8 : vector<4x4x58xf32>
    %10 = arith.addf %3, %9 : vector<4x4x58xf32>
    %11 = vector.extract_strided_slice %2 {offsets = [0, 1, 0], sizes = [4, 4, 58], strides = [1, 1, 1]} : vector<6x6x58xf32> to vector<4x4x58xf32>
    %c1 = arith.constant 1 : index
    %c0_6 = arith.constant 0 : index
    %c0_7 = arith.constant 0 : index
    %12 = vector.load %arg2[%c1, %c0_6, %c0_7] : memref<9x1x58xf32, #tpu.memory_space<vmem>>, vector<1x1x58xf32>
    %13 = vector.shape_cast %12 : vector<1x1x58xf32> to vector<1x58xf32>
    %14 = vector.shape_cast %13 : vector<1x58xf32> to vector<1x1x58xf32>
    %15 = vector.broadcast %14 : vector<1x1x58xf32> to vector<4x4x58xf32>
    %16 = arith.mulf %11, %15 : vector<4x4x58xf32>
    %17 = arith.addf %10, %16 : vector<4x4x58xf32>
    %18 = vector.extract_strided_slice %2 {offsets = [0, 2, 0], sizes = [4, 4, 58], strides = [1, 1, 1]} : vector<6x6x58xf32> to vector<4x4x58xf32>
    %c2 = arith.constant 2 : index
    %c0_8 = arith.constant 0 : index
    %c0_9 = arith.constant 0 : index
    %19 = vector.load %arg2[%c2, %c0_8, %c0_9] : memref<9x1x58xf32, #tpu.memory_space<vmem>>, vector<1x1x58xf32>
    %20 = vector.shape_cast %19 : vector<1x1x58xf32> to vector<1x58xf32>
    %21 = vector.shape_cast %20 : vector<1x58xf32> to vector<1x1x58xf32>
    %22 = vector.broadcast %21 : vector<1x1x58xf32> to vector<4x4x58xf32>
    %23 = arith.mulf %18, %22 : vector<4x4x58xf32>
    %24 = arith.addf %17, %23 : vector<4x4x58xf32>
    %25 = vector.extract_strided_slice %2 {offsets = [1, 0, 0], sizes = [4, 4, 58], strides = [1, 1, 1]} : vector<6x6x58xf32> to vector<4x4x58xf32>
    %c3 = arith.constant 3 : index
    %c0_10 = arith.constant 0 : index
    %c0_11 = arith.constant 0 : index
    %26 = vector.load %arg2[%c3, %c0_10, %c0_11] : memref<9x1x58xf32, #tpu.memory_space<vmem>>, vector<1x1x58xf32>
    %27 = vector.shape_cast %26 : vector<1x1x58xf32> to vector<1x58xf32>
    %28 = vector.shape_cast %27 : vector<1x58xf32> to vector<1x1x58xf32>
    %29 = vector.broadcast %28 : vector<1x1x58xf32> to vector<4x4x58xf32>
    %30 = arith.mulf %25, %29 : vector<4x4x58xf32>
    %31 = arith.addf %24, %30 : vector<4x4x58xf32>
    %32 = vector.extract_strided_slice %2 {offsets = [1, 1, 0], sizes = [4, 4, 58], strides = [1, 1, 1]} : vector<6x6x58xf32> to vector<4x4x58xf32>
    %c4 = arith.constant 4 : index
    %c0_12 = arith.constant 0 : index
    %c0_13 = arith.constant 0 : index
    %33 = vector.load %arg2[%c4, %c0_12, %c0_13] : memref<9x1x58xf32, #tpu.memory_space<vmem>>, vector<1x1x58xf32>
    %34 = vector.shape_cast %33 : vector<1x1x58xf32> to vector<1x58xf32>
    %35 = vector.shape_cast %34 : vector<1x58xf32> to vector<1x1x58xf32>
    %36 = vector.broadcast %35 : vector<1x1x58xf32> to vector<4x4x58xf32>
    %37 = arith.mulf %32, %36 : vector<4x4x58xf32>
    %38 = arith.addf %31, %37 : vector<4x4x58xf32>
    %39 = vector.extract_strided_slice %2 {offsets = [1, 2, 0], sizes = [4, 4, 58], strides = [1, 1, 1]} : vector<6x6x58xf32> to vector<4x4x58xf32>
    %c5 = arith.constant 5 : index
    %c0_14 = arith.constant 0 : index
    %c0_15 = arith.constant 0 : index
    %40 = vector.load %arg2[%c5, %c0_14, %c0_15] : memref<9x1x58xf32, #tpu.memory_space<vmem>>, vector<1x1x58xf32>
    %41 = vector.shape_cast %40 : vector<1x1x58xf32> to vector<1x58xf32>
    %42 = vector.shape_cast %41 : vector<1x58xf32> to vector<1x1x58xf32>
    %43 = vector.broadcast %42 : vector<1x1x58xf32> to vector<4x4x58xf32>
    %44 = arith.mulf %39, %43 : vector<4x4x58xf32>
    %45 = arith.addf %38, %44 : vector<4x4x58xf32>
    %46 = vector.extract_strided_slice %2 {offsets = [2, 0, 0], sizes = [4, 4, 58], strides = [1, 1, 1]} : vector<6x6x58xf32> to vector<4x4x58xf32>
    %c6 = arith.constant 6 : index
    %c0_16 = arith.constant 0 : index
    %c0_17 = arith.constant 0 : index
    %47 = vector.load %arg2[%c6, %c0_16, %c0_17] : memref<9x1x58xf32, #tpu.memory_space<vmem>>, vector<1x1x58xf32>
    %48 = vector.shape_cast %47 : vector<1x1x58xf32> to vector<1x58xf32>
    %49 = vector.shape_cast %48 : vector<1x58xf32> to vector<1x1x58xf32>
    %50 = vector.broadcast %49 : vector<1x1x58xf32> to vector<4x4x58xf32>
    %51 = arith.mulf %46, %50 : vector<4x4x58xf32>
    %52 = arith.addf %45, %51 : vector<4x4x58xf32>
    %53 = vector.extract_strided_slice %2 {offsets = [2, 1, 0], sizes = [4, 4, 58], strides = [1, 1, 1]} : vector<6x6x58xf32> to vector<4x4x58xf32>
    %c7 = arith.constant 7 : index
    %c0_18 = arith.constant 0 : index
    %c0_19 = arith.constant 0 : index
    %54 = vector.load %arg2[%c7, %c0_18, %c0_19] : memref<9x1x58xf32, #tpu.memory_space<vmem>>, vector<1x1x58xf32>
    %55 = vector.shape_cast %54 : vector<1x1x58xf32> to vector<1x58xf32>
    %56 = vector.shape_cast %55 : vector<1x58xf32> to vector<1x1x58xf32>
    %57 = vector.broadcast %56 : vector<1x1x58xf32> to vector<4x4x58xf32>
    %58 = arith.mulf %53, %57 : vector<4x4x58xf32>
    %59 = arith.addf %52, %58 : vector<4x4x58xf32>
    %60 = vector.extract_strided_slice %2 {offsets = [2, 2, 0], sizes = [4, 4, 58], strides = [1, 1, 1]} : vector<6x6x58xf32> to vector<4x4x58xf32>
    %c8 = arith.constant 8 : index
    %c0_20 = arith.constant 0 : index
    %c0_21 = arith.constant 0 : index
    %61 = vector.load %arg2[%c8, %c0_20, %c0_21] : memref<9x1x58xf32, #tpu.memory_space<vmem>>, vector<1x1x58xf32>
    %62 = vector.shape_cast %61 : vector<1x1x58xf32> to vector<1x58xf32>
    %63 = vector.shape_cast %62 : vector<1x58xf32> to vector<1x1x58xf32>
    %64 = vector.broadcast %63 : vector<1x1x58xf32> to vector<4x4x58xf32>
    %65 = arith.mulf %60, %64 : vector<4x4x58xf32>
    %66 = arith.addf %59, %65 : vector<4x4x58xf32>
    %c0_22 = arith.constant 0 : index
    %c0_23 = arith.constant 0 : index
    %67 = vector.load %arg3[%c0_22, %c0_23] : memref<1x58xf32, #tpu.memory_space<vmem>>, vector<1x58xf32>
    %68 = vector.shape_cast %67 : vector<1x58xf32> to vector<1x1x58xf32>
    %69 = vector.broadcast %68 : vector<1x1x58xf32> to vector<4x4x58xf32>
    %70 = arith.addf %66, %69 : vector<4x4x58xf32>
    %71 = arith.truncf %70 : vector<4x4x58xf32> to vector<4x4x58xbf16>
    %c0_24 = arith.constant 0 : index
    %c0_25 = arith.constant 0 : index
    %c0_26 = arith.constant 0 : index
    %c0_27 = arith.constant 0 : index
    %72 = vector.load %arg4[%c0_24, %c0_25, %c0_26, %c0_27] : memref<1x4x4x58xbf16, #tpu.memory_space<vmem>>, vector<1x4x4x58xbf16>
    %73 = vector.shape_cast %72 : vector<1x4x4x58xbf16> to vector<4x4x58xbf16>
    %74 = vector.shape_cast %71 : vector<4x4x58xbf16> to vector<1x4x4x58xbf16>
    tpu.vector_store %arg4[%c0_24, %c0_25, %c0_26, %c0_27], %74 {strides = array<i32>} : memref<1x4x4x58xbf16, #tpu.memory_space<vmem>>, vector<1x4x4x58xbf16>,
    return
  }
  func.func @transform_0(%arg0: i32) -> (i32, i32, i32, i32) {
    %c0_i32 = arith.constant 0 : i32
    %c0_i32_0 = arith.constant 0 : i32
    %c0_i32_1 = arith.constant 0 : i32
    %c0_i32_2 = arith.constant 0 : i32
    return %arg0, %c0_i32, %c0_i32_0, %c0_i32_1 : i32, i32, i32, i32
  }
  func.func @transform_1(%arg0: i32) -> (i32, i32, i32) {
    %c0_i32 = arith.constant 0 : i32
    %c0_i32_0 = arith.constant 0 : i32
    %c0_i32_1 = arith.constant 0 : i32
    %c0_i32_2 = arith.constant 0 : i32
    return %c0_i32, %c0_i32_0, %c0_i32_1 : i32, i32, i32
  }
  func.func @transform_2(%arg0: i32) -> (i32, i32) {
    %c0_i32 = arith.constant 0 : i32
    %c0_i32_0 = arith.constant 0 : i32
    %c0_i32_1 = arith.constant 0 : i32
    return %c0_i32, %c0_i32_0 : i32, i32
  }
  func.func @transform_3(%arg0: i32) -> (i32, i32, i32, i32) {
    %c0_i32 = arith.constant 0 : i32
    %c0_i32_0 = arith.constant 0 : i32
    %c0_i32_1 = arith.constant 0 : i32
    %c0_i32_2 = arith.constant 0 : i32
    return %arg0, %c0_i32, %c0_i32_0, %c0_i32_1 : i32, i32, i32, i32
  }
}

module attributes {stable_mosaic.version = 11 : i64} {
  func.func @_matmul_bias_act_kernel(%arg0: i32, %arg1: memref<32x116xbf16, #tpu.memory_space<vmem>>, %arg2: memref<116x116xbf16, #tpu.memory_space<vmem>>, %arg3: memref<1x116xf32, #tpu.memory_space<vmem>>, %arg4: memref<32x116xbf16, #tpu.memory_space<vmem>>) attributes {dimension_semantics = [#tpu.dimension_semantics<parallel>], iteration_bounds = array<i64: 1>, scalar_prefetch = 0 : i64, scratch_operands = 0 : i64, tpu.core_type = #tpu.core_type<tc>, window_params = [{transform_indices = @transform_0, window_bounds = array<i64: 32, 116>}, {pipeline_mode = #tpu.pipeline_mode<synchronous>, transform_indices = @transform_1, window_bounds = array<i64: 116, 116>}, {pipeline_mode = #tpu.pipeline_mode<synchronous>, transform_indices = @transform_2, window_bounds = array<i64: 1, 116>}, {transform_indices = @transform_3, window_bounds = array<i64: 32, 116>}]} {
    %c0 = arith.constant 0 : index
    %c0_0 = arith.constant 0 : index
    %0 = vector.load %arg1[%c0, %c0_0] : memref<32x116xbf16, #tpu.memory_space<vmem>>, vector<32x116xbf16>
    %c0_1 = arith.constant 0 : index
    %c0_2 = arith.constant 0 : index
    %1 = vector.load %arg2[%c0_1, %c0_2] : memref<116x116xbf16, #tpu.memory_space<vmem>>, vector<116x116xbf16>
    %cst = arith.constant dense<0.000000e+00> : vector<32x116xf32>
    %2 = tpu.matmul %0, %1, %cst {dimension_numbers = #tpu.dot_dimension_numbers<[1], [0], [0], [1], [0, 0, 1, 1], [], []>} : vector<32x116xbf16>, vector<116x116xbf16>, vector<32x116xf32> -> vector<32x116xf32>
    %c0_3 = arith.constant 0 : index
    %c0_4 = arith.constant 0 : index
    %3 = vector.load %arg3[%c0_3, %c0_4] : memref<1x116xf32, #tpu.memory_space<vmem>>, vector<1x116xf32>
    %4 = vector.broadcast %3 : vector<1x116xf32> to vector<32x116xf32>
    %5 = arith.addf %2, %4 : vector<32x116xf32>
    %cst_5 = arith.constant 0.000000e+00 : f32
    %6 = vector.broadcast %cst_5 : f32 to vector<32x116xf32>
    %7 = arith.maximumf %5, %6 : vector<32x116xf32>
    %8 = arith.truncf %7 : vector<32x116xf32> to vector<32x116xbf16>
    %c0_6 = arith.constant 0 : index
    %c0_7 = arith.constant 0 : index
    %9 = vector.load %arg4[%c0_6, %c0_7] : memref<32x116xbf16, #tpu.memory_space<vmem>>, vector<32x116xbf16>
    tpu.vector_store %arg4[%c0_6, %c0_7], %8 {strides = array<i32>} : memref<32x116xbf16, #tpu.memory_space<vmem>>, vector<32x116xbf16>,
    return
  }
  func.func @transform_0(%arg0: i32) -> (i32, i32) {
    %c0_i32 = arith.constant 0 : i32
    %c0_i32_0 = arith.constant 0 : i32
    return %arg0, %c0_i32 : i32, i32
  }
  func.func @transform_1(%arg0: i32) -> (i32, i32) {
    %c0_i32 = arith.constant 0 : i32
    %c0_i32_0 = arith.constant 0 : i32
    %c0_i32_1 = arith.constant 0 : i32
    return %c0_i32, %c0_i32_0 : i32, i32
  }
  func.func @transform_2(%arg0: i32) -> (i32, i32) {
    %c0_i32 = arith.constant 0 : i32
    %c0_i32_0 = arith.constant 0 : i32
    %c0_i32_1 = arith.constant 0 : i32
    return %c0_i32, %c0_i32_0 : i32, i32
  }
  func.func @transform_3(%arg0: i32) -> (i32, i32) {
    %c0_i32 = arith.constant 0 : i32
    %c0_i32_0 = arith.constant 0 : i32
    return %arg0, %c0_i32 : i32, i32
  }
}

module attributes {stable_mosaic.version = 11 : i64} {
  func.func @_dwconv3x3_s2_kernel(%arg0: i32, %arg1: memref<4x3x3x116xbf16, #tpu.memory_space<vmem>>, %arg2: memref<9x1x116xf32, #tpu.memory_space<vmem>>, %arg3: memref<1x116xf32, #tpu.memory_space<vmem>>, %arg4: memref<1x2x2x116xbf16, #tpu.memory_space<vmem>>) attributes {dimension_semantics = [#tpu.dimension_semantics<parallel>], iteration_bounds = array<i64: 2>, scalar_prefetch = 0 : i64, scratch_operands = 0 : i64, tpu.core_type = #tpu.core_type<tc>, window_params = [{transform_indices = @transform_0, window_bounds = array<i64: 4, 3, 3, 116>}, {pipeline_mode = #tpu.pipeline_mode<synchronous>, transform_indices = @transform_1, window_bounds = array<i64: 9, 1, 116>}, {pipeline_mode = #tpu.pipeline_mode<synchronous>, transform_indices = @transform_2, window_bounds = array<i64: 1, 116>}, {transform_indices = @transform_3, window_bounds = array<i64: 1, 2, 2, 116>}]} {
    %cst = arith.constant 0.000000e+00 : f32
    %0 = vector.broadcast %cst : f32 to vector<2x2x116xf32>
    %c0 = arith.constant 0 : index
    %c0_0 = arith.constant 0 : index
    %c0_1 = arith.constant 0 : index
    %c0_2 = arith.constant 0 : index
    %1 = vector.load %arg1[%c0, %c0_0, %c0_1, %c0_2] : memref<4x3x3x116xbf16, #tpu.memory_space<vmem>>, vector<1x3x3x116xbf16>
    %2 = vector.shape_cast %1 : vector<1x3x3x116xbf16> to vector<3x3x116xbf16>
    %3 = arith.extf %2 : vector<3x3x116xbf16> to vector<3x3x116xf32>
    %4 = vector.extract_strided_slice %3 {offsets = [0, 0, 0], sizes = [2, 2, 116], strides = [1, 1, 1]} : vector<3x3x116xf32> to vector<2x2x116xf32>
    %c0_3 = arith.constant 0 : index
    %c0_4 = arith.constant 0 : index
    %c0_5 = arith.constant 0 : index
    %5 = vector.load %arg2[%c0_3, %c0_4, %c0_5] : memref<9x1x116xf32, #tpu.memory_space<vmem>>, vector<1x1x116xf32>
    %6 = vector.shape_cast %5 : vector<1x1x116xf32> to vector<1x116xf32>
    %7 = vector.shape_cast %6 : vector<1x116xf32> to vector<1x1x116xf32>
    %8 = vector.broadcast %7 : vector<1x1x116xf32> to vector<2x2x116xf32>
    %9 = arith.mulf %4, %8 : vector<2x2x116xf32>
    %10 = arith.addf %0, %9 : vector<2x2x116xf32>
    %c1 = arith.constant 1 : index
    %c0_6 = arith.constant 0 : index
    %c0_7 = arith.constant 0 : index
    %c0_8 = arith.constant 0 : index
    %11 = vector.load %arg1[%c1, %c0_6, %c0_7, %c0_8] : memref<4x3x3x116xbf16, #tpu.memory_space<vmem>>, vector<1x3x3x116xbf16>
    %12 = vector.shape_cast %11 : vector<1x3x3x116xbf16> to vector<3x3x116xbf16>
    %13 = arith.extf %12 : vector<3x3x116xbf16> to vector<3x3x116xf32>
    %14 = vector.extract_strided_slice %13 {offsets = [0, 0, 0], sizes = [2, 2, 116], strides = [1, 1, 1]} : vector<3x3x116xf32> to vector<2x2x116xf32>
    %c1_9 = arith.constant 1 : index
    %c0_10 = arith.constant 0 : index
    %c0_11 = arith.constant 0 : index
    %15 = vector.load %arg2[%c1_9, %c0_10, %c0_11] : memref<9x1x116xf32, #tpu.memory_space<vmem>>, vector<1x1x116xf32>
    %16 = vector.shape_cast %15 : vector<1x1x116xf32> to vector<1x116xf32>
    %17 = vector.shape_cast %16 : vector<1x116xf32> to vector<1x1x116xf32>
    %18 = vector.broadcast %17 : vector<1x1x116xf32> to vector<2x2x116xf32>
    %19 = arith.mulf %14, %18 : vector<2x2x116xf32>
    %20 = arith.addf %10, %19 : vector<2x2x116xf32>
    %c0_12 = arith.constant 0 : index
    %c0_13 = arith.constant 0 : index
    %c0_14 = arith.constant 0 : index
    %c0_15 = arith.constant 0 : index
    %21 = vector.load %arg1[%c0_12, %c0_13, %c0_14, %c0_15] : memref<4x3x3x116xbf16, #tpu.memory_space<vmem>>, vector<1x3x3x116xbf16>
    %22 = vector.shape_cast %21 : vector<1x3x3x116xbf16> to vector<3x3x116xbf16>
    %23 = arith.extf %22 : vector<3x3x116xbf16> to vector<3x3x116xf32>
    %24 = vector.extract_strided_slice %23 {offsets = [0, 1, 0], sizes = [2, 2, 116], strides = [1, 1, 1]} : vector<3x3x116xf32> to vector<2x2x116xf32>
    %c2 = arith.constant 2 : index
    %c0_16 = arith.constant 0 : index
    %c0_17 = arith.constant 0 : index
    %25 = vector.load %arg2[%c2, %c0_16, %c0_17] : memref<9x1x116xf32, #tpu.memory_space<vmem>>, vector<1x1x116xf32>
    %26 = vector.shape_cast %25 : vector<1x1x116xf32> to vector<1x116xf32>
    %27 = vector.shape_cast %26 : vector<1x116xf32> to vector<1x1x116xf32>
    %28 = vector.broadcast %27 : vector<1x1x116xf32> to vector<2x2x116xf32>
    %29 = arith.mulf %24, %28 : vector<2x2x116xf32>
    %30 = arith.addf %20, %29 : vector<2x2x116xf32>
    %c2_18 = arith.constant 2 : index
    %c0_19 = arith.constant 0 : index
    %c0_20 = arith.constant 0 : index
    %c0_21 = arith.constant 0 : index
    %31 = vector.load %arg1[%c2_18, %c0_19, %c0_20, %c0_21] : memref<4x3x3x116xbf16, #tpu.memory_space<vmem>>, vector<1x3x3x116xbf16>
    %32 = vector.shape_cast %31 : vector<1x3x3x116xbf16> to vector<3x3x116xbf16>
    %33 = arith.extf %32 : vector<3x3x116xbf16> to vector<3x3x116xf32>
    %34 = vector.extract_strided_slice %33 {offsets = [0, 0, 0], sizes = [2, 2, 116], strides = [1, 1, 1]} : vector<3x3x116xf32> to vector<2x2x116xf32>
    %c3 = arith.constant 3 : index
    %c0_22 = arith.constant 0 : index
    %c0_23 = arith.constant 0 : index
    %35 = vector.load %arg2[%c3, %c0_22, %c0_23] : memref<9x1x116xf32, #tpu.memory_space<vmem>>, vector<1x1x116xf32>
    %36 = vector.shape_cast %35 : vector<1x1x116xf32> to vector<1x116xf32>
    %37 = vector.shape_cast %36 : vector<1x116xf32> to vector<1x1x116xf32>
    %38 = vector.broadcast %37 : vector<1x1x116xf32> to vector<2x2x116xf32>
    %39 = arith.mulf %34, %38 : vector<2x2x116xf32>
    %40 = arith.addf %30, %39 : vector<2x2x116xf32>
    %c3_24 = arith.constant 3 : index
    %c0_25 = arith.constant 0 : index
    %c0_26 = arith.constant 0 : index
    %c0_27 = arith.constant 0 : index
    %41 = vector.load %arg1[%c3_24, %c0_25, %c0_26, %c0_27] : memref<4x3x3x116xbf16, #tpu.memory_space<vmem>>, vector<1x3x3x116xbf16>
    %42 = vector.shape_cast %41 : vector<1x3x3x116xbf16> to vector<3x3x116xbf16>
    %43 = arith.extf %42 : vector<3x3x116xbf16> to vector<3x3x116xf32>
    %44 = vector.extract_strided_slice %43 {offsets = [0, 0, 0], sizes = [2, 2, 116], strides = [1, 1, 1]} : vector<3x3x116xf32> to vector<2x2x116xf32>
    %c4 = arith.constant 4 : index
    %c0_28 = arith.constant 0 : index
    %c0_29 = arith.constant 0 : index
    %45 = vector.load %arg2[%c4, %c0_28, %c0_29] : memref<9x1x116xf32, #tpu.memory_space<vmem>>, vector<1x1x116xf32>
    %46 = vector.shape_cast %45 : vector<1x1x116xf32> to vector<1x116xf32>
    %47 = vector.shape_cast %46 : vector<1x116xf32> to vector<1x1x116xf32>
    %48 = vector.broadcast %47 : vector<1x1x116xf32> to vector<2x2x116xf32>
    %49 = arith.mulf %44, %48 : vector<2x2x116xf32>
    %50 = arith.addf %40, %49 : vector<2x2x116xf32>
    %c2_30 = arith.constant 2 : index
    %c0_31 = arith.constant 0 : index
    %c0_32 = arith.constant 0 : index
    %c0_33 = arith.constant 0 : index
    %51 = vector.load %arg1[%c2_30, %c0_31, %c0_32, %c0_33] : memref<4x3x3x116xbf16, #tpu.memory_space<vmem>>, vector<1x3x3x116xbf16>
    %52 = vector.shape_cast %51 : vector<1x3x3x116xbf16> to vector<3x3x116xbf16>
    %53 = arith.extf %52 : vector<3x3x116xbf16> to vector<3x3x116xf32>
    %54 = vector.extract_strided_slice %53 {offsets = [0, 1, 0], sizes = [2, 2, 116], strides = [1, 1, 1]} : vector<3x3x116xf32> to vector<2x2x116xf32>
    %c5 = arith.constant 5 : index
    %c0_34 = arith.constant 0 : index
    %c0_35 = arith.constant 0 : index
    %55 = vector.load %arg2[%c5, %c0_34, %c0_35] : memref<9x1x116xf32, #tpu.memory_space<vmem>>, vector<1x1x116xf32>
    %56 = vector.shape_cast %55 : vector<1x1x116xf32> to vector<1x116xf32>
    %57 = vector.shape_cast %56 : vector<1x116xf32> to vector<1x1x116xf32>
    %58 = vector.broadcast %57 : vector<1x1x116xf32> to vector<2x2x116xf32>
    %59 = arith.mulf %54, %58 : vector<2x2x116xf32>
    %60 = arith.addf %50, %59 : vector<2x2x116xf32>
    %c0_36 = arith.constant 0 : index
    %c0_37 = arith.constant 0 : index
    %c0_38 = arith.constant 0 : index
    %c0_39 = arith.constant 0 : index
    %61 = vector.load %arg1[%c0_36, %c0_37, %c0_38, %c0_39] : memref<4x3x3x116xbf16, #tpu.memory_space<vmem>>, vector<1x3x3x116xbf16>
    %62 = vector.shape_cast %61 : vector<1x3x3x116xbf16> to vector<3x3x116xbf16>
    %63 = arith.extf %62 : vector<3x3x116xbf16> to vector<3x3x116xf32>
    %64 = vector.extract_strided_slice %63 {offsets = [1, 0, 0], sizes = [2, 2, 116], strides = [1, 1, 1]} : vector<3x3x116xf32> to vector<2x2x116xf32>
    %c6 = arith.constant 6 : index
    %c0_40 = arith.constant 0 : index
    %c0_41 = arith.constant 0 : index
    %65 = vector.load %arg2[%c6, %c0_40, %c0_41] : memref<9x1x116xf32, #tpu.memory_space<vmem>>, vector<1x1x116xf32>
    %66 = vector.shape_cast %65 : vector<1x1x116xf32> to vector<1x116xf32>
    %67 = vector.shape_cast %66 : vector<1x116xf32> to vector<1x1x116xf32>
    %68 = vector.broadcast %67 : vector<1x1x116xf32> to vector<2x2x116xf32>
    %69 = arith.mulf %64, %68 : vector<2x2x116xf32>
    %70 = arith.addf %60, %69 : vector<2x2x116xf32>
    %c1_42 = arith.constant 1 : index
    %c0_43 = arith.constant 0 : index
    %c0_44 = arith.constant 0 : index
    %c0_45 = arith.constant 0 : index
    %71 = vector.load %arg1[%c1_42, %c0_43, %c0_44, %c0_45] : memref<4x3x3x116xbf16, #tpu.memory_space<vmem>>, vector<1x3x3x116xbf16>
    %72 = vector.shape_cast %71 : vector<1x3x3x116xbf16> to vector<3x3x116xbf16>
    %73 = arith.extf %72 : vector<3x3x116xbf16> to vector<3x3x116xf32>
    %74 = vector.extract_strided_slice %73 {offsets = [1, 0, 0], sizes = [2, 2, 116], strides = [1, 1, 1]} : vector<3x3x116xf32> to vector<2x2x116xf32>
    %c7 = arith.constant 7 : index
    %c0_46 = arith.constant 0 : index
    %c0_47 = arith.constant 0 : index
    %75 = vector.load %arg2[%c7, %c0_46, %c0_47] : memref<9x1x116xf32, #tpu.memory_space<vmem>>, vector<1x1x116xf32>
    %76 = vector.shape_cast %75 : vector<1x1x116xf32> to vector<1x116xf32>
    %77 = vector.shape_cast %76 : vector<1x116xf32> to vector<1x1x116xf32>
    %78 = vector.broadcast %77 : vector<1x1x116xf32> to vector<2x2x116xf32>
    %79 = arith.mulf %74, %78 : vector<2x2x116xf32>
    %80 = arith.addf %70, %79 : vector<2x2x116xf32>
    %c0_48 = arith.constant 0 : index
    %c0_49 = arith.constant 0 : index
    %c0_50 = arith.constant 0 : index
    %c0_51 = arith.constant 0 : index
    %81 = vector.load %arg1[%c0_48, %c0_49, %c0_50, %c0_51] : memref<4x3x3x116xbf16, #tpu.memory_space<vmem>>, vector<1x3x3x116xbf16>
    %82 = vector.shape_cast %81 : vector<1x3x3x116xbf16> to vector<3x3x116xbf16>
    %83 = arith.extf %82 : vector<3x3x116xbf16> to vector<3x3x116xf32>
    %84 = vector.extract_strided_slice %83 {offsets = [1, 1, 0], sizes = [2, 2, 116], strides = [1, 1, 1]} : vector<3x3x116xf32> to vector<2x2x116xf32>
    %c8 = arith.constant 8 : index
    %c0_52 = arith.constant 0 : index
    %c0_53 = arith.constant 0 : index
    %85 = vector.load %arg2[%c8, %c0_52, %c0_53] : memref<9x1x116xf32, #tpu.memory_space<vmem>>, vector<1x1x116xf32>
    %86 = vector.shape_cast %85 : vector<1x1x116xf32> to vector<1x116xf32>
    %87 = vector.shape_cast %86 : vector<1x116xf32> to vector<1x1x116xf32>
    %88 = vector.broadcast %87 : vector<1x1x116xf32> to vector<2x2x116xf32>
    %89 = arith.mulf %84, %88 : vector<2x2x116xf32>
    %90 = arith.addf %80, %89 : vector<2x2x116xf32>
    %c0_54 = arith.constant 0 : index
    %c0_55 = arith.constant 0 : index
    %91 = vector.load %arg3[%c0_54, %c0_55] : memref<1x116xf32, #tpu.memory_space<vmem>>, vector<1x116xf32>
    %92 = vector.shape_cast %91 : vector<1x116xf32> to vector<1x1x116xf32>
    %93 = vector.broadcast %92 : vector<1x1x116xf32> to vector<2x2x116xf32>
    %94 = arith.addf %90, %93 : vector<2x2x116xf32>
    %95 = arith.truncf %94 : vector<2x2x116xf32> to vector<2x2x116xbf16>
    %c0_56 = arith.constant 0 : index
    %c0_57 = arith.constant 0 : index
    %c0_58 = arith.constant 0 : index
    %c0_59 = arith.constant 0 : index
    %96 = vector.load %arg4[%c0_56, %c0_57, %c0_58, %c0_59] : memref<1x2x2x116xbf16, #tpu.memory_space<vmem>>, vector<1x2x2x116xbf16>
    %97 = vector.shape_cast %96 : vector<1x2x2x116xbf16> to vector<2x2x116xbf16>
    %98 = vector.shape_cast %95 : vector<2x2x116xbf16> to vector<1x2x2x116xbf16>
    tpu.vector_store %arg4[%c0_56, %c0_57, %c0_58, %c0_59], %98 {strides = array<i32>} : memref<1x2x2x116xbf16, #tpu.memory_space<vmem>>, vector<1x2x2x116xbf16>,
    return
  }
  func.func @transform_0(%arg0: i32) -> (i32, i32, i32, i32) {
    %c0_i32 = arith.constant 0 : i32
    %c0_i32_0 = arith.constant 0 : i32
    %c0_i32_1 = arith.constant 0 : i32
    %c0_i32_2 = arith.constant 0 : i32
    return %arg0, %c0_i32, %c0_i32_0, %c0_i32_1 : i32, i32, i32, i32
  }
  func.func @transform_1(%arg0: i32) -> (i32, i32, i32) {
    %c0_i32 = arith.constant 0 : i32
    %c0_i32_0 = arith.constant 0 : i32
    %c0_i32_1 = arith.constant 0 : i32
    %c0_i32_2 = arith.constant 0 : i32
    return %c0_i32, %c0_i32_0, %c0_i32_1 : i32, i32, i32
  }
  func.func @transform_2(%arg0: i32) -> (i32, i32) {
    %c0_i32 = arith.constant 0 : i32
    %c0_i32_0 = arith.constant 0 : i32
    %c0_i32_1 = arith.constant 0 : i32
    return %c0_i32, %c0_i32_0 : i32, i32
  }
  func.func @transform_3(%arg0: i32) -> (i32, i32, i32, i32) {
    %c0_i32 = arith.constant 0 : i32
    %c0_i32_0 = arith.constant 0 : i32
    %c0_i32_1 = arith.constant 0 : i32
    %c0_i32_2 = arith.constant 0 : i32
    return %arg0, %c0_i32, %c0_i32_0, %c0_i32_1 : i32, i32, i32, i32
  }
}

module attributes {stable_mosaic.version = 11 : i64} {
  func.func @_matmul_bias_act_kernel(%arg0: i32, %arg1: memref<8x116xbf16, #tpu.memory_space<vmem>>, %arg2: memref<116x116xbf16, #tpu.memory_space<vmem>>, %arg3: memref<1x116xf32, #tpu.memory_space<vmem>>, %arg4: memref<8x116xbf16, #tpu.memory_space<vmem>>) attributes {dimension_semantics = [#tpu.dimension_semantics<parallel>], iteration_bounds = array<i64: 1>, scalar_prefetch = 0 : i64, scratch_operands = 0 : i64, tpu.core_type = #tpu.core_type<tc>, window_params = [{transform_indices = @transform_0, window_bounds = array<i64: 8, 116>}, {pipeline_mode = #tpu.pipeline_mode<synchronous>, transform_indices = @transform_1, window_bounds = array<i64: 116, 116>}, {pipeline_mode = #tpu.pipeline_mode<synchronous>, transform_indices = @transform_2, window_bounds = array<i64: 1, 116>}, {transform_indices = @transform_3, window_bounds = array<i64: 8, 116>}]} {
    %c0 = arith.constant 0 : index
    %c0_0 = arith.constant 0 : index
    %0 = vector.load %arg1[%c0, %c0_0] : memref<8x116xbf16, #tpu.memory_space<vmem>>, vector<8x116xbf16>
    %c0_1 = arith.constant 0 : index
    %c0_2 = arith.constant 0 : index
    %1 = vector.load %arg2[%c0_1, %c0_2] : memref<116x116xbf16, #tpu.memory_space<vmem>>, vector<116x116xbf16>
    %cst = arith.constant dense<0.000000e+00> : vector<8x116xf32>
    %2 = tpu.matmul %0, %1, %cst {dimension_numbers = #tpu.dot_dimension_numbers<[1], [0], [0], [1], [0, 0, 1, 1], [], []>} : vector<8x116xbf16>, vector<116x116xbf16>, vector<8x116xf32> -> vector<8x116xf32>
    %c0_3 = arith.constant 0 : index
    %c0_4 = arith.constant 0 : index
    %3 = vector.load %arg3[%c0_3, %c0_4] : memref<1x116xf32, #tpu.memory_space<vmem>>, vector<1x116xf32>
    %4 = vector.broadcast %3 : vector<1x116xf32> to vector<8x116xf32>
    %5 = arith.addf %2, %4 : vector<8x116xf32>
    %cst_5 = arith.constant 0.000000e+00 : f32
    %6 = vector.broadcast %cst_5 : f32 to vector<8x116xf32>
    %7 = arith.maximumf %5, %6 : vector<8x116xf32>
    %8 = arith.truncf %7 : vector<8x116xf32> to vector<8x116xbf16>
    %c0_6 = arith.constant 0 : index
    %c0_7 = arith.constant 0 : index
    %9 = vector.load %arg4[%c0_6, %c0_7] : memref<8x116xbf16, #tpu.memory_space<vmem>>, vector<8x116xbf16>
    tpu.vector_store %arg4[%c0_6, %c0_7], %8 {strides = array<i32>} : memref<8x116xbf16, #tpu.memory_space<vmem>>, vector<8x116xbf16>,
    return
  }
  func.func @transform_0(%arg0: i32) -> (i32, i32) {
    %c0_i32 = arith.constant 0 : i32
    %c0_i32_0 = arith.constant 0 : i32
    return %arg0, %c0_i32 : i32, i32
  }
  func.func @transform_1(%arg0: i32) -> (i32, i32) {
    %c0_i32 = arith.constant 0 : i32
    %c0_i32_0 = arith.constant 0 : i32
    %c0_i32_1 = arith.constant 0 : i32
    return %c0_i32, %c0_i32_0 : i32, i32
  }
  func.func @transform_2(%arg0: i32) -> (i32, i32) {
    %c0_i32 = arith.constant 0 : i32
    %c0_i32_0 = arith.constant 0 : i32
    %c0_i32_1 = arith.constant 0 : i32
    return %c0_i32, %c0_i32_0 : i32, i32
  }
  func.func @transform_3(%arg0: i32) -> (i32, i32) {
    %c0_i32 = arith.constant 0 : i32
    %c0_i32_0 = arith.constant 0 : i32
    return %arg0, %c0_i32 : i32, i32
  }
}

module attributes {stable_mosaic.version = 11 : i64} {
  func.func @_dwconv3x3_s1_kernel(%arg0: i32, %arg1: memref<1x4x4x116xbf16, #tpu.memory_space<vmem>>, %arg2: memref<9x1x116xf32, #tpu.memory_space<vmem>>, %arg3: memref<1x116xf32, #tpu.memory_space<vmem>>, %arg4: memref<1x2x2x116xbf16, #tpu.memory_space<vmem>>) attributes {dimension_semantics = [#tpu.dimension_semantics<parallel>], iteration_bounds = array<i64: 2>, scalar_prefetch = 0 : i64, scratch_operands = 0 : i64, tpu.core_type = #tpu.core_type<tc>, window_params = [{transform_indices = @transform_0, window_bounds = array<i64: 1, 4, 4, 116>}, {pipeline_mode = #tpu.pipeline_mode<synchronous>, transform_indices = @transform_1, window_bounds = array<i64: 9, 1, 116>}, {pipeline_mode = #tpu.pipeline_mode<synchronous>, transform_indices = @transform_2, window_bounds = array<i64: 1, 116>}, {transform_indices = @transform_3, window_bounds = array<i64: 1, 2, 2, 116>}]} {
    %c0 = arith.constant 0 : index
    %c0_0 = arith.constant 0 : index
    %c0_1 = arith.constant 0 : index
    %c0_2 = arith.constant 0 : index
    %0 = vector.load %arg1[%c0, %c0_0, %c0_1, %c0_2] : memref<1x4x4x116xbf16, #tpu.memory_space<vmem>>, vector<1x4x4x116xbf16>
    %1 = vector.shape_cast %0 : vector<1x4x4x116xbf16> to vector<4x4x116xbf16>
    %2 = arith.extf %1 : vector<4x4x116xbf16> to vector<4x4x116xf32>
    %cst = arith.constant 0.000000e+00 : f32
    %3 = vector.broadcast %cst : f32 to vector<2x2x116xf32>
    %4 = vector.extract_strided_slice %2 {offsets = [0, 0, 0], sizes = [2, 2, 116], strides = [1, 1, 1]} : vector<4x4x116xf32> to vector<2x2x116xf32>
    %c0_3 = arith.constant 0 : index
    %c0_4 = arith.constant 0 : index
    %c0_5 = arith.constant 0 : index
    %5 = vector.load %arg2[%c0_3, %c0_4, %c0_5] : memref<9x1x116xf32, #tpu.memory_space<vmem>>, vector<1x1x116xf32>
    %6 = vector.shape_cast %5 : vector<1x1x116xf32> to vector<1x116xf32>
    %7 = vector.shape_cast %6 : vector<1x116xf32> to vector<1x1x116xf32>
    %8 = vector.broadcast %7 : vector<1x1x116xf32> to vector<2x2x116xf32>
    %9 = arith.mulf %4, %8 : vector<2x2x116xf32>
    %10 = arith.addf %3, %9 : vector<2x2x116xf32>
    %11 = vector.extract_strided_slice %2 {offsets = [0, 1, 0], sizes = [2, 2, 116], strides = [1, 1, 1]} : vector<4x4x116xf32> to vector<2x2x116xf32>
    %c1 = arith.constant 1 : index
    %c0_6 = arith.constant 0 : index
    %c0_7 = arith.constant 0 : index
    %12 = vector.load %arg2[%c1, %c0_6, %c0_7] : memref<9x1x116xf32, #tpu.memory_space<vmem>>, vector<1x1x116xf32>
    %13 = vector.shape_cast %12 : vector<1x1x116xf32> to vector<1x116xf32>
    %14 = vector.shape_cast %13 : vector<1x116xf32> to vector<1x1x116xf32>
    %15 = vector.broadcast %14 : vector<1x1x116xf32> to vector<2x2x116xf32>
    %16 = arith.mulf %11, %15 : vector<2x2x116xf32>
    %17 = arith.addf %10, %16 : vector<2x2x116xf32>
    %18 = vector.extract_strided_slice %2 {offsets = [0, 2, 0], sizes = [2, 2, 116], strides = [1, 1, 1]} : vector<4x4x116xf32> to vector<2x2x116xf32>
    %c2 = arith.constant 2 : index
    %c0_8 = arith.constant 0 : index
    %c0_9 = arith.constant 0 : index
    %19 = vector.load %arg2[%c2, %c0_8, %c0_9] : memref<9x1x116xf32, #tpu.memory_space<vmem>>, vector<1x1x116xf32>
    %20 = vector.shape_cast %19 : vector<1x1x116xf32> to vector<1x116xf32>
    %21 = vector.shape_cast %20 : vector<1x116xf32> to vector<1x1x116xf32>
    %22 = vector.broadcast %21 : vector<1x1x116xf32> to vector<2x2x116xf32>
    %23 = arith.mulf %18, %22 : vector<2x2x116xf32>
    %24 = arith.addf %17, %23 : vector<2x2x116xf32>
    %25 = vector.extract_strided_slice %2 {offsets = [1, 0, 0], sizes = [2, 2, 116], strides = [1, 1, 1]} : vector<4x4x116xf32> to vector<2x2x116xf32>
    %c3 = arith.constant 3 : index
    %c0_10 = arith.constant 0 : index
    %c0_11 = arith.constant 0 : index
    %26 = vector.load %arg2[%c3, %c0_10, %c0_11] : memref<9x1x116xf32, #tpu.memory_space<vmem>>, vector<1x1x116xf32>
    %27 = vector.shape_cast %26 : vector<1x1x116xf32> to vector<1x116xf32>
    %28 = vector.shape_cast %27 : vector<1x116xf32> to vector<1x1x116xf32>
    %29 = vector.broadcast %28 : vector<1x1x116xf32> to vector<2x2x116xf32>
    %30 = arith.mulf %25, %29 : vector<2x2x116xf32>
    %31 = arith.addf %24, %30 : vector<2x2x116xf32>
    %32 = vector.extract_strided_slice %2 {offsets = [1, 1, 0], sizes = [2, 2, 116], strides = [1, 1, 1]} : vector<4x4x116xf32> to vector<2x2x116xf32>
    %c4 = arith.constant 4 : index
    %c0_12 = arith.constant 0 : index
    %c0_13 = arith.constant 0 : index
    %33 = vector.load %arg2[%c4, %c0_12, %c0_13] : memref<9x1x116xf32, #tpu.memory_space<vmem>>, vector<1x1x116xf32>
    %34 = vector.shape_cast %33 : vector<1x1x116xf32> to vector<1x116xf32>
    %35 = vector.shape_cast %34 : vector<1x116xf32> to vector<1x1x116xf32>
    %36 = vector.broadcast %35 : vector<1x1x116xf32> to vector<2x2x116xf32>
    %37 = arith.mulf %32, %36 : vector<2x2x116xf32>
    %38 = arith.addf %31, %37 : vector<2x2x116xf32>
    %39 = vector.extract_strided_slice %2 {offsets = [1, 2, 0], sizes = [2, 2, 116], strides = [1, 1, 1]} : vector<4x4x116xf32> to vector<2x2x116xf32>
    %c5 = arith.constant 5 : index
    %c0_14 = arith.constant 0 : index
    %c0_15 = arith.constant 0 : index
    %40 = vector.load %arg2[%c5, %c0_14, %c0_15] : memref<9x1x116xf32, #tpu.memory_space<vmem>>, vector<1x1x116xf32>
    %41 = vector.shape_cast %40 : vector<1x1x116xf32> to vector<1x116xf32>
    %42 = vector.shape_cast %41 : vector<1x116xf32> to vector<1x1x116xf32>
    %43 = vector.broadcast %42 : vector<1x1x116xf32> to vector<2x2x116xf32>
    %44 = arith.mulf %39, %43 : vector<2x2x116xf32>
    %45 = arith.addf %38, %44 : vector<2x2x116xf32>
    %46 = vector.extract_strided_slice %2 {offsets = [2, 0, 0], sizes = [2, 2, 116], strides = [1, 1, 1]} : vector<4x4x116xf32> to vector<2x2x116xf32>
    %c6 = arith.constant 6 : index
    %c0_16 = arith.constant 0 : index
    %c0_17 = arith.constant 0 : index
    %47 = vector.load %arg2[%c6, %c0_16, %c0_17] : memref<9x1x116xf32, #tpu.memory_space<vmem>>, vector<1x1x116xf32>
    %48 = vector.shape_cast %47 : vector<1x1x116xf32> to vector<1x116xf32>
    %49 = vector.shape_cast %48 : vector<1x116xf32> to vector<1x1x116xf32>
    %50 = vector.broadcast %49 : vector<1x1x116xf32> to vector<2x2x116xf32>
    %51 = arith.mulf %46, %50 : vector<2x2x116xf32>
    %52 = arith.addf %45, %51 : vector<2x2x116xf32>
    %53 = vector.extract_strided_slice %2 {offsets = [2, 1, 0], sizes = [2, 2, 116], strides = [1, 1, 1]} : vector<4x4x116xf32> to vector<2x2x116xf32>
    %c7 = arith.constant 7 : index
    %c0_18 = arith.constant 0 : index
    %c0_19 = arith.constant 0 : index
    %54 = vector.load %arg2[%c7, %c0_18, %c0_19] : memref<9x1x116xf32, #tpu.memory_space<vmem>>, vector<1x1x116xf32>
    %55 = vector.shape_cast %54 : vector<1x1x116xf32> to vector<1x116xf32>
    %56 = vector.shape_cast %55 : vector<1x116xf32> to vector<1x1x116xf32>
    %57 = vector.broadcast %56 : vector<1x1x116xf32> to vector<2x2x116xf32>
    %58 = arith.mulf %53, %57 : vector<2x2x116xf32>
    %59 = arith.addf %52, %58 : vector<2x2x116xf32>
    %60 = vector.extract_strided_slice %2 {offsets = [2, 2, 0], sizes = [2, 2, 116], strides = [1, 1, 1]} : vector<4x4x116xf32> to vector<2x2x116xf32>
    %c8 = arith.constant 8 : index
    %c0_20 = arith.constant 0 : index
    %c0_21 = arith.constant 0 : index
    %61 = vector.load %arg2[%c8, %c0_20, %c0_21] : memref<9x1x116xf32, #tpu.memory_space<vmem>>, vector<1x1x116xf32>
    %62 = vector.shape_cast %61 : vector<1x1x116xf32> to vector<1x116xf32>
    %63 = vector.shape_cast %62 : vector<1x116xf32> to vector<1x1x116xf32>
    %64 = vector.broadcast %63 : vector<1x1x116xf32> to vector<2x2x116xf32>
    %65 = arith.mulf %60, %64 : vector<2x2x116xf32>
    %66 = arith.addf %59, %65 : vector<2x2x116xf32>
    %c0_22 = arith.constant 0 : index
    %c0_23 = arith.constant 0 : index
    %67 = vector.load %arg3[%c0_22, %c0_23] : memref<1x116xf32, #tpu.memory_space<vmem>>, vector<1x116xf32>
    %68 = vector.shape_cast %67 : vector<1x116xf32> to vector<1x1x116xf32>
    %69 = vector.broadcast %68 : vector<1x1x116xf32> to vector<2x2x116xf32>
    %70 = arith.addf %66, %69 : vector<2x2x116xf32>
    %71 = arith.truncf %70 : vector<2x2x116xf32> to vector<2x2x116xbf16>
    %c0_24 = arith.constant 0 : index
    %c0_25 = arith.constant 0 : index
    %c0_26 = arith.constant 0 : index
    %c0_27 = arith.constant 0 : index
    %72 = vector.load %arg4[%c0_24, %c0_25, %c0_26, %c0_27] : memref<1x2x2x116xbf16, #tpu.memory_space<vmem>>, vector<1x2x2x116xbf16>
    %73 = vector.shape_cast %72 : vector<1x2x2x116xbf16> to vector<2x2x116xbf16>
    %74 = vector.shape_cast %71 : vector<2x2x116xbf16> to vector<1x2x2x116xbf16>
    tpu.vector_store %arg4[%c0_24, %c0_25, %c0_26, %c0_27], %74 {strides = array<i32>} : memref<1x2x2x116xbf16, #tpu.memory_space<vmem>>, vector<1x2x2x116xbf16>,
    return
  }
  func.func @transform_0(%arg0: i32) -> (i32, i32, i32, i32) {
    %c0_i32 = arith.constant 0 : i32
    %c0_i32_0 = arith.constant 0 : i32
    %c0_i32_1 = arith.constant 0 : i32
    %c0_i32_2 = arith.constant 0 : i32
    return %arg0, %c0_i32, %c0_i32_0, %c0_i32_1 : i32, i32, i32, i32
  }
  func.func @transform_1(%arg0: i32) -> (i32, i32, i32) {
    %c0_i32 = arith.constant 0 : i32
    %c0_i32_0 = arith.constant 0 : i32
    %c0_i32_1 = arith.constant 0 : i32
    %c0_i32_2 = arith.constant 0 : i32
    return %c0_i32, %c0_i32_0, %c0_i32_1 : i32, i32, i32
  }
  func.func @transform_2(%arg0: i32) -> (i32, i32) {
    %c0_i32 = arith.constant 0 : i32
    %c0_i32_0 = arith.constant 0 : i32
    %c0_i32_1 = arith.constant 0 : i32
    return %c0_i32, %c0_i32_0 : i32, i32
  }
  func.func @transform_3(%arg0: i32) -> (i32, i32, i32, i32) {
    %c0_i32 = arith.constant 0 : i32
    %c0_i32_0 = arith.constant 0 : i32
    %c0_i32_1 = arith.constant 0 : i32
    %c0_i32_2 = arith.constant 0 : i32
    return %arg0, %c0_i32, %c0_i32_0, %c0_i32_1 : i32, i32, i32, i32
  }
}

module attributes {stable_mosaic.version = 11 : i64} {
  func.func @_matmul_bias_act_kernel(%arg0: i32, %arg1: memref<8x232xbf16, #tpu.memory_space<vmem>>, %arg2: memref<232x232xbf16, #tpu.memory_space<vmem>>, %arg3: memref<1x232xf32, #tpu.memory_space<vmem>>, %arg4: memref<8x232xbf16, #tpu.memory_space<vmem>>) attributes {dimension_semantics = [#tpu.dimension_semantics<parallel>], iteration_bounds = array<i64: 1>, scalar_prefetch = 0 : i64, scratch_operands = 0 : i64, tpu.core_type = #tpu.core_type<tc>, window_params = [{transform_indices = @transform_0, window_bounds = array<i64: 8, 232>}, {pipeline_mode = #tpu.pipeline_mode<synchronous>, transform_indices = @transform_1, window_bounds = array<i64: 232, 232>}, {pipeline_mode = #tpu.pipeline_mode<synchronous>, transform_indices = @transform_2, window_bounds = array<i64: 1, 232>}, {transform_indices = @transform_3, window_bounds = array<i64: 8, 232>}]} {
    %c0 = arith.constant 0 : index
    %c0_0 = arith.constant 0 : index
    %0 = vector.load %arg1[%c0, %c0_0] : memref<8x232xbf16, #tpu.memory_space<vmem>>, vector<8x232xbf16>
    %c0_1 = arith.constant 0 : index
    %c0_2 = arith.constant 0 : index
    %1 = vector.load %arg2[%c0_1, %c0_2] : memref<232x232xbf16, #tpu.memory_space<vmem>>, vector<232x232xbf16>
    %cst = arith.constant dense<0.000000e+00> : vector<8x232xf32>
    %2 = tpu.matmul %0, %1, %cst {dimension_numbers = #tpu.dot_dimension_numbers<[1], [0], [0], [1], [0, 0, 1, 1], [], []>} : vector<8x232xbf16>, vector<232x232xbf16>, vector<8x232xf32> -> vector<8x232xf32>
    %c0_3 = arith.constant 0 : index
    %c0_4 = arith.constant 0 : index
    %3 = vector.load %arg3[%c0_3, %c0_4] : memref<1x232xf32, #tpu.memory_space<vmem>>, vector<1x232xf32>
    %4 = vector.broadcast %3 : vector<1x232xf32> to vector<8x232xf32>
    %5 = arith.addf %2, %4 : vector<8x232xf32>
    %cst_5 = arith.constant 0.000000e+00 : f32
    %6 = vector.broadcast %cst_5 : f32 to vector<8x232xf32>
    %7 = arith.maximumf %5, %6 : vector<8x232xf32>
    %8 = arith.truncf %7 : vector<8x232xf32> to vector<8x232xbf16>
    %c0_6 = arith.constant 0 : index
    %c0_7 = arith.constant 0 : index
    %9 = vector.load %arg4[%c0_6, %c0_7] : memref<8x232xbf16, #tpu.memory_space<vmem>>, vector<8x232xbf16>
    tpu.vector_store %arg4[%c0_6, %c0_7], %8 {strides = array<i32>} : memref<8x232xbf16, #tpu.memory_space<vmem>>, vector<8x232xbf16>,
    return
  }
  func.func @transform_0(%arg0: i32) -> (i32, i32) {
    %c0_i32 = arith.constant 0 : i32
    %c0_i32_0 = arith.constant 0 : i32
    return %arg0, %c0_i32 : i32, i32
  }
  func.func @transform_1(%arg0: i32) -> (i32, i32) {
    %c0_i32 = arith.constant 0 : i32
    %c0_i32_0 = arith.constant 0 : i32
    %c0_i32_1 = arith.constant 0 : i32
    return %c0_i32, %c0_i32_0 : i32, i32
  }
  func.func @transform_2(%arg0: i32) -> (i32, i32) {
    %c0_i32 = arith.constant 0 : i32
    %c0_i32_0 = arith.constant 0 : i32
    %c0_i32_1 = arith.constant 0 : i32
    return %c0_i32, %c0_i32_0 : i32, i32
  }
  func.func @transform_3(%arg0: i32) -> (i32, i32) {
    %c0_i32 = arith.constant 0 : i32
    %c0_i32_0 = arith.constant 0 : i32
    return %arg0, %c0_i32 : i32, i32
  }
}

module attributes {stable_mosaic.version = 11 : i64} {
  func.func @_dwconv3x3_s2_kernel(%arg0: i32, %arg1: memref<4x2x2x232xbf16, #tpu.memory_space<vmem>>, %arg2: memref<9x1x232xf32, #tpu.memory_space<vmem>>, %arg3: memref<1x232xf32, #tpu.memory_space<vmem>>, %arg4: memref<1x1x1x232xbf16, #tpu.memory_space<vmem>>) attributes {dimension_semantics = [#tpu.dimension_semantics<parallel>], iteration_bounds = array<i64: 2>, scalar_prefetch = 0 : i64, scratch_operands = 0 : i64, tpu.core_type = #tpu.core_type<tc>, window_params = [{transform_indices = @transform_0, window_bounds = array<i64: 4, 2, 2, 232>}, {pipeline_mode = #tpu.pipeline_mode<synchronous>, transform_indices = @transform_1, window_bounds = array<i64: 9, 1, 232>}, {pipeline_mode = #tpu.pipeline_mode<synchronous>, transform_indices = @transform_2, window_bounds = array<i64: 1, 232>}, {transform_indices = @transform_3, window_bounds = array<i64: 1, 1, 1, 232>}]} {
    %cst = arith.constant 0.000000e+00 : f32
    %0 = vector.broadcast %cst : f32 to vector<1x1x232xf32>
    %c0 = arith.constant 0 : index
    %c0_0 = arith.constant 0 : index
    %c0_1 = arith.constant 0 : index
    %c0_2 = arith.constant 0 : index
    %1 = vector.load %arg1[%c0, %c0_0, %c0_1, %c0_2] : memref<4x2x2x232xbf16, #tpu.memory_space<vmem>>, vector<1x2x2x232xbf16>
    %2 = vector.shape_cast %1 : vector<1x2x2x232xbf16> to vector<2x2x232xbf16>
    %3 = arith.extf %2 : vector<2x2x232xbf16> to vector<2x2x232xf32>
    %4 = vector.extract_strided_slice %3 {offsets = [0, 0, 0], sizes = [1, 1, 232], strides = [1, 1, 1]} : vector<2x2x232xf32> to vector<1x1x232xf32>
    %c0_3 = arith.constant 0 : index
    %c0_4 = arith.constant 0 : index
    %c0_5 = arith.constant 0 : index
    %5 = vector.load %arg2[%c0_3, %c0_4, %c0_5] : memref<9x1x232xf32, #tpu.memory_space<vmem>>, vector<1x1x232xf32>
    %6 = vector.shape_cast %5 : vector<1x1x232xf32> to vector<1x232xf32>
    %7 = vector.shape_cast %6 : vector<1x232xf32> to vector<1x1x232xf32>
    %8 = arith.mulf %4, %7 : vector<1x1x232xf32>
    %9 = arith.addf %0, %8 : vector<1x1x232xf32>
    %c1 = arith.constant 1 : index
    %c0_6 = arith.constant 0 : index
    %c0_7 = arith.constant 0 : index
    %c0_8 = arith.constant 0 : index
    %10 = vector.load %arg1[%c1, %c0_6, %c0_7, %c0_8] : memref<4x2x2x232xbf16, #tpu.memory_space<vmem>>, vector<1x2x2x232xbf16>
    %11 = vector.shape_cast %10 : vector<1x2x2x232xbf16> to vector<2x2x232xbf16>
    %12 = arith.extf %11 : vector<2x2x232xbf16> to vector<2x2x232xf32>
    %13 = vector.extract_strided_slice %12 {offsets = [0, 0, 0], sizes = [1, 1, 232], strides = [1, 1, 1]} : vector<2x2x232xf32> to vector<1x1x232xf32>
    %c1_9 = arith.constant 1 : index
    %c0_10 = arith.constant 0 : index
    %c0_11 = arith.constant 0 : index
    %14 = vector.load %arg2[%c1_9, %c0_10, %c0_11] : memref<9x1x232xf32, #tpu.memory_space<vmem>>, vector<1x1x232xf32>
    %15 = vector.shape_cast %14 : vector<1x1x232xf32> to vector<1x232xf32>
    %16 = vector.shape_cast %15 : vector<1x232xf32> to vector<1x1x232xf32>
    %17 = arith.mulf %13, %16 : vector<1x1x232xf32>
    %18 = arith.addf %9, %17 : vector<1x1x232xf32>
    %c0_12 = arith.constant 0 : index
    %c0_13 = arith.constant 0 : index
    %c0_14 = arith.constant 0 : index
    %c0_15 = arith.constant 0 : index
    %19 = vector.load %arg1[%c0_12, %c0_13, %c0_14, %c0_15] : memref<4x2x2x232xbf16, #tpu.memory_space<vmem>>, vector<1x2x2x232xbf16>
    %20 = vector.shape_cast %19 : vector<1x2x2x232xbf16> to vector<2x2x232xbf16>
    %21 = arith.extf %20 : vector<2x2x232xbf16> to vector<2x2x232xf32>
    %22 = vector.extract_strided_slice %21 {offsets = [0, 1, 0], sizes = [1, 1, 232], strides = [1, 1, 1]} : vector<2x2x232xf32> to vector<1x1x232xf32>
    %c2 = arith.constant 2 : index
    %c0_16 = arith.constant 0 : index
    %c0_17 = arith.constant 0 : index
    %23 = vector.load %arg2[%c2, %c0_16, %c0_17] : memref<9x1x232xf32, #tpu.memory_space<vmem>>, vector<1x1x232xf32>
    %24 = vector.shape_cast %23 : vector<1x1x232xf32> to vector<1x232xf32>
    %25 = vector.shape_cast %24 : vector<1x232xf32> to vector<1x1x232xf32>
    %26 = arith.mulf %22, %25 : vector<1x1x232xf32>
    %27 = arith.addf %18, %26 : vector<1x1x232xf32>
    %c2_18 = arith.constant 2 : index
    %c0_19 = arith.constant 0 : index
    %c0_20 = arith.constant 0 : index
    %c0_21 = arith.constant 0 : index
    %28 = vector.load %arg1[%c2_18, %c0_19, %c0_20, %c0_21] : memref<4x2x2x232xbf16, #tpu.memory_space<vmem>>, vector<1x2x2x232xbf16>
    %29 = vector.shape_cast %28 : vector<1x2x2x232xbf16> to vector<2x2x232xbf16>
    %30 = arith.extf %29 : vector<2x2x232xbf16> to vector<2x2x232xf32>
    %31 = vector.extract_strided_slice %30 {offsets = [0, 0, 0], sizes = [1, 1, 232], strides = [1, 1, 1]} : vector<2x2x232xf32> to vector<1x1x232xf32>
    %c3 = arith.constant 3 : index
    %c0_22 = arith.constant 0 : index
    %c0_23 = arith.constant 0 : index
    %32 = vector.load %arg2[%c3, %c0_22, %c0_23] : memref<9x1x232xf32, #tpu.memory_space<vmem>>, vector<1x1x232xf32>
    %33 = vector.shape_cast %32 : vector<1x1x232xf32> to vector<1x232xf32>
    %34 = vector.shape_cast %33 : vector<1x232xf32> to vector<1x1x232xf32>
    %35 = arith.mulf %31, %34 : vector<1x1x232xf32>
    %36 = arith.addf %27, %35 : vector<1x1x232xf32>
    %c3_24 = arith.constant 3 : index
    %c0_25 = arith.constant 0 : index
    %c0_26 = arith.constant 0 : index
    %c0_27 = arith.constant 0 : index
    %37 = vector.load %arg1[%c3_24, %c0_25, %c0_26, %c0_27] : memref<4x2x2x232xbf16, #tpu.memory_space<vmem>>, vector<1x2x2x232xbf16>
    %38 = vector.shape_cast %37 : vector<1x2x2x232xbf16> to vector<2x2x232xbf16>
    %39 = arith.extf %38 : vector<2x2x232xbf16> to vector<2x2x232xf32>
    %40 = vector.extract_strided_slice %39 {offsets = [0, 0, 0], sizes = [1, 1, 232], strides = [1, 1, 1]} : vector<2x2x232xf32> to vector<1x1x232xf32>
    %c4 = arith.constant 4 : index
    %c0_28 = arith.constant 0 : index
    %c0_29 = arith.constant 0 : index
    %41 = vector.load %arg2[%c4, %c0_28, %c0_29] : memref<9x1x232xf32, #tpu.memory_space<vmem>>, vector<1x1x232xf32>
    %42 = vector.shape_cast %41 : vector<1x1x232xf32> to vector<1x232xf32>
    %43 = vector.shape_cast %42 : vector<1x232xf32> to vector<1x1x232xf32>
    %44 = arith.mulf %40, %43 : vector<1x1x232xf32>
    %45 = arith.addf %36, %44 : vector<1x1x232xf32>
    %c2_30 = arith.constant 2 : index
    %c0_31 = arith.constant 0 : index
    %c0_32 = arith.constant 0 : index
    %c0_33 = arith.constant 0 : index
    %46 = vector.load %arg1[%c2_30, %c0_31, %c0_32, %c0_33] : memref<4x2x2x232xbf16, #tpu.memory_space<vmem>>, vector<1x2x2x232xbf16>
    %47 = vector.shape_cast %46 : vector<1x2x2x232xbf16> to vector<2x2x232xbf16>
    %48 = arith.extf %47 : vector<2x2x232xbf16> to vector<2x2x232xf32>
    %49 = vector.extract_strided_slice %48 {offsets = [0, 1, 0], sizes = [1, 1, 232], strides = [1, 1, 1]} : vector<2x2x232xf32> to vector<1x1x232xf32>
    %c5 = arith.constant 5 : index
    %c0_34 = arith.constant 0 : index
    %c0_35 = arith.constant 0 : index
    %50 = vector.load %arg2[%c5, %c0_34, %c0_35] : memref<9x1x232xf32, #tpu.memory_space<vmem>>, vector<1x1x232xf32>
    %51 = vector.shape_cast %50 : vector<1x1x232xf32> to vector<1x232xf32>
    %52 = vector.shape_cast %51 : vector<1x232xf32> to vector<1x1x232xf32>
    %53 = arith.mulf %49, %52 : vector<1x1x232xf32>
    %54 = arith.addf %45, %53 : vector<1x1x232xf32>
    %c0_36 = arith.constant 0 : index
    %c0_37 = arith.constant 0 : index
    %c0_38 = arith.constant 0 : index
    %c0_39 = arith.constant 0 : index
    %55 = vector.load %arg1[%c0_36, %c0_37, %c0_38, %c0_39] : memref<4x2x2x232xbf16, #tpu.memory_space<vmem>>, vector<1x2x2x232xbf16>
    %56 = vector.shape_cast %55 : vector<1x2x2x232xbf16> to vector<2x2x232xbf16>
    %57 = arith.extf %56 : vector<2x2x232xbf16> to vector<2x2x232xf32>
    %58 = vector.extract_strided_slice %57 {offsets = [1, 0, 0], sizes = [1, 1, 232], strides = [1, 1, 1]} : vector<2x2x232xf32> to vector<1x1x232xf32>
    %c6 = arith.constant 6 : index
    %c0_40 = arith.constant 0 : index
    %c0_41 = arith.constant 0 : index
    %59 = vector.load %arg2[%c6, %c0_40, %c0_41] : memref<9x1x232xf32, #tpu.memory_space<vmem>>, vector<1x1x232xf32>
    %60 = vector.shape_cast %59 : vector<1x1x232xf32> to vector<1x232xf32>
    %61 = vector.shape_cast %60 : vector<1x232xf32> to vector<1x1x232xf32>
    %62 = arith.mulf %58, %61 : vector<1x1x232xf32>
    %63 = arith.addf %54, %62 : vector<1x1x232xf32>
    %c1_42 = arith.constant 1 : index
    %c0_43 = arith.constant 0 : index
    %c0_44 = arith.constant 0 : index
    %c0_45 = arith.constant 0 : index
    %64 = vector.load %arg1[%c1_42, %c0_43, %c0_44, %c0_45] : memref<4x2x2x232xbf16, #tpu.memory_space<vmem>>, vector<1x2x2x232xbf16>
    %65 = vector.shape_cast %64 : vector<1x2x2x232xbf16> to vector<2x2x232xbf16>
    %66 = arith.extf %65 : vector<2x2x232xbf16> to vector<2x2x232xf32>
    %67 = vector.extract_strided_slice %66 {offsets = [1, 0, 0], sizes = [1, 1, 232], strides = [1, 1, 1]} : vector<2x2x232xf32> to vector<1x1x232xf32>
    %c7 = arith.constant 7 : index
    %c0_46 = arith.constant 0 : index
    %c0_47 = arith.constant 0 : index
    %68 = vector.load %arg2[%c7, %c0_46, %c0_47] : memref<9x1x232xf32, #tpu.memory_space<vmem>>, vector<1x1x232xf32>
    %69 = vector.shape_cast %68 : vector<1x1x232xf32> to vector<1x232xf32>
    %70 = vector.shape_cast %69 : vector<1x232xf32> to vector<1x1x232xf32>
    %71 = arith.mulf %67, %70 : vector<1x1x232xf32>
    %72 = arith.addf %63, %71 : vector<1x1x232xf32>
    %c0_48 = arith.constant 0 : index
    %c0_49 = arith.constant 0 : index
    %c0_50 = arith.constant 0 : index
    %c0_51 = arith.constant 0 : index
    %73 = vector.load %arg1[%c0_48, %c0_49, %c0_50, %c0_51] : memref<4x2x2x232xbf16, #tpu.memory_space<vmem>>, vector<1x2x2x232xbf16>
    %74 = vector.shape_cast %73 : vector<1x2x2x232xbf16> to vector<2x2x232xbf16>
    %75 = arith.extf %74 : vector<2x2x232xbf16> to vector<2x2x232xf32>
    %76 = vector.extract_strided_slice %75 {offsets = [1, 1, 0], sizes = [1, 1, 232], strides = [1, 1, 1]} : vector<2x2x232xf32> to vector<1x1x232xf32>
    %c8 = arith.constant 8 : index
    %c0_52 = arith.constant 0 : index
    %c0_53 = arith.constant 0 : index
    %77 = vector.load %arg2[%c8, %c0_52, %c0_53] : memref<9x1x232xf32, #tpu.memory_space<vmem>>, vector<1x1x232xf32>
    %78 = vector.shape_cast %77 : vector<1x1x232xf32> to vector<1x232xf32>
    %79 = vector.shape_cast %78 : vector<1x232xf32> to vector<1x1x232xf32>
    %80 = arith.mulf %76, %79 : vector<1x1x232xf32>
    %81 = arith.addf %72, %80 : vector<1x1x232xf32>
    %c0_54 = arith.constant 0 : index
    %c0_55 = arith.constant 0 : index
    %82 = vector.load %arg3[%c0_54, %c0_55] : memref<1x232xf32, #tpu.memory_space<vmem>>, vector<1x232xf32>
    %83 = vector.shape_cast %82 : vector<1x232xf32> to vector<1x1x232xf32>
    %84 = arith.addf %81, %83 : vector<1x1x232xf32>
    %85 = arith.truncf %84 : vector<1x1x232xf32> to vector<1x1x232xbf16>
    %c0_56 = arith.constant 0 : index
    %c0_57 = arith.constant 0 : index
    %c0_58 = arith.constant 0 : index
    %c0_59 = arith.constant 0 : index
    %86 = vector.load %arg4[%c0_56, %c0_57, %c0_58, %c0_59] : memref<1x1x1x232xbf16, #tpu.memory_space<vmem>>, vector<1x1x1x232xbf16>
    %87 = vector.shape_cast %86 : vector<1x1x1x232xbf16> to vector<1x1x232xbf16>
    %88 = vector.shape_cast %85 : vector<1x1x232xbf16> to vector<1x1x1x232xbf16>
    tpu.vector_store %arg4[%c0_56, %c0_57, %c0_58, %c0_59], %88 {strides = array<i32>} : memref<1x1x1x232xbf16, #tpu.memory_space<vmem>>, vector<1x1x1x232xbf16>,
    return
  }
  func.func @transform_0(%arg0: i32) -> (i32, i32, i32, i32) {
    %c0_i32 = arith.constant 0 : i32
    %c0_i32_0 = arith.constant 0 : i32
    %c0_i32_1 = arith.constant 0 : i32
    %c0_i32_2 = arith.constant 0 : i32
    return %arg0, %c0_i32, %c0_i32_0, %c0_i32_1 : i32, i32, i32, i32
  }
  func.func @transform_1(%arg0: i32) -> (i32, i32, i32) {
    %c0_i32 = arith.constant 0 : i32
    %c0_i32_0 = arith.constant 0 : i32
    %c0_i32_1 = arith.constant 0 : i32
    %c0_i32_2 = arith.constant 0 : i32
    return %c0_i32, %c0_i32_0, %c0_i32_1 : i32, i32, i32
  }
  func.func @transform_2(%arg0: i32) -> (i32, i32) {
    %c0_i32 = arith.constant 0 : i32
    %c0_i32_0 = arith.constant 0 : i32
    %c0_i32_1 = arith.constant 0 : i32
    return %c0_i32, %c0_i32_0 : i32, i32
  }
  func.func @transform_3(%arg0: i32) -> (i32, i32, i32, i32) {
    %c0_i32 = arith.constant 0 : i32
    %c0_i32_0 = arith.constant 0 : i32
    %c0_i32_1 = arith.constant 0 : i32
    %c0_i32_2 = arith.constant 0 : i32
    return %arg0, %c0_i32, %c0_i32_0, %c0_i32_1 : i32, i32, i32, i32
  }
}

module attributes {stable_mosaic.version = 11 : i64} {
  func.func @_dwconv3x3_s1_kernel(%arg0: i32, %arg1: memref<1x3x3x232xbf16, #tpu.memory_space<vmem>>, %arg2: memref<9x1x232xf32, #tpu.memory_space<vmem>>, %arg3: memref<1x232xf32, #tpu.memory_space<vmem>>, %arg4: memref<1x1x1x232xbf16, #tpu.memory_space<vmem>>) attributes {dimension_semantics = [#tpu.dimension_semantics<parallel>], iteration_bounds = array<i64: 2>, scalar_prefetch = 0 : i64, scratch_operands = 0 : i64, tpu.core_type = #tpu.core_type<tc>, window_params = [{transform_indices = @transform_0, window_bounds = array<i64: 1, 3, 3, 232>}, {pipeline_mode = #tpu.pipeline_mode<synchronous>, transform_indices = @transform_1, window_bounds = array<i64: 9, 1, 232>}, {pipeline_mode = #tpu.pipeline_mode<synchronous>, transform_indices = @transform_2, window_bounds = array<i64: 1, 232>}, {transform_indices = @transform_3, window_bounds = array<i64: 1, 1, 1, 232>}]} {
    %c0 = arith.constant 0 : index
    %c0_0 = arith.constant 0 : index
    %c0_1 = arith.constant 0 : index
    %c0_2 = arith.constant 0 : index
    %0 = vector.load %arg1[%c0, %c0_0, %c0_1, %c0_2] : memref<1x3x3x232xbf16, #tpu.memory_space<vmem>>, vector<1x3x3x232xbf16>
    %1 = vector.shape_cast %0 : vector<1x3x3x232xbf16> to vector<3x3x232xbf16>
    %2 = arith.extf %1 : vector<3x3x232xbf16> to vector<3x3x232xf32>
    %cst = arith.constant 0.000000e+00 : f32
    %3 = vector.broadcast %cst : f32 to vector<1x1x232xf32>
    %4 = vector.extract_strided_slice %2 {offsets = [0, 0, 0], sizes = [1, 1, 232], strides = [1, 1, 1]} : vector<3x3x232xf32> to vector<1x1x232xf32>
    %c0_3 = arith.constant 0 : index
    %c0_4 = arith.constant 0 : index
    %c0_5 = arith.constant 0 : index
    %5 = vector.load %arg2[%c0_3, %c0_4, %c0_5] : memref<9x1x232xf32, #tpu.memory_space<vmem>>, vector<1x1x232xf32>
    %6 = vector.shape_cast %5 : vector<1x1x232xf32> to vector<1x232xf32>
    %7 = vector.shape_cast %6 : vector<1x232xf32> to vector<1x1x232xf32>
    %8 = arith.mulf %4, %7 : vector<1x1x232xf32>
    %9 = arith.addf %3, %8 : vector<1x1x232xf32>
    %10 = vector.extract_strided_slice %2 {offsets = [0, 1, 0], sizes = [1, 1, 232], strides = [1, 1, 1]} : vector<3x3x232xf32> to vector<1x1x232xf32>
    %c1 = arith.constant 1 : index
    %c0_6 = arith.constant 0 : index
    %c0_7 = arith.constant 0 : index
    %11 = vector.load %arg2[%c1, %c0_6, %c0_7] : memref<9x1x232xf32, #tpu.memory_space<vmem>>, vector<1x1x232xf32>
    %12 = vector.shape_cast %11 : vector<1x1x232xf32> to vector<1x232xf32>
    %13 = vector.shape_cast %12 : vector<1x232xf32> to vector<1x1x232xf32>
    %14 = arith.mulf %10, %13 : vector<1x1x232xf32>
    %15 = arith.addf %9, %14 : vector<1x1x232xf32>
    %16 = vector.extract_strided_slice %2 {offsets = [0, 2, 0], sizes = [1, 1, 232], strides = [1, 1, 1]} : vector<3x3x232xf32> to vector<1x1x232xf32>
    %c2 = arith.constant 2 : index
    %c0_8 = arith.constant 0 : index
    %c0_9 = arith.constant 0 : index
    %17 = vector.load %arg2[%c2, %c0_8, %c0_9] : memref<9x1x232xf32, #tpu.memory_space<vmem>>, vector<1x1x232xf32>
    %18 = vector.shape_cast %17 : vector<1x1x232xf32> to vector<1x232xf32>
    %19 = vector.shape_cast %18 : vector<1x232xf32> to vector<1x1x232xf32>
    %20 = arith.mulf %16, %19 : vector<1x1x232xf32>
    %21 = arith.addf %15, %20 : vector<1x1x232xf32>
    %22 = vector.extract_strided_slice %2 {offsets = [1, 0, 0], sizes = [1, 1, 232], strides = [1, 1, 1]} : vector<3x3x232xf32> to vector<1x1x232xf32>
    %c3 = arith.constant 3 : index
    %c0_10 = arith.constant 0 : index
    %c0_11 = arith.constant 0 : index
    %23 = vector.load %arg2[%c3, %c0_10, %c0_11] : memref<9x1x232xf32, #tpu.memory_space<vmem>>, vector<1x1x232xf32>
    %24 = vector.shape_cast %23 : vector<1x1x232xf32> to vector<1x232xf32>
    %25 = vector.shape_cast %24 : vector<1x232xf32> to vector<1x1x232xf32>
    %26 = arith.mulf %22, %25 : vector<1x1x232xf32>
    %27 = arith.addf %21, %26 : vector<1x1x232xf32>
    %28 = vector.extract_strided_slice %2 {offsets = [1, 1, 0], sizes = [1, 1, 232], strides = [1, 1, 1]} : vector<3x3x232xf32> to vector<1x1x232xf32>
    %c4 = arith.constant 4 : index
    %c0_12 = arith.constant 0 : index
    %c0_13 = arith.constant 0 : index
    %29 = vector.load %arg2[%c4, %c0_12, %c0_13] : memref<9x1x232xf32, #tpu.memory_space<vmem>>, vector<1x1x232xf32>
    %30 = vector.shape_cast %29 : vector<1x1x232xf32> to vector<1x232xf32>
    %31 = vector.shape_cast %30 : vector<1x232xf32> to vector<1x1x232xf32>
    %32 = arith.mulf %28, %31 : vector<1x1x232xf32>
    %33 = arith.addf %27, %32 : vector<1x1x232xf32>
    %34 = vector.extract_strided_slice %2 {offsets = [1, 2, 0], sizes = [1, 1, 232], strides = [1, 1, 1]} : vector<3x3x232xf32> to vector<1x1x232xf32>
    %c5 = arith.constant 5 : index
    %c0_14 = arith.constant 0 : index
    %c0_15 = arith.constant 0 : index
    %35 = vector.load %arg2[%c5, %c0_14, %c0_15] : memref<9x1x232xf32, #tpu.memory_space<vmem>>, vector<1x1x232xf32>
    %36 = vector.shape_cast %35 : vector<1x1x232xf32> to vector<1x232xf32>
    %37 = vector.shape_cast %36 : vector<1x232xf32> to vector<1x1x232xf32>
    %38 = arith.mulf %34, %37 : vector<1x1x232xf32>
    %39 = arith.addf %33, %38 : vector<1x1x232xf32>
    %40 = vector.extract_strided_slice %2 {offsets = [2, 0, 0], sizes = [1, 1, 232], strides = [1, 1, 1]} : vector<3x3x232xf32> to vector<1x1x232xf32>
    %c6 = arith.constant 6 : index
    %c0_16 = arith.constant 0 : index
    %c0_17 = arith.constant 0 : index
    %41 = vector.load %arg2[%c6, %c0_16, %c0_17] : memref<9x1x232xf32, #tpu.memory_space<vmem>>, vector<1x1x232xf32>
    %42 = vector.shape_cast %41 : vector<1x1x232xf32> to vector<1x232xf32>
    %43 = vector.shape_cast %42 : vector<1x232xf32> to vector<1x1x232xf32>
    %44 = arith.mulf %40, %43 : vector<1x1x232xf32>
    %45 = arith.addf %39, %44 : vector<1x1x232xf32>
    %46 = vector.extract_strided_slice %2 {offsets = [2, 1, 0], sizes = [1, 1, 232], strides = [1, 1, 1]} : vector<3x3x232xf32> to vector<1x1x232xf32>
    %c7 = arith.constant 7 : index
    %c0_18 = arith.constant 0 : index
    %c0_19 = arith.constant 0 : index
    %47 = vector.load %arg2[%c7, %c0_18, %c0_19] : memref<9x1x232xf32, #tpu.memory_space<vmem>>, vector<1x1x232xf32>
    %48 = vector.shape_cast %47 : vector<1x1x232xf32> to vector<1x232xf32>
    %49 = vector.shape_cast %48 : vector<1x232xf32> to vector<1x1x232xf32>
    %50 = arith.mulf %46, %49 : vector<1x1x232xf32>
    %51 = arith.addf %45, %50 : vector<1x1x232xf32>
    %52 = vector.extract_strided_slice %2 {offsets = [2, 2, 0], sizes = [1, 1, 232], strides = [1, 1, 1]} : vector<3x3x232xf32> to vector<1x1x232xf32>
    %c8 = arith.constant 8 : index
    %c0_20 = arith.constant 0 : index
    %c0_21 = arith.constant 0 : index
    %53 = vector.load %arg2[%c8, %c0_20, %c0_21] : memref<9x1x232xf32, #tpu.memory_space<vmem>>, vector<1x1x232xf32>
    %54 = vector.shape_cast %53 : vector<1x1x232xf32> to vector<1x232xf32>
    %55 = vector.shape_cast %54 : vector<1x232xf32> to vector<1x1x232xf32>
    %56 = arith.mulf %52, %55 : vector<1x1x232xf32>
    %57 = arith.addf %51, %56 : vector<1x1x232xf32>
    %c0_22 = arith.constant 0 : index
    %c0_23 = arith.constant 0 : index
    %58 = vector.load %arg3[%c0_22, %c0_23] : memref<1x232xf32, #tpu.memory_space<vmem>>, vector<1x232xf32>
    %59 = vector.shape_cast %58 : vector<1x232xf32> to vector<1x1x232xf32>
    %60 = arith.addf %57, %59 : vector<1x1x232xf32>
    %61 = arith.truncf %60 : vector<1x1x232xf32> to vector<1x1x232xbf16>
    %c0_24 = arith.constant 0 : index
    %c0_25 = arith.constant 0 : index
    %c0_26 = arith.constant 0 : index
    %c0_27 = arith.constant 0 : index
    %62 = vector.load %arg4[%c0_24, %c0_25, %c0_26, %c0_27] : memref<1x1x1x232xbf16, #tpu.memory_space<vmem>>, vector<1x1x1x232xbf16>
    %63 = vector.shape_cast %62 : vector<1x1x1x232xbf16> to vector<1x1x232xbf16>
    %64 = vector.shape_cast %61 : vector<1x1x232xbf16> to vector<1x1x1x232xbf16>
    tpu.vector_store %arg4[%c0_24, %c0_25, %c0_26, %c0_27], %64 {strides = array<i32>} : memref<1x1x1x232xbf16, #tpu.memory_space<vmem>>, vector<1x1x1x232xbf16>,
    return
  }
  func.func @transform_0(%arg0: i32) -> (i32, i32, i32, i32) {
    %c0_i32 = arith.constant 0 : i32
    %c0_i32_0 = arith.constant 0 : i32
    %c0_i32_1 = arith.constant 0 : i32
    %c0_i32_2 = arith.constant 0 : i32
    return %arg0, %c0_i32, %c0_i32_0, %c0_i32_1 : i32, i32, i32, i32
  }
  func.func @transform_1(%arg0: i32) -> (i32, i32, i32) {
    %c0_i32 = arith.constant 0 : i32
    %c0_i32_0 = arith.constant 0 : i32
    %c0_i32_1 = arith.constant 0 : i32
    %c0_i32_2 = arith.constant 0 : i32
    return %c0_i32, %c0_i32_0, %c0_i32_1 : i32, i32, i32
  }
  func.func @transform_2(%arg0: i32) -> (i32, i32) {
    %c0_i32 = arith.constant 0 : i32
    %c0_i32_0 = arith.constant 0 : i32
    %c0_i32_1 = arith.constant 0 : i32
    return %c0_i32, %c0_i32_0 : i32, i32
  }
  func.func @transform_3(%arg0: i32) -> (i32, i32, i32, i32) {
    %c0_i32 = arith.constant 0 : i32
    %c0_i32_0 = arith.constant 0 : i32
    %c0_i32_1 = arith.constant 0 : i32
    %c0_i32_2 = arith.constant 0 : i32
    return %arg0, %c0_i32, %c0_i32_0, %c0_i32_1 : i32, i32, i32, i32
  }
}

module attributes {stable_mosaic.version = 11 : i64} {
  func.func @_matmul_bias_act_kernel(%arg0: i32, %arg1: memref<8x464xbf16, #tpu.memory_space<vmem>>, %arg2: memref<464x1024xbf16, #tpu.memory_space<vmem>>, %arg3: memref<1x1024xf32, #tpu.memory_space<vmem>>, %arg4: memref<8x1024xbf16, #tpu.memory_space<vmem>>) attributes {dimension_semantics = [#tpu.dimension_semantics<parallel>], iteration_bounds = array<i64: 1>, scalar_prefetch = 0 : i64, scratch_operands = 0 : i64, tpu.core_type = #tpu.core_type<tc>, window_params = [{transform_indices = @transform_0, window_bounds = array<i64: 8, 464>}, {pipeline_mode = #tpu.pipeline_mode<synchronous>, transform_indices = @transform_1, window_bounds = array<i64: 464, 1024>}, {pipeline_mode = #tpu.pipeline_mode<synchronous>, transform_indices = @transform_2, window_bounds = array<i64: 1, 1024>}, {transform_indices = @transform_3, window_bounds = array<i64: 8, 1024>}]} {
    %c0 = arith.constant 0 : index
    %c0_0 = arith.constant 0 : index
    %0 = vector.load %arg1[%c0, %c0_0] : memref<8x464xbf16, #tpu.memory_space<vmem>>, vector<8x464xbf16>
    %c0_1 = arith.constant 0 : index
    %c0_2 = arith.constant 0 : index
    %1 = vector.load %arg2[%c0_1, %c0_2] : memref<464x1024xbf16, #tpu.memory_space<vmem>>, vector<464x1024xbf16>
    %cst = arith.constant dense<0.000000e+00> : vector<8x1024xf32>
    %2 = tpu.matmul %0, %1, %cst {dimension_numbers = #tpu.dot_dimension_numbers<[1], [0], [0], [1], [0, 0, 1, 1], [], []>} : vector<8x464xbf16>, vector<464x1024xbf16>, vector<8x1024xf32> -> vector<8x1024xf32>
    %c0_3 = arith.constant 0 : index
    %c0_4 = arith.constant 0 : index
    %3 = vector.load %arg3[%c0_3, %c0_4] : memref<1x1024xf32, #tpu.memory_space<vmem>>, vector<1x1024xf32>
    %4 = vector.broadcast %3 : vector<1x1024xf32> to vector<8x1024xf32>
    %5 = arith.addf %2, %4 : vector<8x1024xf32>
    %cst_5 = arith.constant 0.000000e+00 : f32
    %6 = vector.broadcast %cst_5 : f32 to vector<8x1024xf32>
    %7 = arith.maximumf %5, %6 : vector<8x1024xf32>
    %8 = arith.truncf %7 : vector<8x1024xf32> to vector<8x1024xbf16>
    %c0_6 = arith.constant 0 : index
    %c0_7 = arith.constant 0 : index
    %9 = vector.load %arg4[%c0_6, %c0_7] : memref<8x1024xbf16, #tpu.memory_space<vmem>>, vector<8x1024xbf16>
    tpu.vector_store %arg4[%c0_6, %c0_7], %8 {strides = array<i32>} : memref<8x1024xbf16, #tpu.memory_space<vmem>>, vector<8x1024xbf16>,
    return
  }
  func.func @transform_0(%arg0: i32) -> (i32, i32) {
    %c0_i32 = arith.constant 0 : i32
    %c0_i32_0 = arith.constant 0 : i32
    return %arg0, %c0_i32 : i32, i32
  }
  func.func @transform_1(%arg0: i32) -> (i32, i32) {
    %c0_i32 = arith.constant 0 : i32
    %c0_i32_0 = arith.constant 0 : i32
    %c0_i32_1 = arith.constant 0 : i32
    return %c0_i32, %c0_i32_0 : i32, i32
  }
  func.func @transform_2(%arg0: i32) -> (i32, i32) {
    %c0_i32 = arith.constant 0 : i32
    %c0_i32_0 = arith.constant 0 : i32
    %c0_i32_1 = arith.constant 0 : i32
    return %c0_i32, %c0_i32_0 : i32, i32
  }
  func.func @transform_3(%arg0: i32) -> (i32, i32) {
    %c0_i32 = arith.constant 0 : i32
    %c0_i32_0 = arith.constant 0 : i32
    return %arg0, %c0_i32 : i32, i32
  }
}

module attributes {stable_mosaic.version = 11 : i64} {
  func.func @_pool_fc_sigmoid_kernel(%arg0: memref<2x1x1024xbf16, #tpu.memory_space<vmem>>, %arg1: memref<1x1024xf32, #tpu.memory_space<vmem>>, %arg2: memref<1x1xf32, #tpu.memory_space<vmem>>, %arg3: memref<2x1xf32, #tpu.memory_space<vmem>>) attributes {dimension_semantics = [], scalar_prefetch = 0 : i64, scratch_operands = 0 : i64, tpu.core_type = #tpu.core_type<tc>} {
    %c0 = arith.constant 0 : index
    %c0_0 = arith.constant 0 : index
    %c0_1 = arith.constant 0 : index
    %0 = vector.load %arg0[%c0, %c0_0, %c0_1] : memref<2x1x1024xbf16, #tpu.memory_space<vmem>>, vector<2x1x1024xbf16>
    %1 = arith.extf %0 : vector<2x1x1024xbf16> to vector<2x1x1024xf32>
    %cst = arith.constant dense<0.000000e+00> : vector<2x1024xf32>
    %2 = vector.multi_reduction <add>, %1, %cst [1] : vector<2x1x1024xf32> to vector<2x1024xf32>
    %cst_2 = arith.constant 1.000000e+00 : f32
    %3 = vector.broadcast %cst_2 : f32 to vector<2x1024xf32>
    %4 = arith.divf %2, %3 : vector<2x1024xf32>
    %c0_3 = arith.constant 0 : index
    %c0_4 = arith.constant 0 : index
    %5 = vector.load %arg1[%c0_3, %c0_4] : memref<1x1024xf32, #tpu.memory_space<vmem>>, vector<1x1024xf32>
    %6 = vector.broadcast %5 : vector<1x1024xf32> to vector<2x1024xf32>
    %7 = arith.mulf %4, %6 : vector<2x1024xf32>
    %cst_5 = arith.constant dense<0.000000e+00> : vector<2xf32>
    %8 = vector.multi_reduction <add>, %7, %cst_5 [1] : vector<2x1024xf32> to vector<2xf32>
    %9 = vector.shape_cast %8 : vector<2xf32> to vector<2x1xf32>
    %c0_6 = arith.constant 0 : index
    %c0_7 = arith.constant 0 : index
    %10 = vector.load %arg2[%c0_6, %c0_7] : memref<1x1xf32, #tpu.memory_space<vmem>>, vector<1x1xf32>
    %11 = vector.broadcast %10 : vector<1x1xf32> to vector<2x1xf32>
    %12 = arith.addf %9, %11 : vector<2x1xf32>
    %13 = arith.negf %12 : vector<2x1xf32>
    %14 = math.exp %13 : vector<2x1xf32>
    %cst_8 = arith.constant 1.000000e+00 : f32
    %15 = vector.broadcast %cst_8 : f32 to vector<2x1xf32>
    %16 = arith.addf %15, %14 : vector<2x1xf32>
    %17 = arith.divf %15, %16 : vector<2x1xf32>
    %c0_9 = arith.constant 0 : index
    %c0_10 = arith.constant 0 : index
    %18 = vector.load %arg3[%c0_9, %c0_10] : memref<2x1xf32, #tpu.memory_space<vmem>>, vector<2x1xf32>
    tpu.vector_store %arg3[%c0_9, %c0_10], %17 {strides = array<i32>} : memref<2x1xf32, #tpu.memory_space<vmem>>, vector<2x1xf32>,
    return
  }
}

</mosaic_0001>

<llo_original>
// kernel: reranking_shufflenet_forward.58
$region0: #{reranking_shufflenet_forward.58}
  #allocation0 [shape = 'u32[]', space=smem, size = 0x4, offset = 0x4, fixed_abs, tag = 'smem constant byte address 0x4 - core index']
  #allocation1 [shape = 'u32[144,128]{1,0:T(1,128)}', space=vmem, size = 0x12000, scoped, tag = 'internal scratch']
  %s0 = inlined_call_operand.vmem [shape: bf16[512,27], index: 0, kind: input, shape index: {}]
  %s1 = inlined_call_operand.vmem [shape: bf16[27,24], index: 1, kind: input, shape index: {}]
  %s2 = inlined_call_operand.vmem [shape: f32[1,24], index: 2, kind: input, shape index: {}]
  %s3 = inlined_call_operand.vmem [shape: bf16[512,24], index: 3, kind: output, shape index: {}]
  %s4 = sld [smem:[#allocation0]]
  $region45: #{reranking_shufflenet_forward.58} parent=0
    _
  %s6 = ssub.s32 1, %s4
  %s7 = scalar_select 0, %s6, %s4
  loop: start=0, step=1, limit=4
  $region2: #{reranking_shufflenet_forward.58} parent=0 // loop_pre_header
    _
  $region3: #{reranking_shufflenet_forward.58} parent=0 // loop_header
    %s9 = sphi 0, %s13
    %p10 = scmp.ge.s32.totalorder %s9, 4
    %s19 = sphi 0, %s21
    %s22 = sphi 0, %s19
    %s23 = sphi 0, %s22
    %s39 = sphi 0, %s23
    %s43 = sphi 0, %s43
    %s45 = sphi 0, %s43
    %s46 = sphi 0, %s45
    %s60 = sphi 0, %s46
    %s64 = sphi 0, %s64
    %s66 = sphi 0, %s64
    %s67 = sphi 0, %s66
    %s81 = sphi 0, %s67
    %s87 = sphi 0, %s89
    %s90 = sphi 0, %s87
    %s91 = sphi 0, %s90
    %s107 = sphi 0, %s91
  $region4: #{reranking_shufflenet_forward.58} parent=0 // loop_header_branch
    %12 = sbr.rel (%p10) target = $region8
  $region5: #{reranking_shufflenet_forward.58} parent=0 // loop_body
    %s14 = ssub.s32 %s9, 1
    %s15 = ssub.s32 %s9, 2
    %s16 = sadd.s32 %s9, 1
    %s17 = ssub.s32 %s9, %s16
    %p18 = scmp.eq.s32.totalorder %s17, 0
    %s20 = sadd.s32 %s19, 1
    %s21 = scalar_select %p18, %s19, %s20
    %p24 = pneg %p18
    %p25 = scmp.eq.s32.totalorder %s9, 1
    %p26 = por %p24, %p25
    %p27 = scmp.ne.s32.totalorder %s19, %s22
    %p28 = scmp.eq.s32.totalorder %s9, 0
    %p29 = por %p27, %p28
    %p30 = scmp.ne.s32.totalorder %s19, %s22
    %p31 = scmp.eq.s32.totalorder %s14, 1
    %p32 = por %p30, %p31
    %p33 = scmp.ne.s32.totalorder %s22, %s23
    %p34 = scmp.eq.s32.totalorder %s14, 0
    %p35 = por %p33, %p34
    %p36 = scmp.ne.s32.totalorder %s22, %s23
    %p37 = scmp.eq.s32.totalorder %s15, 1
    %p38 = por %p36, %p37
    %p40 = scmp.ne.s32.totalorder %s23, %s39
    %p41 = scmp.eq.s32.totalorder %s15, 0
    %p42 = por %p40, %p41
    %s44 = sadd.s32 %s43, 1
    %p47 = scmp.eq.s32.totalorder %s9, 1
    %p48 = scmp.ne.s32.totalorder %s43, %s45
    %p49 = scmp.eq.s32.totalorder %s9, 0
    %p50 = por %p48, %p49
    %p51 = scmp.ne.s32.totalorder %s43, %s45
    %p52 = scmp.eq.s32.totalorder %s14, 1
    %p53 = por %p51, %p52
    %p54 = scmp.ne.s32.totalorder %s45, %s46
    %p55 = scmp.eq.s32.totalorder %s14, 0
    %p56 = por %p54, %p55
    %p57 = scmp.ne.s32.totalorder %s45, %s46
    %p58 = scmp.eq.s32.totalorder %s15, 1
    %p59 = por %p57, %p58
    %p61 = scmp.ne.s32.totalorder %s46, %s60
    %p62 = scmp.eq.s32.totalorder %s15, 0
    %p63 = por %p61, %p62
    %s65 = sadd.s32 %s64, 1
    %p68 = scmp.eq.s32.totalorder %s9, 1
    %p69 = scmp.ne.s32.totalorder %s64, %s66
    %p70 = scmp.eq.s32.totalorder %s9, 0
    %p71 = por %p69, %p70
    %p72 = scmp.ne.s32.totalorder %s64, %s66
    %p73 = scmp.eq.s32.totalorder %s14, 1
    %p74 = por %p72, %p73
    %p75 = scmp.ne.s32.totalorder %s66, %s67
    %p76 = scmp.eq.s32.totalorder %s14, 0
    %p77 = por %p75, %p76
    %p78 = scmp.ne.s32.totalorder %s66, %s67
    %p79 = scmp.eq.s32.totalorder %s15, 1
    %p80 = por %p78, %p79
    %p82 = scmp.ne.s32.totalorder %s67, %s81
    %p83 = scmp.eq.s32.totalorder %s15, 0
    %p84 = por %p82, %p83
    %s85 = ssub.s32 %s9, %s16
    %p86 = scmp.eq.s32.totalorder %s85, 0
    %s88 = sadd.s32 %s87, 1
    %s89 = scalar_select %p86, %s87, %s88
    %p92 = pneg %p86
    %p93 = scmp.eq.s32.totalorder %s9, 1
    %p94 = por %p92, %p93
    %p95 = scmp.ne.s32.totalorder %s87, %s90
    %p96 = scmp.eq.s32.totalorder %s9, 0
    %p97 = por %p95, %p96
    %p98 = scmp.ne.s32.totalorder %s87, %s90
    %p99 = scmp.eq.s32.totalorder %s14, 1
    %p100 = por %p98, %p99
    %p101 = scmp.ne.s32.totalorder %s90, %s91
    %p102 = scmp.eq.s32.totalorder %s14, 0
    %p103 = por %p101, %p102
    %p104 = scmp.ne.s32.totalorder %s90, %s91
    %p105 = scmp.eq.s32.totalorder %s15, 1
    %p106 = por %p104, %p105
    %p108 = scmp.ne.s32.totalorder %s91, %s107
    %p109 = scmp.eq.s32.totalorder %s15, 0
    %p110 = por %p108, %p109
    %p111 = scmp.le.s32.totalorder 1, %s9
    %p112 = scmp.lt.s32.totalorder %s9, 3
    %p113 = pnand %p111, %p112
    %p114 = pneg %p113
    // Predicated region
    $region9: #{reranking_shufflenet_forward.58} parent=5 // pred_check
      _
    $region10: #{reranking_shufflenet_forward.58} parent=5 // pred_check_branch
      %116 = sbr.rel (%p113) target = $region12
    $region11: #{reranking_shufflenet_forward.58} parent=5 // pred_region
      %s117 = ssub.s32 %s9, 1
      // Predicated region
      $region13: #{reranking_shufflenet_forward.58} parent=11 // pred_check
        %p118 = pneg %p56
      $region14: #{reranking_shufflenet_forward.58} parent=11 // pred_check_branch
        %120 = sbr.rel (%p118) target = $region16
      $region15: #{reranking_shufflenet_forward.58} parent=11 // pred_region
        _
      $region16: #{reranking_shufflenet_forward.58} parent=11 // pred_fallthru
        _
      // Predicated region
      $region17: #{reranking_shufflenet_forward.58} parent=11 // pred_check
        %p121 = pneg %p77
      $region18: #{reranking_shufflenet_forward.58} parent=11 // pred_check_branch
        %123 = sbr.rel (%p121) target = $region20
      $region19: #{reranking_shufflenet_forward.58} parent=11 // pred_region
        _
      $region20: #{reranking_shufflenet_forward.58} parent=11 // pred_fallthru
        _
    $region12: #{reranking_shufflenet_forward.58} parent=5 // pred_fallthru
      _
    %p124 = scmp.lt.s32.totalorder %s9, 2
    // Predicated region
    $region21: #{reranking_shufflenet_forward.58} parent=5 // pred_check
      %p125 = pneg %p124
    $region22: #{reranking_shufflenet_forward.58} parent=5 // pred_check_branch
      %127 = sbr.rel (%p125) target = $region24
    $region23: #{reranking_shufflenet_forward.58} parent=5 // pred_region
      // Predicated region
      $region25: #{reranking_shufflenet_forward.58} parent=23 // pred_check
        %p128 = pneg %p29
      $region26: #{reranking_shufflenet_forward.58} parent=23 // pred_check_branch
        %130 = sbr.rel (%p128) target = $region28
      $region27: #{reranking_shufflenet_forward.58} parent=23 // pred_region
        %s131 = smul.u32 32, %s9
        %p132 = scmp.lt.s32.totalorder %s131, 63
        %s133 = scalar_select %p132, %s131, 63
        %s134 = smul.addr %s133, 4
        %s135 = scalar_lea.vmem %s0, %s134
        %s136 = smul.u32 32, %s9
      $region28: #{reranking_shufflenet_forward.58} parent=23 // pred_fallthru
        _
    $region24: #{reranking_shufflenet_forward.58} parent=5 // pred_fallthru
      _
    %p137 = scmp.le.s32.totalorder 1, %s9
    %p138 = scmp.lt.s32.totalorder %s9, 3
    %p139 = pnand %p137, %p138
    %p140 = pneg %p139
    // Predicated region
    $region29: #{reranking_shufflenet_forward.58} parent=5 // pred_check
      _
    $region30: #{reranking_shufflenet_forward.58} parent=5 // pred_check_branch
      %142 = sbr.rel (%p139) target = $region32
    $region31: #{reranking_shufflenet_forward.58} parent=5 // pred_region
      %s143 = ssub.s32 %s9, 1
      %s144 = smul.u32 32, %s14
      %p145 = scmp.lt.s32.totalorder %s144, 63
      %s146 = scalar_select %p145, %s144, 63
      %s147 = smul.addr %s146, 4
      %s148 = scalar_lea.vmem %s0, %s147
      %p149 = pneg %p35
      %p150 = pneg %p32
      %p151 = pneg %p56
      %p152 = pneg %p53
      %p153 = pneg %p77
      %p154 = pneg %p74
      %p155 = pneg %p103
      %p156 = pneg %p100
      %s157 = smul.u32 32, %s14
      %p158 = scmp.lt.s32.totalorder %s157, 63
      %s159 = scalar_select %p158, %s157, 63
      %s160 = smul.addr %s159, 4
      %s161 = scalar_lea.vmem %s3, %s160
      %s162 = smul.u32 32, %s14
      %p163 = scmp.lt.s32.totalorder %s162, 63
      %s164 = scalar_select %p163, %s162, 63
      %s165 = smul.addr %s164, 4
      %s166 = scalar_lea.vmem %s0, %s165
      %s167 = smul.u32 32, %s14
      %s168 = smul.u32 32, %s14
      %p169 = scmp.lt.s32.totalorder %s168, 63
      %s170 = scalar_select %p169, %s168, 63
      %s171 = smul.addr %s170, 4
      %s172 = scalar_lea.vmem %s3, %s171
      %s173 = smul.u32 32, %s14
      %v175 = vld [vmem:[%s166] sm:$0xf]
      %v176 = vld [vmem:[%s166 + $0x4] sm:$0xf]
      %v177 = vld [vmem:[%s166 + $0x8] sm:$0xf]
      %v178 = vld [vmem:[%s166 + $0xc] sm:$0xf]
      %v179 = vld [vmem:[%s166 + $0x10] sm:$0xf]
      %v180 = vld [vmem:[%s166 + $0x14] sm:$0xf]
      %v181 = vld [vmem:[%s166 + $0x18] sm:$0xf]
      %v182 = vld [vmem:[%s166 + $0x1c] sm:$0xf]
      %v183 = vld [vmem:[%s166 + $0x20] sm:$0xf]
      %v184 = vld [vmem:[%s166 + $0x24] sm:$0xf]
      %v185 = vld [vmem:[%s166 + $0x28] sm:$0xf]
      %v186 = vld [vmem:[%s166 + $0x2c] sm:$0xf]
      %v187 = vld [vmem:[%s166 + $0x30] sm:$0xf]
      %v188 = vld [vmem:[%s166 + $0x34] sm:$0xf]
      %v189 = vld [vmem:[%s166 + $0x38] sm:$0xf]
      %v190 = vld [vmem:[%s166 + $0x3c] sm:$0xf]
      %v191 = vld [vmem:[%s166 + $0x40] sm:$0xf]
      %v192 = vld [vmem:[%s166 + $0x44] sm:$0xf]
      %v193 = vld [vmem:[%s166 + $0x48] sm:$0xf]
      %v194 = vld [vmem:[%s166 + $0x4c] sm:$0xf]
      %v195 = vld [vmem:[%s166 + $0x50] sm:$0xf]
      %v196 = vld [vmem:[%s166 + $0x54] sm:$0xf]
      %v197 = vld [vmem:[%s166 + $0x58] sm:$0xf]
      %v198 = vld [vmem:[%s166 + $0x5c] sm:$0xf]
      %v199 = vld [vmem:[%s166 + $0x60] sm:$0xf]
      %v200 = vld [vmem:[%s166 + $0x64] sm:$0xf]
      %v201 = vld [vmem:[%s166 + $0x68] sm:$0xf]
      %v202 = vld [vmem:[%s166 + $0x6c] sm:$0xf]
      %v203 = vld [vmem:[%s166 + $0x70] sm:$0xf]
      %v204 = vld [vmem:[%s166 + $0x74] sm:$0xf]
      %v205 = vld [vmem:[%s166 + $0x78] sm:$0xf]
      %v206 = vld [vmem:[%s166 + $0x7c] sm:$0xf]
      %v207 = vld [vmem:[%s1] sm:$0xf]
      %v208 = vld [vmem:[%s1 + $0x4] sm:$0xf]
      %v209 = vld [vmem:[%s1 + $0x8] sm:$0xf]
      %v210 = vld [vmem:[%s1 + $0xc] sm:$0x3]
      %v211 = vld [vmem:[%s2] sm:$0x1]
      %v213 = vlaneseq
      %v214 = vshrl.u32 %v213, 7
      %v215 = vsub.s32 0, %v214
      %v216 = vrot.slane %v211, %v215
      %v250 = vunpack.c.l.b16 %v175
      %v251 = vunpack.c.l.b16 %v176
      %v252 = vunpack.c.l.b16 %v177
      %v253 = vunpack.c.l.b16 %v178
      %v254 = vunpack.c.l.b16 %v179
      %v255 = vunpack.c.l.b16 %v180
      %v256 = vunpack.c.l.b16 %v181
      %v257 = vunpack.c.l.b16 %v182
      %v258 = vunpack.c.l.b16 %v183
      %v259 = vunpack.c.l.b16 %v184
      %v260 = vunpack.c.l.b16 %v185
      %v261 = vunpack.c.l.b16 %v186
      %v262 = vunpack.c.l.b16 %v187
      %v263 = vunpack.c.l.b16 %v188
      %v264 = vunpack.c.l.b16 %v189
      %v265 = vunpack.c.l.b16 %v190
      %v266 = vunpack.c.l.b16 %v191
      %v267 = vunpack.c.l.b16 %v192
      %v268 = vunpack.c.l.b16 %v193
      %v269 = vunpack.c.l.b16 %v194
      %v270 = vunpack.c.l.b16 %v195
      %v271 = vunpack.c.l.b16 %v196
      %v272 = vunpack.c.l.b16 %v197
      %v273 = vunpack.c.l.b16 %v198
      %v274 = vunpack.c.l.b16 %v199
      %v275 = vunpack.c.l.b16 %v200
      %v276 = vunpack.c.l.b16 %v201
      %v277 = vunpack.c.l.b16 %v202
      %v278 = vunpack.c.l.b16 %v203
      %v279 = vunpack.c.l.b16 %v204
      %v280 = vunpack.c.l.b16 %v205
      %v281 = vunpack.c.l.b16 %v206
      %v282 = vpack.c.b16 %v251, %v250
      %v283 = vpack.c.b16 %v253, %v252
      %v284 = vpack.c.b16 %v255, %v254
      %v285 = vpack.c.b16 %v257, %v256
      %v286 = vpack.c.b16 %v259, %v258
      %v287 = vpack.c.b16 %v261, %v260
      %v288 = vpack.c.b16 %v263, %v262
      %v289 = vpack.c.b16 %v265, %v264
      %v290 = vpack.c.b16 %v267, %v266
      %v291 = vpack.c.b16 %v269, %v268
      %v292 = vpack.c.b16 %v271, %v270
      %v293 = vpack.c.b16 %v273, %v272
      %v294 = vpack.c.b16 %v275, %v274
      %v295 = vpack.c.b16 %v277, %v276
      %v296 = vpack.c.b16 %v279, %v278
      %v297 = vpack.c.b16 %v281, %v280
      %v302 = vunpack.c.l.b16 %v207
      %v303 = vunpack.c.l.b16 %v208
      %v304 = vunpack.c.l.b16 %v209
      %v305 = vunpack.c.l.b16 %v210
      %v306 = vpack.c.b16 %v303, %v302
      %v307 = vpack.c.b16 %v305, %v304
      %vm309 = vcmask 220160
      %v311 = vsel %vm309, %v282, 0
      %v314 = vsel %vm309, %v283, 0
      %v317 = vsel %vm309, %v284, 0
      %v320 = vsel %vm309, %v285, 0
      %v323 = vsel %vm309, %v286, 0
      %v326 = vsel %vm309, %v287, 0
      %v329 = vsel %vm309, %v288, 0
      %v332 = vsel %vm309, %v289, 0
      %v335 = vsel %vm309, %v290, 0
      %v338 = vsel %vm309, %v291, 0
      %v341 = vsel %vm309, %v292, 0
      %v344 = vsel %vm309, %v293, 0
      %v347 = vsel %vm309, %v294, 0
      %v350 = vsel %vm309, %v295, 0
      %v353 = vsel %vm309, %v296, 0
      %v356 = vsel %vm309, %v297, 0
      %vm358 = vcmask 1044480
      %vm359 = vcmask 1045504
      %v360 = vsel %vm358, 4294967295, 65535
      %v361 = vsel %vm359, %v360, 0
      %v363 = vand.u32 %v307, %v361
      %365 = vmatprep.subr.bf16.mxu0 0
      %366 = vmatpush1.bf16.msra.mxu0 %v306
      %367 = vmatprep.subr.bf16.mxu0 0
      %368 = vmatpush1.bf16.msra.mxu0 %v363
      %369 = vmatprep.subr.bf16.mxu0 0
      %370 = vmatpush1.bf16.msra.mxu0 0
      %371 = vmatprep.subr.bf16.mxu0 0
      %372 = vmatpush1.bf16.msra.mxu0 0
      %373 = vmatprep.subr.bf16.mxu0 0
      %374 = vmatpush1.bf16.msra.mxu0 0
      %375 = vmatprep.subr.bf16.mxu0 0
      %376 = vmatpush1.bf16.msra.mxu0 0
      %377 = vmatprep.subr.bf16.mxu0 0
      %378 = vmatpush1.bf16.msra.mxu0 0
      %379 = vmatprep.subr.bf16.mxu0 0
      %380 = vmatpush1.bf16.msra.mxu0 0
      %381 = vmatprep.subr.bf16.mxu0 0
      %382 = vmatpush1.bf16.msra.mxu0 0
      %383 = vmatprep.subr.bf16.mxu0 0
      %384 = vmatpush1.bf16.msra.mxu0 0
      %385 = vmatprep.subr.bf16.mxu0 0
      %386 = vmatpush1.bf16.msra.mxu0 0
      %387 = vmatprep.subr.bf16.mxu0 0
      %388 = vmatpush1.bf16.msra.mxu0 0
      %389 = vmatprep.subr.bf16.mxu0 0
      %390 = vmatpush1.bf16.msra.mxu0 0
      %391 = vmatprep.subr.bf16.mxu0 0
      %392 = vmatpush1.bf16.msra.mxu0 0
      %393 = vmatprep.subr.bf16.mxu0 0
      %394 = vmatpush1.bf16.msra.mxu0 0
      %395 = vmatprep.subr.bf16.mxu0 0
      %396 = vmatpush1.bf16.msra.mxu0 0
      %397 = vmatprep.mubr.bf16.mxu0 0
      %398 = vmatmul.mubr.bf16.gmra.mrb[0].mxu0 %v311
      %v399 = vpop.f32.mrb[0].mxu0
      %v400 = vadd.f32 %v216, %v399
      %v401 = vpop.f32.mrb[0].mxu0
      %v402 = vpop.f32.mrb[0].mxu0
      %v403 = vadd.f32 %v216, %v402
      %v404 = vpop.f32.mrb[0].mxu0
      %405 = vmatprep.mubr.bf16.mxu0 0
      %406 = vmatmul.mubr.bf16.gmra.mrb[0].mxu0 %v314
      %v407 = vpop.f32.mrb[0].mxu0
      %v408 = vadd.f32 %v216, %v407
      %v409 = vpop.f32.mrb[0].mxu0
      %v410 = vpop.f32.mrb[0].mxu0
      %v411 = vadd.f32 %v216, %v410
      %v412 = vpop.f32.mrb[0].mxu0
      %413 = vmatprep.mubr.bf16.mxu0 0
      %414 = vmatmul.mubr.bf16.gmra.mrb[0].mxu0 %v317
      %v415 = vpop.f32.mrb[0].mxu0
      %v416 = vadd.f32 %v216, %v415
      %v417 = vpop.f32.mrb[0].mxu0
      %v418 = vpop.f32.mrb[0].mxu0
      %v419 = vadd.f32 %v216, %v418
      %v420 = vpop.f32.mrb[0].mxu0
      %421 = vmatprep.mubr.bf16.mxu0 0
      %422 = vmatmul.mubr.bf16.gmra.mrb[0].mxu0 %v320
      %v423 = vpop.f32.mrb[0].mxu0
      %v424 = vadd.f32 %v216, %v423
      %v425 = vpop.f32.mrb[0].mxu0
      %v426 = vpop.f32.mrb[0].mxu0
      %v427 = vadd.f32 %v216, %v426
      %v428 = vpop.f32.mrb[0].mxu0
      %429 = vmatprep.mubr.bf16.mxu0 0
      %430 = vmatmul.mubr.bf16.gmra.mrb[0].mxu0 %v323
      %v431 = vpop.f32.mrb[0].mxu0
      %v432 = vadd.f32 %v216, %v431
      %v433 = vpop.f32.mrb[0].mxu0
      %v434 = vpop.f32.mrb[0].mxu0
      %v435 = vadd.f32 %v216, %v434
      %v436 = vpop.f32.mrb[0].mxu0
      %437 = vmatprep.mubr.bf16.mxu0 0
      %438 = vmatmul.mubr.bf16.gmra.mrb[0].mxu0 %v326
      %v439 = vpop.f32.mrb[0].mxu0
      %v440 = vadd.f32 %v216, %v439
      %v441 = vpop.f32.mrb[0].mxu0
      %v442 = vpop.f32.mrb[0].mxu0
      %v443 = vadd.f32 %v216, %v442
      %v444 = vpop.f32.mrb[0].mxu0
      %445 = vmatprep.mubr.bf16.mxu0 0
      %446 = vmatmul.mubr.bf16.gmra.mrb[0].mxu0 %v329
      %v447 = vpop.f32.mrb[0].mxu0
      %v448 = vadd.f32 %v216, %v447
      %v449 = vpop.f32.mrb[0].mxu0
      %v450 = vpop.f32.mrb[0].mxu0
      %v451 = vadd.f32 %v216, %v450
      %v452 = vpop.f32.mrb[0].mxu0
      %453 = vmatprep.mubr.bf16.mxu0 0
      %454 = vmatmul.mubr.bf16.gmra.mrb[0].mxu0 %v332
      %v455 = vpop.f32.mrb[0].mxu0
      %v456 = vadd.f32 %v216, %v455
      %v457 = vpop.f32.mrb[0].mxu0
      %v458 = vpop.f32.mrb[0].mxu0
      %v459 = vadd.f32 %v216, %v458
      %v460 = vpop.f32.mrb[0].mxu0
      %461 = vmatprep.mubr.bf16.mxu0 0
      %462 = vmatmul.mubr.bf16.gmra.mrb[0].mxu0 %v335
      %v463 = vpop.f32.mrb[0].mxu0
      %v464 = vadd.f32 %v216, %v463
      %v465 = vpop.f32.mrb[0].mxu0
      %v466 = vpop.f32.mrb[0].mxu0
      %v467 = vadd.f32 %v216, %v466
      %v468 = vpop.f32.mrb[0].mxu0
      %469 = vmatprep.mubr.bf16.mxu0 0
      %470 = vmatmul.mubr.bf16.gmra.mrb[0].mxu0 %v338
      %v471 = vpop.f32.mrb[0].mxu0
      %v472 = vadd.f32 %v216, %v471
      %v473 = vpop.f32.mrb[0].mxu0
      %v474 = vpop.f32.mrb[0].mxu0
      %v475 = vadd.f32 %v216, %v474
      %v476 = vpop.f32.mrb[0].mxu0
      %477 = vmatprep.mubr.bf16.mxu0 0
      %478 = vmatmul.mubr.bf16.gmra.mrb[0].mxu0 %v341
      %v479 = vpop.f32.mrb[0].mxu0
      %v480 = vadd.f32 %v216, %v479
      %v481 = vpop.f32.mrb[0].mxu0
      %v482 = vpop.f32.mrb[0].mxu0
      %v483 = vadd.f32 %v216, %v482
      %v484 = vpop.f32.mrb[0].mxu0
      %485 = vmatprep.mubr.bf16.mxu0 0
      %486 = vmatmul.mubr.bf16.gmra.mrb[0].mxu0 %v344
      %v487 = vpop.f32.mrb[0].mxu0
      %v488 = vadd.f32 %v216, %v487
      %v489 = vpop.f32.mrb[0].mxu0
      %v490 = vpop.f32.mrb[0].mxu0
      %v491 = vadd.f32 %v216, %v490
      %v492 = vpop.f32.mrb[0].mxu0
      %493 = vmatprep.mubr.bf16.mxu0 0
      %494 = vmatmul.mubr.bf16.gmra.mrb[0].mxu0 %v347
      %v495 = vpop.f32.mrb[0].mxu0
      %v496 = vadd.f32 %v216, %v495
      %v497 = vpop.f32.mrb[0].mxu0
      %v498 = vpop.f32.mrb[0].mxu0
      %v499 = vadd.f32 %v216, %v498
      %v500 = vpop.f32.mrb[0].mxu0
      %501 = vmatprep.mubr.bf16.mxu0 0
      %502 = vmatmul.mubr.bf16.gmra.mrb[0].mxu0 %v350
      %v503 = vpop.f32.mrb[0].mxu0
      %v504 = vadd.f32 %v216, %v503
      %v505 = vpop.f32.mrb[0].mxu0
      %v506 = vpop.f32.mrb[0].mxu0
      %v507 = vadd.f32 %v216, %v506
      %v508 = vpop.f32.mrb[0].mxu0
      %509 = vmatprep.mubr.bf16.mxu0 0
      %510 = vmatmul.mubr.bf16.gmra.mrb[0].mxu0 %v353
      %v511 = vpop.f32.mrb[0].mxu0
      %v512 = vadd.f32 %v216, %v511
      %v513 = vpop.f32.mrb[0].mxu0
      %v514 = vpop.f32.mrb[0].mxu0
      %v515 = vadd.f32 %v216, %v514
      %v516 = vpop.f32.mrb[0].mxu0
      %517 = vmatprep.mubr.bf16.mxu0 0
      %518 = vmatmul.mubr.bf16.gmra.mrb[0].mxu0 %v356
      %v519 = vpop.f32.mrb[0].mxu0
      %v520 = vadd.f32 %v216, %v519
      %v521 = vpop.f32.mrb[0].mxu0
      %v522 = vpop.f32.mrb[0].mxu0
      %v523 = vadd.f32 %v216, %v522
      %v524 = vpop.f32.mrb[0].mxu0
      %525 = vdwg.mxu0
      %v526 = vmax.f32 %v400, 0.0
      %v527 = vmax.f32 %v403, 0.0
      %v528 = vmax.f32 %v408, 0.0
      %v529 = vmax.f32 %v411, 0.0
      %v530 = vmax.f32 %v416, 0.0
      %v531 = vmax.f32 %v419, 0.0
      %v532 = vmax.f32 %v424, 0.0
      %v533 = vmax.f32 %v427, 0.0
      %v534 = vmax.f32 %v432, 0.0
      %v535 = vmax.f32 %v435, 0.0
      %v536 = vmax.f32 %v440, 0.0
      %v537 = vmax.f32 %v443, 0.0
      %v538 = vmax.f32 %v448, 0.0
      %v539 = vmax.f32 %v451, 0.0
      %v540 = vmax.f32 %v456, 0.0
      %v541 = vmax.f32 %v459, 0.0
      %v542 = vmax.f32 %v464, 0.0
      %v543 = vmax.f32 %v467, 0.0
      %v544 = vmax.f32 %v472, 0.0
      %v545 = vmax.f32 %v475, 0.0
      %v546 = vmax.f32 %v480, 0.0
      %v547 = vmax.f32 %v483, 0.0
      %v548 = vmax.f32 %v488, 0.0
      %v549 = vmax.f32 %v491, 0.0
      %v550 = vmax.f32 %v496, 0.0
      %v551 = vmax.f32 %v499, 0.0
      %v552 = vmax.f32 %v504, 0.0
      %v553 = vmax.f32 %v507, 0.0
      %v554 = vmax.f32 %v512, 0.0
      %v555 = vmax.f32 %v515, 0.0
      %v556 = vmax.f32 %v520, 0.0
      %v557 = vmax.f32 %v523, 0.0
      %v558 = vpack.c.bf16 %v527, %v526
      %v559 = vpack.c.bf16 %v529, %v528
      %v560 = vpack.c.bf16 %v531, %v530
      %v561 = vpack.c.bf16 %v533, %v532
      %v562 = vpack.c.bf16 %v535, %v534
      %v563 = vpack.c.bf16 %v537, %v536
      %v564 = vpack.c.bf16 %v539, %v538
      %v565 = vpack.c.bf16 %v541, %v540
      %v566 = vpack.c.bf16 %v543, %v542
      %v567 = vpack.c.bf16 %v545, %v544
      %v568 = vpack.c.bf16 %v547, %v546
      %v569 = vpack.c.bf16 %v549, %v548
      %v570 = vpack.c.bf16 %v551, %v550
      %v571 = vpack.c.bf16 %v553, %v552
      %v572 = vpack.c.bf16 %v555, %v554
      %v573 = vpack.c.bf16 %v557, %v556
      %v590 = vunpack.c.l.b16 %v558
      %v591 = vunpack.c.h.b16 %v558
      %v592 = vunpack.c.l.b16 %v559
      %v593 = vunpack.c.h.b16 %v559
      %v594 = vunpack.c.l.b16 %v560
      %v595 = vunpack.c.h.b16 %v560
      %v596 = vunpack.c.l.b16 %v561
      %v597 = vunpack.c.h.b16 %v561
      %v598 = vunpack.c.l.b16 %v562
      %v599 = vunpack.c.h.b16 %v562
      %v600 = vunpack.c.l.b16 %v563
      %v601 = vunpack.c.h.b16 %v563
      %v602 = vunpack.c.l.b16 %v564
      %v603 = vunpack.c.h.b16 %v564
      %v604 = vunpack.c.l.b16 %v565
      %v605 = vunpack.c.h.b16 %v565
      %v606 = vunpack.c.l.b16 %v566
      %v607 = vunpack.c.h.b16 %v566
      %v608 = vunpack.c.l.b16 %v567
      %v609 = vunpack.c.h.b16 %v567
      %v610 = vunpack.c.l.b16 %v568
      %v611 = vunpack.c.h.b16 %v568
      %v612 = vunpack.c.l.b16 %v569
      %v613 = vunpack.c.h.b16 %v569
      %v614 = vunpack.c.l.b16 %v570
      %v615 = vunpack.c.h.b16 %v570
      %v616 = vunpack.c.l.b16 %v571
      %v617 = vunpack.c.h.b16 %v571
      %v618 = vunpack.c.l.b16 %v572
      %v619 = vunpack.c.h.b16 %v572
      %v620 = vunpack.c.l.b16 %v573
      %v621 = vunpack.c.h.b16 %v573
      %v622 = vpack.c.b16 %v590, %v590
      %v623 = vpack.c.b16 %v591, %v591
      %v624 = vpack.c.b16 %v592, %v592
      %v625 = vpack.c.b16 %v593, %v593
      %v626 = vpack.c.b16 %v594, %v594
      %v627 = vpack.c.b16 %v595, %v595
      %v628 = vpack.c.b16 %v596, %v596
      %v629 = vpack.c.b16 %v597, %v597
      %v630 = vpack.c.b16 %v598, %v598
      %v631 = vpack.c.b16 %v599, %v599
      %v632 = vpack.c.b16 %v600, %v600
      %v633 = vpack.c.b16 %v601, %v601
      %v634 = vpack.c.b16 %v602, %v602
      %v635 = vpack.c.b16 %v603, %v603
      %v636 = vpack.c.b16 %v604, %v604
      %v637 = vpack.c.b16 %v605, %v605
      %v638 = vpack.c.b16 %v606, %v606
      %v639 = vpack.c.b16 %v607, %v607
      %v640 = vpack.c.b16 %v608, %v608
      %v641 = vpack.c.b16 %v609, %v609
      %v642 = vpack.c.b16 %v610, %v610
      %v643 = vpack.c.b16 %v611, %v611
      %v644 = vpack.c.b16 %v612, %v612
      %v645 = vpack.c.b16 %v613, %v613
      %v646 = vpack.c.b16 %v614, %v614
      %v647 = vpack.c.b16 %v615, %v615
      %v648 = vpack.c.b16 %v616, %v616
      %v649 = vpack.c.b16 %v617, %v617
      %v650 = vpack.c.b16 %v618, %v618
      %v651 = vpack.c.b16 %v619, %v619
      %v652 = vpack.c.b16 %v620, %v620
      %v653 = vpack.c.b16 %v621, %v621
      %vm686 = vcmask 191488
      %687 = vst.msk [vmem:[%s172] sm:$0xf] %vm686, %v622
      %688 = vst.msk [vmem:[%s172 + $0x4] sm:$0xf] %vm686, %v623
      %689 = vst.msk [vmem:[%s172 + $0x8] sm:$0xf] %vm686, %v624
      %690 = vst.msk [vmem:[%s172 + $0xc] sm:$0xf] %vm686, %v625
      %691 = vst.msk [vmem:[%s172 + $0x10] sm:$0xf] %vm686, %v626
      %692 = vst.msk [vmem:[%s172 + $0x14] sm:$0xf] %vm686, %v627
      %693 = vst.msk [vmem:[%s172 + $0x18] sm:$0xf] %vm686, %v628
      %694 = vst.msk [vmem:[%s172 + $0x1c] sm:$0xf] %vm686, %v629
      %695 = vst.msk [vmem:[%s172 + $0x20] sm:$0xf] %vm686, %v630
      %696 = vst.msk [vmem:[%s172 + $0x24] sm:$0xf] %vm686, %v631
      %697 = vst.msk [vmem:[%s172 + $0x28] sm:$0xf] %vm686, %v632
      %698 = vst.msk [vmem:[%s172 + $0x2c] sm:$0xf] %vm686, %v633
      %699 = vst.msk [vmem:[%s172 + $0x30] sm:$0xf] %vm686, %v634
      %700 = vst.msk [vmem:[%s172 + $0x34] sm:$0xf] %vm686, %v635
      %701 = vst.msk [vmem:[%s172 + $0x38] sm:$0xf] %vm686, %v636
      %702 = vst.msk [vmem:[%s172 + $0x3c] sm:$0xf] %vm686, %v637
      %703 = vst.msk [vmem:[%s172 + $0x40] sm:$0xf] %vm686, %v638
      %704 = vst.msk [vmem:[%s172 + $0x44] sm:$0xf] %vm686, %v639
      %705 = vst.msk [vmem:[%s172 + $0x48] sm:$0xf] %vm686, %v640
      %706 = vst.msk [vmem:[%s172 + $0x4c] sm:$0xf] %vm686, %v641
      %707 = vst.msk [vmem:[%s172 + $0x50] sm:$0xf] %vm686, %v642
      %708 = vst.msk [vmem:[%s172 + $0x54] sm:$0xf] %vm686, %v643
      %709 = vst.msk [vmem:[%s172 + $0x58] sm:$0xf] %vm686, %v644
      %710 = vst.msk [vmem:[%s172 + $0x5c] sm:$0xf] %vm686, %v645
      %711 = vst.msk [vmem:[%s172 + $0x60] sm:$0xf] %vm686, %v646
      %712 = vst.msk [vmem:[%s172 + $0x64] sm:$0xf] %vm686, %v647
      %713 = vst.msk [vmem:[%s172 + $0x68] sm:$0xf] %vm686, %v648
      %714 = vst.msk [vmem:[%s172 + $0x6c] sm:$0xf] %vm686, %v649
      %715 = vst.msk [vmem:[%s172 + $0x70] sm:$0xf] %vm686, %v650
      %716 = vst.msk [vmem:[%s172 + $0x74] sm:$0xf] %vm686, %v651
      %717 = vst.msk [vmem:[%s172 + $0x78] sm:$0xf] %vm686, %v652
      %718 = vst.msk [vmem:[%s172 + $0x7c] sm:$0xf] %vm686, %v653
      %s719 = smul.u32 32, %s14
      %p720 = scmp.lt.s32.totalorder %s719, 63
      %s721 = scalar_select %p720, %s719, 63
      %s722 = smul.addr %s721, 4
      %s723 = scalar_lea.vmem %s3, %s722
      // Predicated region
      $region33: #{reranking_shufflenet_forward.58} parent=31 // pred_check
        %p724 = pneg %p100
      $region34: #{reranking_shufflenet_forward.58} parent=31 // pred_check_branch
        %726 = sbr.rel (%p724) target = $region36
      $region35: #{reranking_shufflenet_forward.58} parent=31 // pred_region
        %s727 = smul.u32 32, %s14
      $region36: #{reranking_shufflenet_forward.58} parent=31 // pred_fallthru
        _
    $region32: #{reranking_shufflenet_forward.58} parent=5 // pred_fallthru
      _
    %p728 = scmp.le.s32.totalorder 2, %s9
    // Predicated region
    $region37: #{reranking_shufflenet_forward.58} parent=5 // pred_check
      %p729 = pneg %p728
    $region38: #{reranking_shufflenet_forward.58} parent=5 // pred_check_branch
      %731 = sbr.rel (%p729) target = $region40
    $region39: #{reranking_shufflenet_forward.58} parent=5 // pred_region
      %s732 = ssub.s32 %s9, 2
      // Predicated region
      $region41: #{reranking_shufflenet_forward.58} parent=39 // pred_check
        %p733 = pneg %p106
      $region42: #{reranking_shufflenet_forward.58} parent=39 // pred_check_branch
        %735 = sbr.rel (%p733) target = $region44
      $region43: #{reranking_shufflenet_forward.58} parent=39 // pred_region
        %s736 = smul.u32 32, %s15
        %p737 = scmp.lt.s32.totalorder %s736, 63
        %s738 = scalar_select %p737, %s736, 63
        %s739 = smul.addr %s738, 4
        %s740 = scalar_lea.vmem %s3, %s739
      $region44: #{reranking_shufflenet_forward.58} parent=39 // pred_fallthru
        _
    $region40: #{reranking_shufflenet_forward.58} parent=5 // pred_fallthru
      _
  $region6: #{reranking_shufflenet_forward.58} parent=0 // loop_footer
    %s13 = sadd.s32 1, %s9
  $region7: #{reranking_shufflenet_forward.58} parent=0 // loop_footer_branch
    %8 = sbr.rel target = $region3
  $region8: #{reranking_shufflenet_forward.58} parent=0 // loop_exit
    _

// kernel: reranking_shufflenet_forward.62
$region0: #{reranking_shufflenet_forward.62}
  #allocation0 [shape = 'u32[]', space=smem, size = 0x4, offset = 0x4, fixed_abs, tag = 'smem constant byte address 0x4 - core index']
  #allocation1 [shape = 'u32[144,128]{1,0:T(1,128)}', space=vmem, size = 0x12000, scoped, tag = 'internal scratch']
  %s0 = inlined_call_operand.vmem [shape: bf16[128,24], index: 0, kind: input, shape index: {}]
  %s1 = inlined_call_operand.vmem [shape: bf16[24,58], index: 1, kind: input, shape index: {}]
  %s2 = inlined_call_operand.vmem [shape: f32[1,58], index: 2, kind: input, shape index: {}]
  %s3 = inlined_call_operand.vmem [shape: bf16[128,58], index: 3, kind: output, shape index: {}]
  %s4 = sld [smem:[#allocation0]]
  $region22: #{reranking_shufflenet_forward.62} parent=0
    _
  %s6 = ssub.s32 1, %s4
  %s7 = scalar_select 0, %s6, %s4
  // Predicated region
  $region2: #{reranking_shufflenet_forward.62} parent=0 // pred_check
    _
  $region3: #{reranking_shufflenet_forward.62} parent=0 // pred_check_branch
    %9 = sbr.rel (0) target = $region5
  $region4: #{reranking_shufflenet_forward.62} parent=0 // pred_region
    _
  $region5: #{reranking_shufflenet_forward.62} parent=0 // pred_fallthru
    _
  // Predicated region
  $region6: #{reranking_shufflenet_forward.62} parent=0 // pred_check
    _
  $region7: #{reranking_shufflenet_forward.62} parent=0 // pred_check_branch
    %11 = sbr.rel (0) target = $region9
  $region8: #{reranking_shufflenet_forward.62} parent=0 // pred_region
    _
  $region9: #{reranking_shufflenet_forward.62} parent=0 // pred_fallthru
    _
  // Predicated region
  $region10: #{reranking_shufflenet_forward.62} parent=0 // pred_check
    _
  $region11: #{reranking_shufflenet_forward.62} parent=0 // pred_check_branch
    %13 = sbr.rel (0) target = $region13
  $region12: #{reranking_shufflenet_forward.62} parent=0 // pred_region
    _
  $region13: #{reranking_shufflenet_forward.62} parent=0 // pred_fallthru
    _
  %v15 = vld [vmem:[%s0] sm:$0xf]
  %v16 = vld [vmem:[%s0 + $0x4] sm:$0xf]
  %v17 = vld [vmem:[%s0 + $0x8] sm:$0xf]
  %v18 = vld [vmem:[%s0 + $0xc] sm:$0xf]
  %v19 = vld [vmem:[%s0 + $0x10] sm:$0xf]
  %v20 = vld [vmem:[%s0 + $0x14] sm:$0xf]
  %v21 = vld [vmem:[%s0 + $0x18] sm:$0xf]
  %v22 = vld [vmem:[%s0 + $0x1c] sm:$0xf]
  %v23 = vld [vmem:[%s0 + $0x20] sm:$0xf]
  %v24 = vld [vmem:[%s0 + $0x24] sm:$0xf]
  %v25 = vld [vmem:[%s0 + $0x28] sm:$0xf]
  %v26 = vld [vmem:[%s0 + $0x2c] sm:$0xf]
  %v27 = vld [vmem:[%s0 + $0x30] sm:$0xf]
  %v28 = vld [vmem:[%s0 + $0x34] sm:$0xf]
  %v29 = vld [vmem:[%s0 + $0x38] sm:$0xf]
  %v30 = vld [vmem:[%s0 + $0x3c] sm:$0xf]
  %v31 = vld [vmem:[%s1] sm:$0xf]
  %v32 = vld [vmem:[%s1 + $0x4] sm:$0xf]
  %v33 = vld [vmem:[%s1 + $0x8] sm:$0xf]
  %v34 = vld [vmem:[%s2] sm:$0x1]
  %v36 = vlaneseq
  %v37 = vshrl.u32 %v36, 7
  %v38 = vsub.s32 0, %v37
  %v39 = vrot.slane %v34, %v38
  %v57 = vunpack.c.l.b16 %v15
  %v58 = vunpack.c.l.b16 %v16
  %v59 = vunpack.c.l.b16 %v17
  %v60 = vunpack.c.l.b16 %v18
  %v61 = vunpack.c.l.b16 %v19
  %v62 = vunpack.c.l.b16 %v20
  %v63 = vunpack.c.l.b16 %v21
  %v64 = vunpack.c.l.b16 %v22
  %v65 = vunpack.c.l.b16 %v23
  %v66 = vunpack.c.l.b16 %v24
  %v67 = vunpack.c.l.b16 %v25
  %v68 = vunpack.c.l.b16 %v26
  %v69 = vunpack.c.l.b16 %v27
  %v70 = vunpack.c.l.b16 %v28
  %v71 = vunpack.c.l.b16 %v29
  %v72 = vunpack.c.l.b16 %v30
  %v73 = vpack.c.b16 %v58, %v57
  %v74 = vpack.c.b16 %v60, %v59
  %v75 = vpack.c.b16 %v62, %v61
  %v76 = vpack.c.b16 %v64, %v63
  %v77 = vpack.c.b16 %v66, %v65
  %v78 = vpack.c.b16 %v68, %v67
  %v79 = vpack.c.b16 %v70, %v69
  %v80 = vpack.c.b16 %v72, %v71
  %v84 = vunpack.c.l.b16 %v31
  %v85 = vunpack.c.l.b16 %v32
  %v86 = vunpack.c.l.b16 %v33
  %v87 = vpack.c.b16 %v85, %v84
  %v88 = vpack.c.b16 %v86, %v86
  %vm90 = vcmask 195584
  %v92 = vsel %vm90, %v73, 0
  %v95 = vsel %vm90, %v74, 0
  %v98 = vsel %vm90, %v75, 0
  %v101 = vsel %vm90, %v76, 0
  %v104 = vsel %vm90, %v77, 0
  %v107 = vsel %vm90, %v78, 0
  %v110 = vsel %vm90, %v79, 0
  %v113 = vsel %vm90, %v80, 0
  %vm115 = vcmask 1043456
  %v117 = vsel %vm115, %v88, 0
  %119 = vmatprep.subr.bf16.mxu0 0
  %120 = vmatpush1.bf16.msra.mxu0 %v87
  %121 = vmatprep.subr.bf16.mxu0 0
  %122 = vmatpush1.bf16.msra.mxu0 %v117
  %123 = vmatprep.subr.bf16.mxu0 0
  %124 = vmatpush1.bf16.msra.mxu0 0
  %125 = vmatprep.subr.bf16.mxu0 0
  %126 = vmatpush1.bf16.msra.mxu0 0
  %127 = vmatprep.subr.bf16.mxu0 0
  %128 = vmatpush1.bf16.msra.mxu0 0
  %129 = vmatprep.subr.bf16.mxu0 0
  %130 = vmatpush1.bf16.msra.mxu0 0
  %131 = vmatprep.subr.bf16.mxu0 0
  %132 = vmatpush1.bf16.msra.mxu0 0
  %133 = vmatprep.subr.bf16.mxu0 0
  %134 = vmatpush1.bf16.msra.mxu0 0
  %135 = vmatprep.subr.bf16.mxu0 0
  %136 = vmatpush1.bf16.msra.mxu0 0
  %137 = vmatprep.subr.bf16.mxu0 0
  %138 = vmatpush1.bf16.msra.mxu0 0
  %139 = vmatprep.subr.bf16.mxu0 0
  %140 = vmatpush1.bf16.msra.mxu0 0
  %141 = vmatprep.subr.bf16.mxu0 0
  %142 = vmatpush1.bf16.msra.mxu0 0
  %143 = vmatprep.subr.bf16.mxu0 0
  %144 = vmatpush1.bf16.msra.mxu0 0
  %145 = vmatprep.subr.bf16.mxu0 0
  %146 = vmatpush1.bf16.msra.mxu0 0
  %147 = vmatprep.subr.bf16.mxu0 0
  %148 = vmatpush1.bf16.msra.mxu0 0
  %149 = vmatprep.subr.bf16.mxu0 0
  %150 = vmatpush1.bf16.msra.mxu0 0
  %151 = vmatprep.mubr.bf16.mxu0 0
  %152 = vmatmul.mubr.bf16.gmra.mrb[0].mxu0 %v92
  %v153 = vpop.f32.mrb[0].mxu0
  %v154 = vadd.f32 %v39, %v153
  %v155 = vpop.f32.mrb[0].mxu0
  %v156 = vpop.f32.mrb[0].mxu0
  %v157 = vadd.f32 %v39, %v156
  %v158 = vpop.f32.mrb[0].mxu0
  %159 = vmatprep.mubr.bf16.mxu0 0
  %160 = vmatmul.mubr.bf16.gmra.mrb[0].mxu0 %v95
  %v161 = vpop.f32.mrb[0].mxu0
  %v162 = vadd.f32 %v39, %v161
  %v163 = vpop.f32.mrb[0].mxu0
  %v164 = vpop.f32.mrb[0].mxu0
  %v165 = vadd.f32 %v39, %v164
  %v166 = vpop.f32.mrb[0].mxu0
  %167 = vmatprep.mubr.bf16.mxu0 0
  %168 = vmatmul.mubr.bf16.gmra.mrb[0].mxu0 %v98
  %v169 = vpop.f32.mrb[0].mxu0
  %v170 = vadd.f32 %v39, %v169
  %v171 = vpop.f32.mrb[0].mxu0
  %v172 = vpop.f32.mrb[0].mxu0
  %v173 = vadd.f32 %v39, %v172
  %v174 = vpop.f32.mrb[0].mxu0
  %175 = vmatprep.mubr.bf16.mxu0 0
  %176 = vmatmul.mubr.bf16.gmra.mrb[0].mxu0 %v101
  %v177 = vpop.f32.mrb[0].mxu0
  %v178 = vadd.f32 %v39, %v177
  %v179 = vpop.f32.mrb[0].mxu0
  %v180 = vpop.f32.mrb[0].mxu0
  %v181 = vadd.f32 %v39, %v180
  %v182 = vpop.f32.mrb[0].mxu0
  %183 = vmatprep.mubr.bf16.mxu0 0
  %184 = vmatmul.mubr.bf16.gmra.mrb[0].mxu0 %v104
  %v185 = vpop.f32.mrb[0].mxu0
  %v186 = vadd.f32 %v39, %v185
  %v187 = vpop.f32.mrb[0].mxu0
  %v188 = vpop.f32.mrb[0].mxu0
  %v189 = vadd.f32 %v39, %v188
  %v190 = vpop.f32.mrb[0].mxu0
  %191 = vmatprep.mubr.bf16.mxu0 0
  %192 = vmatmul.mubr.bf16.gmra.mrb[0].mxu0 %v107
  %v193 = vpop.f32.mrb[0].mxu0
  %v194 = vadd.f32 %v39, %v193
  %v195 = vpop.f32.mrb[0].mxu0
  %v196 = vpop.f32.mrb[0].mxu0
  %v197 = vadd.f32 %v39, %v196
  %v198 = vpop.f32.mrb[0].mxu0
  %199 = vmatprep.mubr.bf16.mxu0 0
  %200 = vmatmul.mubr.bf16.gmra.mrb[0].mxu0 %v110
  %v201 = vpop.f32.mrb[0].mxu0
  %v202 = vadd.f32 %v39, %v201
  %v203 = vpop.f32.mrb[0].mxu0
  %v204 = vpop.f32.mrb[0].mxu0
  %v205 = vadd.f32 %v39, %v204
  %v206 = vpop.f32.mrb[0].mxu0
  %207 = vmatprep.mubr.bf16.mxu0 0
  %208 = vmatmul.mubr.bf16.gmra.mrb[0].mxu0 %v113
  %v209 = vpop.f32.mrb[0].mxu0
  %v210 = vadd.f32 %v39, %v209
  %v211 = vpop.f32.mrb[0].mxu0
  %v212 = vpop.f32.mrb[0].mxu0
  %v213 = vadd.f32 %v39, %v212
  %v214 = vpop.f32.mrb[0].mxu0
  %215 = vdwg.mxu0
  %v216 = vmax.f32 %v154, 0.0
  %v217 = vmax.f32 %v157, 0.0
  %v218 = vmax.f32 %v162, 0.0
  %v219 = vmax.f32 %v165, 0.0
  %v220 = vmax.f32 %v170, 0.0
  %v221 = vmax.f32 %v173, 0.0
  %v222 = vmax.f32 %v178, 0.0
  %v223 = vmax.f32 %v181, 0.0
  %v224 = vmax.f32 %v186, 0.0
  %v225 = vmax.f32 %v189, 0.0
  %v226 = vmax.f32 %v194, 0.0
  %v227 = vmax.f32 %v197, 0.0
  %v228 = vmax.f32 %v202, 0.0
  %v229 = vmax.f32 %v205, 0.0
  %v230 = vmax.f32 %v210, 0.0
  %v231 = vmax.f32 %v213, 0.0
  %v232 = vpack.c.bf16 %v217, %v216
  %v233 = vpack.c.bf16 %v219, %v218
  %v234 = vpack.c.bf16 %v221, %v220
  %v235 = vpack.c.bf16 %v223, %v222
  %v236 = vpack.c.bf16 %v225, %v224
  %v237 = vpack.c.bf16 %v227, %v226
  %v238 = vpack.c.bf16 %v229, %v228
  %v239 = vpack.c.bf16 %v231, %v230
  %v248 = vunpack.c.l.b16 %v232
  %v249 = vunpack.c.h.b16 %v232
  %v250 = vunpack.c.l.b16 %v233
  %v251 = vunpack.c.h.b16 %v233
  %v252 = vunpack.c.l.b16 %v234
  %v253 = vunpack.c.h.b16 %v234
  %v254 = vunpack.c.l.b16 %v235
  %v255 = vunpack.c.h.b16 %v235
  %v256 = vunpack.c.l.b16 %v236
  %v257 = vunpack.c.h.b16 %v236
  %v258 = vunpack.c.l.b16 %v237
  %v259 = vunpack.c.h.b16 %v237
  %v260 = vunpack.c.l.b16 %v238
  %v261 = vunpack.c.h.b16 %v238
  %v262 = vunpack.c.l.b16 %v239
  %v263 = vunpack.c.h.b16 %v239
  %v264 = vpack.c.b16 %v248, %v248
  %v265 = vpack.c.b16 %v249, %v249
  %v266 = vpack.c.b16 %v250, %v250
  %v267 = vpack.c.b16 %v251, %v251
  %v268 = vpack.c.b16 %v252, %v252
  %v269 = vpack.c.b16 %v253, %v253
  %v270 = vpack.c.b16 %v254, %v254
  %v271 = vpack.c.b16 %v255, %v255
  %v272 = vpack.c.b16 %v256, %v256
  %v273 = vpack.c.b16 %v257, %v257
  %v274 = vpack.c.b16 %v258, %v258
  %v275 = vpack.c.b16 %v259, %v259
  %v276 = vpack.c.b16 %v260, %v260
  %v277 = vpack.c.b16 %v261, %v261
  %v278 = vpack.c.b16 %v262, %v262
  %v279 = vpack.c.b16 %v263, %v263
  %vm296 = vcmask 470016
  %297 = vst.msk [vmem:[%s3] sm:$0xf] %vm296, %v264
  %298 = vst.msk [vmem:[%s3 + $0x4] sm:$0xf] %vm296, %v265
  %299 = vst.msk [vmem:[%s3 + $0x8] sm:$0xf] %vm296, %v266
  %300 = vst.msk [vmem:[%s3 + $0xc] sm:$0xf] %vm296, %v267
  %301 = vst.msk [vmem:[%s3 + $0x10] sm:$0xf] %vm296, %v268
  %302 = vst.msk [vmem:[%s3 + $0x14] sm:$0xf] %vm296, %v269
  %303 = vst.msk [vmem:[%s3 + $0x18] sm:$0xf] %vm296, %v270
  %304 = vst.msk [vmem:[%s3 + $0x1c] sm:$0xf] %vm296, %v271
  %305 = vst.msk [vmem:[%s3 + $0x20] sm:$0xf] %vm296, %v272
  %306 = vst.msk [vmem:[%s3 + $0x24] sm:$0xf] %vm296, %v273
  %307 = vst.msk [vmem:[%s3 + $0x28] sm:$0xf] %vm296, %v274
  %308 = vst.msk [vmem:[%s3 + $0x2c] sm:$0xf] %vm296, %v275
  %309 = vst.msk [vmem:[%s3 + $0x30] sm:$0xf] %vm296, %v276
  %310 = vst.msk [vmem:[%s3 + $0x34] sm:$0xf] %vm296, %v277
  %311 = vst.msk [vmem:[%s3 + $0x38] sm:$0xf] %vm296, %v278
  %312 = vst.msk [vmem:[%s3 + $0x3c] sm:$0xf] %vm296, %v279
  // Predicated region
  $region14: #{reranking_shufflenet_forward.62} parent=0 // pred_check
    _
  $region15: #{reranking_shufflenet_forward.62} parent=0 // pred_check_branch
    %314 = sbr.rel (0) target = $region17
  $region16: #{reranking_shufflenet_forward.62} parent=0 // pred_region
    _
  $region17: #{reranking_shufflenet_forward.62} parent=0 // pred_fallthru
    _
  // Predicated region
  $region18: #{reranking_shufflenet_forward.62} parent=0 // pred_check
    _
  $region19: #{reranking_shufflenet_forward.62} parent=0 // pred_check_branch
    %316 = sbr.rel (0) target = $region21
  $region20: #{reranking_shufflenet_forward.62} parent=0 // pred_region
    _
  $region21: #{reranking_shufflenet_forward.62} parent=0 // pred_fallthru
    _

// kernel: reranking_shufflenet_forward.59
$region0: #{reranking_shufflenet_forward.59}
  #allocation0 [shape = 'u32[]', space=smem, size = 0x4, offset = 0x4, fixed_abs, tag = 'smem constant byte address 0x4 - core index']
  #allocation1 [shape = 'u32[144,128]{1,0:T(1,128)}', space=vmem, size = 0x12000, scoped, tag = 'internal scratch']
  %s0 = inlined_call_operand.vmem [shape: bf16[8,9,9,24], index: 0, kind: input, shape index: {}]
  %s1 = inlined_call_operand.vmem [shape: bf16[2,8,8,24], index: 1, kind: output, shape index: {}]
  %s2 = sld [smem:[#allocation0]]
  $region37: #{reranking_shufflenet_forward.59} parent=0
    _
  %s4 = ssub.s32 1, %s2
  %s5 = scalar_select 0, %s4, %s2
  loop: start=0, step=1, limit=4
  $region2: #{reranking_shufflenet_forward.59} parent=0 // loop_pre_header
    _
  $region3: #{reranking_shufflenet_forward.59} parent=0 // loop_header
    %s7 = sphi 0, %s11
    %p8 = scmp.ge.s32.totalorder %s7, 4
    %s17 = sphi 0, %s19
    %s20 = sphi 0, %s17
    %s21 = sphi 0, %s20
    %s37 = sphi 0, %s21
    %s43 = sphi 0, %s45
    %s46 = sphi 0, %s43
    %s47 = sphi 0, %s46
    %s63 = sphi 0, %s47
  $region4: #{reranking_shufflenet_forward.59} parent=0 // loop_header_branch
    %10 = sbr.rel (%p8) target = $region8
  $region5: #{reranking_shufflenet_forward.59} parent=0 // loop_body
    %s12 = ssub.s32 %s7, 1
    %s13 = ssub.s32 %s7, 2
    %s14 = sadd.s32 %s7, 1
    %s15 = ssub.s32 %s7, %s14
    %p16 = scmp.eq.s32.totalorder %s15, 0
    %s18 = sadd.s32 %s17, 1
    %s19 = scalar_select %p16, %s17, %s18
    %p22 = pneg %p16
    %p23 = scmp.eq.s32.totalorder %s7, 1
    %p24 = por %p22, %p23
    %p25 = scmp.ne.s32.totalorder %s17, %s20
    %p26 = scmp.eq.s32.totalorder %s7, 0
    %p27 = por %p25, %p26
    %p28 = scmp.ne.s32.totalorder %s17, %s20
    %p29 = scmp.eq.s32.totalorder %s12, 1
    %p30 = por %p28, %p29
    %p31 = scmp.ne.s32.totalorder %s20, %s21
    %p32 = scmp.eq.s32.totalorder %s12, 0
    %p33 = por %p31, %p32
    %p34 = scmp.ne.s32.totalorder %s20, %s21
    %p35 = scmp.eq.s32.totalorder %s13, 1
    %p36 = por %p34, %p35
    %p38 = scmp.ne.s32.totalorder %s21, %s37
    %p39 = scmp.eq.s32.totalorder %s13, 0
    %p40 = por %p38, %p39
    %s41 = ssub.s32 %s7, %s14
    %p42 = scmp.eq.s32.totalorder %s41, 0
    %s44 = sadd.s32 %s43, 1
    %s45 = scalar_select %p42, %s43, %s44
    %p48 = pneg %p42
    %p49 = scmp.eq.s32.totalorder %s7, 1
    %p50 = por %p48, %p49
    %p51 = scmp.ne.s32.totalorder %s43, %s46
    %p52 = scmp.eq.s32.totalorder %s7, 0
    %p53 = por %p51, %p52
    %p54 = scmp.ne.s32.totalorder %s43, %s46
    %p55 = scmp.eq.s32.totalorder %s12, 1
    %p56 = por %p54, %p55
    %p57 = scmp.ne.s32.totalorder %s46, %s47
    %p58 = scmp.eq.s32.totalorder %s12, 0
    %p59 = por %p57, %p58
    %p60 = scmp.ne.s32.totalorder %s46, %s47
    %p61 = scmp.eq.s32.totalorder %s13, 1
    %p62 = por %p60, %p61
    %p64 = scmp.ne.s32.totalorder %s47, %s63
    %p65 = scmp.eq.s32.totalorder %s13, 0
    %p66 = por %p64, %p65
    %p67 = scmp.le.s32.totalorder 1, %s7
    %p68 = scmp.lt.s32.totalorder %s7, 3
    %p69 = pnand %p67, %p68
    %p70 = pneg %p69
    // Predicated region
    $region9: #{reranking_shufflenet_forward.59} parent=5 // pred_check
      _
    $region10: #{reranking_shufflenet_forward.59} parent=5 // pred_check_branch
      %72 = sbr.rel (%p69) target = $region12
    $region11: #{reranking_shufflenet_forward.59} parent=5 // pred_region
      %s73 = ssub.s32 %s7, 1
    $region12: #{reranking_shufflenet_forward.59} parent=5 // pred_fallthru
      _
    %p74 = scmp.lt.s32.totalorder %s7, 2
    // Predicated region
    $region13: #{reranking_shufflenet_forward.59} parent=5 // pred_check
      %p75 = pneg %p74
    $region14: #{reranking_shufflenet_forward.59} parent=5 // pred_check_branch
      %77 = sbr.rel (%p75) target = $region16
    $region15: #{reranking_shufflenet_forward.59} parent=5 // pred_region
      // Predicated region
      $region17: #{reranking_shufflenet_forward.59} parent=15 // pred_check
        %p78 = pneg %p27
      $region18: #{reranking_shufflenet_forward.59} parent=15 // pred_check_branch
        %80 = sbr.rel (%p78) target = $region20
      $region19: #{reranking_shufflenet_forward.59} parent=15 // pred_region
        %s81 = smul.u32 4, %s7
        %p82 = scmp.lt.s32.totalorder %s81, 7
        %s83 = scalar_select %p82, %s81, 7
        %s84 = smul.addr %s83, 18
        %s85 = smul.addr %s84, 4
        %s86 = scalar_lea.vmem %s0, %s85
        %s87 = smul.u32 4, %s7
      $region20: #{reranking_shufflenet_forward.59} parent=15 // pred_fallthru
        _
    $region16: #{reranking_shufflenet_forward.59} parent=5 // pred_fallthru
      _
    %p88 = scmp.le.s32.totalorder 1, %s7
    %p89 = scmp.lt.s32.totalorder %s7, 3
    %p90 = pnand %p88, %p89
    %p91 = pneg %p90
    // Predicated region
    $region21: #{reranking_shufflenet_forward.59} parent=5 // pred_check
      _
    $region22: #{reranking_shufflenet_forward.59} parent=5 // pred_check_branch
      %93 = sbr.rel (%p90) target = $region24
    $region23: #{reranking_shufflenet_forward.59} parent=5 // pred_region
      %s94 = ssub.s32 %s7, 1
      %s95 = smul.u32 4, %s12
      %p96 = scmp.lt.s32.totalorder %s95, 7
      %s97 = scalar_select %p96, %s95, 7
      %s98 = smul.addr %s97, 18
      %s99 = smul.addr %s98, 4
      %s100 = scalar_lea.vmem %s0, %s99
      %p101 = pneg %p33
      %p102 = pneg %p30
      %p103 = pneg %p59
      %p104 = pneg %p56
      %p105 = scmp.lt.s32.totalorder %s12, 1
      %s106 = scalar_select %p105, %s12, 1
      %s107 = smul.addr %s106, 8
      %s108 = smul.addr %s107, 4
      %s109 = scalar_lea.vmem %s1, %s108
      %s110 = smul.u32 4, %s12
      %p111 = scmp.lt.s32.totalorder %s110, 7
      %s112 = scalar_select %p111, %s110, 7
      %s113 = smul.addr %s112, 18
      %s114 = smul.addr %s113, 4
      %s115 = scalar_lea.vmem %s0, %s114
      %s116 = smul.u32 4, %s12
      %p117 = scmp.lt.s32.totalorder %s12, 1
      %s118 = scalar_select %p117, %s12, 1
      %s119 = smul.addr %s118, 8
      %s120 = smul.addr %s119, 4
      %s121 = scalar_lea.vmem %s1, %s120
      %v122 = vld [vmem:[%s115] sm:$0xf]
      %v123 = vld [vmem:[%s115 + $0x4] sm:$0x1]
      %v124 = vld [vmem:[%s115 + $0x8] sm:$0xf]
      %v125 = vld [vmem:[%s115 + $0xc] sm:$0x1]
      %v126 = vld [vmem:[%s115 + $0x10] sm:$0xf]
      %v127 = vld [vmem:[%s115 + $0x14] sm:$0x1]
      %v128 = vld [vmem:[%s115 + $0x18] sm:$0xf]
      %v129 = vld [vmem:[%s115 + $0x1c] sm:$0x1]
      %v130 = vld [vmem:[%s115 + $0x20] sm:$0xf]
      %v131 = vld [vmem:[%s115 + $0x24] sm:$0x1]
      %v132 = vld [vmem:[%s115 + $0x28] sm:$0xf]
      %v133 = vld [vmem:[%s115 + $0x2c] sm:$0x1]
      %v134 = vld [vmem:[%s115 + $0x30] sm:$0xf]
      %v135 = vld [vmem:[%s115 + $0x34] sm:$0x1]
      %v136 = vld [vmem:[%s115 + $0x38] sm:$0xf]
      %v137 = vld [vmem:[%s115 + $0x3c] sm:$0x1]
      %v138 = vld [vmem:[%s115 + $0x40] sm:$0xf]
      %v139 = vld [vmem:[%s115 + $0x44] sm:$0x1]
      %v140 = vunpack.c.l.bf16 %v122
      %v141 = vunpack.c.l.bf16 %v123
      %v142 = vunpack.c.l.bf16 %v124
      %v143 = vunpack.c.l.bf16 %v125
      %v144 = vunpack.c.l.bf16 %v126
      %v145 = vunpack.c.l.bf16 %v127
      %v146 = vunpack.c.l.bf16 %v128
      %v147 = vunpack.c.l.bf16 %v129
      %v148 = vunpack.c.l.bf16 %v130
      %v149 = vunpack.c.l.bf16 %v131
      %v150 = vunpack.c.l.bf16 %v132
      %v151 = vunpack.c.l.bf16 %v133
      %v152 = vunpack.c.l.bf16 %v134
      %v153 = vunpack.c.l.bf16 %v135
      %v154 = vunpack.c.l.bf16 %v136
      %v155 = vunpack.c.l.bf16 %v137
      %v156 = vunpack.c.l.bf16 %v138
      %v157 = vunpack.c.l.bf16 %v139
      %s158 = scalar_lea.vmem %s115, 72
      %v159 = vld [vmem:[%s158] sm:$0xf]
      %v160 = vld [vmem:[%s158 + $0x8] sm:$0xf]
      %v161 = vld [vmem:[%s158 + $0x10] sm:$0xf]
      %v162 = vld [vmem:[%s158 + $0x18] sm:$0xf]
      %v163 = vld [vmem:[%s158 + $0x20] sm:$0xf]
      %v164 = vld [vmem:[%s158 + $0x28] sm:$0xf]
      %v165 = vld [vmem:[%s158 + $0x30] sm:$0xf]
      %v166 = vld [vmem:[%s158 + $0x38] sm:$0xf]
      %v167 = vld [vmem:[%s158 + $0x40] sm:$0xf]
      %v168 = vunpack.c.l.bf16 %v159
      %v169 = vunpack.c.l.bf16 %v160
      %v170 = vunpack.c.l.bf16 %v161
      %v171 = vunpack.c.l.bf16 %v162
      %v172 = vunpack.c.l.bf16 %v163
      %v173 = vunpack.c.l.bf16 %v164
      %v174 = vunpack.c.l.bf16 %v165
      %v175 = vunpack.c.l.bf16 %v166
      %v176 = vunpack.c.l.bf16 %v167
      %v177 = vmax.f32 %v140, %v168
      %v178 = vmax.f32 %v142, %v169
      %v179 = vmax.f32 %v144, %v170
      %v180 = vmax.f32 %v146, %v171
      %v181 = vmax.f32 %v148, %v172
      %v182 = vmax.f32 %v150, %v173
      %v183 = vmax.f32 %v152, %v174
      %v184 = vmax.f32 %v154, %v175
      %vm201 = vcmask 1046528
      %v202 = vrot.slane %v140, 1
      %v203 = vrot.slane %v141, 1
      %v204 = vsel %vm201, %v202, %v203
      %v205 = vrot.slane %v142, 1
      %v206 = vrot.slane %v143, 1
      %v207 = vsel %vm201, %v205, %v206
      %v208 = vrot.slane %v144, 1
      %v209 = vrot.slane %v145, 1
      %v210 = vsel %vm201, %v208, %v209
      %v211 = vrot.slane %v146, 1
      %v212 = vrot.slane %v147, 1
      %v213 = vsel %vm201, %v211, %v212
      %v214 = vrot.slane %v148, 1
      %v215 = vrot.slane %v149, 1
      %v216 = vsel %vm201, %v214, %v215
      %v217 = vrot.slane %v150, 1
      %v218 = vrot.slane %v151, 1
      %v219 = vsel %vm201, %v217, %v218
      %v220 = vrot.slane %v152, 1
      %v221 = vrot.slane %v153, 1
      %v222 = vsel %vm201, %v220, %v221
      %v223 = vrot.slane %v154, 1
      %v224 = vrot.slane %v155, 1
      %v225 = vsel %vm201, %v223, %v224
      %v234 = vmax.f32 %v177, %v204
      %v235 = vmax.f32 %v178, %v207
      %v236 = vmax.f32 %v179, %v210
      %v237 = vmax.f32 %v180, %v213
      %v238 = vmax.f32 %v181, %v216
      %v239 = vmax.f32 %v182, %v219
      %v240 = vmax.f32 %v183, %v222
      %v241 = vmax.f32 %v184, %v225
      %s242 = scalar_lea.vmem %s115, 144
      %v243 = vld [vmem:[%s242] sm:$0xf]
      %v244 = vld [vmem:[%s242 + $0x4] sm:$0x1]
      %v245 = vld [vmem:[%s242 + $0x8] sm:$0xf]
      %v246 = vld [vmem:[%s242 + $0xc] sm:$0x1]
      %v247 = vld [vmem:[%s242 + $0x10] sm:$0xf]
      %v248 = vld [vmem:[%s242 + $0x14] sm:$0x1]
      %v249 = vld [vmem:[%s242 + $0x18] sm:$0xf]
      %v250 = vld [vmem:[%s242 + $0x1c] sm:$0x1]
      %v251 = vld [vmem:[%s242 + $0x20] sm:$0xf]
      %v252 = vld [vmem:[%s242 + $0x24] sm:$0x1]
      %v253 = vld [vmem:[%s242 + $0x28] sm:$0xf]
      %v254 = vld [vmem:[%s242 + $0x2c] sm:$0x1]
      %v255 = vld [vmem:[%s242 + $0x30] sm:$0xf]
      %v256 = vld [vmem:[%s242 + $0x34] sm:$0x1]
      %v257 = vld [vmem:[%s242 + $0x38] sm:$0xf]
      %v258 = vld [vmem:[%s242 + $0x3c] sm:$0x1]
      %v259 = vunpack.c.l.bf16 %v243
      %v260 = vunpack.c.l.bf16 %v244
      %v261 = vunpack.c.l.bf16 %v245
      %v262 = vunpack.c.l.bf16 %v246
      %v263 = vunpack.c.l.bf16 %v247
      %v264 = vunpack.c.l.bf16 %v248
      %v265 = vunpack.c.l.bf16 %v249
      %v266 = vunpack.c.l.bf16 %v250
      %v267 = vunpack.c.l.bf16 %v251
      %v268 = vunpack.c.l.bf16 %v252
      %v269 = vunpack.c.l.bf16 %v253
      %v270 = vunpack.c.l.bf16 %v254
      %v271 = vunpack.c.l.bf16 %v255
      %v272 = vunpack.c.l.bf16 %v256
      %v273 = vunpack.c.l.bf16 %v257
      %v274 = vunpack.c.l.bf16 %v258
      %v275 = vmax.f32 %v234, %v259
      %v276 = vmax.f32 %v235, %v261
      %v277 = vmax.f32 %v236, %v263
      %v278 = vmax.f32 %v237, %v265
      %v279 = vmax.f32 %v238, %v267
      %v280 = vmax.f32 %v239, %v269
      %v281 = vmax.f32 %v240, %v271
      %v282 = vmax.f32 %v241, %v273
      %s283 = scalar_lea.vmem %s115, 216
      %v284 = vld [vmem:[%s283] sm:$0xf]
      %v285 = vld [vmem:[%s283 + $0x8] sm:$0xf]
      %v286 = vld [vmem:[%s283 + $0x10] sm:$0xf]
      %v287 = vld [vmem:[%s283 + $0x18] sm:$0xf]
      %v288 = vld [vmem:[%s283 + $0x20] sm:$0xf]
      %v289 = vld [vmem:[%s283 + $0x28] sm:$0xf]
      %v290 = vld [vmem:[%s283 + $0x30] sm:$0xf]
      %v291 = vld [vmem:[%s283 + $0x38] sm:$0xf]
      %v292 = vunpack.c.l.bf16 %v284
      %v293 = vunpack.c.l.bf16 %v285
      %v294 = vunpack.c.l.bf16 %v286
      %v295 = vunpack.c.l.bf16 %v287
      %v296 = vunpack.c.l.bf16 %v288
      %v297 = vunpack.c.l.bf16 %v289
      %v298 = vunpack.c.l.bf16 %v290
      %v299 = vunpack.c.l.bf16 %v291
      %v300 = vmax.f32 %v275, %v292
      %v301 = vmax.f32 %v276, %v293
      %v302 = vmax.f32 %v277, %v294
      %v303 = vmax.f32 %v278, %v295
      %v304 = vmax.f32 %v279, %v296
      %v305 = vmax.f32 %v280, %v297
      %v306 = vmax.f32 %v281, %v298
      %v307 = vmax.f32 %v282, %v299
      %v324 = vrot.slane %v259, 1
      %v325 = vrot.slane %v260, 1
      %v326 = vsel %vm201, %v324, %v325
      %v327 = vrot.slane %v261, 1
      %v328 = vrot.slane %v262, 1
      %v329 = vsel %vm201, %v327, %v328
      %v330 = vrot.slane %v263, 1
      %v331 = vrot.slane %v264, 1
      %v332 = vsel %vm201, %v330, %v331
      %v333 = vrot.slane %v265, 1
      %v334 = vrot.slane %v266, 1
      %v335 = vsel %vm201, %v333, %v334
      %v336 = vrot.slane %v267, 1
      %v337 = vrot.slane %v268, 1
      %v338 = vsel %vm201, %v336, %v337
      %v339 = vrot.slane %v269, 1
      %v340 = vrot.slane %v270, 1
      %v341 = vsel %vm201, %v339, %v340
      %v342 = vrot.slane %v271, 1
      %v343 = vrot.slane %v272, 1
      %v344 = vsel %vm201, %v342, %v343
      %v345 = vrot.slane %v273, 1
      %v346 = vrot.slane %v274, 1
      %v347 = vsel %vm201, %v345, %v346
      %v356 = vmax.f32 %v300, %v326
      %v357 = vmax.f32 %v301, %v329
      %v358 = vmax.f32 %v302, %v332
      %v359 = vmax.f32 %v303, %v335
      %v360 = vmax.f32 %v304, %v338
      %v361 = vmax.f32 %v305, %v341
      %v362 = vmax.f32 %v306, %v344
      %v363 = vmax.f32 %v307, %v347
      %v364 = vmax.f32 %v356, %v142
      %v365 = vmax.f32 %v357, %v144
      %v366 = vmax.f32 %v358, %v146
      %v367 = vmax.f32 %v359, %v148
      %v368 = vmax.f32 %v360, %v150
      %v369 = vmax.f32 %v361, %v152
      %v370 = vmax.f32 %v362, %v154
      %v371 = vmax.f32 %v363, %v156
      %v372 = vmax.f32 %v364, %v169
      %v373 = vmax.f32 %v365, %v170
      %v374 = vmax.f32 %v366, %v171
      %v375 = vmax.f32 %v367, %v172
      %v376 = vmax.f32 %v368, %v173
      %v377 = vmax.f32 %v369, %v174
      %v378 = vmax.f32 %v370, %v175
      %v379 = vmax.f32 %v371, %v176
      %v382 = vrot.slane %v156, 1
      %v383 = vrot.slane %v157, 1
      %v384 = vsel %vm201, %v382, %v383
      %v386 = vmax.f32 %v372, %v207
      %v387 = vmax.f32 %v373, %v210
      %v388 = vmax.f32 %v374, %v213
      %v389 = vmax.f32 %v375, %v216
      %v390 = vmax.f32 %v376, %v219
      %v391 = vmax.f32 %v377, %v222
      %v392 = vmax.f32 %v378, %v225
      %v393 = vmax.f32 %v379, %v384
      %v394 = vpack.c.bf16 %v386, %v386
      %v395 = vpack.c.bf16 %v387, %v387
      %v396 = vpack.c.bf16 %v388, %v388
      %v397 = vpack.c.bf16 %v389, %v389
      %v398 = vpack.c.bf16 %v390, %v390
      %v399 = vpack.c.bf16 %v391, %v391
      %v400 = vpack.c.bf16 %v392, %v392
      %v401 = vpack.c.bf16 %v393, %v393
      %vm402 = vcmask 191488
      %403 = vst.msk [vmem:[%s121] sm:$0xf] %vm402, %v394
      %404 = vst.msk [vmem:[%s121 + $0x4] sm:$0xf] %vm402, %v395
      %405 = vst.msk [vmem:[%s121 + $0x8] sm:$0xf] %vm402, %v396
      %406 = vst.msk [vmem:[%s121 + $0xc] sm:$0xf] %vm402, %v397
      %407 = vst.msk [vmem:[%s121 + $0x10] sm:$0xf] %vm402, %v398
      %408 = vst.msk [vmem:[%s121 + $0x14] sm:$0xf] %vm402, %v399
      %409 = vst.msk [vmem:[%s121 + $0x18] sm:$0xf] %vm402, %v400
      %410 = vst.msk [vmem:[%s121 + $0x1c] sm:$0xf] %vm402, %v401
      %p411 = scmp.lt.s32.totalorder %s12, 1
      %s412 = scalar_select %p411, %s12, 1
      %s413 = smul.addr %s412, 8
      %s414 = smul.addr %s413, 4
      %s415 = scalar_lea.vmem %s1, %s414
      // Predicated region
      $region25: #{reranking_shufflenet_forward.59} parent=23 // pred_check
        %p416 = pneg %p56
      $region26: #{reranking_shufflenet_forward.59} parent=23 // pred_check_branch
        %418 = sbr.rel (%p416) target = $region28
      $region27: #{reranking_shufflenet_forward.59} parent=23 // pred_region
        _
      $region28: #{reranking_shufflenet_forward.59} parent=23 // pred_fallthru
        _
    $region24: #{reranking_shufflenet_forward.59} parent=5 // pred_fallthru
      _
    %p419 = scmp.le.s32.totalorder 2, %s7
    // Predicated region
    $region29: #{reranking_shufflenet_forward.59} parent=5 // pred_check
      %p420 = pneg %p419
    $region30: #{reranking_shufflenet_forward.59} parent=5 // pred_check_branch
      %422 = sbr.rel (%p420) target = $region32
    $region31: #{reranking_shufflenet_forward.59} parent=5 // pred_region
      %s423 = ssub.s32 %s7, 2
      // Predicated region
      $region33: #{reranking_shufflenet_forward.59} parent=31 // pred_check
        %p424 = pneg %p62
      $region34: #{reranking_shufflenet_forward.59} parent=31 // pred_check_branch
        %426 = sbr.rel (%p424) target = $region36
      $region35: #{reranking_shufflenet_forward.59} parent=31 // pred_region
        %p427 = scmp.lt.s32.totalorder %s13, 1
        %s428 = scalar_select %p427, %s13, 1
        %s429 = smul.addr %s428, 8
        %s430 = smul.addr %s429, 4
        %s431 = scalar_lea.vmem %s1, %s430
      $region36: #{reranking_shufflenet_forward.59} parent=31 // pred_fallthru
        _
    $region32: #{reranking_shufflenet_forward.59} parent=5 // pred_fallthru
      _
  $region6: #{reranking_shufflenet_forward.59} parent=0 // loop_footer
    %s11 = sadd.s32 1, %s7
  $region7: #{reranking_shufflenet_forward.59} parent=0 // loop_footer_branch
    %6 = sbr.rel target = $region3
  $region8: #{reranking_shufflenet_forward.59} parent=0 // loop_exit
    _

// kernel: reranking_shufflenet_forward.64
$region0: #{reranking_shufflenet_forward.64}
  #allocation0 [shape = 'u32[]', space=smem, size = 0x4, offset = 0x4, fixed_abs, tag = 'smem constant byte address 0x4 - core index']
  #allocation1 [shape = 'u32[144,128]{1,0:T(1,128)}', space=vmem, size = 0x12000, scoped, tag = 'internal scratch']
  %s0 = inlined_call_operand.vmem [shape: bf16[32,58], index: 0, kind: input, shape index: {}]
  %s1 = inlined_call_operand.vmem [shape: bf16[58,58], index: 1, kind: input, shape index: {}]
  %s2 = inlined_call_operand.vmem [shape: f32[1,58], index: 2, kind: input, shape index: {}]
  %s3 = inlined_call_operand.vmem [shape: bf16[32,58], index: 3, kind: output, shape index: {}]
  %s4 = sld [smem:[#allocation0]]
  $region22: #{reranking_shufflenet_forward.64} parent=0
    _
  %s6 = ssub.s32 1, %s4
  %s7 = scalar_select 0, %s6, %s4
  // Predicated region
  $region2: #{reranking_shufflenet_forward.64} parent=0 // pred_check
    _
  $region3: #{reranking_shufflenet_forward.64} parent=0 // pred_check_branch
    %9 = sbr.rel (0) target = $region5
  $region4: #{reranking_shufflenet_forward.64} parent=0 // pred_region
    _
  $region5: #{reranking_shufflenet_forward.64} parent=0 // pred_fallthru
    _
  // Predicated region
  $region6: #{reranking_shufflenet_forward.64} parent=0 // pred_check
    _
  $region7: #{reranking_shufflenet_forward.64} parent=0 // pred_check_branch
    %11 = sbr.rel (0) target = $region9
  $region8: #{reranking_shufflenet_forward.64} parent=0 // pred_region
    _
  $region9: #{reranking_shufflenet_forward.64} parent=0 // pred_fallthru
    _
  // Predicated region
  $region10: #{reranking_shufflenet_forward.64} parent=0 // pred_check
    _
  $region11: #{reranking_shufflenet_forward.64} parent=0 // pred_check_branch
    %13 = sbr.rel (0) target = $region13
  $region12: #{reranking_shufflenet_forward.64} parent=0 // pred_region
    _
  $region13: #{reranking_shufflenet_forward.64} parent=0 // pred_fallthru
    _
  %v15 = vld [vmem:[%s0] sm:$0xf]
  %v16 = vld [vmem:[%s0 + $0x4] sm:$0xf]
  %v17 = vld [vmem:[%s0 + $0x8] sm:$0xf]
  %v18 = vld [vmem:[%s0 + $0xc] sm:$0xf]
  %v19 = vld [vmem:[%s1] sm:$0xf]
  %v20 = vld [vmem:[%s1 + $0x4] sm:$0xf]
  %v21 = vld [vmem:[%s1 + $0x8] sm:$0xf]
  %v22 = vld [vmem:[%s1 + $0xc] sm:$0xf]
  %v23 = vld [vmem:[%s1 + $0x10] sm:$0xf]
  %v24 = vld [vmem:[%s1 + $0x14] sm:$0xf]
  %v25 = vld [vmem:[%s1 + $0x18] sm:$0xf]
  %v26 = vld [vmem:[%s1 + $0x1c] sm:$0x1]
  %v27 = vld [vmem:[%s2] sm:$0x1]
  %v29 = vlaneseq
  %v30 = vshrl.u32 %v29, 7
  %v31 = vsub.s32 0, %v30
  %v32 = vrot.slane %v27, %v31
  %v38 = vunpack.c.l.b16 %v15
  %v39 = vunpack.c.l.b16 %v16
  %v40 = vunpack.c.l.b16 %v17
  %v41 = vunpack.c.l.b16 %v18
  %v42 = vpack.c.b16 %v39, %v38
  %v43 = vpack.c.b16 %v41, %v40
  %v52 = vunpack.c.l.b16 %v19
  %v53 = vunpack.c.l.b16 %v20
  %v54 = vunpack.c.l.b16 %v21
  %v55 = vunpack.c.l.b16 %v22
  %v56 = vunpack.c.l.b16 %v23
  %v57 = vunpack.c.l.b16 %v24
  %v58 = vunpack.c.l.b16 %v25
  %v59 = vunpack.c.l.b16 %v26
  %v60 = vpack.c.b16 %v53, %v52
  %v61 = vpack.c.b16 %v55, %v54
  %v62 = vpack.c.b16 %v57, %v56
  %v63 = vpack.c.b16 %v59, %v58
  %vm67 = vcmask 474112
  %v69 = vsel %vm67, %v42, 0
  %v72 = vsel %vm67, %v43, 0
  %vm74 = vcmask 1044480
  %v76 = vsel %vm74, %v63, 0
  %78 = vmatprep.subr.bf16.mxu0 0
  %79 = vmatpush1.bf16.msra.mxu0 %v60
  %80 = vmatprep.subr.bf16.mxu0 0
  %81 = vmatpush1.bf16.msra.mxu0 %v61
  %82 = vmatprep.subr.bf16.mxu0 0
  %83 = vmatpush1.bf16.msra.mxu0 %v62
  %84 = vmatprep.subr.bf16.mxu0 0
  %85 = vmatpush1.bf16.msra.mxu0 %v76
  %86 = vmatprep.subr.bf16.mxu0 0
  %87 = vmatpush1.bf16.msra.mxu0 0
  %88 = vmatprep.subr.bf16.mxu0 0
  %89 = vmatpush1.bf16.msra.mxu0 0
  %90 = vmatprep.subr.bf16.mxu0 0
  %91 = vmatpush1.bf16.msra.mxu0 0
  %92 = vmatprep.subr.bf16.mxu0 0
  %93 = vmatpush1.bf16.msra.mxu0 0
  %94 = vmatprep.subr.bf16.mxu0 0
  %95 = vmatpush1.bf16.msra.mxu0 0
  %96 = vmatprep.subr.bf16.mxu0 0
  %97 = vmatpush1.bf16.msra.mxu0 0
  %98 = vmatprep.subr.bf16.mxu0 0
  %99 = vmatpush1.bf16.msra.mxu0 0
  %100 = vmatprep.subr.bf16.mxu0 0
  %101 = vmatpush1.bf16.msra.mxu0 0
  %102 = vmatprep.subr.bf16.mxu0 0
  %103 = vmatpush1.bf16.msra.mxu0 0
  %104 = vmatprep.subr.bf16.mxu0 0
  %105 = vmatpush1.bf16.msra.mxu0 0
  %106 = vmatprep.subr.bf16.mxu0 0
  %107 = vmatpush1.bf16.msra.mxu0 0
  %108 = vmatprep.subr.bf16.mxu0 0
  %109 = vmatpush1.bf16.msra.mxu0 0
  %110 = vmatprep.mubr.bf16.mxu0 0
  %111 = vmatmul.mubr.bf16.gmra.mrb[0].mxu0 %v69
  %v112 = vpop.f32.mrb[0].mxu0
  %v113 = vadd.f32 %v32, %v112
  %v114 = vpop.f32.mrb[0].mxu0
  %v115 = vpop.f32.mrb[0].mxu0
  %v116 = vadd.f32 %v32, %v115
  %v117 = vpop.f32.mrb[0].mxu0
  %118 = vmatprep.mubr.bf16.mxu0 0
  %119 = vmatmul.mubr.bf16.gmra.mrb[0].mxu0 %v72
  %v120 = vpop.f32.mrb[0].mxu0
  %v121 = vadd.f32 %v32, %v120
  %v122 = vpop.f32.mrb[0].mxu0
  %v123 = vpop.f32.mrb[0].mxu0
  %v124 = vadd.f32 %v32, %v123
  %v125 = vpop.f32.mrb[0].mxu0
  %126 = vdwg.mxu0
  %v127 = vmax.f32 %v113, 0.0
  %v128 = vmax.f32 %v116, 0.0
  %v129 = vmax.f32 %v121, 0.0
  %v130 = vmax.f32 %v124, 0.0
  %v131 = vpack.c.bf16 %v128, %v127
  %v132 = vpack.c.bf16 %v130, %v129
  %v135 = vunpack.c.l.b16 %v131
  %v136 = vunpack.c.h.b16 %v131
  %v137 = vunpack.c.l.b16 %v132
  %v138 = vunpack.c.h.b16 %v132
  %v139 = vpack.c.b16 %v135, %v135
  %v140 = vpack.c.b16 %v136, %v136
  %v141 = vpack.c.b16 %v137, %v137
  %v142 = vpack.c.b16 %v138, %v138
  %vm147 = vcmask 470016
  %148 = vst.msk [vmem:[%s3] sm:$0xf] %vm147, %v139
  %149 = vst.msk [vmem:[%s3 + $0x4] sm:$0xf] %vm147, %v140
  %150 = vst.msk [vmem:[%s3 + $0x8] sm:$0xf] %vm147, %v141
  %151 = vst.msk [vmem:[%s3 + $0xc] sm:$0xf] %vm147, %v142
  // Predicated region
  $region14: #{reranking_shufflenet_forward.64} parent=0 // pred_check
    _
  $region15: #{reranking_shufflenet_forward.64} parent=0 // pred_check_branch
    %153 = sbr.rel (0) target = $region17
  $region16: #{reranking_shufflenet_forward.64} parent=0 // pred_region
    _
  $region17: #{reranking_shufflenet_forward.64} parent=0 // pred_fallthru
    _
  // Predicated region
  $region18: #{reranking_shufflenet_forward.64} parent=0 // pred_check
    _
  $region19: #{reranking_shufflenet_forward.64} parent=0 // pred_check_branch
    %155 = sbr.rel (0) target = $region21
  $region20: #{reranking_shufflenet_forward.64} parent=0 // pred_region
    _
  $region21: #{reranking_shufflenet_forward.64} parent=0 // pred_fallthru
    _

// kernel: reranking_shufflenet_forward.63
$region0: #{reranking_shufflenet_forward.63}
  #allocation0 [shape = 'u32[]', space=smem, size = 0x4, offset = 0x4, fixed_abs, tag = 'smem constant byte address 0x4 - core index']
  #allocation1 [shape = 'u32[144,128]{1,0:T(1,128)}', space=vmem, size = 0x12000, scoped, tag = 'internal scratch']
  %s0 = inlined_call_operand.vmem [shape: bf16[8,5,5,58], index: 0, kind: input, shape index: {}]
  %s1 = inlined_call_operand.vmem [shape: f32[9,1,58], index: 1, kind: input, shape index: {}]
  %s2 = inlined_call_operand.vmem [shape: f32[1,58], index: 2, kind: input, shape index: {}]
  %s3 = inlined_call_operand.vmem [shape: bf16[2,4,4,58], index: 3, kind: output, shape index: {}]
  %s4 = sld [smem:[#allocation0]]
  $region45: #{reranking_shufflenet_forward.63} parent=0
    _
  %s6 = ssub.s32 1, %s4
  %s7 = scalar_select 0, %s6, %s4
  loop: start=0, step=1, limit=4
  $region2: #{reranking_shufflenet_forward.63} parent=0 // loop_pre_header
    _
  $region3: #{reranking_shufflenet_forward.63} parent=0 // loop_header
    %s9 = sphi 0, %s13
    %p10 = scmp.ge.s32.totalorder %s9, 4
    %s19 = sphi 0, %s21
    %s22 = sphi 0, %s19
    %s23 = sphi 0, %s22
    %s39 = sphi 0, %s23
    %s43 = sphi 0, %s43
    %s45 = sphi 0, %s43
    %s46 = sphi 0, %s45
    %s60 = sphi 0, %s46
    %s64 = sphi 0, %s64
    %s66 = sphi 0, %s64
    %s67 = sphi 0, %s66
    %s81 = sphi 0, %s67
    %s87 = sphi 0, %s89
    %s90 = sphi 0, %s87
    %s91 = sphi 0, %s90
    %s107 = sphi 0, %s91
  $region4: #{reranking_shufflenet_forward.63} parent=0 // loop_header_branch
    %12 = sbr.rel (%p10) target = $region8
  $region5: #{reranking_shufflenet_forward.63} parent=0 // loop_body
    %s14 = ssub.s32 %s9, 1
    %s15 = ssub.s32 %s9, 2
    %s16 = sadd.s32 %s9, 1
    %s17 = ssub.s32 %s9, %s16
    %p18 = scmp.eq.s32.totalorder %s17, 0
    %s20 = sadd.s32 %s19, 1
    %s21 = scalar_select %p18, %s19, %s20
    %p24 = pneg %p18
    %p25 = scmp.eq.s32.totalorder %s9, 1
    %p26 = por %p24, %p25
    %p27 = scmp.ne.s32.totalorder %s19, %s22
    %p28 = scmp.eq.s32.totalorder %s9, 0
    %p29 = por %p27, %p28
    %p30 = scmp.ne.s32.totalorder %s19, %s22
    %p31 = scmp.eq.s32.totalorder %s14, 1
    %p32 = por %p30, %p31
    %p33 = scmp.ne.s32.totalorder %s22, %s23
    %p34 = scmp.eq.s32.totalorder %s14, 0
    %p35 = por %p33, %p34
    %p36 = scmp.ne.s32.totalorder %s22, %s23
    %p37 = scmp.eq.s32.totalorder %s15, 1
    %p38 = por %p36, %p37
    %p40 = scmp.ne.s32.totalorder %s23, %s39
    %p41 = scmp.eq.s32.totalorder %s15, 0
    %p42 = por %p40, %p41
    %s44 = sadd.s32 %s43, 1
    %p47 = scmp.eq.s32.totalorder %s9, 1
    %p48 = scmp.ne.s32.totalorder %s43, %s45
    %p49 = scmp.eq.s32.totalorder %s9, 0
    %p50 = por %p48, %p49
    %p51 = scmp.ne.s32.totalorder %s43, %s45
    %p52 = scmp.eq.s32.totalorder %s14, 1
    %p53 = por %p51, %p52
    %p54 = scmp.ne.s32.totalorder %s45, %s46
    %p55 = scmp.eq.s32.totalorder %s14, 0
    %p56 = por %p54, %p55
    %p57 = scmp.ne.s32.totalorder %s45, %s46
    %p58 = scmp.eq.s32.totalorder %s15, 1
    %p59 = por %p57, %p58
    %p61 = scmp.ne.s32.totalorder %s46, %s60
    %p62 = scmp.eq.s32.totalorder %s15, 0
    %p63 = por %p61, %p62
    %s65 = sadd.s32 %s64, 1
    %p68 = scmp.eq.s32.totalorder %s9, 1
    %p69 = scmp.ne.s32.totalorder %s64, %s66
    %p70 = scmp.eq.s32.totalorder %s9, 0
    %p71 = por %p69, %p70
    %p72 = scmp.ne.s32.totalorder %s64, %s66
    %p73 = scmp.eq.s32.totalorder %s14, 1
    %p74 = por %p72, %p73
    %p75 = scmp.ne.s32.totalorder %s66, %s67
    %p76 = scmp.eq.s32.totalorder %s14, 0
    %p77 = por %p75, %p76
    %p78 = scmp.ne.s32.totalorder %s66, %s67
    %p79 = scmp.eq.s32.totalorder %s15, 1
    %p80 = por %p78, %p79
    %p82 = scmp.ne.s32.totalorder %s67, %s81
    %p83 = scmp.eq.s32.totalorder %s15, 0
    %p84 = por %p82, %p83
    %s85 = ssub.s32 %s9, %s16
    %p86 = scmp.eq.s32.totalorder %s85, 0
    %s88 = sadd.s32 %s87, 1
    %s89 = scalar_select %p86, %s87, %s88
    %p92 = pneg %p86
    %p93 = scmp.eq.s32.totalorder %s9, 1
    %p94 = por %p92, %p93
    %p95 = scmp.ne.s32.totalorder %s87, %s90
    %p96 = scmp.eq.s32.totalorder %s9, 0
    %p97 = por %p95, %p96
    %p98 = scmp.ne.s32.totalorder %s87, %s90
    %p99 = scmp.eq.s32.totalorder %s14, 1
    %p100 = por %p98, %p99
    %p101 = scmp.ne.s32.totalorder %s90, %s91
    %p102 = scmp.eq.s32.totalorder %s14, 0
    %p103 = por %p101, %p102
    %p104 = scmp.ne.s32.totalorder %s90, %s91
    %p105 = scmp.eq.s32.totalorder %s15, 1
    %p106 = por %p104, %p105
    %p108 = scmp.ne.s32.totalorder %s91, %s107
    %p109 = scmp.eq.s32.totalorder %s15, 0
    %p110 = por %p108, %p109
    %p111 = scmp.le.s32.totalorder 1, %s9
    %p112 = scmp.lt.s32.totalorder %s9, 3
    %p113 = pnand %p111, %p112
    %p114 = pneg %p113
    // Predicated region
    $region9: #{reranking_shufflenet_forward.63} parent=5 // pred_check
      _
    $region10: #{reranking_shufflenet_forward.63} parent=5 // pred_check_branch
      %116 = sbr.rel (%p113) target = $region12
    $region11: #{reranking_shufflenet_forward.63} parent=5 // pred_region
      %s117 = ssub.s32 %s9, 1
      // Predicated region
      $region13: #{reranking_shufflenet_forward.63} parent=11 // pred_check
        %p118 = pneg %p56
      $region14: #{reranking_shufflenet_forward.63} parent=11 // pred_check_branch
        %120 = sbr.rel (%p118) target = $region16
      $region15: #{reranking_shufflenet_forward.63} parent=11 // pred_region
        _
      $region16: #{reranking_shufflenet_forward.63} parent=11 // pred_fallthru
        _
      // Predicated region
      $region17: #{reranking_shufflenet_forward.63} parent=11 // pred_check
        %p121 = pneg %p77
      $region18: #{reranking_shufflenet_forward.63} parent=11 // pred_check_branch
        %123 = sbr.rel (%p121) target = $region20
      $region19: #{reranking_shufflenet_forward.63} parent=11 // pred_region
        _
      $region20: #{reranking_shufflenet_forward.63} parent=11 // pred_fallthru
        _
    $region12: #{reranking_shufflenet_forward.63} parent=5 // pred_fallthru
      _
    %p124 = scmp.lt.s32.totalorder %s9, 2
    // Predicated region
    $region21: #{reranking_shufflenet_forward.63} parent=5 // pred_check
      %p125 = pneg %p124
    $region22: #{reranking_shufflenet_forward.63} parent=5 // pred_check_branch
      %127 = sbr.rel (%p125) target = $region24
    $region23: #{reranking_shufflenet_forward.63} parent=5 // pred_region
      // Predicated region
      $region25: #{reranking_shufflenet_forward.63} parent=23 // pred_check
        %p128 = pneg %p29
      $region26: #{reranking_shufflenet_forward.63} parent=23 // pred_check_branch
        %130 = sbr.rel (%p128) target = $region28
      $region27: #{reranking_shufflenet_forward.63} parent=23 // pred_region
        %s131 = smul.u32 4, %s9
        %p132 = scmp.lt.s32.totalorder %s131, 7
        %s133 = scalar_select %p132, %s131, 7
        %s134 = smul.addr %s133, 5
        %s135 = smul.addr %s134, 4
        %s136 = scalar_lea.vmem %s0, %s135
        %s137 = smul.u32 4, %s9
      $region28: #{reranking_shufflenet_forward.63} parent=23 // pred_fallthru
        _
    $region24: #{reranking_shufflenet_forward.63} parent=5 // pred_fallthru
      _
    %p138 = scmp.le.s32.totalorder 1, %s9
    %p139 = scmp.lt.s32.totalorder %s9, 3
    %p140 = pnand %p138, %p139
    %p141 = pneg %p140
    // Predicated region
    $region29: #{reranking_shufflenet_forward.63} parent=5 // pred_check
      _
    $region30: #{reranking_shufflenet_forward.63} parent=5 // pred_check_branch
      %143 = sbr.rel (%p140) target = $region32
    $region31: #{reranking_shufflenet_forward.63} parent=5 // pred_region
      %s144 = ssub.s32 %s9, 1
      %s145 = smul.u32 4, %s14
      %p146 = scmp.lt.s32.totalorder %s145, 7
      %s147 = scalar_select %p146, %s145, 7
      %s148 = smul.addr %s147, 5
      %s149 = smul.addr %s148, 4
      %s150 = scalar_lea.vmem %s0, %s149
      %p151 = pneg %p35
      %p152 = pneg %p32
      %p153 = pneg %p56
      %p154 = pneg %p53
      %p155 = pneg %p77
      %p156 = pneg %p74
      %p157 = pneg %p103
      %p158 = pneg %p100
      %p159 = scmp.lt.s32.totalorder %s14, 1
      %s160 = scalar_select %p159, %s14, 1
      %s161 = smul.addr %s160, 4
      %s162 = smul.addr %s161, 2
      %s163 = scalar_lea.vmem %s3, %s162
      %s164 = smul.u32 4, %s14
      %p165 = scmp.lt.s32.totalorder %s164, 7
      %s166 = scalar_select %p165, %s164, 7
      %s167 = smul.addr %s166, 5
      %s168 = smul.addr %s167, 4
      %s169 = scalar_lea.vmem %s0, %s168
      %s170 = smul.u32 4, %s14
      %p171 = scmp.lt.s32.totalorder %s14, 1
      %s172 = scalar_select %p171, %s14, 1
      %s173 = smul.addr %s172, 4
      %s174 = smul.addr %s173, 2
      %s175 = scalar_lea.vmem %s3, %s174
      %v176 = vld [vmem:[%s169] sm:$0x7]
      %v177 = vld [vmem:[%s169 + $0x4] sm:$0x7]
      %v178 = vld [vmem:[%s169 + $0x8] sm:$0x7]
      %v179 = vld [vmem:[%s169 + $0xc] sm:$0x7]
      %v180 = vld [vmem:[%s169 + $0x10] sm:$0x7]
      %v181 = vunpack.c.l.bf16 %v176
      %v182 = vunpack.c.l.bf16 %v177
      %v183 = vunpack.c.l.bf16 %v178
      %v184 = vunpack.c.l.bf16 %v179
      %v185 = vunpack.c.l.bf16 %v180
      %v186 = vld [vmem:[%s1] sm:$0x1]
      %v188 = vlaneseq
      %v189 = vshrl.u32 %v188, 7
      %v190 = vsub.s32 0, %v189
      %v191 = vrot.slane %v186, %v190
      %v193 = vmul.f32 %v181, %v191
      %v194 = vmul.f32 %v182, %v191
      %v195 = vmul.f32 %v183, %v191
      %v196 = vmul.f32 %v184, %v191
      %v197 = vadd.f32 %v193, 0.0
      %v198 = vadd.f32 %v194, 0.0
      %v199 = vadd.f32 %v195, 0.0
      %v200 = vadd.f32 %v196, 0.0
      %s201 = scalar_lea.vmem %s169, 20
      %v202 = vld [vmem:[%s201] sm:$0x7]
      %v203 = vld [vmem:[%s201 + $0x4] sm:$0x7]
      %v204 = vld [vmem:[%s201 + $0x8] sm:$0x7]
      %v205 = vld [vmem:[%s201 + $0xc] sm:$0x7]
      %v206 = vld [vmem:[%s201 + $0x10] sm:$0x7]
      %v207 = vunpack.c.l.bf16 %v202
      %v208 = vunpack.c.l.bf16 %v203
      %v209 = vunpack.c.l.bf16 %v204
      %v210 = vunpack.c.l.bf16 %v205
      %v211 = vunpack.c.l.bf16 %v206
      %s212 = scalar_lea.vmem %s1, 1
      %v213 = vld [vmem:[%s212] sm:$0x1]
      %v215 = vlaneseq
      %v216 = vshrl.u32 %v215, 7
      %v217 = vsub.s32 0, %v216
      %v218 = vrot.slane %v213, %v217
      %v220 = vmul.f32 %v207, %v218
      %v221 = vmul.f32 %v208, %v218
      %v222 = vmul.f32 %v209, %v218
      %v223 = vmul.f32 %v210, %v218
      %v224 = vadd.f32 %v197, %v220
      %v225 = vadd.f32 %v198, %v221
      %v226 = vadd.f32 %v199, %v222
      %v227 = vadd.f32 %v200, %v223
      %s228 = scalar_lea.vmem %s1, 2
      %v229 = vld [vmem:[%s228] sm:$0x1]
      %v231 = vlaneseq
      %v232 = vshrl.u32 %v231, 7
      %v233 = vsub.s32 0, %v232
      %v234 = vrot.slane %v229, %v233
      %v236 = vmul.f32 %v181, %v234
      %v237 = vmul.f32 %v182, %v234
      %v238 = vmul.f32 %v183, %v234
      %v239 = vmul.f32 %v184, %v234
      %v244 = vrot.slane %v236, 1
      %v245 = vrot.slane %v237, 1
      %v246 = vrot.slane %v238, 1
      %v247 = vrot.slane %v239, 1
      %v252 = vadd.f32 %v224, %v244
      %v253 = vadd.f32 %v225, %v245
      %v254 = vadd.f32 %v226, %v246
      %v255 = vadd.f32 %v227, %v247
      %s256 = scalar_lea.vmem %s169, 40
      %v257 = vld [vmem:[%s256] sm:$0x7]
      %v258 = vld [vmem:[%s256 + $0x4] sm:$0x7]
      %v259 = vld [vmem:[%s256 + $0x8] sm:$0x7]
      %v260 = vld [vmem:[%s256 + $0xc] sm:$0x7]
      %v261 = vunpack.c.l.bf16 %v257
      %v262 = vunpack.c.l.bf16 %v258
      %v263 = vunpack.c.l.bf16 %v259
      %v264 = vunpack.c.l.bf16 %v260
      %s265 = scalar_lea.vmem %s1, 3
      %v266 = vld [vmem:[%s265] sm:$0x1]
      %v268 = vlaneseq
      %v269 = vshrl.u32 %v268, 7
      %v270 = vsub.s32 0, %v269
      %v271 = vrot.slane %v266, %v270
      %v273 = vmul.f32 %v261, %v271
      %v274 = vmul.f32 %v262, %v271
      %v275 = vmul.f32 %v263, %v271
      %v276 = vmul.f32 %v264, %v271
      %v277 = vadd.f32 %v252, %v273
      %v278 = vadd.f32 %v253, %v274
      %v279 = vadd.f32 %v254, %v275
      %v280 = vadd.f32 %v255, %v276
      %s281 = scalar_lea.vmem %s169, 60
      %v282 = vld [vmem:[%s281] sm:$0x7]
      %v283 = vld [vmem:[%s281 + $0x4] sm:$0x7]
      %v284 = vld [vmem:[%s281 + $0x8] sm:$0x7]
      %v285 = vld [vmem:[%s281 + $0xc] sm:$0x7]
      %v286 = vunpack.c.l.bf16 %v282
      %v287 = vunpack.c.l.bf16 %v283
      %v288 = vunpack.c.l.bf16 %v284
      %v289 = vunpack.c.l.bf16 %v285
      %s290 = scalar_lea.vmem %s1, 4
      %v291 = vld [vmem:[%s290] sm:$0x1]
      %v293 = vlaneseq
      %v294 = vshrl.u32 %v293, 7
      %v295 = vsub.s32 0, %v294
      %v296 = vrot.slane %v291, %v295
      %v298 = vmul.f32 %v286, %v296
      %v299 = vmul.f32 %v287, %v296
      %v300 = vmul.f32 %v288, %v296
      %v301 = vmul.f32 %v289, %v296
      %v302 = vadd.f32 %v277, %v298
      %v303 = vadd.f32 %v278, %v299
      %v304 = vadd.f32 %v279, %v300
      %v305 = vadd.f32 %v280, %v301
      %s306 = scalar_lea.vmem %s1, 5
      %v307 = vld [vmem:[%s306] sm:$0x1]
      %v309 = vlaneseq
      %v310 = vshrl.u32 %v309, 7
      %v311 = vsub.s32 0, %v310
      %v312 = vrot.slane %v307, %v311
      %v314 = vmul.f32 %v261, %v312
      %v315 = vmul.f32 %v262, %v312
      %v316 = vmul.f32 %v263, %v312
      %v317 = vmul.f32 %v264, %v312
      %v322 = vrot.slane %v314, 1
      %v323 = vrot.slane %v315, 1
      %v324 = vrot.slane %v316, 1
      %v325 = vrot.slane %v317, 1
      %v330 = vadd.f32 %v302, %v322
      %v331 = vadd.f32 %v303, %v323
      %v332 = vadd.f32 %v304, %v324
      %v333 = vadd.f32 %v305, %v325
      %s334 = scalar_lea.vmem %s1, 6
      %v335 = vld [vmem:[%s334] sm:$0x1]
      %v337 = vlaneseq
      %v338 = vshrl.u32 %v337, 7
      %v339 = vsub.s32 0, %v338
      %v340 = vrot.slane %v335, %v339
      %v342 = vmul.f32 %v182, %v340
      %v343 = vmul.f32 %v183, %v340
      %v344 = vmul.f32 %v184, %v340
      %v345 = vmul.f32 %v185, %v340
      %v346 = vadd.f32 %v330, %v342
      %v347 = vadd.f32 %v331, %v343
      %v348 = vadd.f32 %v332, %v344
      %v349 = vadd.f32 %v333, %v345
      %s350 = scalar_lea.vmem %s1, 7
      %v351 = vld [vmem:[%s350] sm:$0x1]
      %v353 = vlaneseq
      %v354 = vshrl.u32 %v353, 7
      %v355 = vsub.s32 0, %v354
      %v356 = vrot.slane %v351, %v355
      %v358 = vmul.f32 %v208, %v356
      %v359 = vmul.f32 %v209, %v356
      %v360 = vmul.f32 %v210, %v356
      %v361 = vmul.f32 %v211, %v356
      %v362 = vadd.f32 %v346, %v358
      %v363 = vadd.f32 %v347, %v359
      %v364 = vadd.f32 %v348, %v360
      %v365 = vadd.f32 %v349, %v361
      %s366 = scalar_lea.vmem %s1, 8
      %v367 = vld [vmem:[%s366] sm:$0x1]
      %v369 = vlaneseq
      %v370 = vshrl.u32 %v369, 7
      %v371 = vsub.s32 0, %v370
      %v372 = vrot.slane %v367, %v371
      %v374 = vmul.f32 %v182, %v372
      %v375 = vmul.f32 %v183, %v372
      %v376 = vmul.f32 %v184, %v372
      %v377 = vmul.f32 %v185, %v372
      %v382 = vrot.slane %v374, 1
      %v383 = vrot.slane %v375, 1
      %v384 = vrot.slane %v376, 1
      %v385 = vrot.slane %v377, 1
      %v390 = vadd.f32 %v362, %v382
      %v391 = vadd.f32 %v363, %v383
      %v392 = vadd.f32 %v364, %v384
      %v393 = vadd.f32 %v365, %v385
      %v394 = vld [vmem:[%s2] sm:$0x1]
      %v396 = vlaneseq
      %v397 = vshrl.u32 %v396, 7
      %v398 = vsub.s32 0, %v397
      %v399 = vrot.slane %v394, %v398
      %v401 = vadd.f32 %v390, %v399
      %v402 = vadd.f32 %v391, %v399
      %v403 = vadd.f32 %v392, %v399
      %v404 = vadd.f32 %v393, %v399
      %v405 = vpack.c.bf16 %v401, %v401
      %v406 = vpack.c.bf16 %v402, %v402
      %v407 = vpack.c.bf16 %v403, %v403
      %v408 = vpack.c.bf16 %v404, %v404
      %vm409 = vcmask 467968
      %410 = vst.msk [vmem:[%s175] sm:$0x3] %vm409, %v405
      %411 = vst.msk [vmem:[%s175 + $0x2] sm:$0x3] %vm409, %v406
      %412 = vst.msk [vmem:[%s175 + $0x4] sm:$0x3] %vm409, %v407
      %413 = vst.msk [vmem:[%s175 + $0x6] sm:$0x3] %vm409, %v408
      %p414 = scmp.lt.s32.totalorder %s14, 1
      %s415 = scalar_select %p414, %s14, 1
      %s416 = smul.addr %s415, 4
      %s417 = smul.addr %s416, 2
      %s418 = scalar_lea.vmem %s3, %s417
      // Predicated region
      $region33: #{reranking_shufflenet_forward.63} parent=31 // pred_check
        %p419 = pneg %p100
      $region34: #{reranking_shufflenet_forward.63} parent=31 // pred_check_branch
        %421 = sbr.rel (%p419) target = $region36
      $region35: #{reranking_shufflenet_forward.63} parent=31 // pred_region
        _
      $region36: #{reranking_shufflenet_forward.63} parent=31 // pred_fallthru
        _
    $region32: #{reranking_shufflenet_forward.63} parent=5 // pred_fallthru
      _
    %p422 = scmp.le.s32.totalorder 2, %s9
    // Predicated region
    $region37: #{reranking_shufflenet_forward.63} parent=5 // pred_check
      %p423 = pneg %p422
    $region38: #{reranking_shufflenet_forward.63} parent=5 // pred_check_branch
      %425 = sbr.rel (%p423) target = $region40
    $region39: #{reranking_shufflenet_forward.63} parent=5 // pred_region
      %s426 = ssub.s32 %s9, 2
      // Predicated region
      $region41: #{reranking_shufflenet_forward.63} parent=39 // pred_check
        %p427 = pneg %p106
      $region42: #{reranking_shufflenet_forward.63} parent=39 // pred_check_branch
        %429 = sbr.rel (%p427) target = $region44
      $region43: #{reranking_shufflenet_forward.63} parent=39 // pred_region
        %p430 = scmp.lt.s32.totalorder %s15, 1
        %s431 = scalar_select %p430, %s15, 1
        %s432 = smul.addr %s431, 4
        %s433 = smul.addr %s432, 2
        %s434 = scalar_lea.vmem %s3, %s433
      $region44: #{reranking_shufflenet_forward.63} parent=39 // pred_fallthru
        _
    $region40: #{reranking_shufflenet_forward.63} parent=5 // pred_fallthru
      _
  $region6: #{reranking_shufflenet_forward.63} parent=0 // loop_footer
    %s13 = sadd.s32 1, %s9
  $region7: #{reranking_shufflenet_forward.63} parent=0 // loop_footer_branch
    %8 = sbr.rel target = $region3
  $region8: #{reranking_shufflenet_forward.63} parent=0 // loop_exit
    _

// kernel: reranking_shufflenet_forward.61
$region0: #{reranking_shufflenet_forward.61}
  #allocation0 [shape = 'u32[]', space=smem, size = 0x4, offset = 0x4, fixed_abs, tag = 'smem constant byte address 0x4 - core index']
  #allocation1 [shape = 'u32[144,128]{1,0:T(1,128)}', space=vmem, size = 0x12000, scoped, tag = 'internal scratch']
  %s0 = inlined_call_operand.vmem [shape: bf16[32,24], index: 0, kind: input, shape index: {}]
  %s1 = inlined_call_operand.vmem [shape: bf16[24,58], index: 1, kind: input, shape index: {}]
  %s2 = inlined_call_operand.vmem [shape: f32[1,58], index: 2, kind: input, shape index: {}]
  %s3 = inlined_call_operand.vmem [shape: bf16[32,58], index: 3, kind: output, shape index: {}]
  %s4 = sld [smem:[#allocation0]]
  $region22: #{reranking_shufflenet_forward.61} parent=0
    _
  %s6 = ssub.s32 1, %s4
  %s7 = scalar_select 0, %s6, %s4
  // Predicated region
  $region2: #{reranking_shufflenet_forward.61} parent=0 // pred_check
    _
  $region3: #{reranking_shufflenet_forward.61} parent=0 // pred_check_branch
    %9 = sbr.rel (0) target = $region5
  $region4: #{reranking_shufflenet_forward.61} parent=0 // pred_region
    _
  $region5: #{reranking_shufflenet_forward.61} parent=0 // pred_fallthru
    _
  // Predicated region
  $region6: #{reranking_shufflenet_forward.61} parent=0 // pred_check
    _
  $region7: #{reranking_shufflenet_forward.61} parent=0 // pred_check_branch
    %11 = sbr.rel (0) target = $region9
  $region8: #{reranking_shufflenet_forward.61} parent=0 // pred_region
    _
  $region9: #{reranking_shufflenet_forward.61} parent=0 // pred_fallthru
    _
  // Predicated region
  $region10: #{reranking_shufflenet_forward.61} parent=0 // pred_check
    _
  $region11: #{reranking_shufflenet_forward.61} parent=0 // pred_check_branch
    %13 = sbr.rel (0) target = $region13
  $region12: #{reranking_shufflenet_forward.61} parent=0 // pred_region
    _
  $region13: #{reranking_shufflenet_forward.61} parent=0 // pred_fallthru
    _
  %v15 = vld [vmem:[%s0] sm:$0xf]
  %v16 = vld [vmem:[%s0 + $0x4] sm:$0xf]
  %v17 = vld [vmem:[%s0 + $0x8] sm:$0xf]
  %v18 = vld [vmem:[%s0 + $0xc] sm:$0xf]
  %v19 = vld [vmem:[%s1] sm:$0xf]
  %v20 = vld [vmem:[%s1 + $0x4] sm:$0xf]
  %v21 = vld [vmem:[%s1 + $0x8] sm:$0xf]
  %v22 = vld [vmem:[%s2] sm:$0x1]
  %v24 = vlaneseq
  %v25 = vshrl.u32 %v24, 7
  %v26 = vsub.s32 0, %v25
  %v27 = vrot.slane %v22, %v26
  %v33 = vunpack.c.l.b16 %v15
  %v34 = vunpack.c.l.b16 %v16
  %v35 = vunpack.c.l.b16 %v17
  %v36 = vunpack.c.l.b16 %v18
  %v37 = vpack.c.b16 %v34, %v33
  %v38 = vpack.c.b16 %v36, %v35
  %v42 = vunpack.c.l.b16 %v19
  %v43 = vunpack.c.l.b16 %v20
  %v44 = vunpack.c.l.b16 %v21
  %v45 = vpack.c.b16 %v43, %v42
  %v46 = vpack.c.b16 %v44, %v44
  %vm48 = vcmask 195584
  %v50 = vsel %vm48, %v37, 0
  %v53 = vsel %vm48, %v38, 0
  %vm55 = vcmask 1043456
  %v57 = vsel %vm55, %v46, 0
  %59 = vmatprep.subr.bf16.mxu0 0
  %60 = vmatpush1.bf16.msra.mxu0 %v45
  %61 = vmatprep.subr.bf16.mxu0 0
  %62 = vmatpush1.bf16.msra.mxu0 %v57
  %63 = vmatprep.subr.bf16.mxu0 0
  %64 = vmatpush1.bf16.msra.mxu0 0
  %65 = vmatprep.subr.bf16.mxu0 0
  %66 = vmatpush1.bf16.msra.mxu0 0
  %67 = vmatprep.subr.bf16.mxu0 0
  %68 = vmatpush1.bf16.msra.mxu0 0
  %69 = vmatprep.subr.bf16.mxu0 0
  %70 = vmatpush1.bf16.msra.mxu0 0
  %71 = vmatprep.subr.bf16.mxu0 0
  %72 = vmatpush1.bf16.msra.mxu0 0
  %73 = vmatprep.subr.bf16.mxu0 0
  %74 = vmatpush1.bf16.msra.mxu0 0
  %75 = vmatprep.subr.bf16.mxu0 0
  %76 = vmatpush1.bf16.msra.mxu0 0
  %77 = vmatprep.subr.bf16.mxu0 0
  %78 = vmatpush1.bf16.msra.mxu0 0
  %79 = vmatprep.subr.bf16.mxu0 0
  %80 = vmatpush1.bf16.msra.mxu0 0
  %81 = vmatprep.subr.bf16.mxu0 0
  %82 = vmatpush1.bf16.msra.mxu0 0
  %83 = vmatprep.subr.bf16.mxu0 0
  %84 = vmatpush1.bf16.msra.mxu0 0
  %85 = vmatprep.subr.bf16.mxu0 0
  %86 = vmatpush1.bf16.msra.mxu0 0
  %87 = vmatprep.subr.bf16.mxu0 0
  %88 = vmatpush1.bf16.msra.mxu0 0
  %89 = vmatprep.subr.bf16.mxu0 0
  %90 = vmatpush1.bf16.msra.mxu0 0
  %91 = vmatprep.mubr.bf16.mxu0 0
  %92 = vmatmul.mubr.bf16.gmra.mrb[0].mxu0 %v50
  %v93 = vpop.f32.mrb[0].mxu0
  %v94 = vadd.f32 %v27, %v93
  %v95 = vpop.f32.mrb[0].mxu0
  %v96 = vpop.f32.mrb[0].mxu0
  %v97 = vadd.f32 %v27, %v96
  %v98 = vpop.f32.mrb[0].mxu0
  %99 = vmatprep.mubr.bf16.mxu0 0
  %100 = vmatmul.mubr.bf16.gmra.mrb[0].mxu0 %v53
  %v101 = vpop.f32.mrb[0].mxu0
  %v102 = vadd.f32 %v27, %v101
  %v103 = vpop.f32.mrb[0].mxu0
  %v104 = vpop.f32.mrb[0].mxu0
  %v105 = vadd.f32 %v27, %v104
  %v106 = vpop.f32.mrb[0].mxu0
  %107 = vdwg.mxu0
  %v108 = vmax.f32 %v94, 0.0
  %v109 = vmax.f32 %v97, 0.0
  %v110 = vmax.f32 %v102, 0.0
  %v111 = vmax.f32 %v105, 0.0
  %v112 = vpack.c.bf16 %v109, %v108
  %v113 = vpack.c.bf16 %v111, %v110
  %v116 = vunpack.c.l.b16 %v112
  %v117 = vunpack.c.h.b16 %v112
  %v118 = vunpack.c.l.b16 %v113
  %v119 = vunpack.c.h.b16 %v113
  %v120 = vpack.c.b16 %v116, %v116
  %v121 = vpack.c.b16 %v117, %v117
  %v122 = vpack.c.b16 %v118, %v118
  %v123 = vpack.c.b16 %v119, %v119
  %vm128 = vcmask 470016
  %129 = vst.msk [vmem:[%s3] sm:$0xf] %vm128, %v120
  %130 = vst.msk [vmem:[%s3 + $0x4] sm:$0xf] %vm128, %v121
  %131 = vst.msk [vmem:[%s3 + $0x8] sm:$0xf] %vm128, %v122
  %132 = vst.msk [vmem:[%s3 + $0xc] sm:$0xf] %vm128, %v123
  // Predicated region
  $region14: #{reranking_shufflenet_forward.61} parent=0 // pred_check
    _
  $region15: #{reranking_shufflenet_forward.61} parent=0 // pred_check_branch
    %134 = sbr.rel (0) target = $region17
  $region16: #{reranking_shufflenet_forward.61} parent=0 // pred_region
    _
  $region17: #{reranking_shufflenet_forward.61} parent=0 // pred_fallthru
    _
  // Predicated region
  $region18: #{reranking_shufflenet_forward.61} parent=0 // pred_check
    _
  $region19: #{reranking_shufflenet_forward.61} parent=0 // pred_check_branch
    %136 = sbr.rel (0) target = $region21
  $region20: #{reranking_shufflenet_forward.61} parent=0 // pred_region
    _
  $region21: #{reranking_shufflenet_forward.61} parent=0 // pred_fallthru
    _

// kernel: reranking_shufflenet_forward.60
$region0: #{reranking_shufflenet_forward.60}
  #allocation0 [shape = 'u32[]', space=smem, size = 0x4, offset = 0x4, fixed_abs, tag = 'smem constant byte address 0x4 - core index']
  #allocation1 [shape = 'u32[144,128]{1,0:T(1,128)}', space=vmem, size = 0x12000, scoped, tag = 'internal scratch']
  %s0 = inlined_call_operand.vmem [shape: bf16[8,5,5,24], index: 0, kind: input, shape index: {}]
  %s1 = inlined_call_operand.vmem [shape: f32[9,1,24], index: 1, kind: input, shape index: {}]
  %s2 = inlined_call_operand.vmem [shape: f32[1,24], index: 2, kind: input, shape index: {}]
  %s3 = inlined_call_operand.vmem [shape: bf16[2,4,4,24], index: 3, kind: output, shape index: {}]
  %s4 = sld [smem:[#allocation0]]
  $region45: #{reranking_shufflenet_forward.60} parent=0
    _
  %s6 = ssub.s32 1, %s4
  %s7 = scalar_select 0, %s6, %s4
  loop: start=0, step=1, limit=4
  $region2: #{reranking_shufflenet_forward.60} parent=0 // loop_pre_header
    _
  $region3: #{reranking_shufflenet_forward.60} parent=0 // loop_header
    %s9 = sphi 0, %s13
    %p10 = scmp.ge.s32.totalorder %s9, 4
    %s19 = sphi 0, %s21
    %s22 = sphi 0, %s19
    %s23 = sphi 0, %s22
    %s39 = sphi 0, %s23
    %s43 = sphi 0, %s43
    %s45 = sphi 0, %s43
    %s46 = sphi 0, %s45
    %s60 = sphi 0, %s46
    %s64 = sphi 0, %s64
    %s66 = sphi 0, %s64
    %s67 = sphi 0, %s66
    %s81 = sphi 0, %s67
    %s87 = sphi 0, %s89
    %s90 = sphi 0, %s87
    %s91 = sphi 0, %s90
    %s107 = sphi 0, %s91
  $region4: #{reranking_shufflenet_forward.60} parent=0 // loop_header_branch
    %12 = sbr.rel (%p10) target = $region8
  $region5: #{reranking_shufflenet_forward.60} parent=0 // loop_body
    %s14 = ssub.s32 %s9, 1
    %s15 = ssub.s32 %s9, 2
    %s16 = sadd.s32 %s9, 1
    %s17 = ssub.s32 %s9, %s16
    %p18 = scmp.eq.s32.totalorder %s17, 0
    %s20 = sadd.s32 %s19, 1
    %s21 = scalar_select %p18, %s19, %s20
    %p24 = pneg %p18
    %p25 = scmp.eq.s32.totalorder %s9, 1
    %p26 = por %p24, %p25
    %p27 = scmp.ne.s32.totalorder %s19, %s22
    %p28 = scmp.eq.s32.totalorder %s9, 0
    %p29 = por %p27, %p28
    %p30 = scmp.ne.s32.totalorder %s19, %s22
    %p31 = scmp.eq.s32.totalorder %s14, 1
    %p32 = por %p30, %p31
    %p33 = scmp.ne.s32.totalorder %s22, %s23
    %p34 = scmp.eq.s32.totalorder %s14, 0
    %p35 = por %p33, %p34
    %p36 = scmp.ne.s32.totalorder %s22, %s23
    %p37 = scmp.eq.s32.totalorder %s15, 1
    %p38 = por %p36, %p37
    %p40 = scmp.ne.s32.totalorder %s23, %s39
    %p41 = scmp.eq.s32.totalorder %s15, 0
    %p42 = por %p40, %p41
    %s44 = sadd.s32 %s43, 1
    %p47 = scmp.eq.s32.totalorder %s9, 1
    %p48 = scmp.ne.s32.totalorder %s43, %s45
    %p49 = scmp.eq.s32.totalorder %s9, 0
    %p50 = por %p48, %p49
    %p51 = scmp.ne.s32.totalorder %s43, %s45
    %p52 = scmp.eq.s32.totalorder %s14, 1
    %p53 = por %p51, %p52
    %p54 = scmp.ne.s32.totalorder %s45, %s46
    %p55 = scmp.eq.s32.totalorder %s14, 0
    %p56 = por %p54, %p55
    %p57 = scmp.ne.s32.totalorder %s45, %s46
    %p58 = scmp.eq.s32.totalorder %s15, 1
    %p59 = por %p57, %p58
    %p61 = scmp.ne.s32.totalorder %s46, %s60
    %p62 = scmp.eq.s32.totalorder %s15, 0
    %p63 = por %p61, %p62
    %s65 = sadd.s32 %s64, 1
    %p68 = scmp.eq.s32.totalorder %s9, 1
    %p69 = scmp.ne.s32.totalorder %s64, %s66
    %p70 = scmp.eq.s32.totalorder %s9, 0
    %p71 = por %p69, %p70
    %p72 = scmp.ne.s32.totalorder %s64, %s66
    %p73 = scmp.eq.s32.totalorder %s14, 1
    %p74 = por %p72, %p73
    %p75 = scmp.ne.s32.totalorder %s66, %s67
    %p76 = scmp.eq.s32.totalorder %s14, 0
    %p77 = por %p75, %p76
    %p78 = scmp.ne.s32.totalorder %s66, %s67
    %p79 = scmp.eq.s32.totalorder %s15, 1
    %p80 = por %p78, %p79
    %p82 = scmp.ne.s32.totalorder %s67, %s81
    %p83 = scmp.eq.s32.totalorder %s15, 0
    %p84 = por %p82, %p83
    %s85 = ssub.s32 %s9, %s16
    %p86 = scmp.eq.s32.totalorder %s85, 0
    %s88 = sadd.s32 %s87, 1
    %s89 = scalar_select %p86, %s87, %s88
    %p92 = pneg %p86
    %p93 = scmp.eq.s32.totalorder %s9, 1
    %p94 = por %p92, %p93
    %p95 = scmp.ne.s32.totalorder %s87, %s90
    %p96 = scmp.eq.s32.totalorder %s9, 0
    %p97 = por %p95, %p96
    %p98 = scmp.ne.s32.totalorder %s87, %s90
    %p99 = scmp.eq.s32.totalorder %s14, 1
    %p100 = por %p98, %p99
    %p101 = scmp.ne.s32.totalorder %s90, %s91
    %p102 = scmp.eq.s32.totalorder %s14, 0
    %p103 = por %p101, %p102
    %p104 = scmp.ne.s32.totalorder %s90, %s91
    %p105 = scmp.eq.s32.totalorder %s15, 1
    %p106 = por %p104, %p105
    %p108 = scmp.ne.s32.totalorder %s91, %s107
    %p109 = scmp.eq.s32.totalorder %s15, 0
    %p110 = por %p108, %p109
    %p111 = scmp.le.s32.totalorder 1, %s9
    %p112 = scmp.lt.s32.totalorder %s9, 3
    %p113 = pnand %p111, %p112
    %p114 = pneg %p113
    // Predicated region
    $region9: #{reranking_shufflenet_forward.60} parent=5 // pred_check
      _
    $region10: #{reranking_shufflenet_forward.60} parent=5 // pred_check_branch
      %116 = sbr.rel (%p113) target = $region12
    $region11: #{reranking_shufflenet_forward.60} parent=5 // pred_region
      %s117 = ssub.s32 %s9, 1
      // Predicated region
      $region13: #{reranking_shufflenet_forward.60} parent=11 // pred_check
        %p118 = pneg %p56
      $region14: #{reranking_shufflenet_forward.60} parent=11 // pred_check_branch
        %120 = sbr.rel (%p118) target = $region16
      $region15: #{reranking_shufflenet_forward.60} parent=11 // pred_region
        _
      $region16: #{reranking_shufflenet_forward.60} parent=11 // pred_fallthru
        _
      // Predicated region
      $region17: #{reranking_shufflenet_forward.60} parent=11 // pred_check
        %p121 = pneg %p77
      $region18: #{reranking_shufflenet_forward.60} parent=11 // pred_check_branch
        %123 = sbr.rel (%p121) target = $region20
      $region19: #{reranking_shufflenet_forward.60} parent=11 // pred_region
        _
      $region20: #{reranking_shufflenet_forward.60} parent=11 // pred_fallthru
        _
    $region12: #{reranking_shufflenet_forward.60} parent=5 // pred_fallthru
      _
    %p124 = scmp.lt.s32.totalorder %s9, 2
    // Predicated region
    $region21: #{reranking_shufflenet_forward.60} parent=5 // pred_check
      %p125 = pneg %p124
    $region22: #{reranking_shufflenet_forward.60} parent=5 // pred_check_branch
      %127 = sbr.rel (%p125) target = $region24
    $region23: #{reranking_shufflenet_forward.60} parent=5 // pred_region
      // Predicated region
      $region25: #{reranking_shufflenet_forward.60} parent=23 // pred_check
        %p128 = pneg %p29
      $region26: #{reranking_shufflenet_forward.60} parent=23 // pred_check_branch
        %130 = sbr.rel (%p128) target = $region28
      $region27: #{reranking_shufflenet_forward.60} parent=23 // pred_region
        %s131 = smul.u32 4, %s9
        %p132 = scmp.lt.s32.totalorder %s131, 7
        %s133 = scalar_select %p132, %s131, 7
        %s134 = smul.addr %s133, 5
        %s135 = smul.addr %s134, 4
        %s136 = scalar_lea.vmem %s0, %s135
        %s137 = smul.u32 4, %s9
      $region28: #{reranking_shufflenet_forward.60} parent=23 // pred_fallthru
        _
    $region24: #{reranking_shufflenet_forward.60} parent=5 // pred_fallthru
      _
    %p138 = scmp.le.s32.totalorder 1, %s9
    %p139 = scmp.lt.s32.totalorder %s9, 3
    %p140 = pnand %p138, %p139
    %p141 = pneg %p140
    // Predicated region
    $region29: #{reranking_shufflenet_forward.60} parent=5 // pred_check
      _
    $region30: #{reranking_shufflenet_forward.60} parent=5 // pred_check_branch
      %143 = sbr.rel (%p140) target = $region32
    $region31: #{reranking_shufflenet_forward.60} parent=5 // pred_region
      %s144 = ssub.s32 %s9, 1
      %s145 = smul.u32 4, %s14
      %p146 = scmp.lt.s32.totalorder %s145, 7
      %s147 = scalar_select %p146, %s145, 7
      %s148 = smul.addr %s147, 5
      %s149 = smul.addr %s148, 4
      %s150 = scalar_lea.vmem %s0, %s149
      %p151 = pneg %p35
      %p152 = pneg %p32
      %p153 = pneg %p56
      %p154 = pneg %p53
      %p155 = pneg %p77
      %p156 = pneg %p74
      %p157 = pneg %p103
      %p158 = pneg %p100
      %p159 = scmp.lt.s32.totalorder %s14, 1
      %s160 = scalar_select %p159, %s14, 1
      %s161 = smul.addr %s160, 4
      %s162 = smul.addr %s161, 2
      %s163 = scalar_lea.vmem %s3, %s162
      %s164 = smul.u32 4, %s14
      %p165 = scmp.lt.s32.totalorder %s164, 7
      %s166 = scalar_select %p165, %s164, 7
      %s167 = smul.addr %s166, 5
      %s168 = smul.addr %s167, 4
      %s169 = scalar_lea.vmem %s0, %s168
      %s170 = smul.u32 4, %s14
      %p171 = scmp.lt.s32.totalorder %s14, 1
      %s172 = scalar_select %p171, %s14, 1
      %s173 = smul.addr %s172, 4
      %s174 = smul.addr %s173, 2
      %s175 = scalar_lea.vmem %s3, %s174
      %v176 = vld [vmem:[%s169] sm:$0x7]
      %v177 = vld [vmem:[%s169 + $0x4] sm:$0x7]
      %v178 = vld [vmem:[%s169 + $0x8] sm:$0x7]
      %v179 = vld [vmem:[%s169 + $0xc] sm:$0x7]
      %v180 = vld [vmem:[%s169 + $0x10] sm:$0x7]
      %v181 = vunpack.c.l.bf16 %v176
      %v182 = vunpack.c.l.bf16 %v177
      %v183 = vunpack.c.l.bf16 %v178
      %v184 = vunpack.c.l.bf16 %v179
      %v185 = vunpack.c.l.bf16 %v180
      %v186 = vld [vmem:[%s1] sm:$0x1]
      %v188 = vlaneseq
      %v189 = vshrl.u32 %v188, 7
      %v190 = vsub.s32 0, %v189
      %v191 = vrot.slane %v186, %v190
      %v193 = vmul.f32 %v181, %v191
      %v194 = vmul.f32 %v182, %v191
      %v195 = vmul.f32 %v183, %v191
      %v196 = vmul.f32 %v184, %v191
      %v197 = vadd.f32 %v193, 0.0
      %v198 = vadd.f32 %v194, 0.0
      %v199 = vadd.f32 %v195, 0.0
      %v200 = vadd.f32 %v196, 0.0
      %s201 = scalar_lea.vmem %s169, 20
      %v202 = vld [vmem:[%s201] sm:$0x7]
      %v203 = vld [vmem:[%s201 + $0x4] sm:$0x7]
      %v204 = vld [vmem:[%s201 + $0x8] sm:$0x7]
      %v205 = vld [vmem:[%s201 + $0xc] sm:$0x7]
      %v206 = vld [vmem:[%s201 + $0x10] sm:$0x7]
      %v207 = vunpack.c.l.bf16 %v202
      %v208 = vunpack.c.l.bf16 %v203
      %v209 = vunpack.c.l.bf16 %v204
      %v210 = vunpack.c.l.bf16 %v205
      %v211 = vunpack.c.l.bf16 %v206
      %s212 = scalar_lea.vmem %s1, 1
      %v213 = vld [vmem:[%s212] sm:$0x1]
      %v215 = vlaneseq
      %v216 = vshrl.u32 %v215, 7
      %v217 = vsub.s32 0, %v216
      %v218 = vrot.slane %v213, %v217
      %v220 = vmul.f32 %v207, %v218
      %v221 = vmul.f32 %v208, %v218
      %v222 = vmul.f32 %v209, %v218
      %v223 = vmul.f32 %v210, %v218
      %v224 = vadd.f32 %v197, %v220
      %v225 = vadd.f32 %v198, %v221
      %v226 = vadd.f32 %v199, %v222
      %v227 = vadd.f32 %v200, %v223
      %s228 = scalar_lea.vmem %s1, 2
      %v229 = vld [vmem:[%s228] sm:$0x1]
      %v231 = vlaneseq
      %v232 = vshrl.u32 %v231, 7
      %v233 = vsub.s32 0, %v232
      %v234 = vrot.slane %v229, %v233
      %v236 = vmul.f32 %v181, %v234
      %v237 = vmul.f32 %v182, %v234
      %v238 = vmul.f32 %v183, %v234
      %v239 = vmul.f32 %v184, %v234
      %v244 = vrot.slane %v236, 1
      %v245 = vrot.slane %v237, 1
      %v246 = vrot.slane %v238, 1
      %v247 = vrot.slane %v239, 1
      %v252 = vadd.f32 %v224, %v244
      %v253 = vadd.f32 %v225, %v245
      %v254 = vadd.f32 %v226, %v246
      %v255 = vadd.f32 %v227, %v247
      %s256 = scalar_lea.vmem %s169, 40
      %v257 = vld [vmem:[%s256] sm:$0x7]
      %v258 = vld [vmem:[%s256 + $0x4] sm:$0x7]
      %v259 = vld [vmem:[%s256 + $0x8] sm:$0x7]
      %v260 = vld [vmem:[%s256 + $0xc] sm:$0x7]
      %v261 = vunpack.c.l.bf16 %v257
      %v262 = vunpack.c.l.bf16 %v258
      %v263 = vunpack.c.l.bf16 %v259
      %v264 = vunpack.c.l.bf16 %v260
      %s265 = scalar_lea.vmem %s1, 3
      %v266 = vld [vmem:[%s265] sm:$0x1]
      %v268 = vlaneseq
      %v269 = vshrl.u32 %v268, 7
      %v270 = vsub.s32 0, %v269
      %v271 = vrot.slane %v266, %v270
      %v273 = vmul.f32 %v261, %v271
      %v274 = vmul.f32 %v262, %v271
      %v275 = vmul.f32 %v263, %v271
      %v276 = vmul.f32 %v264, %v271
      %v277 = vadd.f32 %v252, %v273
      %v278 = vadd.f32 %v253, %v274
      %v279 = vadd.f32 %v254, %v275
      %v280 = vadd.f32 %v255, %v276
      %s281 = scalar_lea.vmem %s169, 60
      %v282 = vld [vmem:[%s281] sm:$0x7]
      %v283 = vld [vmem:[%s281 + $0x4] sm:$0x7]
      %v284 = vld [vmem:[%s281 + $0x8] sm:$0x7]
      %v285 = vld [vmem:[%s281 + $0xc] sm:$0x7]
      %v286 = vunpack.c.l.bf16 %v282
      %v287 = vunpack.c.l.bf16 %v283
      %v288 = vunpack.c.l.bf16 %v284
      %v289 = vunpack.c.l.bf16 %v285
      %s290 = scalar_lea.vmem %s1, 4
      %v291 = vld [vmem:[%s290] sm:$0x1]
      %v293 = vlaneseq
      %v294 = vshrl.u32 %v293, 7
      %v295 = vsub.s32 0, %v294
      %v296 = vrot.slane %v291, %v295
      %v298 = vmul.f32 %v286, %v296
      %v299 = vmul.f32 %v287, %v296
      %v300 = vmul.f32 %v288, %v296
      %v301 = vmul.f32 %v289, %v296
      %v302 = vadd.f32 %v277, %v298
      %v303 = vadd.f32 %v278, %v299
      %v304 = vadd.f32 %v279, %v300
      %v305 = vadd.f32 %v280, %v301
      %s306 = scalar_lea.vmem %s1, 5
      %v307 = vld [vmem:[%s306] sm:$0x1]
      %v309 = vlaneseq
      %v310 = vshrl.u32 %v309, 7
      %v311 = vsub.s32 0, %v310
      %v312 = vrot.slane %v307, %v311
      %v314 = vmul.f32 %v261, %v312
      %v315 = vmul.f32 %v262, %v312
      %v316 = vmul.f32 %v263, %v312
      %v317 = vmul.f32 %v264, %v312
      %v322 = vrot.slane %v314, 1
      %v323 = vrot.slane %v315, 1
      %v324 = vrot.slane %v316, 1
      %v325 = vrot.slane %v317, 1
      %v330 = vadd.f32 %v302, %v322
      %v331 = vadd.f32 %v303, %v323
      %v332 = vadd.f32 %v304, %v324
      %v333 = vadd.f32 %v305, %v325
      %s334 = scalar_lea.vmem %s1, 6
      %v335 = vld [vmem:[%s334] sm:$0x1]
      %v337 = vlaneseq
      %v338 = vshrl.u32 %v337, 7
      %v339 = vsub.s32 0, %v338
      %v340 = vrot.slane %v335, %v339
      %v342 = vmul.f32 %v182, %v340
      %v343 = vmul.f32 %v183, %v340
      %v344 = vmul.f32 %v184, %v340
      %v345 = vmul.f32 %v185, %v340
      %v346 = vadd.f32 %v330, %v342
      %v347 = vadd.f32 %v331, %v343
      %v348 = vadd.f32 %v332, %v344
      %v349 = vadd.f32 %v333, %v345
      %s350 = scalar_lea.vmem %s1, 7
      %v351 = vld [vmem:[%s350] sm:$0x1]
      %v353 = vlaneseq
      %v354 = vshrl.u32 %v353, 7
      %v355 = vsub.s32 0, %v354
      %v356 = vrot.slane %v351, %v355
      %v358 = vmul.f32 %v208, %v356
      %v359 = vmul.f32 %v209, %v356
      %v360 = vmul.f32 %v210, %v356
      %v361 = vmul.f32 %v211, %v356
      %v362 = vadd.f32 %v346, %v358
      %v363 = vadd.f32 %v347, %v359
      %v364 = vadd.f32 %v348, %v360
      %v365 = vadd.f32 %v349, %v361
      %s366 = scalar_lea.vmem %s1, 8
      %v367 = vld [vmem:[%s366] sm:$0x1]
      %v369 = vlaneseq
      %v370 = vshrl.u32 %v369, 7
      %v371 = vsub.s32 0, %v370
      %v372 = vrot.slane %v367, %v371
      %v374 = vmul.f32 %v182, %v372
      %v375 = vmul.f32 %v183, %v372
      %v376 = vmul.f32 %v184, %v372
      %v377 = vmul.f32 %v185, %v372
      %v382 = vrot.slane %v374, 1
      %v383 = vrot.slane %v375, 1
      %v384 = vrot.slane %v376, 1
      %v385 = vrot.slane %v377, 1
      %v390 = vadd.f32 %v362, %v382
      %v391 = vadd.f32 %v363, %v383
      %v392 = vadd.f32 %v364, %v384
      %v393 = vadd.f32 %v365, %v385
      %v394 = vld [vmem:[%s2] sm:$0x1]
      %v396 = vlaneseq
      %v397 = vshrl.u32 %v396, 7
      %v398 = vsub.s32 0, %v397
      %v399 = vrot.slane %v394, %v398
      %v401 = vadd.f32 %v390, %v399
      %v402 = vadd.f32 %v391, %v399
      %v403 = vadd.f32 %v392, %v399
      %v404 = vadd.f32 %v393, %v399
      %v405 = vpack.c.bf16 %v401, %v401
      %v406 = vpack.c.bf16 %v402, %v402
      %v407 = vpack.c.bf16 %v403, %v403
      %v408 = vpack.c.bf16 %v404, %v404
      %vm409 = vcmask 189440
      %410 = vst.msk [vmem:[%s175] sm:$0x3] %vm409, %v405
      %411 = vst.msk [vmem:[%s175 + $0x2] sm:$0x3] %vm409, %v406
      %412 = vst.msk [vmem:[%s175 + $0x4] sm:$0x3] %vm409, %v407
      %413 = vst.msk [vmem:[%s175 + $0x6] sm:$0x3] %vm409, %v408
      %p414 = scmp.lt.s32.totalorder %s14, 1
      %s415 = scalar_select %p414, %s14, 1
      %s416 = smul.addr %s415, 4
      %s417 = smul.addr %s416, 2
      %s418 = scalar_lea.vmem %s3, %s417
      // Predicated region
      $region33: #{reranking_shufflenet_forward.60} parent=31 // pred_check
        %p419 = pneg %p100
      $region34: #{reranking_shufflenet_forward.60} parent=31 // pred_check_branch
        %421 = sbr.rel (%p419) target = $region36
      $region35: #{reranking_shufflenet_forward.60} parent=31 // pred_region
        _
      $region36: #{reranking_shufflenet_forward.60} parent=31 // pred_fallthru
        _
    $region32: #{reranking_shufflenet_forward.60} parent=5 // pred_fallthru
      _
    %p422 = scmp.le.s32.totalorder 2, %s9
    // Predicated region
    $region37: #{reranking_shufflenet_forward.60} parent=5 // pred_check
      %p423 = pneg %p422
    $region38: #{reranking_shufflenet_forward.60} parent=5 // pred_check_branch
      %425 = sbr.rel (%p423) target = $region40
    $region39: #{reranking_shufflenet_forward.60} parent=5 // pred_region
      %s426 = ssub.s32 %s9, 2
      // Predicated region
      $region41: #{reranking_shufflenet_forward.60} parent=39 // pred_check
        %p427 = pneg %p106
      $region42: #{reranking_shufflenet_forward.60} parent=39 // pred_check_branch
        %429 = sbr.rel (%p427) target = $region44
      $region43: #{reranking_shufflenet_forward.60} parent=39 // pred_region
        %p430 = scmp.lt.s32.totalorder %s15, 1
        %s431 = scalar_select %p430, %s15, 1
        %s432 = smul.addr %s431, 4
        %s433 = smul.addr %s432, 2
        %s434 = scalar_lea.vmem %s3, %s433
      $region44: #{reranking_shufflenet_forward.60} parent=39 // pred_fallthru
        _
    $region40: #{reranking_shufflenet_forward.60} parent=5 // pred_fallthru
      _
  $region6: #{reranking_shufflenet_forward.60} parent=0 // loop_footer
    %s13 = sadd.s32 1, %s9
  $region7: #{reranking_shufflenet_forward.60} parent=0 // loop_footer_branch
    %8 = sbr.rel target = $region3
  $region8: #{reranking_shufflenet_forward.60} parent=0 // loop_exit
    _

// kernel: reranking_shufflenet_forward.66
$region0: #{reranking_shufflenet_forward.66}
  #allocation0 [shape = 'u32[]', space=smem, size = 0x4, offset = 0x4, fixed_abs, tag = 'smem constant byte address 0x4 - core index']
  #allocation1 [shape = 'u32[144,128]{1,0:T(1,128)}', space=vmem, size = 0x12000, scoped, tag = 'internal scratch']
  %s0 = inlined_call_operand.vmem [shape: bf16[2,6,6,58], index: 0, kind: input, shape index: {}]
  %s1 = inlined_call_operand.vmem [shape: f32[9,1,58], index: 1, kind: input, shape index: {}]
  %s2 = inlined_call_operand.vmem [shape: f32[1,58], index: 2, kind: input, shape index: {}]
  %s3 = inlined_call_operand.vmem [shape: bf16[2,4,4,58], index: 3, kind: output, shape index: {}]
  %s4 = sld [smem:[#allocation0]]
  $region45: #{reranking_shufflenet_forward.66} parent=0
    _
  %s6 = ssub.s32 1, %s4
  %s7 = scalar_select 0, %s6, %s4
  loop: start=0, step=1, limit=4
  $region2: #{reranking_shufflenet_forward.66} parent=0 // loop_pre_header
    _
  $region3: #{reranking_shufflenet_forward.66} parent=0 // loop_header
    %s9 = sphi 0, %s13
    %p10 = scmp.ge.s32.totalorder %s9, 4
    %s19 = sphi 0, %s21
    %s22 = sphi 0, %s19
    %s23 = sphi 0, %s22
    %s39 = sphi 0, %s23
    %s43 = sphi 0, %s43
    %s45 = sphi 0, %s43
    %s46 = sphi 0, %s45
    %s60 = sphi 0, %s46
    %s64 = sphi 0, %s64
    %s66 = sphi 0, %s64
    %s67 = sphi 0, %s66
    %s81 = sphi 0, %s67
    %s87 = sphi 0, %s89
    %s90 = sphi 0, %s87
    %s91 = sphi 0, %s90
    %s107 = sphi 0, %s91
  $region4: #{reranking_shufflenet_forward.66} parent=0 // loop_header_branch
    %12 = sbr.rel (%p10) target = $region8
  $region5: #{reranking_shufflenet_forward.66} parent=0 // loop_body
    %s14 = ssub.s32 %s9, 1
    %s15 = ssub.s32 %s9, 2
    %s16 = sadd.s32 %s9, 1
    %s17 = ssub.s32 %s9, %s16
    %p18 = scmp.eq.s32.totalorder %s17, 0
    %s20 = sadd.s32 %s19, 1
    %s21 = scalar_select %p18, %s19, %s20
    %p24 = pneg %p18
    %p25 = scmp.eq.s32.totalorder %s9, 1
    %p26 = por %p24, %p25
    %p27 = scmp.ne.s32.totalorder %s19, %s22
    %p28 = scmp.eq.s32.totalorder %s9, 0
    %p29 = por %p27, %p28
    %p30 = scmp.ne.s32.totalorder %s19, %s22
    %p31 = scmp.eq.s32.totalorder %s14, 1
    %p32 = por %p30, %p31
    %p33 = scmp.ne.s32.totalorder %s22, %s23
    %p34 = scmp.eq.s32.totalorder %s14, 0
    %p35 = por %p33, %p34
    %p36 = scmp.ne.s32.totalorder %s22, %s23
    %p37 = scmp.eq.s32.totalorder %s15, 1
    %p38 = por %p36, %p37
    %p40 = scmp.ne.s32.totalorder %s23, %s39
    %p41 = scmp.eq.s32.totalorder %s15, 0
    %p42 = por %p40, %p41
    %s44 = sadd.s32 %s43, 1
    %p47 = scmp.eq.s32.totalorder %s9, 1
    %p48 = scmp.ne.s32.totalorder %s43, %s45
    %p49 = scmp.eq.s32.totalorder %s9, 0
    %p50 = por %p48, %p49
    %p51 = scmp.ne.s32.totalorder %s43, %s45
    %p52 = scmp.eq.s32.totalorder %s14, 1
    %p53 = por %p51, %p52
    %p54 = scmp.ne.s32.totalorder %s45, %s46
    %p55 = scmp.eq.s32.totalorder %s14, 0
    %p56 = por %p54, %p55
    %p57 = scmp.ne.s32.totalorder %s45, %s46
    %p58 = scmp.eq.s32.totalorder %s15, 1
    %p59 = por %p57, %p58
    %p61 = scmp.ne.s32.totalorder %s46, %s60
    %p62 = scmp.eq.s32.totalorder %s15, 0
    %p63 = por %p61, %p62
    %s65 = sadd.s32 %s64, 1
    %p68 = scmp.eq.s32.totalorder %s9, 1
    %p69 = scmp.ne.s32.totalorder %s64, %s66
    %p70 = scmp.eq.s32.totalorder %s9, 0
    %p71 = por %p69, %p70
    %p72 = scmp.ne.s32.totalorder %s64, %s66
    %p73 = scmp.eq.s32.totalorder %s14, 1
    %p74 = por %p72, %p73
    %p75 = scmp.ne.s32.totalorder %s66, %s67
    %p76 = scmp.eq.s32.totalorder %s14, 0
    %p77 = por %p75, %p76
    %p78 = scmp.ne.s32.totalorder %s66, %s67
    %p79 = scmp.eq.s32.totalorder %s15, 1
    %p80 = por %p78, %p79
    %p82 = scmp.ne.s32.totalorder %s67, %s81
    %p83 = scmp.eq.s32.totalorder %s15, 0
    %p84 = por %p82, %p83
    %s85 = ssub.s32 %s9, %s16
    %p86 = scmp.eq.s32.totalorder %s85, 0
    %s88 = sadd.s32 %s87, 1
    %s89 = scalar_select %p86, %s87, %s88
    %p92 = pneg %p86
    %p93 = scmp.eq.s32.totalorder %s9, 1
    %p94 = por %p92, %p93
    %p95 = scmp.ne.s32.totalorder %s87, %s90
    %p96 = scmp.eq.s32.totalorder %s9, 0
    %p97 = por %p95, %p96
    %p98 = scmp.ne.s32.totalorder %s87, %s90
    %p99 = scmp.eq.s32.totalorder %s14, 1
    %p100 = por %p98, %p99
    %p101 = scmp.ne.s32.totalorder %s90, %s91
    %p102 = scmp.eq.s32.totalorder %s14, 0
    %p103 = por %p101, %p102
    %p104 = scmp.ne.s32.totalorder %s90, %s91
    %p105 = scmp.eq.s32.totalorder %s15, 1
    %p106 = por %p104, %p105
    %p108 = scmp.ne.s32.totalorder %s91, %s107
    %p109 = scmp.eq.s32.totalorder %s15, 0
    %p110 = por %p108, %p109
    %p111 = scmp.le.s32.totalorder 1, %s9
    %p112 = scmp.lt.s32.totalorder %s9, 3
    %p113 = pnand %p111, %p112
    %p114 = pneg %p113
    // Predicated region
    $region9: #{reranking_shufflenet_forward.66} parent=5 // pred_check
      _
    $region10: #{reranking_shufflenet_forward.66} parent=5 // pred_check_branch
      %116 = sbr.rel (%p113) target = $region12
    $region11: #{reranking_shufflenet_forward.66} parent=5 // pred_region
      %s117 = ssub.s32 %s9, 1
      // Predicated region
      $region13: #{reranking_shufflenet_forward.66} parent=11 // pred_check
        %p118 = pneg %p56
      $region14: #{reranking_shufflenet_forward.66} parent=11 // pred_check_branch
        %120 = sbr.rel (%p118) target = $region16
      $region15: #{reranking_shufflenet_forward.66} parent=11 // pred_region
        _
      $region16: #{reranking_shufflenet_forward.66} parent=11 // pred_fallthru
        _
      // Predicated region
      $region17: #{reranking_shufflenet_forward.66} parent=11 // pred_check
        %p121 = pneg %p77
      $region18: #{reranking_shufflenet_forward.66} parent=11 // pred_check_branch
        %123 = sbr.rel (%p121) target = $region20
      $region19: #{reranking_shufflenet_forward.66} parent=11 // pred_region
        _
      $region20: #{reranking_shufflenet_forward.66} parent=11 // pred_fallthru
        _
    $region12: #{reranking_shufflenet_forward.66} parent=5 // pred_fallthru
      _
    %p124 = scmp.lt.s32.totalorder %s9, 2
    // Predicated region
    $region21: #{reranking_shufflenet_forward.66} parent=5 // pred_check
      %p125 = pneg %p124
    $region22: #{reranking_shufflenet_forward.66} parent=5 // pred_check_branch
      %127 = sbr.rel (%p125) target = $region24
    $region23: #{reranking_shufflenet_forward.66} parent=5 // pred_region
      // Predicated region
      $region25: #{reranking_shufflenet_forward.66} parent=23 // pred_check
        %p128 = pneg %p29
      $region26: #{reranking_shufflenet_forward.66} parent=23 // pred_check_branch
        %130 = sbr.rel (%p128) target = $region28
      $region27: #{reranking_shufflenet_forward.66} parent=23 // pred_region
        %p131 = scmp.lt.s32.totalorder %s9, 1
        %s132 = scalar_select %p131, %s9, 1
        %s133 = smul.addr %s132, 6
        %s134 = smul.addr %s133, 4
        %s135 = scalar_lea.vmem %s0, %s134
      $region28: #{reranking_shufflenet_forward.66} parent=23 // pred_fallthru
        _
    $region24: #{reranking_shufflenet_forward.66} parent=5 // pred_fallthru
      _
    %p136 = scmp.le.s32.totalorder 1, %s9
    %p137 = scmp.lt.s32.totalorder %s9, 3
    %p138 = pnand %p136, %p137
    %p139 = pneg %p138
    // Predicated region
    $region29: #{reranking_shufflenet_forward.66} parent=5 // pred_check
      _
    $region30: #{reranking_shufflenet_forward.66} parent=5 // pred_check_branch
      %141 = sbr.rel (%p138) target = $region32
    $region31: #{reranking_shufflenet_forward.66} parent=5 // pred_region
      %s142 = ssub.s32 %s9, 1
      %p143 = scmp.lt.s32.totalorder %s14, 1
      %s144 = scalar_select %p143, %s14, 1
      %s145 = smul.addr %s144, 6
      %s146 = smul.addr %s145, 4
      %s147 = scalar_lea.vmem %s0, %s146
      %p148 = pneg %p35
      %p149 = pneg %p32
      %p150 = pneg %p56
      %p151 = pneg %p53
      %p152 = pneg %p77
      %p153 = pneg %p74
      %p154 = pneg %p103
      %p155 = pneg %p100
      %p156 = scmp.lt.s32.totalorder %s14, 1
      %s157 = scalar_select %p156, %s14, 1
      %s158 = smul.addr %s157, 4
      %s159 = smul.addr %s158, 2
      %s160 = scalar_lea.vmem %s3, %s159
      %p161 = scmp.lt.s32.totalorder %s14, 1
      %s162 = scalar_select %p161, %s14, 1
      %s163 = smul.addr %s162, 6
      %s164 = smul.addr %s163, 4
      %s165 = scalar_lea.vmem %s0, %s164
      %p166 = scmp.lt.s32.totalorder %s14, 1
      %s167 = scalar_select %p166, %s14, 1
      %s168 = smul.addr %s167, 4
      %s169 = smul.addr %s168, 2
      %s170 = scalar_lea.vmem %s3, %s169
      %v171 = vld [vmem:[%s165] sm:$0x7]
      %v172 = vld [vmem:[%s165 + $0x4] sm:$0x7]
      %v173 = vld [vmem:[%s165 + $0x8] sm:$0x7]
      %v174 = vld [vmem:[%s165 + $0xc] sm:$0x7]
      %v175 = vld [vmem:[%s165 + $0x10] sm:$0x7]
      %v176 = vld [vmem:[%s165 + $0x14] sm:$0x7]
      %v177 = vunpack.c.l.bf16 %v171
      %v178 = vunpack.c.l.bf16 %v172
      %v179 = vunpack.c.l.bf16 %v173
      %v180 = vunpack.c.l.bf16 %v174
      %v181 = vunpack.c.l.bf16 %v175
      %v182 = vunpack.c.l.bf16 %v176
      %v183 = vld [vmem:[%s1] sm:$0x1]
      %v185 = vlaneseq
      %v186 = vshrl.u32 %v185, 7
      %v187 = vsub.s32 0, %v186
      %v188 = vrot.slane %v183, %v187
      %v190 = vmul.f32 %v177, %v188
      %v191 = vmul.f32 %v178, %v188
      %v192 = vmul.f32 %v179, %v188
      %v193 = vmul.f32 %v180, %v188
      %v194 = vadd.f32 %v190, 0.0
      %v195 = vadd.f32 %v191, 0.0
      %v196 = vadd.f32 %v192, 0.0
      %v197 = vadd.f32 %v193, 0.0
      %s198 = scalar_lea.vmem %s1, 1
      %v199 = vld [vmem:[%s198] sm:$0x1]
      %v201 = vlaneseq
      %v202 = vshrl.u32 %v201, 7
      %v203 = vsub.s32 0, %v202
      %v204 = vrot.slane %v199, %v203
      %v206 = vmul.f32 %v177, %v204
      %v207 = vmul.f32 %v178, %v204
      %v208 = vmul.f32 %v179, %v204
      %v209 = vmul.f32 %v180, %v204
      %v214 = vrot.slane %v206, 1
      %v215 = vrot.slane %v207, 1
      %v216 = vrot.slane %v208, 1
      %v217 = vrot.slane %v209, 1
      %v222 = vadd.f32 %v194, %v214
      %v223 = vadd.f32 %v195, %v215
      %v224 = vadd.f32 %v196, %v216
      %v225 = vadd.f32 %v197, %v217
      %s226 = scalar_lea.vmem %s1, 2
      %v227 = vld [vmem:[%s226] sm:$0x1]
      %v229 = vlaneseq
      %v230 = vshrl.u32 %v229, 7
      %v231 = vsub.s32 0, %v230
      %v232 = vrot.slane %v227, %v231
      %v234 = vmul.f32 %v177, %v232
      %v235 = vmul.f32 %v178, %v232
      %v236 = vmul.f32 %v179, %v232
      %v237 = vmul.f32 %v180, %v232
      %v242 = vrot.slane %v234, 2
      %v243 = vrot.slane %v235, 2
      %v244 = vrot.slane %v236, 2
      %v245 = vrot.slane %v237, 2
      %v250 = vadd.f32 %v222, %v242
      %v251 = vadd.f32 %v223, %v243
      %v252 = vadd.f32 %v224, %v244
      %v253 = vadd.f32 %v225, %v245
      %s254 = scalar_lea.vmem %s1, 3
      %v255 = vld [vmem:[%s254] sm:$0x1]
      %v257 = vlaneseq
      %v258 = vshrl.u32 %v257, 7
      %v259 = vsub.s32 0, %v258
      %v260 = vrot.slane %v255, %v259
      %v262 = vmul.f32 %v178, %v260
      %v263 = vmul.f32 %v179, %v260
      %v264 = vmul.f32 %v180, %v260
      %v265 = vmul.f32 %v181, %v260
      %v266 = vadd.f32 %v250, %v262
      %v267 = vadd.f32 %v251, %v263
      %v268 = vadd.f32 %v252, %v264
      %v269 = vadd.f32 %v253, %v265
      %s270 = scalar_lea.vmem %s1, 4
      %v271 = vld [vmem:[%s270] sm:$0x1]
      %v273 = vlaneseq
      %v274 = vshrl.u32 %v273, 7
      %v275 = vsub.s32 0, %v274
      %v276 = vrot.slane %v271, %v275
      %v278 = vmul.f32 %v178, %v276
      %v279 = vmul.f32 %v179, %v276
      %v280 = vmul.f32 %v180, %v276
      %v281 = vmul.f32 %v181, %v276
      %v286 = vrot.slane %v278, 1
      %v287 = vrot.slane %v279, 1
      %v288 = vrot.slane %v280, 1
      %v289 = vrot.slane %v281, 1
      %v294 = vadd.f32 %v266, %v286
      %v295 = vadd.f32 %v267, %v287
      %v296 = vadd.f32 %v268, %v288
      %v297 = vadd.f32 %v269, %v289
      %s298 = scalar_lea.vmem %s1, 5
      %v299 = vld [vmem:[%s298] sm:$0x1]
      %v301 = vlaneseq
      %v302 = vshrl.u32 %v301, 7
      %v303 = vsub.s32 0, %v302
      %v304 = vrot.slane %v299, %v303
      %v306 = vmul.f32 %v178, %v304
      %v307 = vmul.f32 %v179, %v304
      %v308 = vmul.f32 %v180, %v304
      %v309 = vmul.f32 %v181, %v304
      %v314 = vrot.slane %v306, 2
      %v315 = vrot.slane %v307, 2
      %v316 = vrot.slane %v308, 2
      %v317 = vrot.slane %v309, 2
      %v322 = vadd.f32 %v294, %v314
      %v323 = vadd.f32 %v295, %v315
      %v324 = vadd.f32 %v296, %v316
      %v325 = vadd.f32 %v297, %v317
      %s326 = scalar_lea.vmem %s1, 6
      %v327 = vld [vmem:[%s326] sm:$0x1]
      %v329 = vlaneseq
      %v330 = vshrl.u32 %v329, 7
      %v331 = vsub.s32 0, %v330
      %v332 = vrot.slane %v327, %v331
      %v334 = vmul.f32 %v179, %v332
      %v335 = vmul.f32 %v180, %v332
      %v336 = vmul.f32 %v181, %v332
      %v337 = vmul.f32 %v182, %v332
      %v338 = vadd.f32 %v322, %v334
      %v339 = vadd.f32 %v323, %v335
      %v340 = vadd.f32 %v324, %v336
      %v341 = vadd.f32 %v325, %v337
      %s342 = scalar_lea.vmem %s1, 7
      %v343 = vld [vmem:[%s342] sm:$0x1]
      %v345 = vlaneseq
      %v346 = vshrl.u32 %v345, 7
      %v347 = vsub.s32 0, %v346
      %v348 = vrot.slane %v343, %v347
      %v350 = vmul.f32 %v179, %v348
      %v351 = vmul.f32 %v180, %v348
      %v352 = vmul.f32 %v181, %v348
      %v353 = vmul.f32 %v182, %v348
      %v358 = vrot.slane %v350, 1
      %v359 = vrot.slane %v351, 1
      %v360 = vrot.slane %v352, 1
      %v361 = vrot.slane %v353, 1
      %v366 = vadd.f32 %v338, %v358
      %v367 = vadd.f32 %v339, %v359
      %v368 = vadd.f32 %v340, %v360
      %v369 = vadd.f32 %v341, %v361
      %s370 = scalar_lea.vmem %s1, 8
      %v371 = vld [vmem:[%s370] sm:$0x1]
      %v373 = vlaneseq
      %v374 = vshrl.u32 %v373, 7
      %v375 = vsub.s32 0, %v374
      %v376 = vrot.slane %v371, %v375
      %v378 = vmul.f32 %v179, %v376
      %v379 = vmul.f32 %v180, %v376
      %v380 = vmul.f32 %v181, %v376
      %v381 = vmul.f32 %v182, %v376
      %v386 = vrot.slane %v378, 2
      %v387 = vrot.slane %v379, 2
      %v388 = vrot.slane %v380, 2
      %v389 = vrot.slane %v381, 2
      %v394 = vadd.f32 %v366, %v386
      %v395 = vadd.f32 %v367, %v387
      %v396 = vadd.f32 %v368, %v388
      %v397 = vadd.f32 %v369, %v389
      %v398 = vld [vmem:[%s2] sm:$0x1]
      %v400 = vlaneseq
      %v401 = vshrl.u32 %v400, 7
      %v402 = vsub.s32 0, %v401
      %v403 = vrot.slane %v398, %v402
      %v405 = vadd.f32 %v394, %v403
      %v406 = vadd.f32 %v395, %v403
      %v407 = vadd.f32 %v396, %v403
      %v408 = vadd.f32 %v397, %v403
      %v409 = vpack.c.bf16 %v405, %v405
      %v410 = vpack.c.bf16 %v406, %v406
      %v411 = vpack.c.bf16 %v407, %v407
      %v412 = vpack.c.bf16 %v408, %v408
      %vm413 = vcmask 467968
      %414 = vst.msk [vmem:[%s170] sm:$0x3] %vm413, %v409
      %415 = vst.msk [vmem:[%s170 + $0x2] sm:$0x3] %vm413, %v410
      %416 = vst.msk [vmem:[%s170 + $0x4] sm:$0x3] %vm413, %v411
      %417 = vst.msk [vmem:[%s170 + $0x6] sm:$0x3] %vm413, %v412
      %p418 = scmp.lt.s32.totalorder %s14, 1
      %s419 = scalar_select %p418, %s14, 1
      %s420 = smul.addr %s419, 4
      %s421 = smul.addr %s420, 2
      %s422 = scalar_lea.vmem %s3, %s421
      // Predicated region
      $region33: #{reranking_shufflenet_forward.66} parent=31 // pred_check
        %p423 = pneg %p100
      $region34: #{reranking_shufflenet_forward.66} parent=31 // pred_check_branch
        %425 = sbr.rel (%p423) target = $region36
      $region35: #{reranking_shufflenet_forward.66} parent=31 // pred_region
        _
      $region36: #{reranking_shufflenet_forward.66} parent=31 // pred_fallthru
        _
    $region32: #{reranking_shufflenet_forward.66} parent=5 // pred_fallthru
      _
    %p426 = scmp.le.s32.totalorder 2, %s9
    // Predicated region
    $region37: #{reranking_shufflenet_forward.66} parent=5 // pred_check
      %p427 = pneg %p426
    $region38: #{reranking_shufflenet_forward.66} parent=5 // pred_check_branch
      %429 = sbr.rel (%p427) target = $region40
    $region39: #{reranking_shufflenet_forward.66} parent=5 // pred_region
      %s430 = ssub.s32 %s9, 2
      // Predicated region
      $region41: #{reranking_shufflenet_forward.66} parent=39 // pred_check
        %p431 = pneg %p106
      $region42: #{reranking_shufflenet_forward.66} parent=39 // pred_check_branch
        %433 = sbr.rel (%p431) target = $region44
      $region43: #{reranking_shufflenet_forward.66} parent=39 // pred_region
        %p434 = scmp.lt.s32.totalorder %s15, 1
        %s435 = scalar_select %p434, %s15, 1
        %s436 = smul.addr %s435, 4
        %s437 = smul.addr %s436, 2
        %s438 = scalar_lea.vmem %s3, %s437
      $region44: #{reranking_shufflenet_forward.66} parent=39 // pred_fallthru
        _
    $region40: #{reranking_shufflenet_forward.66} parent=5 // pred_fallthru
      _
  $region6: #{reranking_shufflenet_forward.66} parent=0 // loop_footer
    %s13 = sadd.s32 1, %s9
  $region7: #{reranking_shufflenet_forward.66} parent=0 // loop_footer_branch
    %8 = sbr.rel target = $region3
  $region8: #{reranking_shufflenet_forward.66} parent=0 // loop_exit
    _

// kernel: reranking_shufflenet_forward.76
$region0: #{reranking_shufflenet_forward.76}
  #allocation0 [shape = 'u32[]', space=smem, size = 0x4, offset = 0x4, fixed_abs, tag = 'smem constant byte address 0x4 - core index']
  #allocation1 [shape = 'u32[144,128]{1,0:T(1,128)}', space=vmem, size = 0x12000, scoped, tag = 'internal scratch']
  %s0 = inlined_call_operand.vmem [shape: bf16[32,116], index: 0, kind: input, shape index: {}]
  %s1 = inlined_call_operand.vmem [shape: bf16[116,116], index: 1, kind: input, shape index: {}]
  %s2 = inlined_call_operand.vmem [shape: f32[1,116], index: 2, kind: input, shape index: {}]
  %s3 = inlined_call_operand.vmem [shape: bf16[32,116], index: 3, kind: output, shape index: {}]
  %s4 = sld [smem:[#allocation0]]
  $region22: #{reranking_shufflenet_forward.76} parent=0
    _
  %s6 = ssub.s32 1, %s4
  %s7 = scalar_select 0, %s6, %s4
  // Predicated region
  $region2: #{reranking_shufflenet_forward.76} parent=0 // pred_check
    _
  $region3: #{reranking_shufflenet_forward.76} parent=0 // pred_check_branch
    %9 = sbr.rel (0) target = $region5
  $region4: #{reranking_shufflenet_forward.76} parent=0 // pred_region
    _
  $region5: #{reranking_shufflenet_forward.76} parent=0 // pred_fallthru
    _
  // Predicated region
  $region6: #{reranking_shufflenet_forward.76} parent=0 // pred_check
    _
  $region7: #{reranking_shufflenet_forward.76} parent=0 // pred_check_branch
    %11 = sbr.rel (0) target = $region9
  $region8: #{reranking_shufflenet_forward.76} parent=0 // pred_region
    _
  $region9: #{reranking_shufflenet_forward.76} parent=0 // pred_fallthru
    _
  // Predicated region
  $region10: #{reranking_shufflenet_forward.76} parent=0 // pred_check
    _
  $region11: #{reranking_shufflenet_forward.76} parent=0 // pred_check_branch
    %13 = sbr.rel (0) target = $region13
  $region12: #{reranking_shufflenet_forward.76} parent=0 // pred_region
    _
  $region13: #{reranking_shufflenet_forward.76} parent=0 // pred_fallthru
    _
  %v15 = vld [vmem:[%s0] sm:$0xf]
  %v16 = vld [vmem:[%s0 + $0x4] sm:$0xf]
  %v17 = vld [vmem:[%s0 + $0x8] sm:$0xf]
  %v18 = vld [vmem:[%s0 + $0xc] sm:$0xf]
  %v19 = vld [vmem:[%s1] sm:$0xf]
  %v20 = vld [vmem:[%s1 + $0x4] sm:$0xf]
  %v21 = vld [vmem:[%s1 + $0x8] sm:$0xf]
  %v22 = vld [vmem:[%s1 + $0xc] sm:$0xf]
  %v23 = vld [vmem:[%s1 + $0x10] sm:$0xf]
  %v24 = vld [vmem:[%s1 + $0x14] sm:$0xf]
  %v25 = vld [vmem:[%s1 + $0x18] sm:$0xf]
  %v26 = vld [vmem:[%s1 + $0x1c] sm:$0xf]
  %v27 = vld [vmem:[%s1 + $0x20] sm:$0xf]
  %v28 = vld [vmem:[%s1 + $0x24] sm:$0xf]
  %v29 = vld [vmem:[%s1 + $0x28] sm:$0xf]
  %v30 = vld [vmem:[%s1 + $0x2c] sm:$0xf]
  %v31 = vld [vmem:[%s1 + $0x30] sm:$0xf]
  %v32 = vld [vmem:[%s1 + $0x34] sm:$0xf]
  %v33 = vld [vmem:[%s1 + $0x38] sm:$0x3]
  %v34 = vld [vmem:[%s2] sm:$0x1]
  %v36 = vlaneseq
  %v37 = vshrl.u32 %v36, 7
  %v38 = vsub.s32 0, %v37
  %v39 = vrot.slane %v34, %v38
  %v45 = vunpack.c.l.b16 %v15
  %v46 = vunpack.c.l.b16 %v16
  %v47 = vunpack.c.l.b16 %v17
  %v48 = vunpack.c.l.b16 %v18
  %v49 = vpack.c.b16 %v46, %v45
  %v50 = vpack.c.b16 %v48, %v47
  %v66 = vunpack.c.l.b16 %v19
  %v67 = vunpack.c.l.b16 %v20
  %v68 = vunpack.c.l.b16 %v21
  %v69 = vunpack.c.l.b16 %v22
  %v70 = vunpack.c.l.b16 %v23
  %v71 = vunpack.c.l.b16 %v24
  %v72 = vunpack.c.l.b16 %v25
  %v73 = vunpack.c.l.b16 %v26
  %v74 = vunpack.c.l.b16 %v27
  %v75 = vunpack.c.l.b16 %v28
  %v76 = vunpack.c.l.b16 %v29
  %v77 = vunpack.c.l.b16 %v30
  %v78 = vunpack.c.l.b16 %v31
  %v79 = vunpack.c.l.b16 %v32
  %v80 = vunpack.c.l.b16 %v33
  %v81 = vpack.c.b16 %v67, %v66
  %v82 = vpack.c.b16 %v69, %v68
  %v83 = vpack.c.b16 %v71, %v70
  %v84 = vpack.c.b16 %v73, %v72
  %v85 = vpack.c.b16 %v75, %v74
  %v86 = vpack.c.b16 %v77, %v76
  %v87 = vpack.c.b16 %v79, %v78
  %v88 = vpack.c.b16 %v80, %v80
  %vm96 = vcmask 949248
  %v98 = vsel %vm96, %v49, 0
  %v101 = vsel %vm96, %v50, 0
  %vm103 = vcmask 1041408
  %v105 = vsel %vm103, %v88, 0
  %107 = vmatprep.subr.bf16.mxu0 0
  %108 = vmatpush1.bf16.msra.mxu0 %v81
  %109 = vmatprep.subr.bf16.mxu0 0
  %110 = vmatpush1.bf16.msra.mxu0 %v82
  %111 = vmatprep.subr.bf16.mxu0 0
  %112 = vmatpush1.bf16.msra.mxu0 %v83
  %113 = vmatprep.subr.bf16.mxu0 0
  %114 = vmatpush1.bf16.msra.mxu0 %v84
  %115 = vmatprep.subr.bf16.mxu0 0
  %116 = vmatpush1.bf16.msra.mxu0 %v85
  %117 = vmatprep.subr.bf16.mxu0 0
  %118 = vmatpush1.bf16.msra.mxu0 %v86
  %119 = vmatprep.subr.bf16.mxu0 0
  %120 = vmatpush1.bf16.msra.mxu0 %v87
  %121 = vmatprep.subr.bf16.mxu0 0
  %122 = vmatpush1.bf16.msra.mxu0 %v105
  %123 = vmatprep.subr.bf16.mxu0 0
  %124 = vmatpush1.bf16.msra.mxu0 0
  %125 = vmatprep.subr.bf16.mxu0 0
  %126 = vmatpush1.bf16.msra.mxu0 0
  %127 = vmatprep.subr.bf16.mxu0 0
  %128 = vmatpush1.bf16.msra.mxu0 0
  %129 = vmatprep.subr.bf16.mxu0 0
  %130 = vmatpush1.bf16.msra.mxu0 0
  %131 = vmatprep.subr.bf16.mxu0 0
  %132 = vmatpush1.bf16.msra.mxu0 0
  %133 = vmatprep.subr.bf16.mxu0 0
  %134 = vmatpush1.bf16.msra.mxu0 0
  %135 = vmatprep.subr.bf16.mxu0 0
  %136 = vmatpush1.bf16.msra.mxu0 0
  %137 = vmatprep.subr.bf16.mxu0 0
  %138 = vmatpush1.bf16.msra.mxu0 0
  %139 = vmatprep.mubr.bf16.mxu0 0
  %140 = vmatmul.mubr.bf16.gmra.mrb[0].mxu0 %v98
  %v141 = vpop.f32.mrb[0].mxu0
  %v142 = vadd.f32 %v39, %v141
  %v143 = vpop.f32.mrb[0].mxu0
  %v144 = vpop.f32.mrb[0].mxu0
  %v145 = vadd.f32 %v39, %v144
  %v146 = vpop.f32.mrb[0].mxu0
  %147 = vmatprep.mubr.bf16.mxu0 0
  %148 = vmatmul.mubr.bf16.gmra.mrb[0].mxu0 %v101
  %v149 = vpop.f32.mrb[0].mxu0
  %v150 = vadd.f32 %v39, %v149
  %v151 = vpop.f32.mrb[0].mxu0
  %v152 = vpop.f32.mrb[0].mxu0
  %v153 = vadd.f32 %v39, %v152
  %v154 = vpop.f32.mrb[0].mxu0
  %155 = vdwg.mxu0
  %v156 = vmax.f32 %v142, 0.0
  %v157 = vmax.f32 %v145, 0.0
  %v158 = vmax.f32 %v150, 0.0
  %v159 = vmax.f32 %v153, 0.0
  %v160 = vpack.c.bf16 %v157, %v156
  %v161 = vpack.c.bf16 %v159, %v158
  %v164 = vunpack.c.l.b16 %v160
  %v165 = vunpack.c.h.b16 %v160
  %v166 = vunpack.c.l.b16 %v161
  %v167 = vunpack.c.h.b16 %v161
  %v168 = vpack.c.b16 %v164, %v164
  %v169 = vpack.c.b16 %v165, %v165
  %v170 = vpack.c.b16 %v166, %v166
  %v171 = vpack.c.b16 %v167, %v167
  %vm176 = vcmask 945152
  %177 = vst.msk [vmem:[%s3] sm:$0xf] %vm176, %v168
  %178 = vst.msk [vmem:[%s3 + $0x4] sm:$0xf] %vm176, %v169
  %179 = vst.msk [vmem:[%s3 + $0x8] sm:$0xf] %vm176, %v170
  %180 = vst.msk [vmem:[%s3 + $0xc] sm:$0xf] %vm176, %v171
  // Predicated region
  $region14: #{reranking_shufflenet_forward.76} parent=0 // pred_check
    _
  $region15: #{reranking_shufflenet_forward.76} parent=0 // pred_check_branch
    %182 = sbr.rel (0) target = $region17
  $region16: #{reranking_shufflenet_forward.76} parent=0 // pred_region
    _
  $region17: #{reranking_shufflenet_forward.76} parent=0 // pred_fallthru
    _
  // Predicated region
  $region18: #{reranking_shufflenet_forward.76} parent=0 // pred_check
    _
  $region19: #{reranking_shufflenet_forward.76} parent=0 // pred_check_branch
    %184 = sbr.rel (0) target = $region21
  $region20: #{reranking_shufflenet_forward.76} parent=0 // pred_region
    _
  $region21: #{reranking_shufflenet_forward.76} parent=0 // pred_fallthru
    _

// kernel: reranking_shufflenet_forward.78
$region0: #{reranking_shufflenet_forward.78}
  #allocation0 [shape = 'u32[]', space=smem, size = 0x4, offset = 0x4, fixed_abs, tag = 'smem constant byte address 0x4 - core index']
  #allocation1 [shape = 'u32[144,128]{1,0:T(1,128)}', space=vmem, size = 0x12000, scoped, tag = 'internal scratch']
  %s0 = inlined_call_operand.vmem [shape: bf16[8,116], index: 0, kind: input, shape index: {}]
  %s1 = inlined_call_operand.vmem [shape: bf16[116,116], index: 1, kind: input, shape index: {}]
  %s2 = inlined_call_operand.vmem [shape: f32[1,116], index: 2, kind: input, shape index: {}]
  %s3 = inlined_call_operand.vmem [shape: bf16[8,116], index: 3, kind: output, shape index: {}]
  %s4 = sld [smem:[#allocation0]]
  $region22: #{reranking_shufflenet_forward.78} parent=0
    _
  %s6 = ssub.s32 1, %s4
  %s7 = scalar_select 0, %s6, %s4
  // Predicated region
  $region2: #{reranking_shufflenet_forward.78} parent=0 // pred_check
    _
  $region3: #{reranking_shufflenet_forward.78} parent=0 // pred_check_branch
    %9 = sbr.rel (0) target = $region5
  $region4: #{reranking_shufflenet_forward.78} parent=0 // pred_region
    _
  $region5: #{reranking_shufflenet_forward.78} parent=0 // pred_fallthru
    _
  // Predicated region
  $region6: #{reranking_shufflenet_forward.78} parent=0 // pred_check
    _
  $region7: #{reranking_shufflenet_forward.78} parent=0 // pred_check_branch
    %11 = sbr.rel (0) target = $region9
  $region8: #{reranking_shufflenet_forward.78} parent=0 // pred_region
    _
  $region9: #{reranking_shufflenet_forward.78} parent=0 // pred_fallthru
    _
  // Predicated region
  $region10: #{reranking_shufflenet_forward.78} parent=0 // pred_check
    _
  $region11: #{reranking_shufflenet_forward.78} parent=0 // pred_check_branch
    %13 = sbr.rel (0) target = $region13
  $region12: #{reranking_shufflenet_forward.78} parent=0 // pred_region
    _
  $region13: #{reranking_shufflenet_forward.78} parent=0 // pred_fallthru
    _
  %v15 = vld [vmem:[%s0] sm:$0xf]
  %v16 = vld [vmem:[%s1] sm:$0xf]
  %v17 = vld [vmem:[%s1 + $0x4] sm:$0xf]
  %v18 = vld [vmem:[%s1 + $0x8] sm:$0xf]
  %v19 = vld [vmem:[%s1 + $0xc] sm:$0xf]
  %v20 = vld [vmem:[%s1 + $0x10] sm:$0xf]
  %v21 = vld [vmem:[%s1 + $0x14] sm:$0xf]
  %v22 = vld [vmem:[%s1 + $0x18] sm:$0xf]
  %v23 = vld [vmem:[%s1 + $0x1c] sm:$0xf]
  %v24 = vld [vmem:[%s1 + $0x20] sm:$0xf]
  %v25 = vld [vmem:[%s1 + $0x24] sm:$0xf]
  %v26 = vld [vmem:[%s1 + $0x28] sm:$0xf]
  %v27 = vld [vmem:[%s1 + $0x2c] sm:$0xf]
  %v28 = vld [vmem:[%s1 + $0x30] sm:$0xf]
  %v29 = vld [vmem:[%s1 + $0x34] sm:$0xf]
  %v30 = vld [vmem:[%s1 + $0x38] sm:$0x3]
  %v31 = vld [vmem:[%s2] sm:$0x1]
  %v33 = vlaneseq
  %v34 = vshrl.u32 %v33, 7
  %v35 = vsub.s32 0, %v34
  %v36 = vrot.slane %v31, %v35
  %v53 = vunpack.c.l.b16 %v16
  %v54 = vunpack.c.l.b16 %v17
  %v55 = vunpack.c.l.b16 %v18
  %v56 = vunpack.c.l.b16 %v19
  %v57 = vunpack.c.l.b16 %v20
  %v58 = vunpack.c.l.b16 %v21
  %v59 = vunpack.c.l.b16 %v22
  %v60 = vunpack.c.l.b16 %v23
  %v61 = vunpack.c.l.b16 %v24
  %v62 = vunpack.c.l.b16 %v25
  %v63 = vunpack.c.l.b16 %v26
  %v64 = vunpack.c.l.b16 %v27
  %v65 = vunpack.c.l.b16 %v28
  %v66 = vunpack.c.l.b16 %v29
  %v67 = vunpack.c.l.b16 %v30
  %v68 = vpack.c.b16 %v54, %v53
  %v69 = vpack.c.b16 %v56, %v55
  %v70 = vpack.c.b16 %v58, %v57
  %v71 = vpack.c.b16 %v60, %v59
  %v72 = vpack.c.b16 %v62, %v61
  %v73 = vpack.c.b16 %v64, %v63
  %v74 = vpack.c.b16 %v66, %v65
  %v75 = vpack.c.b16 %v67, %v67
  %vm83 = vcmask 949248
  %v85 = vsel %vm83, %v15, 0
  %vm87 = vcmask 1041408
  %v89 = vsel %vm87, %v75, 0
  %91 = vmatprep.subr.bf16.mxu0 0
  %92 = vmatpush1.bf16.msra.mxu0 %v68
  %93 = vmatprep.subr.bf16.mxu0 0
  %94 = vmatpush1.bf16.msra.mxu0 %v69
  %95 = vmatprep.subr.bf16.mxu0 0
  %96 = vmatpush1.bf16.msra.mxu0 %v70
  %97 = vmatprep.subr.bf16.mxu0 0
  %98 = vmatpush1.bf16.msra.mxu0 %v71
  %99 = vmatprep.subr.bf16.mxu0 0
  %100 = vmatpush1.bf16.msra.mxu0 %v72
  %101 = vmatprep.subr.bf16.mxu0 0
  %102 = vmatpush1.bf16.msra.mxu0 %v73
  %103 = vmatprep.subr.bf16.mxu0 0
  %104 = vmatpush1.bf16.msra.mxu0 %v74
  %105 = vmatprep.subr.bf16.mxu0 0
  %106 = vmatpush1.bf16.msra.mxu0 %v89
  %107 = vmatprep.subr.bf16.mxu0 0
  %108 = vmatpush1.bf16.msra.mxu0 0
  %109 = vmatprep.subr.bf16.mxu0 0
  %110 = vmatpush1.bf16.msra.mxu0 0
  %111 = vmatprep.subr.bf16.mxu0 0
  %112 = vmatpush1.bf16.msra.mxu0 0
  %113 = vmatprep.subr.bf16.mxu0 0
  %114 = vmatpush1.bf16.msra.mxu0 0
  %115 = vmatprep.subr.bf16.mxu0 0
  %116 = vmatpush1.bf16.msra.mxu0 0
  %117 = vmatprep.subr.bf16.mxu0 0
  %118 = vmatpush1.bf16.msra.mxu0 0
  %119 = vmatprep.subr.bf16.mxu0 0
  %120 = vmatpush1.bf16.msra.mxu0 0
  %121 = vmatprep.subr.bf16.mxu0 0
  %122 = vmatpush1.bf16.msra.mxu0 0
  %123 = vmatprep.mubr.bf16.mxu0 0
  %124 = vmatmul.mubr.bf16.gmra.mrb[0].mxu0 %v85
  %v125 = vpop.f32.mrb[0].mxu0
  %v126 = vadd.f32 %v36, %v125
  %v127 = vpop.f32.mrb[0].mxu0
  %v128 = vpop.f32.mrb[0].mxu0
  %v129 = vpop.f32.mrb[0].mxu0
  %130 = vdwg.mxu0
  %v131 = vmax.f32 %v126, 0.0
  %v132 = vpack.c.bf16 %v131, %v131
  %vm133 = vcmask 945152
  %134 = vst.msk [vmem:[%s3] sm:$0xf] %vm133, %v132
  // Predicated region
  $region14: #{reranking_shufflenet_forward.78} parent=0 // pred_check
    _
  $region15: #{reranking_shufflenet_forward.78} parent=0 // pred_check_branch
    %136 = sbr.rel (0) target = $region17
  $region16: #{reranking_shufflenet_forward.78} parent=0 // pred_region
    _
  $region17: #{reranking_shufflenet_forward.78} parent=0 // pred_fallthru
    _
  // Predicated region
  $region18: #{reranking_shufflenet_forward.78} parent=0 // pred_check
    _
  $region19: #{reranking_shufflenet_forward.78} parent=0 // pred_check_branch
    %138 = sbr.rel (0) target = $region21
  $region20: #{reranking_shufflenet_forward.78} parent=0 // pred_region
    _
  $region21: #{reranking_shufflenet_forward.78} parent=0 // pred_fallthru
    _

// kernel: reranking_shufflenet_forward.77
$region0: #{reranking_shufflenet_forward.77}
  #allocation0 [shape = 'u32[]', space=smem, size = 0x4, offset = 0x4, fixed_abs, tag = 'smem constant byte address 0x4 - core index']
  #allocation1 [shape = 'u32[144,128]{1,0:T(1,128)}', space=vmem, size = 0x12000, scoped, tag = 'internal scratch']
  %s0 = inlined_call_operand.vmem [shape: bf16[8,3,3,116], index: 0, kind: input, shape index: {}]
  %s1 = inlined_call_operand.vmem [shape: f32[9,1,116], index: 1, kind: input, shape index: {}]
  %s2 = inlined_call_operand.vmem [shape: f32[1,116], index: 2, kind: input, shape index: {}]
  %s3 = inlined_call_operand.vmem [shape: bf16[2,2,2,116], index: 3, kind: output, shape index: {}]
  %s4 = sld [smem:[#allocation0]]
  $region45: #{reranking_shufflenet_forward.77} parent=0
    _
  %s6 = ssub.s32 1, %s4
  %s7 = scalar_select 0, %s6, %s4
  loop: start=0, step=1, limit=4
  $region2: #{reranking_shufflenet_forward.77} parent=0 // loop_pre_header
    _
  $region3: #{reranking_shufflenet_forward.77} parent=0 // loop_header
    %s9 = sphi 0, %s13
    %p10 = scmp.ge.s32.totalorder %s9, 4
    %s19 = sphi 0, %s21
    %s22 = sphi 0, %s19
    %s23 = sphi 0, %s22
    %s39 = sphi 0, %s23
    %s43 = sphi 0, %s43
    %s45 = sphi 0, %s43
    %s46 = sphi 0, %s45
    %s60 = sphi 0, %s46
    %s64 = sphi 0, %s64
    %s66 = sphi 0, %s64
    %s67 = sphi 0, %s66
    %s81 = sphi 0, %s67
    %s87 = sphi 0, %s89
    %s90 = sphi 0, %s87
    %s91 = sphi 0, %s90
    %s107 = sphi 0, %s91
  $region4: #{reranking_shufflenet_forward.77} parent=0 // loop_header_branch
    %12 = sbr.rel (%p10) target = $region8
  $region5: #{reranking_shufflenet_forward.77} parent=0 // loop_body
    %s14 = ssub.s32 %s9, 1
    %s15 = ssub.s32 %s9, 2
    %s16 = sadd.s32 %s9, 1
    %s17 = ssub.s32 %s9, %s16
    %p18 = scmp.eq.s32.totalorder %s17, 0
    %s20 = sadd.s32 %s19, 1
    %s21 = scalar_select %p18, %s19, %s20
    %p24 = pneg %p18
    %p25 = scmp.eq.s32.totalorder %s9, 1
    %p26 = por %p24, %p25
    %p27 = scmp.ne.s32.totalorder %s19, %s22
    %p28 = scmp.eq.s32.totalorder %s9, 0
    %p29 = por %p27, %p28
    %p30 = scmp.ne.s32.totalorder %s19, %s22
    %p31 = scmp.eq.s32.totalorder %s14, 1
    %p32 = por %p30, %p31
    %p33 = scmp.ne.s32.totalorder %s22, %s23
    %p34 = scmp.eq.s32.totalorder %s14, 0
    %p35 = por %p33, %p34
    %p36 = scmp.ne.s32.totalorder %s22, %s23
    %p37 = scmp.eq.s32.totalorder %s15, 1
    %p38 = por %p36, %p37
    %p40 = scmp.ne.s32.totalorder %s23, %s39
    %p41 = scmp.eq.s32.totalorder %s15, 0
    %p42 = por %p40, %p41
    %s44 = sadd.s32 %s43, 1
    %p47 = scmp.eq.s32.totalorder %s9, 1
    %p48 = scmp.ne.s32.totalorder %s43, %s45
    %p49 = scmp.eq.s32.totalorder %s9, 0
    %p50 = por %p48, %p49
    %p51 = scmp.ne.s32.totalorder %s43, %s45
    %p52 = scmp.eq.s32.totalorder %s14, 1
    %p53 = por %p51, %p52
    %p54 = scmp.ne.s32.totalorder %s45, %s46
    %p55 = scmp.eq.s32.totalorder %s14, 0
    %p56 = por %p54, %p55
    %p57 = scmp.ne.s32.totalorder %s45, %s46
    %p58 = scmp.eq.s32.totalorder %s15, 1
    %p59 = por %p57, %p58
    %p61 = scmp.ne.s32.totalorder %s46, %s60
    %p62 = scmp.eq.s32.totalorder %s15, 0
    %p63 = por %p61, %p62
    %s65 = sadd.s32 %s64, 1
    %p68 = scmp.eq.s32.totalorder %s9, 1
    %p69 = scmp.ne.s32.totalorder %s64, %s66
    %p70 = scmp.eq.s32.totalorder %s9, 0
    %p71 = por %p69, %p70
    %p72 = scmp.ne.s32.totalorder %s64, %s66
    %p73 = scmp.eq.s32.totalorder %s14, 1
    %p74 = por %p72, %p73
    %p75 = scmp.ne.s32.totalorder %s66, %s67
    %p76 = scmp.eq.s32.totalorder %s14, 0
    %p77 = por %p75, %p76
    %p78 = scmp.ne.s32.totalorder %s66, %s67
    %p79 = scmp.eq.s32.totalorder %s15, 1
    %p80 = por %p78, %p79
    %p82 = scmp.ne.s32.totalorder %s67, %s81
    %p83 = scmp.eq.s32.totalorder %s15, 0
    %p84 = por %p82, %p83
    %s85 = ssub.s32 %s9, %s16
    %p86 = scmp.eq.s32.totalorder %s85, 0
    %s88 = sadd.s32 %s87, 1
    %s89 = scalar_select %p86, %s87, %s88
    %p92 = pneg %p86
    %p93 = scmp.eq.s32.totalorder %s9, 1
    %p94 = por %p92, %p93
    %p95 = scmp.ne.s32.totalorder %s87, %s90
    %p96 = scmp.eq.s32.totalorder %s9, 0
    %p97 = por %p95, %p96
    %p98 = scmp.ne.s32.totalorder %s87, %s90
    %p99 = scmp.eq.s32.totalorder %s14, 1
    %p100 = por %p98, %p99
    %p101 = scmp.ne.s32.totalorder %s90, %s91
    %p102 = scmp.eq.s32.totalorder %s14, 0
    %p103 = por %p101, %p102
    %p104 = scmp.ne.s32.totalorder %s90, %s91
    %p105 = scmp.eq.s32.totalorder %s15, 1
    %p106 = por %p104, %p105
    %p108 = scmp.ne.s32.totalorder %s91, %s107
    %p109 = scmp.eq.s32.totalorder %s15, 0
    %p110 = por %p108, %p109
    %p111 = scmp.le.s32.totalorder 1, %s9
    %p112 = scmp.lt.s32.totalorder %s9, 3
    %p113 = pnand %p111, %p112
    %p114 = pneg %p113
    // Predicated region
    $region9: #{reranking_shufflenet_forward.77} parent=5 // pred_check
      _
    $region10: #{reranking_shufflenet_forward.77} parent=5 // pred_check_branch
      %116 = sbr.rel (%p113) target = $region12
    $region11: #{reranking_shufflenet_forward.77} parent=5 // pred_region
      %s117 = ssub.s32 %s9, 1
      // Predicated region
      $region13: #{reranking_shufflenet_forward.77} parent=11 // pred_check
        %p118 = pneg %p56
      $region14: #{reranking_shufflenet_forward.77} parent=11 // pred_check_branch
        %120 = sbr.rel (%p118) target = $region16
      $region15: #{reranking_shufflenet_forward.77} parent=11 // pred_region
        _
      $region16: #{reranking_shufflenet_forward.77} parent=11 // pred_fallthru
        _
      // Predicated region
      $region17: #{reranking_shufflenet_forward.77} parent=11 // pred_check
        %p121 = pneg %p77
      $region18: #{reranking_shufflenet_forward.77} parent=11 // pred_check_branch
        %123 = sbr.rel (%p121) target = $region20
      $region19: #{reranking_shufflenet_forward.77} parent=11 // pred_region
        _
      $region20: #{reranking_shufflenet_forward.77} parent=11 // pred_fallthru
        _
    $region12: #{reranking_shufflenet_forward.77} parent=5 // pred_fallthru
      _
    %p124 = scmp.lt.s32.totalorder %s9, 2
    // Predicated region
    $region21: #{reranking_shufflenet_forward.77} parent=5 // pred_check
      %p125 = pneg %p124
    $region22: #{reranking_shufflenet_forward.77} parent=5 // pred_check_branch
      %127 = sbr.rel (%p125) target = $region24
    $region23: #{reranking_shufflenet_forward.77} parent=5 // pred_region
      // Predicated region
      $region25: #{reranking_shufflenet_forward.77} parent=23 // pred_check
        %p128 = pneg %p29
      $region26: #{reranking_shufflenet_forward.77} parent=23 // pred_check_branch
        %130 = sbr.rel (%p128) target = $region28
      $region27: #{reranking_shufflenet_forward.77} parent=23 // pred_region
        %s131 = smul.u32 4, %s9
        %p132 = scmp.lt.s32.totalorder %s131, 7
        %s133 = scalar_select %p132, %s131, 7
        %s134 = smul.addr %s133, 3
        %s135 = smul.addr %s134, 2
        %s136 = scalar_lea.vmem %s0, %s135
        %s137 = smul.u32 4, %s9
      $region28: #{reranking_shufflenet_forward.77} parent=23 // pred_fallthru
        _
    $region24: #{reranking_shufflenet_forward.77} parent=5 // pred_fallthru
      _
    %p138 = scmp.le.s32.totalorder 1, %s9
    %p139 = scmp.lt.s32.totalorder %s9, 3
    %p140 = pnand %p138, %p139
    %p141 = pneg %p140
    // Predicated region
    $region29: #{reranking_shufflenet_forward.77} parent=5 // pred_check
      _
    $region30: #{reranking_shufflenet_forward.77} parent=5 // pred_check_branch
      %143 = sbr.rel (%p140) target = $region32
    $region31: #{reranking_shufflenet_forward.77} parent=5 // pred_region
      %s144 = ssub.s32 %s9, 1
      %s145 = smul.u32 4, %s14
      %p146 = scmp.lt.s32.totalorder %s145, 7
      %s147 = scalar_select %p146, %s145, 7
      %s148 = smul.addr %s147, 3
      %s149 = smul.addr %s148, 2
      %s150 = scalar_lea.vmem %s0, %s149
      %p151 = pneg %p35
      %p152 = pneg %p32
      %p153 = pneg %p56
      %p154 = pneg %p53
      %p155 = pneg %p77
      %p156 = pneg %p74
      %p157 = pneg %p103
      %p158 = pneg %p100
      %p159 = scmp.lt.s32.totalorder %s14, 1
      %s160 = scalar_select %p159, %s14, 1
      %s161 = smul.addr %s160, 2
      %s162 = scalar_lea.vmem %s3, %s161
      %s163 = smul.u32 4, %s14
      %p164 = scmp.lt.s32.totalorder %s163, 7
      %s165 = scalar_select %p164, %s163, 7
      %s166 = smul.addr %s165, 3
      %s167 = smul.addr %s166, 2
      %s168 = scalar_lea.vmem %s0, %s167
      %s169 = smul.u32 4, %s14
      %p170 = scmp.lt.s32.totalorder %s14, 1
      %s171 = scalar_select %p170, %s14, 1
      %s172 = smul.addr %s171, 2
      %s173 = scalar_lea.vmem %s3, %s172
      %v174 = vld [vmem:[%s168] sm:$0x3]
      %v175 = vld [vmem:[%s168 + $0x2] sm:$0x3]
      %v176 = vld [vmem:[%s168 + $0x4] sm:$0x3]
      %v177 = vunpack.c.l.bf16 %v174
      %v178 = vunpack.c.l.bf16 %v175
      %v179 = vunpack.c.l.bf16 %v176
      %v180 = vld [vmem:[%s1] sm:$0x1]
      %v182 = vlaneseq
      %v183 = vshrl.u32 %v182, 7
      %v184 = vsub.s32 0, %v183
      %v185 = vrot.slane %v180, %v184
      %v187 = vmul.f32 %v177, %v185
      %v188 = vmul.f32 %v178, %v185
      %v189 = vadd.f32 %v187, 0.0
      %v190 = vadd.f32 %v188, 0.0
      %s191 = scalar_lea.vmem %s168, 6
      %v192 = vld [vmem:[%s191] sm:$0x3]
      %v193 = vld [vmem:[%s191 + $0x2] sm:$0x3]
      %v194 = vld [vmem:[%s191 + $0x4] sm:$0x3]
      %v195 = vunpack.c.l.bf16 %v192
      %v196 = vunpack.c.l.bf16 %v193
      %v197 = vunpack.c.l.bf16 %v194
      %s198 = scalar_lea.vmem %s1, 1
      %v199 = vld [vmem:[%s198] sm:$0x1]
      %v201 = vlaneseq
      %v202 = vshrl.u32 %v201, 7
      %v203 = vsub.s32 0, %v202
      %v204 = vrot.slane %v199, %v203
      %v206 = vmul.f32 %v195, %v204
      %v207 = vmul.f32 %v196, %v204
      %v208 = vadd.f32 %v189, %v206
      %v209 = vadd.f32 %v190, %v207
      %s210 = scalar_lea.vmem %s1, 2
      %v211 = vld [vmem:[%s210] sm:$0x1]
      %v213 = vlaneseq
      %v214 = vshrl.u32 %v213, 7
      %v215 = vsub.s32 0, %v214
      %v216 = vrot.slane %v211, %v215
      %v218 = vmul.f32 %v177, %v216
      %v219 = vmul.f32 %v178, %v216
      %v222 = vrot.slane %v218, 5
      %v223 = vrot.slane %v222, 4
      %v224 = vrot.slane %v219, 5
      %v225 = vrot.slane %v224, 4
      %v228 = vadd.f32 %v208, %v223
      %v229 = vadd.f32 %v209, %v225
      %s230 = scalar_lea.vmem %s168, 12
      %v231 = vld [vmem:[%s230] sm:$0x3]
      %v232 = vld [vmem:[%s230 + $0x2] sm:$0x3]
      %v233 = vunpack.c.l.bf16 %v231
      %v234 = vunpack.c.l.bf16 %v232
      %s235 = scalar_lea.vmem %s1, 3
      %v236 = vld [vmem:[%s235] sm:$0x1]
      %v238 = vlaneseq
      %v239 = vshrl.u32 %v238, 7
      %v240 = vsub.s32 0, %v239
      %v241 = vrot.slane %v236, %v240
      %v243 = vmul.f32 %v233, %v241
      %v244 = vmul.f32 %v234, %v241
      %v245 = vadd.f32 %v228, %v243
      %v246 = vadd.f32 %v229, %v244
      %s247 = scalar_lea.vmem %s168, 18
      %v248 = vld [vmem:[%s247] sm:$0x3]
      %v249 = vld [vmem:[%s247 + $0x2] sm:$0x3]
      %v250 = vunpack.c.l.bf16 %v248
      %v251 = vunpack.c.l.bf16 %v249
      %s252 = scalar_lea.vmem %s1, 4
      %v253 = vld [vmem:[%s252] sm:$0x1]
      %v255 = vlaneseq
      %v256 = vshrl.u32 %v255, 7
      %v257 = vsub.s32 0, %v256
      %v258 = vrot.slane %v253, %v257
      %v260 = vmul.f32 %v250, %v258
      %v261 = vmul.f32 %v251, %v258
      %v262 = vadd.f32 %v245, %v260
      %v263 = vadd.f32 %v246, %v261
      %s264 = scalar_lea.vmem %s1, 5
      %v265 = vld [vmem:[%s264] sm:$0x1]
      %v267 = vlaneseq
      %v268 = vshrl.u32 %v267, 7
      %v269 = vsub.s32 0, %v268
      %v270 = vrot.slane %v265, %v269
      %v272 = vmul.f32 %v233, %v270
      %v273 = vmul.f32 %v234, %v270
      %v276 = vrot.slane %v272, 5
      %v277 = vrot.slane %v276, 4
      %v278 = vrot.slane %v273, 5
      %v279 = vrot.slane %v278, 4
      %v282 = vadd.f32 %v262, %v277
      %v283 = vadd.f32 %v263, %v279
      %s284 = scalar_lea.vmem %s1, 6
      %v285 = vld [vmem:[%s284] sm:$0x1]
      %v287 = vlaneseq
      %v288 = vshrl.u32 %v287, 7
      %v289 = vsub.s32 0, %v288
      %v290 = vrot.slane %v285, %v289
      %v292 = vmul.f32 %v178, %v290
      %v293 = vmul.f32 %v179, %v290
      %v294 = vadd.f32 %v282, %v292
      %v295 = vadd.f32 %v283, %v293
      %s296 = scalar_lea.vmem %s1, 7
      %v297 = vld [vmem:[%s296] sm:$0x1]
      %v299 = vlaneseq
      %v300 = vshrl.u32 %v299, 7
      %v301 = vsub.s32 0, %v300
      %v302 = vrot.slane %v297, %v301
      %v304 = vmul.f32 %v196, %v302
      %v305 = vmul.f32 %v197, %v302
      %v306 = vadd.f32 %v294, %v304
      %v307 = vadd.f32 %v295, %v305
      %s308 = scalar_lea.vmem %s1, 8
      %v309 = vld [vmem:[%s308] sm:$0x1]
      %v311 = vlaneseq
      %v312 = vshrl.u32 %v311, 7
      %v313 = vsub.s32 0, %v312
      %v314 = vrot.slane %v309, %v313
      %v316 = vmul.f32 %v178, %v314
      %v317 = vmul.f32 %v179, %v314
      %v320 = vrot.slane %v316, 5
      %v321 = vrot.slane %v320, 4
      %v322 = vrot.slane %v317, 5
      %v323 = vrot.slane %v322, 4
      %v326 = vadd.f32 %v306, %v321
      %v327 = vadd.f32 %v307, %v323
      %v328 = vld [vmem:[%s2] sm:$0x1]
      %v330 = vlaneseq
      %v331 = vshrl.u32 %v330, 7
      %v332 = vsub.s32 0, %v331
      %v333 = vrot.slane %v328, %v332
      %v335 = vadd.f32 %v326, %v333
      %v336 = vadd.f32 %v327, %v333
      %v337 = vpack.c.bf16 %v335, %v335
      %v338 = vpack.c.bf16 %v336, %v336
      %vm339 = vcmask 942080
      %340 = vst.msk [vmem:[%s173] sm:$0x1] %vm339, %v337
      %341 = vst.msk [vmem:[%s173 + $0x1] sm:$0x1] %vm339, %v338
      %p342 = scmp.lt.s32.totalorder %s14, 1
      %s343 = scalar_select %p342, %s14, 1
      %s344 = smul.addr %s343, 2
      %s345 = scalar_lea.vmem %s3, %s344
      // Predicated region
      $region33: #{reranking_shufflenet_forward.77} parent=31 // pred_check
        %p346 = pneg %p100
      $region34: #{reranking_shufflenet_forward.77} parent=31 // pred_check_branch
        %348 = sbr.rel (%p346) target = $region36
      $region35: #{reranking_shufflenet_forward.77} parent=31 // pred_region
        _
      $region36: #{reranking_shufflenet_forward.77} parent=31 // pred_fallthru
        _
    $region32: #{reranking_shufflenet_forward.77} parent=5 // pred_fallthru
      _
    %p349 = scmp.le.s32.totalorder 2, %s9
    // Predicated region
    $region37: #{reranking_shufflenet_forward.77} parent=5 // pred_check
      %p350 = pneg %p349
    $region38: #{reranking_shufflenet_forward.77} parent=5 // pred_check_branch
      %352 = sbr.rel (%p350) target = $region40
    $region39: #{reranking_shufflenet_forward.77} parent=5 // pred_region
      %s353 = ssub.s32 %s9, 2
      // Predicated region
      $region41: #{reranking_shufflenet_forward.77} parent=39 // pred_check
        %p354 = pneg %p106
      $region42: #{reranking_shufflenet_forward.77} parent=39 // pred_check_branch
        %356 = sbr.rel (%p354) target = $region44
      $region43: #{reranking_shufflenet_forward.77} parent=39 // pred_region
        %p357 = scmp.lt.s32.totalorder %s15, 1
        %s358 = scalar_select %p357, %s15, 1
        %s359 = smul.addr %s358, 2
        %s360 = scalar_lea.vmem %s3, %s359
      $region44: #{reranking_shufflenet_forward.77} parent=39 // pred_fallthru
        _
    $region40: #{reranking_shufflenet_forward.77} parent=5 // pred_fallthru
      _
  $region6: #{reranking_shufflenet_forward.77} parent=0 // loop_footer
    %s13 = sadd.s32 1, %s9
  $region7: #{reranking_shufflenet_forward.77} parent=0 // loop_footer_branch
    %8 = sbr.rel target = $region3
  $region8: #{reranking_shufflenet_forward.77} parent=0 // loop_exit
    _

// kernel: reranking_shufflenet_forward.80
$region0: #{reranking_shufflenet_forward.80}
  #allocation0 [shape = 'u32[]', space=smem, size = 0x4, offset = 0x4, fixed_abs, tag = 'smem constant byte address 0x4 - core index']
  #allocation1 [shape = 'u32[144,128]{1,0:T(1,128)}', space=vmem, size = 0x12000, scoped, tag = 'internal scratch']
  %s0 = inlined_call_operand.vmem [shape: bf16[2,4,4,116], index: 0, kind: input, shape index: {}]
  %s1 = inlined_call_operand.vmem [shape: f32[9,1,116], index: 1, kind: input, shape index: {}]
  %s2 = inlined_call_operand.vmem [shape: f32[1,116], index: 2, kind: input, shape index: {}]
  %s3 = inlined_call_operand.vmem [shape: bf16[2,2,2,116], index: 3, kind: output, shape index: {}]
  %s4 = sld [smem:[#allocation0]]
  $region45: #{reranking_shufflenet_forward.80} parent=0
    _
  %s6 = ssub.s32 1, %s4
  %s7 = scalar_select 0, %s6, %s4
  loop: start=0, step=1, limit=4
  $region2: #{reranking_shufflenet_forward.80} parent=0 // loop_pre_header
    _
  $region3: #{reranking_shufflenet_forward.80} parent=0 // loop_header
    %s9 = sphi 0, %s13
    %p10 = scmp.ge.s32.totalorder %s9, 4
    %s19 = sphi 0, %s21
    %s22 = sphi 0, %s19
    %s23 = sphi 0, %s22
    %s39 = sphi 0, %s23
    %s43 = sphi 0, %s43
    %s45 = sphi 0, %s43
    %s46 = sphi 0, %s45
    %s60 = sphi 0, %s46
    %s64 = sphi 0, %s64
    %s66 = sphi 0, %s64
    %s67 = sphi 0, %s66
    %s81 = sphi 0, %s67
    %s87 = sphi 0, %s89
    %s90 = sphi 0, %s87
    %s91 = sphi 0, %s90
    %s107 = sphi 0, %s91
  $region4: #{reranking_shufflenet_forward.80} parent=0 // loop_header_branch
    %12 = sbr.rel (%p10) target = $region8
  $region5: #{reranking_shufflenet_forward.80} parent=0 // loop_body
    %s14 = ssub.s32 %s9, 1
    %s15 = ssub.s32 %s9, 2
    %s16 = sadd.s32 %s9, 1
    %s17 = ssub.s32 %s9, %s16
    %p18 = scmp.eq.s32.totalorder %s17, 0
    %s20 = sadd.s32 %s19, 1
    %s21 = scalar_select %p18, %s19, %s20
    %p24 = pneg %p18
    %p25 = scmp.eq.s32.totalorder %s9, 1
    %p26 = por %p24, %p25
    %p27 = scmp.ne.s32.totalorder %s19, %s22
    %p28 = scmp.eq.s32.totalorder %s9, 0
    %p29 = por %p27, %p28
    %p30 = scmp.ne.s32.totalorder %s19, %s22
    %p31 = scmp.eq.s32.totalorder %s14, 1
    %p32 = por %p30, %p31
    %p33 = scmp.ne.s32.totalorder %s22, %s23
    %p34 = scmp.eq.s32.totalorder %s14, 0
    %p35 = por %p33, %p34
    %p36 = scmp.ne.s32.totalorder %s22, %s23
    %p37 = scmp.eq.s32.totalorder %s15, 1
    %p38 = por %p36, %p37
    %p40 = scmp.ne.s32.totalorder %s23, %s39
    %p41 = scmp.eq.s32.totalorder %s15, 0
    %p42 = por %p40, %p41
    %s44 = sadd.s32 %s43, 1
    %p47 = scmp.eq.s32.totalorder %s9, 1
    %p48 = scmp.ne.s32.totalorder %s43, %s45
    %p49 = scmp.eq.s32.totalorder %s9, 0
    %p50 = por %p48, %p49
    %p51 = scmp.ne.s32.totalorder %s43, %s45
    %p52 = scmp.eq.s32.totalorder %s14, 1
    %p53 = por %p51, %p52
    %p54 = scmp.ne.s32.totalorder %s45, %s46
    %p55 = scmp.eq.s32.totalorder %s14, 0
    %p56 = por %p54, %p55
    %p57 = scmp.ne.s32.totalorder %s45, %s46
    %p58 = scmp.eq.s32.totalorder %s15, 1
    %p59 = por %p57, %p58
    %p61 = scmp.ne.s32.totalorder %s46, %s60
    %p62 = scmp.eq.s32.totalorder %s15, 0
    %p63 = por %p61, %p62
    %s65 = sadd.s32 %s64, 1
    %p68 = scmp.eq.s32.totalorder %s9, 1
    %p69 = scmp.ne.s32.totalorder %s64, %s66
    %p70 = scmp.eq.s32.totalorder %s9, 0
    %p71 = por %p69, %p70
    %p72 = scmp.ne.s32.totalorder %s64, %s66
    %p73 = scmp.eq.s32.totalorder %s14, 1
    %p74 = por %p72, %p73
    %p75 = scmp.ne.s32.totalorder %s66, %s67
    %p76 = scmp.eq.s32.totalorder %s14, 0
    %p77 = por %p75, %p76
    %p78 = scmp.ne.s32.totalorder %s66, %s67
    %p79 = scmp.eq.s32.totalorder %s15, 1
    %p80 = por %p78, %p79
    %p82 = scmp.ne.s32.totalorder %s67, %s81
    %p83 = scmp.eq.s32.totalorder %s15, 0
    %p84 = por %p82, %p83
    %s85 = ssub.s32 %s9, %s16
    %p86 = scmp.eq.s32.totalorder %s85, 0
    %s88 = sadd.s32 %s87, 1
    %s89 = scalar_select %p86, %s87, %s88
    %p92 = pneg %p86
    %p93 = scmp.eq.s32.totalorder %s9, 1
    %p94 = por %p92, %p93
    %p95 = scmp.ne.s32.totalorder %s87, %s90
    %p96 = scmp.eq.s32.totalorder %s9, 0
    %p97 = por %p95, %p96
    %p98 = scmp.ne.s32.totalorder %s87, %s90
    %p99 = scmp.eq.s32.totalorder %s14, 1
    %p100 = por %p98, %p99
    %p101 = scmp.ne.s32.totalorder %s90, %s91
    %p102 = scmp.eq.s32.totalorder %s14, 0
    %p103 = por %p101, %p102
    %p104 = scmp.ne.s32.totalorder %s90, %s91
    %p105 = scmp.eq.s32.totalorder %s15, 1
    %p106 = por %p104, %p105
    %p108 = scmp.ne.s32.totalorder %s91, %s107
    %p109 = scmp.eq.s32.totalorder %s15, 0
    %p110 = por %p108, %p109
    %p111 = scmp.le.s32.totalorder 1, %s9
    %p112 = scmp.lt.s32.totalorder %s9, 3
    %p113 = pnand %p111, %p112
    %p114 = pneg %p113
    // Predicated region
    $region9: #{reranking_shufflenet_forward.80} parent=5 // pred_check
      _
    $region10: #{reranking_shufflenet_forward.80} parent=5 // pred_check_branch
      %116 = sbr.rel (%p113) target = $region12
    $region11: #{reranking_shufflenet_forward.80} parent=5 // pred_region
      %s117 = ssub.s32 %s9, 1
      // Predicated region
      $region13: #{reranking_shufflenet_forward.80} parent=11 // pred_check
        %p118 = pneg %p56
      $region14: #{reranking_shufflenet_forward.80} parent=11 // pred_check_branch
        %120 = sbr.rel (%p118) target = $region16
      $region15: #{reranking_shufflenet_forward.80} parent=11 // pred_region
        _
      $region16: #{reranking_shufflenet_forward.80} parent=11 // pred_fallthru
        _
      // Predicated region
      $region17: #{reranking_shufflenet_forward.80} parent=11 // pred_check
        %p121 = pneg %p77
      $region18: #{reranking_shufflenet_forward.80} parent=11 // pred_check_branch
        %123 = sbr.rel (%p121) target = $region20
      $region19: #{reranking_shufflenet_forward.80} parent=11 // pred_region
        _
      $region20: #{reranking_shufflenet_forward.80} parent=11 // pred_fallthru
        _
    $region12: #{reranking_shufflenet_forward.80} parent=5 // pred_fallthru
      _
    %p124 = scmp.lt.s32.totalorder %s9, 2
    // Predicated region
    $region21: #{reranking_shufflenet_forward.80} parent=5 // pred_check
      %p125 = pneg %p124
    $region22: #{reranking_shufflenet_forward.80} parent=5 // pred_check_branch
      %127 = sbr.rel (%p125) target = $region24
    $region23: #{reranking_shufflenet_forward.80} parent=5 // pred_region
      // Predicated region
      $region25: #{reranking_shufflenet_forward.80} parent=23 // pred_check
        %p128 = pneg %p29
      $region26: #{reranking_shufflenet_forward.80} parent=23 // pred_check_branch
        %130 = sbr.rel (%p128) target = $region28
      $region27: #{reranking_shufflenet_forward.80} parent=23 // pred_region
        %p131 = scmp.lt.s32.totalorder %s9, 1
        %s132 = scalar_select %p131, %s9, 1
        %s133 = smul.addr %s132, 4
        %s134 = smul.addr %s133, 2
        %s135 = scalar_lea.vmem %s0, %s134
      $region28: #{reranking_shufflenet_forward.80} parent=23 // pred_fallthru
        _
    $region24: #{reranking_shufflenet_forward.80} parent=5 // pred_fallthru
      _
    %p136 = scmp.le.s32.totalorder 1, %s9
    %p137 = scmp.lt.s32.totalorder %s9, 3
    %p138 = pnand %p136, %p137
    %p139 = pneg %p138
    // Predicated region
    $region29: #{reranking_shufflenet_forward.80} parent=5 // pred_check
      _
    $region30: #{reranking_shufflenet_forward.80} parent=5 // pred_check_branch
      %141 = sbr.rel (%p138) target = $region32
    $region31: #{reranking_shufflenet_forward.80} parent=5 // pred_region
      %s142 = ssub.s32 %s9, 1
      %p143 = scmp.lt.s32.totalorder %s14, 1
      %s144 = scalar_select %p143, %s14, 1
      %s145 = smul.addr %s144, 4
      %s146 = smul.addr %s145, 2
      %s147 = scalar_lea.vmem %s0, %s146
      %p148 = pneg %p35
      %p149 = pneg %p32
      %p150 = pneg %p56
      %p151 = pneg %p53
      %p152 = pneg %p77
      %p153 = pneg %p74
      %p154 = pneg %p103
      %p155 = pneg %p100
      %p156 = scmp.lt.s32.totalorder %s14, 1
      %s157 = scalar_select %p156, %s14, 1
      %s158 = smul.addr %s157, 2
      %s159 = scalar_lea.vmem %s3, %s158
      %p160 = scmp.lt.s32.totalorder %s14, 1
      %s161 = scalar_select %p160, %s14, 1
      %s162 = smul.addr %s161, 4
      %s163 = smul.addr %s162, 2
      %s164 = scalar_lea.vmem %s0, %s163
      %p165 = scmp.lt.s32.totalorder %s14, 1
      %s166 = scalar_select %p165, %s14, 1
      %s167 = smul.addr %s166, 2
      %s168 = scalar_lea.vmem %s3, %s167
      %v169 = vld [vmem:[%s164] sm:$0x3]
      %v170 = vld [vmem:[%s164 + $0x2] sm:$0x3]
      %v171 = vld [vmem:[%s164 + $0x4] sm:$0x3]
      %v172 = vld [vmem:[%s164 + $0x6] sm:$0x3]
      %v173 = vunpack.c.l.bf16 %v169
      %v174 = vunpack.c.l.bf16 %v170
      %v175 = vunpack.c.l.bf16 %v171
      %v176 = vunpack.c.l.bf16 %v172
      %v177 = vld [vmem:[%s1] sm:$0x1]
      %v179 = vlaneseq
      %v180 = vshrl.u32 %v179, 7
      %v181 = vsub.s32 0, %v180
      %v182 = vrot.slane %v177, %v181
      %v184 = vmul.f32 %v173, %v182
      %v185 = vmul.f32 %v174, %v182
      %v186 = vadd.f32 %v184, 0.0
      %v187 = vadd.f32 %v185, 0.0
      %s188 = scalar_lea.vmem %s1, 1
      %v189 = vld [vmem:[%s188] sm:$0x1]
      %v191 = vlaneseq
      %v192 = vshrl.u32 %v191, 7
      %v193 = vsub.s32 0, %v192
      %v194 = vrot.slane %v189, %v193
      %v196 = vmul.f32 %v173, %v194
      %v197 = vmul.f32 %v174, %v194
      %v200 = vrot.slane %v196, 5
      %v201 = vrot.slane %v200, 4
      %v202 = vrot.slane %v197, 5
      %v203 = vrot.slane %v202, 4
      %v206 = vadd.f32 %v186, %v201
      %v207 = vadd.f32 %v187, %v203
      %s208 = scalar_lea.vmem %s1, 2
      %v209 = vld [vmem:[%s208] sm:$0x1]
      %v211 = vlaneseq
      %v212 = vshrl.u32 %v211, 7
      %v213 = vsub.s32 0, %v212
      %v214 = vrot.slane %v209, %v213
      %v216 = vmul.f32 %v173, %v214
      %v217 = vmul.f32 %v174, %v214
      %v220 = vrot.slane %v216, 6
      %v221 = vrot.slane %v220, 4
      %v222 = vrot.slane %v217, 6
      %v223 = vrot.slane %v222, 4
      %v226 = vadd.f32 %v206, %v221
      %v227 = vadd.f32 %v207, %v223
      %s228 = scalar_lea.vmem %s1, 3
      %v229 = vld [vmem:[%s228] sm:$0x1]
      %v231 = vlaneseq
      %v232 = vshrl.u32 %v231, 7
      %v233 = vsub.s32 0, %v232
      %v234 = vrot.slane %v229, %v233
      %v236 = vmul.f32 %v174, %v234
      %v237 = vmul.f32 %v175, %v234
      %v238 = vadd.f32 %v226, %v236
      %v239 = vadd.f32 %v227, %v237
      %s240 = scalar_lea.vmem %s1, 4
      %v241 = vld [vmem:[%s240] sm:$0x1]
      %v243 = vlaneseq
      %v244 = vshrl.u32 %v243, 7
      %v245 = vsub.s32 0, %v244
      %v246 = vrot.slane %v241, %v245
      %v248 = vmul.f32 %v174, %v246
      %v249 = vmul.f32 %v175, %v246
      %v252 = vrot.slane %v248, 5
      %v253 = vrot.slane %v252, 4
      %v254 = vrot.slane %v249, 5
      %v255 = vrot.slane %v254, 4
      %v258 = vadd.f32 %v238, %v253
      %v259 = vadd.f32 %v239, %v255
      %s260 = scalar_lea.vmem %s1, 5
      %v261 = vld [vmem:[%s260] sm:$0x1]
      %v263 = vlaneseq
      %v264 = vshrl.u32 %v263, 7
      %v265 = vsub.s32 0, %v264
      %v266 = vrot.slane %v261, %v265
      %v268 = vmul.f32 %v174, %v266
      %v269 = vmul.f32 %v175, %v266
      %v272 = vrot.slane %v268, 6
      %v273 = vrot.slane %v272, 4
      %v274 = vrot.slane %v269, 6
      %v275 = vrot.slane %v274, 4
      %v278 = vadd.f32 %v258, %v273
      %v279 = vadd.f32 %v259, %v275
      %s280 = scalar_lea.vmem %s1, 6
      %v281 = vld [vmem:[%s280] sm:$0x1]
      %v283 = vlaneseq
      %v284 = vshrl.u32 %v283, 7
      %v285 = vsub.s32 0, %v284
      %v286 = vrot.slane %v281, %v285
      %v288 = vmul.f32 %v175, %v286
      %v289 = vmul.f32 %v176, %v286
      %v290 = vadd.f32 %v278, %v288
      %v291 = vadd.f32 %v279, %v289
      %s292 = scalar_lea.vmem %s1, 7
      %v293 = vld [vmem:[%s292] sm:$0x1]
      %v295 = vlaneseq
      %v296 = vshrl.u32 %v295, 7
      %v297 = vsub.s32 0, %v296
      %v298 = vrot.slane %v293, %v297
      %v300 = vmul.f32 %v175, %v298
      %v301 = vmul.f32 %v176, %v298
      %v304 = vrot.slane %v300, 5
      %v305 = vrot.slane %v304, 4
      %v306 = vrot.slane %v301, 5
      %v307 = vrot.slane %v306, 4
      %v310 = vadd.f32 %v290, %v305
      %v311 = vadd.f32 %v291, %v307
      %s312 = scalar_lea.vmem %s1, 8
      %v313 = vld [vmem:[%s312] sm:$0x1]
      %v315 = vlaneseq
      %v316 = vshrl.u32 %v315, 7
      %v317 = vsub.s32 0, %v316
      %v318 = vrot.slane %v313, %v317
      %v320 = vmul.f32 %v175, %v318
      %v321 = vmul.f32 %v176, %v318
      %v324 = vrot.slane %v320, 6
      %v325 = vrot.slane %v324, 4
      %v326 = vrot.slane %v321, 6
      %v327 = vrot.slane %v326, 4
      %v330 = vadd.f32 %v310, %v325
      %v331 = vadd.f32 %v311, %v327
      %v332 = vld [vmem:[%s2] sm:$0x1]
      %v334 = vlaneseq
      %v335 = vshrl.u32 %v334, 7
      %v336 = vsub.s32 0, %v335
      %v337 = vrot.slane %v332, %v336
      %v339 = vadd.f32 %v330, %v337
      %v340 = vadd.f32 %v331, %v337
      %v341 = vpack.c.bf16 %v339, %v339
      %v342 = vpack.c.bf16 %v340, %v340
      %vm343 = vcmask 942080
      %344 = vst.msk [vmem:[%s168] sm:$0x1] %vm343, %v341
      %345 = vst.msk [vmem:[%s168 + $0x1] sm:$0x1] %vm343, %v342
      %p346 = scmp.lt.s32.totalorder %s14, 1
      %s347 = scalar_select %p346, %s14, 1
      %s348 = smul.addr %s347, 2
      %s349 = scalar_lea.vmem %s3, %s348
      // Predicated region
      $region33: #{reranking_shufflenet_forward.80} parent=31 // pred_check
        %p350 = pneg %p100
      $region34: #{reranking_shufflenet_forward.80} parent=31 // pred_check_branch
        %352 = sbr.rel (%p350) target = $region36
      $region35: #{reranking_shufflenet_forward.80} parent=31 // pred_region
        _
      $region36: #{reranking_shufflenet_forward.80} parent=31 // pred_fallthru
        _
    $region32: #{reranking_shufflenet_forward.80} parent=5 // pred_fallthru
      _
    %p353 = scmp.le.s32.totalorder 2, %s9
    // Predicated region
    $region37: #{reranking_shufflenet_forward.80} parent=5 // pred_check
      %p354 = pneg %p353
    $region38: #{reranking_shufflenet_forward.80} parent=5 // pred_check_branch
      %356 = sbr.rel (%p354) target = $region40
    $region39: #{reranking_shufflenet_forward.80} parent=5 // pred_region
      %s357 = ssub.s32 %s9, 2
      // Predicated region
      $region41: #{reranking_shufflenet_forward.80} parent=39 // pred_check
        %p358 = pneg %p106
      $region42: #{reranking_shufflenet_forward.80} parent=39 // pred_check_branch
        %360 = sbr.rel (%p358) target = $region44
      $region43: #{reranking_shufflenet_forward.80} parent=39 // pred_region
        %p361 = scmp.lt.s32.totalorder %s15, 1
        %s362 = scalar_select %p361, %s15, 1
        %s363 = smul.addr %s362, 2
        %s364 = scalar_lea.vmem %s3, %s363
      $region44: #{reranking_shufflenet_forward.80} parent=39 // pred_fallthru
        _
    $region40: #{reranking_shufflenet_forward.80} parent=5 // pred_fallthru
      _
  $region6: #{reranking_shufflenet_forward.80} parent=0 // loop_footer
    %s13 = sadd.s32 1, %s9
  $region7: #{reranking_shufflenet_forward.80} parent=0 // loop_footer_branch
    %8 = sbr.rel target = $region3
  $region8: #{reranking_shufflenet_forward.80} parent=0 // loop_exit
    _

// kernel: reranking_shufflenet_forward.102
$region0: #{reranking_shufflenet_forward.102}
  #allocation0 [shape = 'u32[]', space=smem, size = 0x4, offset = 0x4, fixed_abs, tag = 'smem constant byte address 0x4 - core index']
  #allocation1 [shape = 'u32[144,128]{1,0:T(1,128)}', space=vmem, size = 0x12000, scoped, tag = 'internal scratch']
  %s0 = inlined_call_operand.vmem [shape: bf16[8,232], index: 0, kind: input, shape index: {}]
  %s1 = inlined_call_operand.vmem [shape: bf16[232,232], index: 1, kind: input, shape index: {}]
  %s2 = inlined_call_operand.vmem [shape: f32[1,232], index: 2, kind: input, shape index: {}]
  %s3 = inlined_call_operand.vmem [shape: bf16[8,232], index: 3, kind: output, shape index: {}]
  %s4 = sld [smem:[#allocation0]]
  $region22: #{reranking_shufflenet_forward.102} parent=0
    _
  %s6 = ssub.s32 1, %s4
  %s7 = scalar_select 0, %s6, %s4
  // Predicated region
  $region2: #{reranking_shufflenet_forward.102} parent=0 // pred_check
    _
  $region3: #{reranking_shufflenet_forward.102} parent=0 // pred_check_branch
    %9 = sbr.rel (0) target = $region5
  $region4: #{reranking_shufflenet_forward.102} parent=0 // pred_region
    _
  $region5: #{reranking_shufflenet_forward.102} parent=0 // pred_fallthru
    _
  // Predicated region
  $region6: #{reranking_shufflenet_forward.102} parent=0 // pred_check
    _
  $region7: #{reranking_shufflenet_forward.102} parent=0 // pred_check_branch
    %11 = sbr.rel (0) target = $region9
  $region8: #{reranking_shufflenet_forward.102} parent=0 // pred_region
    _
  $region9: #{reranking_shufflenet_forward.102} parent=0 // pred_fallthru
    _
  // Predicated region
  $region10: #{reranking_shufflenet_forward.102} parent=0 // pred_check
    _
  $region11: #{reranking_shufflenet_forward.102} parent=0 // pred_check_branch
    %13 = sbr.rel (0) target = $region13
  $region12: #{reranking_shufflenet_forward.102} parent=0 // pred_region
    _
  $region13: #{reranking_shufflenet_forward.102} parent=0 // pred_fallthru
    _
  %v15 = vld [vmem:[%s0] sm:$0xff]
  %v16 = vld [vmem:[%s1] sm:$0xff]
  %v17 = vld [vmem:[%s1 + $0x8] sm:$0xff]
  %v18 = vld [vmem:[%s1 + $0x10] sm:$0xff]
  %v19 = vld [vmem:[%s1 + $0x18] sm:$0xff]
  %v20 = vld [vmem:[%s1 + $0x20] sm:$0xff]
  %v21 = vld [vmem:[%s1 + $0x28] sm:$0xff]
  %v22 = vld [vmem:[%s1 + $0x30] sm:$0xff]
  %v23 = vld [vmem:[%s1 + $0x38] sm:$0xff]
  %v24 = vld [vmem:[%s1 + $0x40] sm:$0xff]
  %v25 = vld [vmem:[%s1 + $0x48] sm:$0xff]
  %v26 = vld [vmem:[%s1 + $0x50] sm:$0xff]
  %v27 = vld [vmem:[%s1 + $0x58] sm:$0xff]
  %v28 = vld [vmem:[%s1 + $0x60] sm:$0xff]
  %v29 = vld [vmem:[%s1 + $0x68] sm:$0xff]
  %v30 = vld [vmem:[%s1 + $0x70] sm:$0xff]
  %v31 = vld [vmem:[%s1 + $0x78] sm:$0xff]
  %v32 = vld [vmem:[%s1 + $0x80] sm:$0xff]
  %v33 = vld [vmem:[%s1 + $0x88] sm:$0xff]
  %v34 = vld [vmem:[%s1 + $0x90] sm:$0xff]
  %v35 = vld [vmem:[%s1 + $0x98] sm:$0xff]
  %v36 = vld [vmem:[%s1 + $0xa0] sm:$0xff]
  %v37 = vld [vmem:[%s1 + $0xa8] sm:$0xff]
  %v38 = vld [vmem:[%s1 + $0xb0] sm:$0xff]
  %v39 = vld [vmem:[%s1 + $0xb8] sm:$0xff]
  %v40 = vld [vmem:[%s1 + $0xc0] sm:$0xff]
  %v41 = vld [vmem:[%s1 + $0xc8] sm:$0xff]
  %v42 = vld [vmem:[%s1 + $0xd0] sm:$0xff]
  %v43 = vld [vmem:[%s1 + $0xd8] sm:$0xff]
  %v44 = vld [vmem:[%s1 + $0xe0] sm:$0xff]
  %v45 = vld [vmem:[%s2] sm:$0x3]
  %v47 = vlaneseq
  %v48 = vshrl.u32 %v47, 7
  %v49 = vsub.s32 0, %v48
  %v50 = vrot.slane %v45, %v49
  %v51 = vlaneseq
  %v52 = vshrl.u32 %v51, 7
  %v53 = vsub.s32 1, %v52
  %v54 = vrot.slane %v45, %v53
  %v58 = vunpack.c.l.b16 %v15
  %v59 = vunpack.c.h.b16 %v15
  %v60 = vpack.c.b16 %v58, %v58
  %v61 = vpack.c.b16 %v59, %v59
  %v92 = vunpack.c.l.b16 %v16
  %v93 = vunpack.c.h.b16 %v16
  %v94 = vunpack.c.l.b16 %v17
  %v95 = vunpack.c.h.b16 %v17
  %v96 = vunpack.c.l.b16 %v18
  %v97 = vunpack.c.h.b16 %v18
  %v98 = vunpack.c.l.b16 %v19
  %v99 = vunpack.c.h.b16 %v19
  %v100 = vunpack.c.l.b16 %v20
  %v101 = vunpack.c.h.b16 %v20
  %v102 = vunpack.c.l.b16 %v21
  %v103 = vunpack.c.h.b16 %v21
  %v104 = vunpack.c.l.b16 %v22
  %v105 = vunpack.c.h.b16 %v22
  %v106 = vunpack.c.l.b16 %v23
  %v107 = vunpack.c.h.b16 %v23
  %v108 = vunpack.c.l.b16 %v24
  %v109 = vunpack.c.h.b16 %v24
  %v110 = vunpack.c.l.b16 %v25
  %v111 = vunpack.c.h.b16 %v25
  %v112 = vunpack.c.l.b16 %v26
  %v113 = vunpack.c.h.b16 %v26
  %v114 = vunpack.c.l.b16 %v27
  %v115 = vunpack.c.h.b16 %v27
  %v116 = vunpack.c.l.b16 %v28
  %v117 = vunpack.c.h.b16 %v28
  %v118 = vunpack.c.l.b16 %v29
  %v119 = vunpack.c.h.b16 %v29
  %v120 = vunpack.c.l.b16 %v30
  %v121 = vunpack.c.h.b16 %v30
  %v122 = vunpack.c.l.b16 %v31
  %v123 = vunpack.c.h.b16 %v31
  %v124 = vunpack.c.l.b16 %v32
  %v125 = vunpack.c.h.b16 %v32
  %v126 = vunpack.c.l.b16 %v33
  %v127 = vunpack.c.h.b16 %v33
  %v128 = vunpack.c.l.b16 %v34
  %v129 = vunpack.c.h.b16 %v34
  %v130 = vunpack.c.l.b16 %v35
  %v131 = vunpack.c.h.b16 %v35
  %v132 = vunpack.c.l.b16 %v36
  %v133 = vunpack.c.h.b16 %v36
  %v134 = vunpack.c.l.b16 %v37
  %v135 = vunpack.c.h.b16 %v37
  %v136 = vunpack.c.l.b16 %v38
  %v137 = vunpack.c.h.b16 %v38
  %v138 = vunpack.c.l.b16 %v39
  %v139 = vunpack.c.h.b16 %v39
  %v140 = vunpack.c.l.b16 %v40
  %v141 = vunpack.c.h.b16 %v40
  %v142 = vunpack.c.l.b16 %v41
  %v143 = vunpack.c.h.b16 %v41
  %v144 = vunpack.c.l.b16 %v42
  %v145 = vunpack.c.h.b16 %v42
  %v146 = vunpack.c.l.b16 %v43
  %v147 = vunpack.c.h.b16 %v43
  %v148 = vunpack.c.l.b16 %v44
  %v149 = vunpack.c.h.b16 %v44
  %v150 = vpack.c.b16 %v94, %v92
  %v151 = vpack.c.b16 %v95, %v93
  %v152 = vpack.c.b16 %v98, %v96
  %v153 = vpack.c.b16 %v99, %v97
  %v154 = vpack.c.b16 %v102, %v100
  %v155 = vpack.c.b16 %v103, %v101
  %v156 = vpack.c.b16 %v106, %v104
  %v157 = vpack.c.b16 %v107, %v105
  %v158 = vpack.c.b16 %v110, %v108
  %v159 = vpack.c.b16 %v111, %v109
  %v160 = vpack.c.b16 %v114, %v112
  %v161 = vpack.c.b16 %v115, %v113
  %v162 = vpack.c.b16 %v118, %v116
  %v163 = vpack.c.b16 %v119, %v117
  %v164 = vpack.c.b16 %v122, %v120
  %v165 = vpack.c.b16 %v123, %v121
  %v166 = vpack.c.b16 %v126, %v124
  %v167 = vpack.c.b16 %v127, %v125
  %v168 = vpack.c.b16 %v130, %v128
  %v169 = vpack.c.b16 %v131, %v129
  %v170 = vpack.c.b16 %v134, %v132
  %v171 = vpack.c.b16 %v135, %v133
  %v172 = vpack.c.b16 %v138, %v136
  %v173 = vpack.c.b16 %v139, %v137
  %v174 = vpack.c.b16 %v142, %v140
  %v175 = vpack.c.b16 %v143, %v141
  %v176 = vpack.c.b16 %v146, %v144
  %v177 = vpack.c.b16 %v147, %v145
  %v178 = vpack.c.b16 %v148, %v148
  %v179 = vpack.c.b16 %v149, %v149
  %vm208 = vcmask 850944
  %v210 = vsel %vm208, %v61, 0
  %vm212 = vcmask 1043456
  %v214 = vsel %vm212, %v178, 0
  %v217 = vsel %vm212, %v179, 0
  %219 = vmatprep.subr.bf16.mxu0 %v151
  %220 = vmatpush1.bf16.msra.mxu0 %v150
  %221 = vmatprep.subr.bf16.mxu0 %v153
  %222 = vmatpush1.bf16.msra.mxu0 %v152
  %223 = vmatprep.subr.bf16.mxu0 %v155
  %224 = vmatpush1.bf16.msra.mxu0 %v154
  %225 = vmatprep.subr.bf16.mxu0 %v157
  %226 = vmatpush1.bf16.msra.mxu0 %v156
  %227 = vmatprep.subr.bf16.mxu0 %v159
  %228 = vmatpush1.bf16.msra.mxu0 %v158
  %229 = vmatprep.subr.bf16.mxu0 %v161
  %230 = vmatpush1.bf16.msra.mxu0 %v160
  %231 = vmatprep.subr.bf16.mxu0 %v163
  %232 = vmatpush1.bf16.msra.mxu0 %v162
  %233 = vmatprep.subr.bf16.mxu0 %v165
  %234 = vmatpush1.bf16.msra.mxu0 %v164
  %235 = vmatprep.subr.bf16.mxu0 %v167
  %236 = vmatpush1.bf16.msra.mxu0 %v166
  %237 = vmatprep.subr.bf16.mxu0 %v169
  %238 = vmatpush1.bf16.msra.mxu0 %v168
  %239 = vmatprep.subr.bf16.mxu0 %v171
  %240 = vmatpush1.bf16.msra.mxu0 %v170
  %241 = vmatprep.subr.bf16.mxu0 %v173
  %242 = vmatpush1.bf16.msra.mxu0 %v172
  %243 = vmatprep.subr.bf16.mxu0 %v175
  %244 = vmatpush1.bf16.msra.mxu0 %v174
  %245 = vmatprep.subr.bf16.mxu0 %v177
  %246 = vmatpush1.bf16.msra.mxu0 %v176
  %247 = vmatprep.subr.bf16.mxu0 %v217
  %248 = vmatpush1.bf16.msra.mxu0 %v214
  %249 = vmatprep.subr.bf16.mxu0 0
  %250 = vmatpush1.bf16.msra.mxu0 0
  %251 = vmatprep.mubr.bf16.mxu0 %v210
  %252 = vmatmul.mubr.bf16.gmra.mrb[0].mxu0 %v60
  %v253 = vpop.f32.mrb[0].mxu0
  %v254 = vadd.f32 %v50, %v253
  %v255 = vpop.f32.mrb[0].mxu0
  %v256 = vadd.f32 %v54, %v255
  %v257 = vpop.f32.mrb[0].mxu0
  %v258 = vpop.f32.mrb[0].mxu0
  %259 = vdwg.mxu0
  %v260 = vmax.f32 %v254, 0.0
  %v261 = vmax.f32 %v256, 0.0
  %v262 = vpack.c.bf16 %v260, %v260
  %v263 = vpack.c.bf16 %v261, %v261
  %v266 = vunpack.c.l.b16 %v262
  %v267 = vunpack.c.l.b16 %v263
  %v268 = vpack.c.b16 %v267, %v266
  %vm270 = vcmask 850948
  %vm271 = vmor %vm270, %vm212
  %272 = vst.msk [vmem:[%s3] sm:$0xff] %vm271, %v268
  // Predicated region
  $region14: #{reranking_shufflenet_forward.102} parent=0 // pred_check
    _
  $region15: #{reranking_shufflenet_forward.102} parent=0 // pred_check_branch
    %274 = sbr.rel (0) target = $region17
  $region16: #{reranking_shufflenet_forward.102} parent=0 // pred_region
    _
  $region17: #{reranking_shufflenet_forward.102} parent=0 // pred_fallthru
    _
  // Predicated region
  $region18: #{reranking_shufflenet_forward.102} parent=0 // pred_check
    _
  $region19: #{reranking_shufflenet_forward.102} parent=0 // pred_check_branch
    %276 = sbr.rel (0) target = $region21
  $region20: #{reranking_shufflenet_forward.102} parent=0 // pred_region
    _
  $region21: #{reranking_shufflenet_forward.102} parent=0 // pred_fallthru
    _

// kernel: reranking_shufflenet_forward.103
$region0: #{reranking_shufflenet_forward.103}
  #allocation0 [shape = 'u32[]', space=smem, size = 0x4, offset = 0x4, fixed_abs, tag = 'smem constant byte address 0x4 - core index']
  #allocation1 [shape = 'u32[144,128]{1,0:T(1,128)}', space=vmem, size = 0x12000, scoped, tag = 'internal scratch']
  %s0 = inlined_call_operand.vmem [shape: bf16[8,2,2,232], index: 0, kind: input, shape index: {}]
  %s1 = inlined_call_operand.vmem [shape: f32[9,1,232], index: 1, kind: input, shape index: {}]
  %s2 = inlined_call_operand.vmem [shape: f32[1,232], index: 2, kind: input, shape index: {}]
  %s3 = inlined_call_operand.vmem [shape: bf16[2,1,1,232], index: 3, kind: output, shape index: {}]
  %s4 = sld [smem:[#allocation0]]
  $region45: #{reranking_shufflenet_forward.103} parent=0
    _
  %s6 = ssub.s32 1, %s4
  %s7 = scalar_select 0, %s6, %s4
  loop: start=0, step=1, limit=4
  $region2: #{reranking_shufflenet_forward.103} parent=0 // loop_pre_header
    _
  $region3: #{reranking_shufflenet_forward.103} parent=0 // loop_header
    %s9 = sphi 0, %s13
    %p10 = scmp.ge.s32.totalorder %s9, 4
    %s19 = sphi 0, %s21
    %s22 = sphi 0, %s19
    %s23 = sphi 0, %s22
    %s39 = sphi 0, %s23
    %s43 = sphi 0, %s43
    %s45 = sphi 0, %s43
    %s46 = sphi 0, %s45
    %s60 = sphi 0, %s46
    %s64 = sphi 0, %s64
    %s66 = sphi 0, %s64
    %s67 = sphi 0, %s66
    %s81 = sphi 0, %s67
    %s87 = sphi 0, %s89
    %s90 = sphi 0, %s87
    %s91 = sphi 0, %s90
    %s107 = sphi 0, %s91
  $region4: #{reranking_shufflenet_forward.103} parent=0 // loop_header_branch
    %12 = sbr.rel (%p10) target = $region8
  $region5: #{reranking_shufflenet_forward.103} parent=0 // loop_body
    %s14 = ssub.s32 %s9, 1
    %s15 = ssub.s32 %s9, 2
    %s16 = sadd.s32 %s9, 1
    %s17 = ssub.s32 %s9, %s16
    %p18 = scmp.eq.s32.totalorder %s17, 0
    %s20 = sadd.s32 %s19, 1
    %s21 = scalar_select %p18, %s19, %s20
    %p24 = pneg %p18
    %p25 = scmp.eq.s32.totalorder %s9, 1
    %p26 = por %p24, %p25
    %p27 = scmp.ne.s32.totalorder %s19, %s22
    %p28 = scmp.eq.s32.totalorder %s9, 0
    %p29 = por %p27, %p28
    %p30 = scmp.ne.s32.totalorder %s19, %s22
    %p31 = scmp.eq.s32.totalorder %s14, 1
    %p32 = por %p30, %p31
    %p33 = scmp.ne.s32.totalorder %s22, %s23
    %p34 = scmp.eq.s32.totalorder %s14, 0
    %p35 = por %p33, %p34
    %p36 = scmp.ne.s32.totalorder %s22, %s23
    %p37 = scmp.eq.s32.totalorder %s15, 1
    %p38 = por %p36, %p37
    %p40 = scmp.ne.s32.totalorder %s23, %s39
    %p41 = scmp.eq.s32.totalorder %s15, 0
    %p42 = por %p40, %p41
    %s44 = sadd.s32 %s43, 1
    %p47 = scmp.eq.s32.totalorder %s9, 1
    %p48 = scmp.ne.s32.totalorder %s43, %s45
    %p49 = scmp.eq.s32.totalorder %s9, 0
    %p50 = por %p48, %p49
    %p51 = scmp.ne.s32.totalorder %s43, %s45
    %p52 = scmp.eq.s32.totalorder %s14, 1
    %p53 = por %p51, %p52
    %p54 = scmp.ne.s32.totalorder %s45, %s46
    %p55 = scmp.eq.s32.totalorder %s14, 0
    %p56 = por %p54, %p55
    %p57 = scmp.ne.s32.totalorder %s45, %s46
    %p58 = scmp.eq.s32.totalorder %s15, 1
    %p59 = por %p57, %p58
    %p61 = scmp.ne.s32.totalorder %s46, %s60
    %p62 = scmp.eq.s32.totalorder %s15, 0
    %p63 = por %p61, %p62
    %s65 = sadd.s32 %s64, 1
    %p68 = scmp.eq.s32.totalorder %s9, 1
    %p69 = scmp.ne.s32.totalorder %s64, %s66
    %p70 = scmp.eq.s32.totalorder %s9, 0
    %p71 = por %p69, %p70
    %p72 = scmp.ne.s32.totalorder %s64, %s66
    %p73 = scmp.eq.s32.totalorder %s14, 1
    %p74 = por %p72, %p73
    %p75 = scmp.ne.s32.totalorder %s66, %s67
    %p76 = scmp.eq.s32.totalorder %s14, 0
    %p77 = por %p75, %p76
    %p78 = scmp.ne.s32.totalorder %s66, %s67
    %p79 = scmp.eq.s32.totalorder %s15, 1
    %p80 = por %p78, %p79
    %p82 = scmp.ne.s32.totalorder %s67, %s81
    %p83 = scmp.eq.s32.totalorder %s15, 0
    %p84 = por %p82, %p83
    %s85 = ssub.s32 %s9, %s16
    %p86 = scmp.eq.s32.totalorder %s85, 0
    %s88 = sadd.s32 %s87, 1
    %s89 = scalar_select %p86, %s87, %s88
    %p92 = pneg %p86
    %p93 = scmp.eq.s32.totalorder %s9, 1
    %p94 = por %p92, %p93
    %p95 = scmp.ne.s32.totalorder %s87, %s90
    %p96 = scmp.eq.s32.totalorder %s9, 0
    %p97 = por %p95, %p96
    %p98 = scmp.ne.s32.totalorder %s87, %s90
    %p99 = scmp.eq.s32.totalorder %s14, 1
    %p100 = por %p98, %p99
    %p101 = scmp.ne.s32.totalorder %s90, %s91
    %p102 = scmp.eq.s32.totalorder %s14, 0
    %p103 = por %p101, %p102
    %p104 = scmp.ne.s32.totalorder %s90, %s91
    %p105 = scmp.eq.s32.totalorder %s15, 1
    %p106 = por %p104, %p105
    %p108 = scmp.ne.s32.totalorder %s91, %s107
    %p109 = scmp.eq.s32.totalorder %s15, 0
    %p110 = por %p108, %p109
    %p111 = scmp.le.s32.totalorder 1, %s9
    %p112 = scmp.lt.s32.totalorder %s9, 3
    %p113 = pnand %p111, %p112
    %p114 = pneg %p113
    // Predicated region
    $region9: #{reranking_shufflenet_forward.103} parent=5 // pred_check
      _
    $region10: #{reranking_shufflenet_forward.103} parent=5 // pred_check_branch
      %116 = sbr.rel (%p113) target = $region12
    $region11: #{reranking_shufflenet_forward.103} parent=5 // pred_region
      %s117 = ssub.s32 %s9, 1
      // Predicated region
      $region13: #{reranking_shufflenet_forward.103} parent=11 // pred_check
        %p118 = pneg %p56
      $region14: #{reranking_shufflenet_forward.103} parent=11 // pred_check_branch
        %120 = sbr.rel (%p118) target = $region16
      $region15: #{reranking_shufflenet_forward.103} parent=11 // pred_region
        _
      $region16: #{reranking_shufflenet_forward.103} parent=11 // pred_fallthru
        _
      // Predicated region
      $region17: #{reranking_shufflenet_forward.103} parent=11 // pred_check
        %p121 = pneg %p77
      $region18: #{reranking_shufflenet_forward.103} parent=11 // pred_check_branch
        %123 = sbr.rel (%p121) target = $region20
      $region19: #{reranking_shufflenet_forward.103} parent=11 // pred_region
        _
      $region20: #{reranking_shufflenet_forward.103} parent=11 // pred_fallthru
        _
    $region12: #{reranking_shufflenet_forward.103} parent=5 // pred_fallthru
      _
    %p124 = scmp.lt.s32.totalorder %s9, 2
    // Predicated region
    $region21: #{reranking_shufflenet_forward.103} parent=5 // pred_check
      %p125 = pneg %p124
    $region22: #{reranking_shufflenet_forward.103} parent=5 // pred_check_branch
      %127 = sbr.rel (%p125) target = $region24
    $region23: #{reranking_shufflenet_forward.103} parent=5 // pred_region
      // Predicated region
      $region25: #{reranking_shufflenet_forward.103} parent=23 // pred_check
        %p128 = pneg %p29
      $region26: #{reranking_shufflenet_forward.103} parent=23 // pred_check_branch
        %130 = sbr.rel (%p128) target = $region28
      $region27: #{reranking_shufflenet_forward.103} parent=23 // pred_region
        %s131 = smul.u32 4, %s9
        %p132 = scmp.lt.s32.totalorder %s131, 7
        %s133 = scalar_select %p132, %s131, 7
        %s134 = smul.addr %s133, 4
        %s135 = scalar_lea.vmem %s0, %s134
        %s136 = smul.u32 4, %s9
      $region28: #{reranking_shufflenet_forward.103} parent=23 // pred_fallthru
        _
    $region24: #{reranking_shufflenet_forward.103} parent=5 // pred_fallthru
      _
    %p137 = scmp.le.s32.totalorder 1, %s9
    %p138 = scmp.lt.s32.totalorder %s9, 3
    %p139 = pnand %p137, %p138
    %p140 = pneg %p139
    // Predicated region
    $region29: #{reranking_shufflenet_forward.103} parent=5 // pred_check
      _
    $region30: #{reranking_shufflenet_forward.103} parent=5 // pred_check_branch
      %142 = sbr.rel (%p139) target = $region32
    $region31: #{reranking_shufflenet_forward.103} parent=5 // pred_region
      %s143 = ssub.s32 %s9, 1
      %s144 = smul.u32 4, %s14
      %p145 = scmp.lt.s32.totalorder %s144, 7
      %s146 = scalar_select %p145, %s144, 7
      %s147 = smul.addr %s146, 4
      %s148 = scalar_lea.vmem %s0, %s147
      %p149 = pneg %p35
      %p150 = pneg %p32
      %p151 = pneg %p56
      %p152 = pneg %p53
      %p153 = pneg %p77
      %p154 = pneg %p74
      %p155 = pneg %p103
      %p156 = pneg %p100
      %p157 = scmp.lt.s32.totalorder %s14, 1
      %s158 = scalar_select %p157, %s14, 1
      %s159 = smul.addr %s158, 2
      %s160 = scalar_lea.vmem %s3, %s159
      %s161 = smul.u32 4, %s14
      %p162 = scmp.lt.s32.totalorder %s161, 7
      %s163 = scalar_select %p162, %s161, 7
      %s164 = smul.addr %s163, 4
      %s165 = scalar_lea.vmem %s0, %s164
      %s166 = smul.u32 4, %s14
      %p167 = scmp.lt.s32.totalorder %s14, 1
      %s168 = scalar_select %p167, %s14, 1
      %s169 = smul.addr %s168, 2
      %s170 = scalar_lea.vmem %s3, %s169
      %v171 = vld [vmem:[%s165] sm:$0x3]
      %v172 = vld [vmem:[%s165 + $0x2] sm:$0x3]
      %v173 = vunpack.c.l.bf16 %v171
      %v174 = vunpack.c.l.bf16 %v172
      %v175 = vld [vmem:[%s1] sm:$0x3]
      %v178 = vunpack.c.l.s4 857870592
      %v179 = vunpack.c.0.s8 %v178
      %v180 = vlaneseq
      %v181 = vshrl.u32 %v180, 7
      %v182 = vsub.s32 %v179, %v181
      %v183 = vrot.slane %v175, %v182
      %v185 = vmul.f32 %v173, %v183
      %v186 = vadd.f32 %v185, 0.0
      %s187 = scalar_lea.vmem %s165, 4
      %v188 = vld [vmem:[%s187] sm:$0x3]
      %v189 = vld [vmem:[%s187 + $0x2] sm:$0x3]
      %v190 = vunpack.c.l.bf16 %v188
      %v191 = vunpack.c.l.bf16 %v189
      %s192 = scalar_lea.vmem %s1, 2
      %v193 = vld [vmem:[%s192] sm:$0x3]
      %v196 = vunpack.c.l.s4 857870592
      %v197 = vunpack.c.0.s8 %v196
      %v198 = vlaneseq
      %v199 = vshrl.u32 %v198, 7
      %v200 = vsub.s32 %v197, %v199
      %v201 = vrot.slane %v193, %v200
      %v203 = vmul.f32 %v190, %v201
      %v204 = vadd.f32 %v186, %v203
      %s205 = scalar_lea.vmem %s1, 4
      %v206 = vld [vmem:[%s205] sm:$0x3]
      %v209 = vunpack.c.l.s4 857870592
      %v210 = vunpack.c.0.s8 %v209
      %v211 = vlaneseq
      %v212 = vshrl.u32 %v211, 7
      %v213 = vsub.s32 %v210, %v212
      %v214 = vrot.slane %v206, %v213
      %v216 = vmul.f32 %v173, %v214
      %v218 = vrot.slane %v216, 7
      %v219 = vrot.slane %v218, 2
      %v221 = vadd.f32 %v204, %v219
      %s222 = scalar_lea.vmem %s165, 8
      %v223 = vld [vmem:[%s222] sm:$0x3]
      %v224 = vunpack.c.l.bf16 %v223
      %s225 = scalar_lea.vmem %s1, 6
      %v226 = vld [vmem:[%s225] sm:$0x3]
      %v229 = vunpack.c.l.s4 857870592
      %v230 = vunpack.c.0.s8 %v229
      %v231 = vlaneseq
      %v232 = vshrl.u32 %v231, 7
      %v233 = vsub.s32 %v230, %v232
      %v234 = vrot.slane %v226, %v233
      %v236 = vmul.f32 %v224, %v234
      %v237 = vadd.f32 %v221, %v236
      %s238 = scalar_lea.vmem %s165, 12
      %v239 = vld [vmem:[%s238] sm:$0x3]
      %v240 = vunpack.c.l.bf16 %v239
      %s241 = scalar_lea.vmem %s1, 8
      %v242 = vld [vmem:[%s241] sm:$0x3]
      %v245 = vunpack.c.l.s4 857870592
      %v246 = vunpack.c.0.s8 %v245
      %v247 = vlaneseq
      %v248 = vshrl.u32 %v247, 7
      %v249 = vsub.s32 %v246, %v248
      %v250 = vrot.slane %v242, %v249
      %v252 = vmul.f32 %v240, %v250
      %v253 = vadd.f32 %v237, %v252
      %s254 = scalar_lea.vmem %s1, 10
      %v255 = vld [vmem:[%s254] sm:$0x3]
      %v258 = vunpack.c.l.s4 857870592
      %v259 = vunpack.c.0.s8 %v258
      %v260 = vlaneseq
      %v261 = vshrl.u32 %v260, 7
      %v262 = vsub.s32 %v259, %v261
      %v263 = vrot.slane %v255, %v262
      %v265 = vmul.f32 %v224, %v263
      %v267 = vrot.slane %v265, 7
      %v268 = vrot.slane %v267, 2
      %v270 = vadd.f32 %v253, %v268
      %s271 = scalar_lea.vmem %s1, 12
      %v272 = vld [vmem:[%s271] sm:$0x3]
      %v275 = vunpack.c.l.s4 857870592
      %v276 = vunpack.c.0.s8 %v275
      %v277 = vlaneseq
      %v278 = vshrl.u32 %v277, 7
      %v279 = vsub.s32 %v276, %v278
      %v280 = vrot.slane %v272, %v279
      %v282 = vmul.f32 %v174, %v280
      %v283 = vadd.f32 %v270, %v282
      %s284 = scalar_lea.vmem %s1, 14
      %v285 = vld [vmem:[%s284] sm:$0x3]
      %v288 = vunpack.c.l.s4 857870592
      %v289 = vunpack.c.0.s8 %v288
      %v290 = vlaneseq
      %v291 = vshrl.u32 %v290, 7
      %v292 = vsub.s32 %v289, %v291
      %v293 = vrot.slane %v285, %v292
      %v295 = vmul.f32 %v191, %v293
      %v296 = vadd.f32 %v283, %v295
      %s297 = scalar_lea.vmem %s1, 16
      %v298 = vld [vmem:[%s297] sm:$0x3]
      %v301 = vunpack.c.l.s4 857870592
      %v302 = vunpack.c.0.s8 %v301
      %v303 = vlaneseq
      %v304 = vshrl.u32 %v303, 7
      %v305 = vsub.s32 %v302, %v304
      %v306 = vrot.slane %v298, %v305
      %v308 = vmul.f32 %v174, %v306
      %v310 = vrot.slane %v308, 7
      %v311 = vrot.slane %v310, 2
      %v313 = vadd.f32 %v296, %v311
      %v314 = vld [vmem:[%s2] sm:$0x3]
      %v317 = vunpack.c.l.s4 857870592
      %v318 = vunpack.c.0.s8 %v317
      %v319 = vlaneseq
      %v320 = vshrl.u32 %v319, 7
      %v321 = vsub.s32 %v318, %v320
      %v322 = vrot.slane %v314, %v321
      %v324 = vadd.f32 %v313, %v322
      %v326 = vlaneseq
      %v327 = vshrl.u32 %v326, 7
      %v328 = vsub.s32 0, %v327
      %v329 = vrot.slane %v324, %v328
      %v330 = vlaneseq
      %v331 = vshrl.u32 %v330, 7
      %v332 = vsub.s32 2, %v331
      %v333 = vrot.slane %v324, %v332
      %v336 = vpack.c.bf16 %v329, %v329
      %v337 = vpack.c.bf16 %v333, %v333
      %v340 = vcombine.low %v336, %v337
      %v342 = vunpack.c.l.s4 1966171168
      %v343 = vunpack.c.0.s8 %v342
      %v344 = vlaneseq
      %v345 = vshrl.u32 %v344, 7
      %v346 = vsub.s32 %v343, %v345
      %v347 = vrot.slane %v340, %v346
      %v349 = vunpack.c.l.s4 1966171168
      %v350 = vunpack.c.0.s8 %v349
      %v351 = vlaneseq
      %v352 = vshrl.u32 %v351, 7
      %v353 = vsub.s32 %v350, %v352
      %v354 = vrot.slane %v347, %v353
      %vm356 = vcmask 1040384
      %vm357 = vsmask.f32 256
      %vm358 = vmand %vm356, %vm357
      %vm359 = vcmask 844801
      %vm360 = vsmask.f32 1280
      %vm361 = vmand %vm359, %vm360
      %vm362 = vmor %vm361, %vm358
      %v363 = vld [vmem:[%s170] sm:$0x3]
      %v364 = vsel %vm362, %v354, %v363
      %365 = vst [vmem:[%s170] sm:$0x3] %v364
      %p366 = scmp.lt.s32.totalorder %s14, 1
      %s367 = scalar_select %p366, %s14, 1
      %s368 = smul.addr %s367, 2
      %s369 = scalar_lea.vmem %s3, %s368
      // Predicated region
      $region33: #{reranking_shufflenet_forward.103} parent=31 // pred_check
        %p370 = pneg %p100
      $region34: #{reranking_shufflenet_forward.103} parent=31 // pred_check_branch
        %372 = sbr.rel (%p370) target = $region36
      $region35: #{reranking_shufflenet_forward.103} parent=31 // pred_region
        _
      $region36: #{reranking_shufflenet_forward.103} parent=31 // pred_fallthru
        _
    $region32: #{reranking_shufflenet_forward.103} parent=5 // pred_fallthru
      _
    %p373 = scmp.le.s32.totalorder 2, %s9
    // Predicated region
    $region37: #{reranking_shufflenet_forward.103} parent=5 // pred_check
      %p374 = pneg %p373
    $region38: #{reranking_shufflenet_forward.103} parent=5 // pred_check_branch
      %376 = sbr.rel (%p374) target = $region40
    $region39: #{reranking_shufflenet_forward.103} parent=5 // pred_region
      %s377 = ssub.s32 %s9, 2
      // Predicated region
      $region41: #{reranking_shufflenet_forward.103} parent=39 // pred_check
        %p378 = pneg %p106
      $region42: #{reranking_shufflenet_forward.103} parent=39 // pred_check_branch
        %380 = sbr.rel (%p378) target = $region44
      $region43: #{reranking_shufflenet_forward.103} parent=39 // pred_region
        %p381 = scmp.lt.s32.totalorder %s15, 1
        %s382 = scalar_select %p381, %s15, 1
        %s383 = smul.addr %s382, 2
        %s384 = scalar_lea.vmem %s3, %s383
      $region44: #{reranking_shufflenet_forward.103} parent=39 // pred_fallthru
        _
    $region40: #{reranking_shufflenet_forward.103} parent=5 // pred_fallthru
      _
  $region6: #{reranking_shufflenet_forward.103} parent=0 // loop_footer
    %s13 = sadd.s32 1, %s9
  $region7: #{reranking_shufflenet_forward.103} parent=0 // loop_footer_branch
    %8 = sbr.rel target = $region3
  $region8: #{reranking_shufflenet_forward.103} parent=0 // loop_exit
    _

// kernel: reranking_shufflenet_forward.106
$region0: #{reranking_shufflenet_forward.106}
  #allocation0 [shape = 'u32[]', space=smem, size = 0x4, offset = 0x4, fixed_abs, tag = 'smem constant byte address 0x4 - core index']
  #allocation1 [shape = 'u32[144,128]{1,0:T(1,128)}', space=vmem, size = 0x12000, scoped, tag = 'internal scratch']
  %s0 = inlined_call_operand.vmem [shape: bf16[2,3,3,232], index: 0, kind: input, shape index: {}]
  %s1 = inlined_call_operand.vmem [shape: f32[9,1,232], index: 1, kind: input, shape index: {}]
  %s2 = inlined_call_operand.vmem [shape: f32[1,232], index: 2, kind: input, shape index: {}]
  %s3 = inlined_call_operand.vmem [shape: bf16[2,1,1,232], index: 3, kind: output, shape index: {}]
  %s4 = sld [smem:[#allocation0]]
  $region45: #{reranking_shufflenet_forward.106} parent=0
    _
  %s6 = ssub.s32 1, %s4
  %s7 = scalar_select 0, %s6, %s4
  loop: start=0, step=1, limit=4
  $region2: #{reranking_shufflenet_forward.106} parent=0 // loop_pre_header
    _
  $region3: #{reranking_shufflenet_forward.106} parent=0 // loop_header
    %s9 = sphi 0, %s13
    %p10 = scmp.ge.s32.totalorder %s9, 4
    %s19 = sphi 0, %s21
    %s22 = sphi 0, %s19
    %s23 = sphi 0, %s22
    %s39 = sphi 0, %s23
    %s43 = sphi 0, %s43
    %s45 = sphi 0, %s43
    %s46 = sphi 0, %s45
    %s60 = sphi 0, %s46
    %s64 = sphi 0, %s64
    %s66 = sphi 0, %s64
    %s67 = sphi 0, %s66
    %s81 = sphi 0, %s67
    %s87 = sphi 0, %s89
    %s90 = sphi 0, %s87
    %s91 = sphi 0, %s90
    %s107 = sphi 0, %s91
  $region4: #{reranking_shufflenet_forward.106} parent=0 // loop_header_branch
    %12 = sbr.rel (%p10) target = $region8
  $region5: #{reranking_shufflenet_forward.106} parent=0 // loop_body
    %s14 = ssub.s32 %s9, 1
    %s15 = ssub.s32 %s9, 2
    %s16 = sadd.s32 %s9, 1
    %s17 = ssub.s32 %s9, %s16
    %p18 = scmp.eq.s32.totalorder %s17, 0
    %s20 = sadd.s32 %s19, 1
    %s21 = scalar_select %p18, %s19, %s20
    %p24 = pneg %p18
    %p25 = scmp.eq.s32.totalorder %s9, 1
    %p26 = por %p24, %p25
    %p27 = scmp.ne.s32.totalorder %s19, %s22
    %p28 = scmp.eq.s32.totalorder %s9, 0
    %p29 = por %p27, %p28
    %p30 = scmp.ne.s32.totalorder %s19, %s22
    %p31 = scmp.eq.s32.totalorder %s14, 1
    %p32 = por %p30, %p31
    %p33 = scmp.ne.s32.totalorder %s22, %s23
    %p34 = scmp.eq.s32.totalorder %s14, 0
    %p35 = por %p33, %p34
    %p36 = scmp.ne.s32.totalorder %s22, %s23
    %p37 = scmp.eq.s32.totalorder %s15, 1
    %p38 = por %p36, %p37
    %p40 = scmp.ne.s32.totalorder %s23, %s39
    %p41 = scmp.eq.s32.totalorder %s15, 0
    %p42 = por %p40, %p41
    %s44 = sadd.s32 %s43, 1
    %p47 = scmp.eq.s32.totalorder %s9, 1
    %p48 = scmp.ne.s32.totalorder %s43, %s45
    %p49 = scmp.eq.s32.totalorder %s9, 0
    %p50 = por %p48, %p49
    %p51 = scmp.ne.s32.totalorder %s43, %s45
    %p52 = scmp.eq.s32.totalorder %s14, 1
    %p53 = por %p51, %p52
    %p54 = scmp.ne.s32.totalorder %s45, %s46
    %p55 = scmp.eq.s32.totalorder %s14, 0
    %p56 = por %p54, %p55
    %p57 = scmp.ne.s32.totalorder %s45, %s46
    %p58 = scmp.eq.s32.totalorder %s15, 1
    %p59 = por %p57, %p58
    %p61 = scmp.ne.s32.totalorder %s46, %s60
    %p62 = scmp.eq.s32.totalorder %s15, 0
    %p63 = por %p61, %p62
    %s65 = sadd.s32 %s64, 1
    %p68 = scmp.eq.s32.totalorder %s9, 1
    %p69 = scmp.ne.s32.totalorder %s64, %s66
    %p70 = scmp.eq.s32.totalorder %s9, 0
    %p71 = por %p69, %p70
    %p72 = scmp.ne.s32.totalorder %s64, %s66
    %p73 = scmp.eq.s32.totalorder %s14, 1
    %p74 = por %p72, %p73
    %p75 = scmp.ne.s32.totalorder %s66, %s67
    %p76 = scmp.eq.s32.totalorder %s14, 0
    %p77 = por %p75, %p76
    %p78 = scmp.ne.s32.totalorder %s66, %s67
    %p79 = scmp.eq.s32.totalorder %s15, 1
    %p80 = por %p78, %p79
    %p82 = scmp.ne.s32.totalorder %s67, %s81
    %p83 = scmp.eq.s32.totalorder %s15, 0
    %p84 = por %p82, %p83
    %s85 = ssub.s32 %s9, %s16
    %p86 = scmp.eq.s32.totalorder %s85, 0
    %s88 = sadd.s32 %s87, 1
    %s89 = scalar_select %p86, %s87, %s88
    %p92 = pneg %p86
    %p93 = scmp.eq.s32.totalorder %s9, 1
    %p94 = por %p92, %p93
    %p95 = scmp.ne.s32.totalorder %s87, %s90
    %p96 = scmp.eq.s32.totalorder %s9, 0
    %p97 = por %p95, %p96
    %p98 = scmp.ne.s32.totalorder %s87, %s90
    %p99 = scmp.eq.s32.totalorder %s14, 1
    %p100 = por %p98, %p99
    %p101 = scmp.ne.s32.totalorder %s90, %s91
    %p102 = scmp.eq.s32.totalorder %s14, 0
    %p103 = por %p101, %p102
    %p104 = scmp.ne.s32.totalorder %s90, %s91
    %p105 = scmp.eq.s32.totalorder %s15, 1
    %p106 = por %p104, %p105
    %p108 = scmp.ne.s32.totalorder %s91, %s107
    %p109 = scmp.eq.s32.totalorder %s15, 0
    %p110 = por %p108, %p109
    %p111 = scmp.le.s32.totalorder 1, %s9
    %p112 = scmp.lt.s32.totalorder %s9, 3
    %p113 = pnand %p111, %p112
    %p114 = pneg %p113
    // Predicated region
    $region9: #{reranking_shufflenet_forward.106} parent=5 // pred_check
      _
    $region10: #{reranking_shufflenet_forward.106} parent=5 // pred_check_branch
      %116 = sbr.rel (%p113) target = $region12
    $region11: #{reranking_shufflenet_forward.106} parent=5 // pred_region
      %s117 = ssub.s32 %s9, 1
      // Predicated region
      $region13: #{reranking_shufflenet_forward.106} parent=11 // pred_check
        %p118 = pneg %p56
      $region14: #{reranking_shufflenet_forward.106} parent=11 // pred_check_branch
        %120 = sbr.rel (%p118) target = $region16
      $region15: #{reranking_shufflenet_forward.106} parent=11 // pred_region
        _
      $region16: #{reranking_shufflenet_forward.106} parent=11 // pred_fallthru
        _
      // Predicated region
      $region17: #{reranking_shufflenet_forward.106} parent=11 // pred_check
        %p121 = pneg %p77
      $region18: #{reranking_shufflenet_forward.106} parent=11 // pred_check_branch
        %123 = sbr.rel (%p121) target = $region20
      $region19: #{reranking_shufflenet_forward.106} parent=11 // pred_region
        _
      $region20: #{reranking_shufflenet_forward.106} parent=11 // pred_fallthru
        _
    $region12: #{reranking_shufflenet_forward.106} parent=5 // pred_fallthru
      _
    %p124 = scmp.lt.s32.totalorder %s9, 2
    // Predicated region
    $region21: #{reranking_shufflenet_forward.106} parent=5 // pred_check
      %p125 = pneg %p124
    $region22: #{reranking_shufflenet_forward.106} parent=5 // pred_check_branch
      %127 = sbr.rel (%p125) target = $region24
    $region23: #{reranking_shufflenet_forward.106} parent=5 // pred_region
      // Predicated region
      $region25: #{reranking_shufflenet_forward.106} parent=23 // pred_check
        %p128 = pneg %p29
      $region26: #{reranking_shufflenet_forward.106} parent=23 // pred_check_branch
        %130 = sbr.rel (%p128) target = $region28
      $region27: #{reranking_shufflenet_forward.106} parent=23 // pred_region
        %p131 = scmp.lt.s32.totalorder %s9, 1
        %s132 = scalar_select %p131, %s9, 1
        %s133 = smul.addr %s132, 6
        %s134 = smul.addr %s133, 2
        %s135 = scalar_lea.vmem %s0, %s134
      $region28: #{reranking_shufflenet_forward.106} parent=23 // pred_fallthru
        _
    $region24: #{reranking_shufflenet_forward.106} parent=5 // pred_fallthru
      _
    %p136 = scmp.le.s32.totalorder 1, %s9
    %p137 = scmp.lt.s32.totalorder %s9, 3
    %p138 = pnand %p136, %p137
    %p139 = pneg %p138
    // Predicated region
    $region29: #{reranking_shufflenet_forward.106} parent=5 // pred_check
      _
    $region30: #{reranking_shufflenet_forward.106} parent=5 // pred_check_branch
      %141 = sbr.rel (%p138) target = $region32
    $region31: #{reranking_shufflenet_forward.106} parent=5 // pred_region
      %s142 = ssub.s32 %s9, 1
      %p143 = scmp.lt.s32.totalorder %s14, 1
      %s144 = scalar_select %p143, %s14, 1
      %s145 = smul.addr %s144, 6
      %s146 = smul.addr %s145, 2
      %s147 = scalar_lea.vmem %s0, %s146
      %p148 = pneg %p35
      %p149 = pneg %p32
      %p150 = pneg %p56
      %p151 = pneg %p53
      %p152 = pneg %p77
      %p153 = pneg %p74
      %p154 = pneg %p103
      %p155 = pneg %p100
      %p156 = scmp.lt.s32.totalorder %s14, 1
      %s157 = scalar_select %p156, %s14, 1
      %s158 = smul.addr %s157, 2
      %s159 = scalar_lea.vmem %s3, %s158
      %p160 = scmp.lt.s32.totalorder %s14, 1
      %s161 = scalar_select %p160, %s14, 1
      %s162 = smul.addr %s161, 6
      %s163 = smul.addr %s162, 2
      %s164 = scalar_lea.vmem %s0, %s163
      %p165 = scmp.lt.s32.totalorder %s14, 1
      %s166 = scalar_select %p165, %s14, 1
      %s167 = smul.addr %s166, 2
      %s168 = scalar_lea.vmem %s3, %s167
      %v169 = vld [vmem:[%s164] sm:$0xf]
      %v170 = vld [vmem:[%s164 + $0x4] sm:$0xf]
      %v171 = vld [vmem:[%s164 + $0x8] sm:$0xf]
      %v172 = vunpack.c.l.bf16 %v169
      %v173 = vunpack.c.l.bf16 %v170
      %v174 = vunpack.c.l.bf16 %v171
      %v175 = vld [vmem:[%s1] sm:$0x3]
      %v178 = vunpack.c.l.s4 286326784
      %v179 = vunpack.c.0.s8 %v178
      %v180 = vlaneseq
      %v181 = vshrl.u32 %v180, 7
      %v182 = vsub.s32 %v179, %v181
      %v183 = vrot.slane %v175, %v182
      %v185 = vmul.f32 %v172, %v183
      %v186 = vadd.f32 %v185, 0.0
      %s187 = scalar_lea.vmem %s1, 2
      %v188 = vld [vmem:[%s187] sm:$0x3]
      %v191 = vunpack.c.l.s4 286326784
      %v192 = vunpack.c.0.s8 %v191
      %v193 = vlaneseq
      %v194 = vshrl.u32 %v193, 7
      %v195 = vsub.s32 %v192, %v194
      %v196 = vrot.slane %v188, %v195
      %v198 = vmul.f32 %v172, %v196
      %v200 = vrot.slane %v198, 5
      %v201 = vrot.slane %v200, 4
      %v203 = vadd.f32 %v186, %v201
      %s204 = scalar_lea.vmem %s1, 4
      %v205 = vld [vmem:[%s204] sm:$0x3]
      %v208 = vunpack.c.l.s4 286326784
      %v209 = vunpack.c.0.s8 %v208
      %v210 = vlaneseq
      %v211 = vshrl.u32 %v210, 7
      %v212 = vsub.s32 %v209, %v211
      %v213 = vrot.slane %v205, %v212
      %v215 = vmul.f32 %v172, %v213
      %v217 = vrot.slane %v215, 6
      %v218 = vrot.slane %v217, 4
      %v220 = vadd.f32 %v203, %v218
      %s221 = scalar_lea.vmem %s1, 6
      %v222 = vld [vmem:[%s221] sm:$0x3]
      %v225 = vunpack.c.l.s4 286326784
      %v226 = vunpack.c.0.s8 %v225
      %v227 = vlaneseq
      %v228 = vshrl.u32 %v227, 7
      %v229 = vsub.s32 %v226, %v228
      %v230 = vrot.slane %v222, %v229
      %v232 = vmul.f32 %v173, %v230
      %v233 = vadd.f32 %v220, %v232
      %s234 = scalar_lea.vmem %s1, 8
      %v235 = vld [vmem:[%s234] sm:$0x3]
      %v238 = vunpack.c.l.s4 286326784
      %v239 = vunpack.c.0.s8 %v238
      %v240 = vlaneseq
      %v241 = vshrl.u32 %v240, 7
      %v242 = vsub.s32 %v239, %v241
      %v243 = vrot.slane %v235, %v242
      %v245 = vmul.f32 %v173, %v243
      %v247 = vrot.slane %v245, 5
      %v248 = vrot.slane %v247, 4
      %v250 = vadd.f32 %v233, %v248
      %s251 = scalar_lea.vmem %s1, 10
      %v252 = vld [vmem:[%s251] sm:$0x3]
      %v255 = vunpack.c.l.s4 286326784
      %v256 = vunpack.c.0.s8 %v255
      %v257 = vlaneseq
      %v258 = vshrl.u32 %v257, 7
      %v259 = vsub.s32 %v256, %v258
      %v260 = vrot.slane %v252, %v259
      %v262 = vmul.f32 %v173, %v260
      %v264 = vrot.slane %v262, 6
      %v265 = vrot.slane %v264, 4
      %v267 = vadd.f32 %v250, %v265
      %s268 = scalar_lea.vmem %s1, 12
      %v269 = vld [vmem:[%s268] sm:$0x3]
      %v272 = vunpack.c.l.s4 286326784
      %v273 = vunpack.c.0.s8 %v272
      %v274 = vlaneseq
      %v275 = vshrl.u32 %v274, 7
      %v276 = vsub.s32 %v273, %v275
      %v277 = vrot.slane %v269, %v276
      %v279 = vmul.f32 %v174, %v277
      %v280 = vadd.f32 %v267, %v279
      %s281 = scalar_lea.vmem %s1, 14
      %v282 = vld [vmem:[%s281] sm:$0x3]
      %v285 = vunpack.c.l.s4 286326784
      %v286 = vunpack.c.0.s8 %v285
      %v287 = vlaneseq
      %v288 = vshrl.u32 %v287, 7
      %v289 = vsub.s32 %v286, %v288
      %v290 = vrot.slane %v282, %v289
      %v292 = vmul.f32 %v174, %v290
      %v294 = vrot.slane %v292, 5
      %v295 = vrot.slane %v294, 4
      %v297 = vadd.f32 %v280, %v295
      %s298 = scalar_lea.vmem %s1, 16
      %v299 = vld [vmem:[%s298] sm:$0x3]
      %v302 = vunpack.c.l.s4 286326784
      %v303 = vunpack.c.0.s8 %v302
      %v304 = vlaneseq
      %v305 = vshrl.u32 %v304, 7
      %v306 = vsub.s32 %v303, %v305
      %v307 = vrot.slane %v299, %v306
      %v309 = vmul.f32 %v174, %v307
      %v311 = vrot.slane %v309, 6
      %v312 = vrot.slane %v311, 4
      %v314 = vadd.f32 %v297, %v312
      %v315 = vld [vmem:[%s2] sm:$0x3]
      %v318 = vunpack.c.l.s4 286326784
      %v319 = vunpack.c.0.s8 %v318
      %v320 = vlaneseq
      %v321 = vshrl.u32 %v320, 7
      %v322 = vsub.s32 %v319, %v321
      %v323 = vrot.slane %v315, %v322
      %v325 = vadd.f32 %v314, %v323
      %v327 = vlaneseq
      %v328 = vshrl.u32 %v327, 7
      %v329 = vsub.s32 0, %v328
      %v330 = vrot.slane %v325, %v329
      %v331 = vlaneseq
      %v332 = vshrl.u32 %v331, 7
      %v333 = vsub.s32 4, %v332
      %v334 = vrot.slane %v325, %v333
      %v337 = vpack.c.bf16 %v330, %v330
      %v338 = vpack.c.bf16 %v334, %v334
      %v341 = vcombine.low %v337, %v338
      %v343 = vunpack.c.l.s4 1966171168
      %v344 = vunpack.c.0.s8 %v343
      %v345 = vlaneseq
      %v346 = vshrl.u32 %v345, 7
      %v347 = vsub.s32 %v344, %v346
      %v348 = vrot.slane %v341, %v347
      %v350 = vunpack.c.l.s4 1966171168
      %v351 = vunpack.c.0.s8 %v350
      %v352 = vlaneseq
      %v353 = vshrl.u32 %v352, 7
      %v354 = vsub.s32 %v351, %v353
      %v355 = vrot.slane %v348, %v354
      %vm357 = vcmask 1040384
      %vm358 = vsmask.f32 256
      %vm359 = vmand %vm357, %vm358
      %vm360 = vcmask 844801
      %vm361 = vsmask.f32 1280
      %vm362 = vmand %vm360, %vm361
      %vm363 = vmor %vm362, %vm359
      %v364 = vld [vmem:[%s168] sm:$0x3]
      %v365 = vsel %vm363, %v355, %v364
      %366 = vst [vmem:[%s168] sm:$0x3] %v365
      %p367 = scmp.lt.s32.totalorder %s14, 1
      %s368 = scalar_select %p367, %s14, 1
      %s369 = smul.addr %s368, 2
      %s370 = scalar_lea.vmem %s3, %s369
      // Predicated region
      $region33: #{reranking_shufflenet_forward.106} parent=31 // pred_check
        %p371 = pneg %p100
      $region34: #{reranking_shufflenet_forward.106} parent=31 // pred_check_branch
        %373 = sbr.rel (%p371) target = $region36
      $region35: #{reranking_shufflenet_forward.106} parent=31 // pred_region
        _
      $region36: #{reranking_shufflenet_forward.106} parent=31 // pred_fallthru
        _
    $region32: #{reranking_shufflenet_forward.106} parent=5 // pred_fallthru
      _
    %p374 = scmp.le.s32.totalorder 2, %s9
    // Predicated region
    $region37: #{reranking_shufflenet_forward.106} parent=5 // pred_check
      %p375 = pneg %p374
    $region38: #{reranking_shufflenet_forward.106} parent=5 // pred_check_branch
      %377 = sbr.rel (%p375) target = $region40
    $region39: #{reranking_shufflenet_forward.106} parent=5 // pred_region
      %s378 = ssub.s32 %s9, 2
      // Predicated region
      $region41: #{reranking_shufflenet_forward.106} parent=39 // pred_check
        %p379 = pneg %p106
      $region42: #{reranking_shufflenet_forward.106} parent=39 // pred_check_branch
        %381 = sbr.rel (%p379) target = $region44
      $region43: #{reranking_shufflenet_forward.106} parent=39 // pred_region
        %p382 = scmp.lt.s32.totalorder %s15, 1
        %s383 = scalar_select %p382, %s15, 1
        %s384 = smul.addr %s383, 2
        %s385 = scalar_lea.vmem %s3, %s384
      $region44: #{reranking_shufflenet_forward.106} parent=39 // pred_fallthru
        _
    $region40: #{reranking_shufflenet_forward.106} parent=5 // pred_fallthru
      _
  $region6: #{reranking_shufflenet_forward.106} parent=0 // loop_footer
    %s13 = sadd.s32 1, %s9
  $region7: #{reranking_shufflenet_forward.106} parent=0 // loop_footer_branch
    %8 = sbr.rel target = $region3
  $region8: #{reranking_shufflenet_forward.106} parent=0 // loop_exit
    _

// kernel: reranking_shufflenet_forward.115
$region0: #{reranking_shufflenet_forward.115}
  #allocation0 [shape = 'u32[]', space=smem, size = 0x4, offset = 0x4, fixed_abs, tag = 'smem constant byte address 0x4 - core index']
  #allocation1 [shape = 'u32[144,128]{1,0:T(1,128)}', space=vmem, size = 0x12000, scoped, tag = 'internal scratch']
  #allocation2 [shape = 'f32[1,1]{1,0:T(1,128)S(1)}', space=vmem, size = 0x200, scoped, tag = 'scoped memory for reranking_shufflenet_forward.115']
  %s0 = inlined_call_operand.vmem [shape: bf16[2,1,1024], index: 0, kind: input, shape index: {}]
  %s1 = inlined_call_operand.vmem [shape: f32[1,1024], index: 1, kind: input, shape index: {}]
  %s2 = inlined_call_operand.<no memory space> [shape: f32[1,1], index: 2, kind: input, shape index: {}]
  %s3 = inlined_call_operand.vmem [shape: f32[2,1], index: 3, kind: output, shape index: {}]
  %s4 = sld [smem:[#allocation0]]
  $region22: #{reranking_shufflenet_forward.115} parent=0
    _
  %s6 = ssub.s32 1, %s4
  %s7 = scalar_select 0, %s6, %s4
  %v8 = vstv %s2
  %9 = vst [vmem:[#allocation2] sm:$0x1] %v8
  // Predicated region
  $region2: #{reranking_shufflenet_forward.115} parent=0 // pred_check
    _
  $region3: #{reranking_shufflenet_forward.115} parent=0 // pred_check_branch
    %11 = sbr.rel (0) target = $region5
  $region4: #{reranking_shufflenet_forward.115} parent=0 // pred_region
    _
  $region5: #{reranking_shufflenet_forward.115} parent=0 // pred_fallthru
    _
  // Predicated region
  $region6: #{reranking_shufflenet_forward.115} parent=0 // pred_check
    _
  $region7: #{reranking_shufflenet_forward.115} parent=0 // pred_check_branch
    %13 = sbr.rel (0) target = $region9
  $region8: #{reranking_shufflenet_forward.115} parent=0 // pred_region
    _
  $region9: #{reranking_shufflenet_forward.115} parent=0 // pred_fallthru
    _
  // Predicated region
  $region10: #{reranking_shufflenet_forward.115} parent=0 // pred_check
    _
  $region11: #{reranking_shufflenet_forward.115} parent=0 // pred_check_branch
    %15 = sbr.rel (0) target = $region13
  $region12: #{reranking_shufflenet_forward.115} parent=0 // pred_region
    _
  $region13: #{reranking_shufflenet_forward.115} parent=0 // pred_fallthru
    _
  %v16 = vld [vmem:[%s0] sm:$0xff]
  %v17 = vld [vmem:[%s0 + $0x8] sm:$0xff]
  %v18 = vunpack.c.l.bf16 %v16
  %v19 = vunpack.c.h.bf16 %v16
  %v20 = vunpack.c.l.bf16 %v17
  %v21 = vunpack.c.h.bf16 %v17
  %v22 = vadd.f32 %v18, 0.0
  %v23 = vadd.f32 %v19, 0.0
  %v24 = vadd.f32 %v20, 0.0
  %v25 = vadd.f32 %v21, 0.0
  %v26 = vld [vmem:[%s1] sm:$0xff]
  %v28 = vlaneseq
  %v29 = vshrl.u32 %v28, 7
  %v30 = vsub.s32 0, %v29
  %v31 = vrot.slane %v26, %v30
  %v32 = vlaneseq
  %v33 = vshrl.u32 %v32, 7
  %v34 = vsub.s32 1, %v33
  %v35 = vrot.slane %v26, %v34
  %v36 = vlaneseq
  %v37 = vshrl.u32 %v36, 7
  %v38 = vsub.s32 2, %v37
  %v39 = vrot.slane %v26, %v38
  %v40 = vlaneseq
  %v41 = vshrl.u32 %v40, 7
  %v42 = vsub.s32 3, %v41
  %v43 = vrot.slane %v26, %v42
  %v44 = vlaneseq
  %v45 = vshrl.u32 %v44, 7
  %v46 = vsub.s32 4, %v45
  %v47 = vrot.slane %v26, %v46
  %v48 = vlaneseq
  %v49 = vshrl.u32 %v48, 7
  %v50 = vsub.s32 5, %v49
  %v51 = vrot.slane %v26, %v50
  %v52 = vlaneseq
  %v53 = vshrl.u32 %v52, 7
  %v54 = vsub.s32 6, %v53
  %v55 = vrot.slane %v26, %v54
  %v56 = vlaneseq
  %v57 = vshrl.u32 %v56, 7
  %v58 = vsub.s32 7, %v57
  %v59 = vrot.slane %v26, %v58
  %v60 = vcombine.low %v31, %v35
  %v61 = vcombine.low %v39, %v43
  %v63 = vunpack.c.l.s4 1983009808
  %v64 = vunpack.c.0.s8 %v63
  %v65 = vlaneseq
  %v66 = vshrl.u32 %v65, 7
  %v67 = vsub.s32 %v64, %v66
  %v68 = vrot.slane %v60, %v67
  %v70 = vunpack.c.l.s4 1983009808
  %v71 = vunpack.c.0.s8 %v70
  %v72 = vlaneseq
  %v73 = vshrl.u32 %v72, 7
  %v74 = vsub.s32 %v71, %v73
  %v75 = vrot.slane %v61, %v74
  %v76 = vcombine.low %v68, %v75
  %v77 = vcombine.low %v47, %v51
  %v78 = vcombine.low %v55, %v59
  %v80 = vunpack.c.l.s4 1983009808
  %v81 = vunpack.c.0.s8 %v80
  %v82 = vlaneseq
  %v83 = vshrl.u32 %v82, 7
  %v84 = vsub.s32 %v81, %v83
  %v85 = vrot.slane %v77, %v84
  %v87 = vunpack.c.l.s4 1983009808
  %v88 = vunpack.c.0.s8 %v87
  %v89 = vlaneseq
  %v90 = vshrl.u32 %v89, 7
  %v91 = vsub.s32 %v88, %v90
  %v92 = vrot.slane %v78, %v91
  %v93 = vcombine.low %v85, %v92
  %v94 = vrot.slane %v76, 1
  %v95 = vrot.slane %v93, 1
  %v100 = vmul.f32 %v22, %v76
  %v101 = vmul.f32 %v23, %v93
  %v102 = vmul.f32 %v24, %v94
  %v103 = vmul.f32 %v25, %v95
  %v108 = vlaneseq
  %v109 = vshrl.u32 %v108, 7
  %v110 = vsub.s32 0, %v109
  %v111 = vrot.slane %v100, %v110
  %v112 = vlaneseq
  %v113 = vshrl.u32 %v112, 7
  %v114 = vsub.s32 2, %v113
  %v115 = vrot.slane %v100, %v114
  %v116 = vlaneseq
  %v117 = vshrl.u32 %v116, 7
  %v118 = vsub.s32 4, %v117
  %v119 = vrot.slane %v100, %v118
  %v120 = vlaneseq
  %v121 = vshrl.u32 %v120, 7
  %v122 = vsub.s32 6, %v121
  %v123 = vrot.slane %v100, %v122
  %v124 = vlaneseq
  %v125 = vshrl.u32 %v124, 7
  %v126 = vsub.s32 0, %v125
  %v127 = vrot.slane %v101, %v126
  %v128 = vlaneseq
  %v129 = vshrl.u32 %v128, 7
  %v130 = vsub.s32 2, %v129
  %v131 = vrot.slane %v101, %v130
  %v132 = vlaneseq
  %v133 = vshrl.u32 %v132, 7
  %v134 = vsub.s32 4, %v133
  %v135 = vrot.slane %v101, %v134
  %v136 = vlaneseq
  %v137 = vshrl.u32 %v136, 7
  %v138 = vsub.s32 6, %v137
  %v139 = vrot.slane %v101, %v138
  %v140 = vlaneseq
  %v141 = vshrl.u32 %v140, 7
  %v142 = vsub.s32 0, %v141
  %v143 = vrot.slane %v102, %v142
  %v144 = vlaneseq
  %v145 = vshrl.u32 %v144, 7
  %v146 = vsub.s32 2, %v145
  %v147 = vrot.slane %v102, %v146
  %v148 = vlaneseq
  %v149 = vshrl.u32 %v148, 7
  %v150 = vsub.s32 4, %v149
  %v151 = vrot.slane %v102, %v150
  %v152 = vlaneseq
  %v153 = vshrl.u32 %v152, 7
  %v154 = vsub.s32 6, %v153
  %v155 = vrot.slane %v102, %v154
  %v156 = vlaneseq
  %v157 = vshrl.u32 %v156, 7
  %v158 = vsub.s32 0, %v157
  %v159 = vrot.slane %v103, %v158
  %v160 = vlaneseq
  %v161 = vshrl.u32 %v160, 7
  %v162 = vsub.s32 2, %v161
  %v163 = vrot.slane %v103, %v162
  %v164 = vlaneseq
  %v165 = vshrl.u32 %v164, 7
  %v166 = vsub.s32 4, %v165
  %v167 = vrot.slane %v103, %v166
  %v168 = vlaneseq
  %v169 = vshrl.u32 %v168, 7
  %v170 = vsub.s32 6, %v169
  %v171 = vrot.slane %v103, %v170
  %vm172 = vcmask 1041409
  %v173 = vsel %vm172, %v143, %v111
  %v174 = vsel %vm172, %v147, %v115
  %v175 = vsel %vm172, %v151, %v119
  %v176 = vsel %vm172, %v155, %v123
  %v177 = vsel %vm172, %v159, %v127
  %v178 = vsel %vm172, %v163, %v131
  %v179 = vsel %vm172, %v167, %v135
  %v180 = vsel %vm172, %v171, %v139
  %vm189 = vcmask 1041408
  %v190 = vsel %vm189, %v173, 0.0
  %v191 = vsel %vm189, %v174, 0.0
  %v192 = vadd.f32 %v190, %v191
  %v193 = vsel %vm189, %v175, 0.0
  %v194 = vadd.f32 %v192, %v193
  %v195 = vsel %vm189, %v176, 0.0
  %v196 = vadd.f32 %v194, %v195
  %v197 = vsel %vm189, %v177, 0.0
  %v198 = vadd.f32 %v196, %v197
  %v199 = vsel %vm189, %v178, 0.0
  %v200 = vadd.f32 %v198, %v199
  %v201 = vsel %vm189, %v179, 0.0
  %v202 = vadd.f32 %v200, %v201
  %v203 = vsel %vm189, %v180, 0.0
  %v204 = vadd.f32 %v202, %v203
  %205 = vadd.xlane.f32.xlu0 %v204
  %v206 = vpop.xlane.xlu0 %205
  %v207 = vld [vmem:[#allocation2] sm:$0x1]
  %v209 = vlaneseq
  %v210 = vshrl.u32 %v209, 7
  %v211 = vsub.s32 0, %v210
  %v212 = vrot.slane %v207, %v211
  %v214 = vadd.f32 %v206, %v212
  %v215 = vxor.u32 %v214, 2147483648
  %v216 = vmul.f32 %v215, 1.442695
  %v217 = vpow.pop %v216
  %v218 = vadd.f32 %v217, 1.0
  %v219 = vrcp.pop %v218
  %v220 = vmul.f32 1.0, %v219
  %vm221 = vcmask 1024
  %222 = vst.msk [vmem:[%s3] sm:$0x3] %vm221, %v220
  // Predicated region
  $region14: #{reranking_shufflenet_forward.115} parent=0 // pred_check
    _
  $region15: #{reranking_shufflenet_forward.115} parent=0 // pred_check_branch
    %224 = sbr.rel (0) target = $region17
  $region16: #{reranking_shufflenet_forward.115} parent=0 // pred_region
    _
  $region17: #{reranking_shufflenet_forward.115} parent=0 // pred_fallthru
    _
  // Predicated region
  $region18: #{reranking_shufflenet_forward.115} parent=0 // pred_check
    _
  $region19: #{reranking_shufflenet_forward.115} parent=0 // pred_check_branch
    %226 = sbr.rel (0) target = $region21
  $region20: #{reranking_shufflenet_forward.115} parent=0 // pred_region
    _
  $region21: #{reranking_shufflenet_forward.115} parent=0 // pred_fallthru
    _

// kernel: reranking_shufflenet_forward.114
$region0: #{reranking_shufflenet_forward.114}
  #allocation0 [shape = 'u32[]', space=smem, size = 0x4, offset = 0x4, fixed_abs, tag = 'smem constant byte address 0x4 - core index']
  #allocation1 [shape = 'u32[144,128]{1,0:T(1,128)}', space=vmem, size = 0x12000, scoped, tag = 'internal scratch']
  %s0 = inlined_call_operand.vmem [shape: bf16[8,464], index: 0, kind: input, shape index: {}]
  %s1 = inlined_call_operand.vmem [shape: bf16[464,1024], index: 1, kind: input, shape index: {}]
  %s2 = inlined_call_operand.vmem [shape: f32[1,1024], index: 2, kind: input, shape index: {}]
  %s3 = inlined_call_operand.vmem [shape: bf16[8,1024], index: 3, kind: output, shape index: {}]
  %s4 = sld [smem:[#allocation0]]
  $region22: #{reranking_shufflenet_forward.114} parent=0
    _
  %s6 = ssub.s32 1, %s4
  %s7 = scalar_select 0, %s6, %s4
  // Predicated region
  $region2: #{reranking_shufflenet_forward.114} parent=0 // pred_check
    _
  $region3: #{reranking_shufflenet_forward.114} parent=0 // pred_check_branch
    %9 = sbr.rel (0) target = $region5
  $region4: #{reranking_shufflenet_forward.114} parent=0 // pred_region
    _
  $region5: #{reranking_shufflenet_forward.114} parent=0 // pred_fallthru
    _
  // Predicated region
  $region6: #{reranking_shufflenet_forward.114} parent=0 // pred_check
    _
  $region7: #{reranking_shufflenet_forward.114} parent=0 // pred_check_branch
    %11 = sbr.rel (0) target = $region9
  $region8: #{reranking_shufflenet_forward.114} parent=0 // pred_region
    _
  $region9: #{reranking_shufflenet_forward.114} parent=0 // pred_fallthru
    _
  // Predicated region
  $region10: #{reranking_shufflenet_forward.114} parent=0 // pred_check
    _
  $region11: #{reranking_shufflenet_forward.114} parent=0 // pred_check_branch
    %13 = sbr.rel (0) target = $region13
  $region12: #{reranking_shufflenet_forward.114} parent=0 // pred_region
    _
  $region13: #{reranking_shufflenet_forward.114} parent=0 // pred_fallthru
    _
  %v15 = vld [vmem:[%s0] sm:$0xff]
  %v16 = vld [vmem:[%s0 + $0x8] sm:$0xff]
  %v17 = vld [vmem:[%s1] sm:$0xff]
  %v18 = vld [vmem:[%s1 + $0x8] sm:$0xff]
  %v19 = vld [vmem:[%s1 + $0x10] sm:$0xff]
  %v20 = vld [vmem:[%s1 + $0x18] sm:$0xff]
  %v21 = vld [vmem:[%s1 + $0x20] sm:$0xff]
  %v22 = vld [vmem:[%s1 + $0x28] sm:$0xff]
  %v23 = vld [vmem:[%s1 + $0x30] sm:$0xff]
  %v24 = vld [vmem:[%s1 + $0x38] sm:$0xff]
  %v25 = vld [vmem:[%s1 + $0x40] sm:$0xff]
  %v26 = vld [vmem:[%s1 + $0x48] sm:$0xff]
  %v27 = vld [vmem:[%s1 + $0x50] sm:$0xff]
  %v28 = vld [vmem:[%s1 + $0x58] sm:$0xff]
  %v29 = vld [vmem:[%s1 + $0x60] sm:$0xff]
  %v30 = vld [vmem:[%s1 + $0x68] sm:$0xff]
  %v31 = vld [vmem:[%s1 + $0x70] sm:$0xff]
  %v32 = vld [vmem:[%s1 + $0x78] sm:$0xff]
  %v33 = vld [vmem:[%s1 + $0x80] sm:$0xff]
  %v34 = vld [vmem:[%s1 + $0x88] sm:$0xff]
  %v35 = vld [vmem:[%s1 + $0x90] sm:$0xff]
  %v36 = vld [vmem:[%s1 + $0x98] sm:$0xff]
  %v37 = vld [vmem:[%s1 + $0xa0] sm:$0xff]
  %v38 = vld [vmem:[%s1 + $0xa8] sm:$0xff]
  %v39 = vld [vmem:[%s1 + $0xb0] sm:$0xff]
  %v40 = vld [vmem:[%s1 + $0xb8] sm:$0xff]
  %v41 = vld [vmem:[%s1 + $0xc0] sm:$0xff]
  %v42 = vld [vmem:[%s1 + $0xc8] sm:$0xff]
  %v43 = vld [vmem:[%s1 + $0xd0] sm:$0xff]
  %v44 = vld [vmem:[%s1 + $0xd8] sm:$0xff]
  %v45 = vld [vmem:[%s1 + $0xe0] sm:$0xff]
  %v46 = vld [vmem:[%s1 + $0xe8] sm:$0xff]
  %v47 = vld [vmem:[%s1 + $0xf0] sm:$0xff]
  %v48 = vld [vmem:[%s1 + $0xf8] sm:$0xff]
  %v49 = vld [vmem:[%s1 + $0x100] sm:$0xff]
  %v50 = vld [vmem:[%s1 + $0x108] sm:$0xff]
  %v51 = vld [vmem:[%s1 + $0x110] sm:$0xff]
  %v52 = vld [vmem:[%s1 + $0x118] sm:$0xff]
  %v53 = vld [vmem:[%s1 + $0x120] sm:$0xff]
  %v54 = vld [vmem:[%s1 + $0x128] sm:$0xff]
  %v55 = vld [vmem:[%s1 + $0x130] sm:$0xff]
  %v56 = vld [vmem:[%s1 + $0x138] sm:$0xff]
  %v57 = vld [vmem:[%s1 + $0x140] sm:$0xff]
  %v58 = vld [vmem:[%s1 + $0x148] sm:$0xff]
  %v59 = vld [vmem:[%s1 + $0x150] sm:$0xff]
  %v60 = vld [vmem:[%s1 + $0x158] sm:$0xff]
  %v61 = vld [vmem:[%s1 + $0x160] sm:$0xff]
  %v62 = vld [vmem:[%s1 + $0x168] sm:$0xff]
  %v63 = vld [vmem:[%s1 + $0x170] sm:$0xff]
  %v64 = vld [vmem:[%s1 + $0x178] sm:$0xff]
  %v65 = vld [vmem:[%s1 + $0x180] sm:$0xff]
  %v66 = vld [vmem:[%s1 + $0x188] sm:$0xff]
  %v67 = vld [vmem:[%s1 + $0x190] sm:$0xff]
  %v68 = vld [vmem:[%s1 + $0x198] sm:$0xff]
  %v69 = vld [vmem:[%s1 + $0x1a0] sm:$0xff]
  %v70 = vld [vmem:[%s1 + $0x1a8] sm:$0xff]
  %v71 = vld [vmem:[%s1 + $0x1b0] sm:$0xff]
  %v72 = vld [vmem:[%s1 + $0x1b8] sm:$0xff]
  %v73 = vld [vmem:[%s1 + $0x1c0] sm:$0xff]
  %v74 = vld [vmem:[%s1 + $0x1c8] sm:$0xff]
  %v75 = vld [vmem:[%s1 + $0x1d0] sm:$0xff]
  %v76 = vld [vmem:[%s1 + $0x1d8] sm:$0xff]
  %v77 = vld [vmem:[%s1 + $0x1e0] sm:$0xff]
  %v78 = vld [vmem:[%s1 + $0x1e8] sm:$0xff]
  %v79 = vld [vmem:[%s1 + $0x1f0] sm:$0xff]
  %v80 = vld [vmem:[%s1 + $0x1f8] sm:$0xff]
  %v81 = vld [vmem:[%s1 + $0x200] sm:$0xff]
  %v82 = vld [vmem:[%s1 + $0x208] sm:$0xff]
  %v83 = vld [vmem:[%s1 + $0x210] sm:$0xff]
  %v84 = vld [vmem:[%s1 + $0x218] sm:$0xff]
  %v85 = vld [vmem:[%s1 + $0x220] sm:$0xff]
  %v86 = vld [vmem:[%s1 + $0x228] sm:$0xff]
  %v87 = vld [vmem:[%s1 + $0x230] sm:$0xff]
  %v88 = vld [vmem:[%s1 + $0x238] sm:$0xff]
  %v89 = vld [vmem:[%s1 + $0x240] sm:$0xff]
  %v90 = vld [vmem:[%s1 + $0x248] sm:$0xff]
  %v91 = vld [vmem:[%s1 + $0x250] sm:$0xff]
  %v92 = vld [vmem:[%s1 + $0x258] sm:$0xff]
  %v93 = vld [vmem:[%s1 + $0x260] sm:$0xff]
  %v94 = vld [vmem:[%s1 + $0x268] sm:$0xff]
  %v95 = vld [vmem:[%s1 + $0x270] sm:$0xff]
  %v96 = vld [vmem:[%s1 + $0x278] sm:$0xff]
  %v97 = vld [vmem:[%s1 + $0x280] sm:$0xff]
  %v98 = vld [vmem:[%s1 + $0x288] sm:$0xff]
  %v99 = vld [vmem:[%s1 + $0x290] sm:$0xff]
  %v100 = vld [vmem:[%s1 + $0x298] sm:$0xff]
  %v101 = vld [vmem:[%s1 + $0x2a0] sm:$0xff]
  %v102 = vld [vmem:[%s1 + $0x2a8] sm:$0xff]
  %v103 = vld [vmem:[%s1 + $0x2b0] sm:$0xff]
  %v104 = vld [vmem:[%s1 + $0x2b8] sm:$0xff]
  %v105 = vld [vmem:[%s1 + $0x2c0] sm:$0xff]
  %v106 = vld [vmem:[%s1 + $0x2c8] sm:$0xff]
  %v107 = vld [vmem:[%s1 + $0x2d0] sm:$0xff]
  %v108 = vld [vmem:[%s1 + $0x2d8] sm:$0xff]
  %v109 = vld [vmem:[%s1 + $0x2e0] sm:$0xff]
  %v110 = vld [vmem:[%s1 + $0x2e8] sm:$0xff]
  %v111 = vld [vmem:[%s1 + $0x2f0] sm:$0xff]
  %v112 = vld [vmem:[%s1 + $0x2f8] sm:$0xff]
  %v113 = vld [vmem:[%s1 + $0x300] sm:$0xff]
  %v114 = vld [vmem:[%s1 + $0x308] sm:$0xff]
  %v115 = vld [vmem:[%s1 + $0x310] sm:$0xff]
  %v116 = vld [vmem:[%s1 + $0x318] sm:$0xff]
  %v117 = vld [vmem:[%s1 + $0x320] sm:$0xff]
  %v118 = vld [vmem:[%s1 + $0x328] sm:$0xff]
  %v119 = vld [vmem:[%s1 + $0x330] sm:$0xff]
  %v120 = vld [vmem:[%s1 + $0x338] sm:$0xff]
  %v121 = vld [vmem:[%s1 + $0x340] sm:$0xff]
  %v122 = vld [vmem:[%s1 + $0x348] sm:$0xff]
  %v123 = vld [vmem:[%s1 + $0x350] sm:$0xff]
  %v124 = vld [vmem:[%s1 + $0x358] sm:$0xff]
  %v125 = vld [vmem:[%s1 + $0x360] sm:$0xff]
  %v126 = vld [vmem:[%s1 + $0x368] sm:$0xff]
  %v127 = vld [vmem:[%s1 + $0x370] sm:$0xff]
  %v128 = vld [vmem:[%s1 + $0x378] sm:$0xff]
  %v129 = vld [vmem:[%s1 + $0x380] sm:$0xff]
  %v130 = vld [vmem:[%s1 + $0x388] sm:$0xff]
  %v131 = vld [vmem:[%s1 + $0x390] sm:$0xff]
  %v132 = vld [vmem:[%s1 + $0x398] sm:$0xff]
  %v133 = vld [vmem:[%s1 + $0x3a0] sm:$0xff]
  %v134 = vld [vmem:[%s1 + $0x3a8] sm:$0xff]
  %v135 = vld [vmem:[%s1 + $0x3b0] sm:$0xff]
  %v136 = vld [vmem:[%s1 + $0x3b8] sm:$0xff]
  %v137 = vld [vmem:[%s1 + $0x3c0] sm:$0xff]
  %v138 = vld [vmem:[%s1 + $0x3c8] sm:$0xff]
  %v139 = vld [vmem:[%s1 + $0x3d0] sm:$0xff]
  %v140 = vld [vmem:[%s1 + $0x3d8] sm:$0xff]
  %v141 = vld [vmem:[%s1 + $0x3e0] sm:$0xff]
  %v142 = vld [vmem:[%s1 + $0x3e8] sm:$0xff]
  %v143 = vld [vmem:[%s1 + $0x3f0] sm:$0xff]
  %v144 = vld [vmem:[%s1 + $0x3f8] sm:$0xff]
  %v145 = vld [vmem:[%s1 + $0x400] sm:$0xff]
  %v146 = vld [vmem:[%s1 + $0x408] sm:$0xff]
  %v147 = vld [vmem:[%s1 + $0x410] sm:$0xff]
  %v148 = vld [vmem:[%s1 + $0x418] sm:$0xff]
  %v149 = vld [vmem:[%s1 + $0x420] sm:$0xff]
  %v150 = vld [vmem:[%s1 + $0x428] sm:$0xff]
  %v151 = vld [vmem:[%s1 + $0x430] sm:$0xff]
  %v152 = vld [vmem:[%s1 + $0x438] sm:$0xff]
  %v153 = vld [vmem:[%s1 + $0x440] sm:$0xff]
  %v154 = vld [vmem:[%s1 + $0x448] sm:$0xff]
  %v155 = vld [vmem:[%s1 + $0x450] sm:$0xff]
  %v156 = vld [vmem:[%s1 + $0x458] sm:$0xff]
  %v157 = vld [vmem:[%s1 + $0x460] sm:$0xff]
  %v158 = vld [vmem:[%s1 + $0x468] sm:$0xff]
  %v159 = vld [vmem:[%s1 + $0x470] sm:$0xff]
  %v160 = vld [vmem:[%s1 + $0x478] sm:$0xff]
  %v161 = vld [vmem:[%s1 + $0x480] sm:$0xff]
  %v162 = vld [vmem:[%s1 + $0x488] sm:$0xff]
  %v163 = vld [vmem:[%s1 + $0x490] sm:$0xff]
  %v164 = vld [vmem:[%s1 + $0x498] sm:$0xff]
  %v165 = vld [vmem:[%s1 + $0x4a0] sm:$0xff]
  %v166 = vld [vmem:[%s1 + $0x4a8] sm:$0xff]
  %v167 = vld [vmem:[%s1 + $0x4b0] sm:$0xff]
  %v168 = vld [vmem:[%s1 + $0x4b8] sm:$0xff]
  %v169 = vld [vmem:[%s1 + $0x4c0] sm:$0xff]
  %v170 = vld [vmem:[%s1 + $0x4c8] sm:$0xff]
  %v171 = vld [vmem:[%s1 + $0x4d0] sm:$0xff]
  %v172 = vld [vmem:[%s1 + $0x4d8] sm:$0xff]
  %v173 = vld [vmem:[%s1 + $0x4e0] sm:$0xff]
  %v174 = vld [vmem:[%s1 + $0x4e8] sm:$0xff]
  %v175 = vld [vmem:[%s1 + $0x4f0] sm:$0xff]
  %v176 = vld [vmem:[%s1 + $0x4f8] sm:$0xff]
  %v177 = vld [vmem:[%s1 + $0x500] sm:$0xff]
  %v178 = vld [vmem:[%s1 + $0x508] sm:$0xff]
  %v179 = vld [vmem:[%s1 + $0x510] sm:$0xff]
  %v180 = vld [vmem:[%s1 + $0x518] sm:$0xff]
  %v181 = vld [vmem:[%s1 + $0x520] sm:$0xff]
  %v182 = vld [vmem:[%s1 + $0x528] sm:$0xff]
  %v183 = vld [vmem:[%s1 + $0x530] sm:$0xff]
  %v184 = vld [vmem:[%s1 + $0x538] sm:$0xff]
  %v185 = vld [vmem:[%s1 + $0x540] sm:$0xff]
  %v186 = vld [vmem:[%s1 + $0x548] sm:$0xff]
  %v187 = vld [vmem:[%s1 + $0x550] sm:$0xff]
  %v188 = vld [vmem:[%s1 + $0x558] sm:$0xff]
  %v189 = vld [vmem:[%s1 + $0x560] sm:$0xff]
  %v190 = vld [vmem:[%s1 + $0x568] sm:$0xff]
  %v191 = vld [vmem:[%s1 + $0x570] sm:$0xff]
  %v192 = vld [vmem:[%s1 + $0x578] sm:$0xff]
  %v193 = vld [vmem:[%s1 + $0x580] sm:$0xff]
  %v194 = vld [vmem:[%s1 + $0x588] sm:$0xff]
  %v195 = vld [vmem:[%s1 + $0x590] sm:$0xff]
  %v196 = vld [vmem:[%s1 + $0x598] sm:$0xff]
  %v197 = vld [vmem:[%s1 + $0x5a0] sm:$0xff]
  %v198 = vld [vmem:[%s1 + $0x5a8] sm:$0xff]
  %v199 = vld [vmem:[%s1 + $0x5b0] sm:$0xff]
  %v200 = vld [vmem:[%s1 + $0x5b8] sm:$0xff]
  %v201 = vld [vmem:[%s1 + $0x5c0] sm:$0xff]
  %v202 = vld [vmem:[%s1 + $0x5c8] sm:$0xff]
  %v203 = vld [vmem:[%s1 + $0x5d0] sm:$0xff]
  %v204 = vld [vmem:[%s1 + $0x5d8] sm:$0xff]
  %v205 = vld [vmem:[%s1 + $0x5e0] sm:$0xff]
  %v206 = vld [vmem:[%s1 + $0x5e8] sm:$0xff]
  %v207 = vld [vmem:[%s1 + $0x5f0] sm:$0xff]
  %v208 = vld [vmem:[%s1 + $0x5f8] sm:$0xff]
  %v209 = vld [vmem:[%s1 + $0x600] sm:$0xff]
  %v210 = vld [vmem:[%s1 + $0x608] sm:$0xff]
  %v211 = vld [vmem:[%s1 + $0x610] sm:$0xff]
  %v212 = vld [vmem:[%s1 + $0x618] sm:$0xff]
  %v213 = vld [vmem:[%s1 + $0x620] sm:$0xff]
  %v214 = vld [vmem:[%s1 + $0x628] sm:$0xff]
  %v215 = vld [vmem:[%s1 + $0x630] sm:$0xff]
  %v216 = vld [vmem:[%s1 + $0x638] sm:$0xff]
  %v217 = vld [vmem:[%s1 + $0x640] sm:$0xff]
  %v218 = vld [vmem:[%s1 + $0x648] sm:$0xff]
  %v219 = vld [vmem:[%s1 + $0x650] sm:$0xff]
  %v220 = vld [vmem:[%s1 + $0x658] sm:$0xff]
  %v221 = vld [vmem:[%s1 + $0x660] sm:$0xff]
  %v222 = vld [vmem:[%s1 + $0x668] sm:$0xff]
  %v223 = vld [vmem:[%s1 + $0x670] sm:$0xff]
  %v224 = vld [vmem:[%s1 + $0x678] sm:$0xff]
  %v225 = vld [vmem:[%s1 + $0x680] sm:$0xff]
  %v226 = vld [vmem:[%s1 + $0x688] sm:$0xff]
  %v227 = vld [vmem:[%s1 + $0x690] sm:$0xff]
  %v228 = vld [vmem:[%s1 + $0x698] sm:$0xff]
  %v229 = vld [vmem:[%s1 + $0x6a0] sm:$0xff]
  %v230 = vld [vmem:[%s1 + $0x6a8] sm:$0xff]
  %v231 = vld [vmem:[%s1 + $0x6b0] sm:$0xff]
  %v232 = vld [vmem:[%s1 + $0x6b8] sm:$0xff]
  %v233 = vld [vmem:[%s1 + $0x6c0] sm:$0xff]
  %v234 = vld [vmem:[%s1 + $0x6c8] sm:$0xff]
  %v235 = vld [vmem:[%s1 + $0x6d0] sm:$0xff]
  %v236 = vld [vmem:[%s1 + $0x6d8] sm:$0xff]
  %v237 = vld [vmem:[%s1 + $0x6e0] sm:$0xff]
  %v238 = vld [vmem:[%s1 + $0x6e8] sm:$0xff]
  %v239 = vld [vmem:[%s1 + $0x6f0] sm:$0xff]
  %v240 = vld [vmem:[%s1 + $0x6f8] sm:$0xff]
  %v241 = vld [vmem:[%s1 + $0x700] sm:$0xff]
  %v242 = vld [vmem:[%s1 + $0x708] sm:$0xff]
  %v243 = vld [vmem:[%s1 + $0x710] sm:$0xff]
  %v244 = vld [vmem:[%s1 + $0x718] sm:$0xff]
  %v245 = vld [vmem:[%s1 + $0x720] sm:$0xff]
  %v246 = vld [vmem:[%s1 + $0x728] sm:$0xff]
  %v247 = vld [vmem:[%s1 + $0x730] sm:$0xff]
  %v248 = vld [vmem:[%s1 + $0x738] sm:$0xff]
  %v249 = vld [vmem:[%s2] sm:$0xff]
  %v251 = vlaneseq
  %v252 = vshrl.u32 %v251, 7
  %v253 = vsub.s32 0, %v252
  %v254 = vrot.slane %v249, %v253
  %v255 = vlaneseq
  %v256 = vshrl.u32 %v255, 7
  %v257 = vsub.s32 1, %v256
  %v258 = vrot.slane %v249, %v257
  %v259 = vlaneseq
  %v260 = vshrl.u32 %v259, 7
  %v261 = vsub.s32 2, %v260
  %v262 = vrot.slane %v249, %v261
  %v263 = vlaneseq
  %v264 = vshrl.u32 %v263, 7
  %v265 = vsub.s32 3, %v264
  %v266 = vrot.slane %v249, %v265
  %v267 = vlaneseq
  %v268 = vshrl.u32 %v267, 7
  %v269 = vsub.s32 4, %v268
  %v270 = vrot.slane %v249, %v269
  %v271 = vlaneseq
  %v272 = vshrl.u32 %v271, 7
  %v273 = vsub.s32 5, %v272
  %v274 = vrot.slane %v249, %v273
  %v275 = vlaneseq
  %v276 = vshrl.u32 %v275, 7
  %v277 = vsub.s32 6, %v276
  %v278 = vrot.slane %v249, %v277
  %v279 = vlaneseq
  %v280 = vshrl.u32 %v279, 7
  %v281 = vsub.s32 7, %v280
  %v282 = vrot.slane %v249, %v281
  %v293 = vunpack.c.l.b16 %v15
  %v294 = vunpack.c.h.b16 %v15
  %v295 = vunpack.c.l.b16 %v16
  %v296 = vunpack.c.h.b16 %v16
  %v297 = vpack.c.b16 %v293, %v293
  %v298 = vpack.c.b16 %v294, %v294
  %v299 = vpack.c.b16 %v295, %v295
  %v300 = vpack.c.b16 %v296, %v296
  %v536 = vunpack.c.l.b16 %v17
  %v537 = vunpack.c.h.b16 %v17
  %v538 = vunpack.c.l.b16 %v18
  %v539 = vunpack.c.h.b16 %v18
  %v540 = vunpack.c.l.b16 %v19
  %v541 = vunpack.c.h.b16 %v19
  %v542 = vunpack.c.l.b16 %v20
  %v543 = vunpack.c.h.b16 %v20
  %v544 = vunpack.c.l.b16 %v21
  %v545 = vunpack.c.h.b16 %v21
  %v546 = vunpack.c.l.b16 %v22
  %v547 = vunpack.c.h.b16 %v22
  %v548 = vunpack.c.l.b16 %v23
  %v549 = vunpack.c.h.b16 %v23
  %v550 = vunpack.c.l.b16 %v24
  %v551 = vunpack.c.h.b16 %v24
  %v552 = vunpack.c.l.b16 %v25
  %v553 = vunpack.c.h.b16 %v25
  %v554 = vunpack.c.l.b16 %v26
  %v555 = vunpack.c.h.b16 %v26
  %v556 = vunpack.c.l.b16 %v27
  %v557 = vunpack.c.h.b16 %v27
  %v558 = vunpack.c.l.b16 %v28
  %v559 = vunpack.c.h.b16 %v28
  %v560 = vunpack.c.l.b16 %v29
  %v561 = vunpack.c.h.b16 %v29
  %v562 = vunpack.c.l.b16 %v30
  %v563 = vunpack.c.h.b16 %v30
  %v564 = vunpack.c.l.b16 %v31
  %v565 = vunpack.c.h.b16 %v31
  %v566 = vunpack.c.l.b16 %v32
  %v567 = vunpack.c.h.b16 %v32
  %v568 = vunpack.c.l.b16 %v33
  %v569 = vunpack.c.h.b16 %v33
  %v570 = vunpack.c.l.b16 %v34
  %v571 = vunpack.c.h.b16 %v34
  %v572 = vunpack.c.l.b16 %v35
  %v573 = vunpack.c.h.b16 %v35
  %v574 = vunpack.c.l.b16 %v36
  %v575 = vunpack.c.h.b16 %v36
  %v576 = vunpack.c.l.b16 %v37
  %v577 = vunpack.c.h.b16 %v37
  %v578 = vunpack.c.l.b16 %v38
  %v579 = vunpack.c.h.b16 %v38
  %v580 = vunpack.c.l.b16 %v39
  %v581 = vunpack.c.h.b16 %v39
  %v582 = vunpack.c.l.b16 %v40
  %v583 = vunpack.c.h.b16 %v40
  %v584 = vunpack.c.l.b16 %v41
  %v585 = vunpack.c.h.b16 %v41
  %v586 = vunpack.c.l.b16 %v42
  %v587 = vunpack.c.h.b16 %v42
  %v588 = vunpack.c.l.b16 %v43
  %v589 = vunpack.c.h.b16 %v43
  %v590 = vunpack.c.l.b16 %v44
  %v591 = vunpack.c.h.b16 %v44
  %v592 = vunpack.c.l.b16 %v45
  %v593 = vunpack.c.h.b16 %v45
  %v594 = vunpack.c.l.b16 %v46
  %v595 = vunpack.c.h.b16 %v46
  %v596 = vunpack.c.l.b16 %v47
  %v597 = vunpack.c.h.b16 %v47
  %v598 = vunpack.c.l.b16 %v48
  %v599 = vunpack.c.h.b16 %v48
  %v600 = vunpack.c.l.b16 %v49
  %v601 = vunpack.c.h.b16 %v49
  %v602 = vunpack.c.l.b16 %v50
  %v603 = vunpack.c.h.b16 %v50
  %v604 = vunpack.c.l.b16 %v51
  %v605 = vunpack.c.h.b16 %v51
  %v606 = vunpack.c.l.b16 %v52
  %v607 = vunpack.c.h.b16 %v52
  %v608 = vunpack.c.l.b16 %v53
  %v609 = vunpack.c.h.b16 %v53
  %v610 = vunpack.c.l.b16 %v54
  %v611 = vunpack.c.h.b16 %v54
  %v612 = vunpack.c.l.b16 %v55
  %v613 = vunpack.c.h.b16 %v55
  %v614 = vunpack.c.l.b16 %v56
  %v615 = vunpack.c.h.b16 %v56
  %v616 = vunpack.c.l.b16 %v57
  %v617 = vunpack.c.h.b16 %v57
  %v618 = vunpack.c.l.b16 %v58
  %v619 = vunpack.c.h.b16 %v58
  %v620 = vunpack.c.l.b16 %v59
  %v621 = vunpack.c.h.b16 %v59
  %v622 = vunpack.c.l.b16 %v60
  %v623 = vunpack.c.h.b16 %v60
  %v624 = vunpack.c.l.b16 %v61
  %v625 = vunpack.c.h.b16 %v61
  %v626 = vunpack.c.l.b16 %v62
  %v627 = vunpack.c.h.b16 %v62
  %v628 = vunpack.c.l.b16 %v63
  %v629 = vunpack.c.h.b16 %v63
  %v630 = vunpack.c.l.b16 %v64
  %v631 = vunpack.c.h.b16 %v64
  %v632 = vunpack.c.l.b16 %v65
  %v633 = vunpack.c.h.b16 %v65
  %v634 = vunpack.c.l.b16 %v66
  %v635 = vunpack.c.h.b16 %v66
  %v636 = vunpack.c.l.b16 %v67
  %v637 = vunpack.c.h.b16 %v67
  %v638 = vunpack.c.l.b16 %v68
  %v639 = vunpack.c.h.b16 %v68
  %v640 = vunpack.c.l.b16 %v69
  %v641 = vunpack.c.h.b16 %v69
  %v642 = vunpack.c.l.b16 %v70
  %v643 = vunpack.c.h.b16 %v70
  %v644 = vunpack.c.l.b16 %v71
  %v645 = vunpack.c.h.b16 %v71
  %v646 = vunpack.c.l.b16 %v72
  %v647 = vunpack.c.h.b16 %v72
  %v648 = vunpack.c.l.b16 %v73
  %v649 = vunpack.c.h.b16 %v73
  %v650 = vunpack.c.l.b16 %v74
  %v651 = vunpack.c.h.b16 %v74
  %v652 = vunpack.c.l.b16 %v75
  %v653 = vunpack.c.h.b16 %v75
  %v654 = vunpack.c.l.b16 %v76
  %v655 = vunpack.c.h.b16 %v76
  %v656 = vunpack.c.l.b16 %v77
  %v657 = vunpack.c.h.b16 %v77
  %v658 = vunpack.c.l.b16 %v78
  %v659 = vunpack.c.h.b16 %v78
  %v660 = vunpack.c.l.b16 %v79
  %v661 = vunpack.c.h.b16 %v79
  %v662 = vunpack.c.l.b16 %v80
  %v663 = vunpack.c.h.b16 %v80
  %v664 = vunpack.c.l.b16 %v81
  %v665 = vunpack.c.h.b16 %v81
  %v666 = vunpack.c.l.b16 %v82
  %v667 = vunpack.c.h.b16 %v82
  %v668 = vunpack.c.l.b16 %v83
  %v669 = vunpack.c.h.b16 %v83
  %v670 = vunpack.c.l.b16 %v84
  %v671 = vunpack.c.h.b16 %v84
  %v672 = vunpack.c.l.b16 %v85
  %v673 = vunpack.c.h.b16 %v85
  %v674 = vunpack.c.l.b16 %v86
  %v675 = vunpack.c.h.b16 %v86
  %v676 = vunpack.c.l.b16 %v87
  %v677 = vunpack.c.h.b16 %v87
  %v678 = vunpack.c.l.b16 %v88
  %v679 = vunpack.c.h.b16 %v88
  %v680 = vunpack.c.l.b16 %v89
  %v681 = vunpack.c.h.b16 %v89
  %v682 = vunpack.c.l.b16 %v90
  %v683 = vunpack.c.h.b16 %v90
  %v684 = vunpack.c.l.b16 %v91
  %v685 = vunpack.c.h.b16 %v91
  %v686 = vunpack.c.l.b16 %v92
  %v687 = vunpack.c.h.b16 %v92
  %v688 = vunpack.c.l.b16 %v93
  %v689 = vunpack.c.h.b16 %v93
  %v690 = vunpack.c.l.b16 %v94
  %v691 = vunpack.c.h.b16 %v94
  %v692 = vunpack.c.l.b16 %v95
  %v693 = vunpack.c.h.b16 %v95
  %v694 = vunpack.c.l.b16 %v96
  %v695 = vunpack.c.h.b16 %v96
  %v696 = vunpack.c.l.b16 %v97
  %v697 = vunpack.c.h.b16 %v97
  %v698 = vunpack.c.l.b16 %v98
  %v699 = vunpack.c.h.b16 %v98
  %v700 = vunpack.c.l.b16 %v99
  %v701 = vunpack.c.h.b16 %v99
  %v702 = vunpack.c.l.b16 %v100
  %v703 = vunpack.c.h.b16 %v100
  %v704 = vunpack.c.l.b16 %v101
  %v705 = vunpack.c.h.b16 %v101
  %v706 = vunpack.c.l.b16 %v102
  %v707 = vunpack.c.h.b16 %v102
  %v708 = vunpack.c.l.b16 %v103
  %v709 = vunpack.c.h.b16 %v103
  %v710 = vunpack.c.l.b16 %v104
  %v711 = vunpack.c.h.b16 %v104
  %v712 = vunpack.c.l.b16 %v105
  %v713 = vunpack.c.h.b16 %v105
  %v714 = vunpack.c.l.b16 %v106
  %v715 = vunpack.c.h.b16 %v106
  %v716 = vunpack.c.l.b16 %v107
  %v717 = vunpack.c.h.b16 %v107
  %v718 = vunpack.c.l.b16 %v108
  %v719 = vunpack.c.h.b16 %v108
  %v720 = vunpack.c.l.b16 %v109
  %v721 = vunpack.c.h.b16 %v109
  %v722 = vunpack.c.l.b16 %v110
  %v723 = vunpack.c.h.b16 %v110
  %v724 = vunpack.c.l.b16 %v111
  %v725 = vunpack.c.h.b16 %v111
  %v726 = vunpack.c.l.b16 %v112
  %v727 = vunpack.c.h.b16 %v112
  %v728 = vunpack.c.l.b16 %v113
  %v729 = vunpack.c.h.b16 %v113
  %v730 = vunpack.c.l.b16 %v114
  %v731 = vunpack.c.h.b16 %v114
  %v732 = vunpack.c.l.b16 %v115
  %v733 = vunpack.c.h.b16 %v115
  %v734 = vunpack.c.l.b16 %v116
  %v735 = vunpack.c.h.b16 %v116
  %v736 = vunpack.c.l.b16 %v117
  %v737 = vunpack.c.h.b16 %v117
  %v738 = vunpack.c.l.b16 %v118
  %v739 = vunpack.c.h.b16 %v118
  %v740 = vunpack.c.l.b16 %v119
  %v741 = vunpack.c.h.b16 %v119
  %v742 = vunpack.c.l.b16 %v120
  %v743 = vunpack.c.h.b16 %v120
  %v744 = vunpack.c.l.b16 %v121
  %v745 = vunpack.c.h.b16 %v121
  %v746 = vunpack.c.l.b16 %v122
  %v747 = vunpack.c.h.b16 %v122
  %v748 = vunpack.c.l.b16 %v123
  %v749 = vunpack.c.h.b16 %v123
  %v750 = vunpack.c.l.b16 %v124
  %v751 = vunpack.c.h.b16 %v124
  %v752 = vunpack.c.l.b16 %v125
  %v753 = vunpack.c.h.b16 %v125
  %v754 = vunpack.c.l.b16 %v126
  %v755 = vunpack.c.h.b16 %v126
  %v756 = vunpack.c.l.b16 %v127
  %v757 = vunpack.c.h.b16 %v127
  %v758 = vunpack.c.l.b16 %v128
  %v759 = vunpack.c.h.b16 %v128
  %v760 = vunpack.c.l.b16 %v129
  %v761 = vunpack.c.h.b16 %v129
  %v762 = vunpack.c.l.b16 %v130
  %v763 = vunpack.c.h.b16 %v130
  %v764 = vunpack.c.l.b16 %v131
  %v765 = vunpack.c.h.b16 %v131
  %v766 = vunpack.c.l.b16 %v132
  %v767 = vunpack.c.h.b16 %v132
  %v768 = vunpack.c.l.b16 %v133
  %v769 = vunpack.c.h.b16 %v133
  %v770 = vunpack.c.l.b16 %v134
  %v771 = vunpack.c.h.b16 %v134
  %v772 = vunpack.c.l.b16 %v135
  %v773 = vunpack.c.h.b16 %v135
  %v774 = vunpack.c.l.b16 %v136
  %v775 = vunpack.c.h.b16 %v136
  %v776 = vunpack.c.l.b16 %v137
  %v777 = vunpack.c.h.b16 %v137
  %v778 = vunpack.c.l.b16 %v138
  %v779 = vunpack.c.h.b16 %v138
  %v780 = vunpack.c.l.b16 %v139
  %v781 = vunpack.c.h.b16 %v139
  %v782 = vunpack.c.l.b16 %v140
  %v783 = vunpack.c.h.b16 %v140
  %v784 = vunpack.c.l.b16 %v141
  %v785 = vunpack.c.h.b16 %v141
  %v786 = vunpack.c.l.b16 %v142
  %v787 = vunpack.c.h.b16 %v142
  %v788 = vunpack.c.l.b16 %v143
  %v789 = vunpack.c.h.b16 %v143
  %v790 = vunpack.c.l.b16 %v144
  %v791 = vunpack.c.h.b16 %v144
  %v792 = vunpack.c.l.b16 %v145
  %v793 = vunpack.c.h.b16 %v145
  %v794 = vunpack.c.l.b16 %v146
  %v795 = vunpack.c.h.b16 %v146
  %v796 = vunpack.c.l.b16 %v147
  %v797 = vunpack.c.h.b16 %v147
  %v798 = vunpack.c.l.b16 %v148
  %v799 = vunpack.c.h.b16 %v148
  %v800 = vunpack.c.l.b16 %v149
  %v801 = vunpack.c.h.b16 %v149
  %v802 = vunpack.c.l.b16 %v150
  %v803 = vunpack.c.h.b16 %v150
  %v804 = vunpack.c.l.b16 %v151
  %v805 = vunpack.c.h.b16 %v151
  %v806 = vunpack.c.l.b16 %v152
  %v807 = vunpack.c.h.b16 %v152
  %v808 = vunpack.c.l.b16 %v153
  %v809 = vunpack.c.h.b16 %v153
  %v810 = vunpack.c.l.b16 %v154
  %v811 = vunpack.c.h.b16 %v154
  %v812 = vunpack.c.l.b16 %v155
  %v813 = vunpack.c.h.b16 %v155
  %v814 = vunpack.c.l.b16 %v156
  %v815 = vunpack.c.h.b16 %v156
  %v816 = vunpack.c.l.b16 %v157
  %v817 = vunpack.c.h.b16 %v157
  %v818 = vunpack.c.l.b16 %v158
  %v819 = vunpack.c.h.b16 %v158
  %v820 = vunpack.c.l.b16 %v159
  %v821 = vunpack.c.h.b16 %v159
  %v822 = vunpack.c.l.b16 %v160
  %v823 = vunpack.c.h.b16 %v160
  %v824 = vunpack.c.l.b16 %v161
  %v825 = vunpack.c.h.b16 %v161
  %v826 = vunpack.c.l.b16 %v162
  %v827 = vunpack.c.h.b16 %v162
  %v828 = vunpack.c.l.b16 %v163
  %v829 = vunpack.c.h.b16 %v163
  %v830 = vunpack.c.l.b16 %v164
  %v831 = vunpack.c.h.b16 %v164
  %v832 = vunpack.c.l.b16 %v165
  %v833 = vunpack.c.h.b16 %v165
  %v834 = vunpack.c.l.b16 %v166
  %v835 = vunpack.c.h.b16 %v166
  %v836 = vunpack.c.l.b16 %v167
  %v837 = vunpack.c.h.b16 %v167
  %v838 = vunpack.c.l.b16 %v168
  %v839 = vunpack.c.h.b16 %v168
  %v840 = vunpack.c.l.b16 %v169
  %v841 = vunpack.c.h.b16 %v169
  %v842 = vunpack.c.l.b16 %v170
  %v843 = vunpack.c.h.b16 %v170
  %v844 = vunpack.c.l.b16 %v171
  %v845 = vunpack.c.h.b16 %v171
  %v846 = vunpack.c.l.b16 %v172
  %v847 = vunpack.c.h.b16 %v172
  %v848 = vunpack.c.l.b16 %v173
  %v849 = vunpack.c.h.b16 %v173
  %v850 = vunpack.c.l.b16 %v174
  %v851 = vunpack.c.h.b16 %v174
  %v852 = vunpack.c.l.b16 %v175
  %v853 = vunpack.c.h.b16 %v175
  %v854 = vunpack.c.l.b16 %v176
  %v855 = vunpack.c.h.b16 %v176
  %v856 = vunpack.c.l.b16 %v177
  %v857 = vunpack.c.h.b16 %v177
  %v858 = vunpack.c.l.b16 %v178
  %v859 = vunpack.c.h.b16 %v178
  %v860 = vunpack.c.l.b16 %v179
  %v861 = vunpack.c.h.b16 %v179
  %v862 = vunpack.c.l.b16 %v180
  %v863 = vunpack.c.h.b16 %v180
  %v864 = vunpack.c.l.b16 %v181
  %v865 = vunpack.c.h.b16 %v181
  %v866 = vunpack.c.l.b16 %v182
  %v867 = vunpack.c.h.b16 %v182
  %v868 = vunpack.c.l.b16 %v183
  %v869 = vunpack.c.h.b16 %v183
  %v870 = vunpack.c.l.b16 %v184
  %v871 = vunpack.c.h.b16 %v184
  %v872 = vunpack.c.l.b16 %v185
  %v873 = vunpack.c.h.b16 %v185
  %v874 = vunpack.c.l.b16 %v186
  %v875 = vunpack.c.h.b16 %v186
  %v876 = vunpack.c.l.b16 %v187
  %v877 = vunpack.c.h.b16 %v187
  %v878 = vunpack.c.l.b16 %v188
  %v879 = vunpack.c.h.b16 %v188
  %v880 = vunpack.c.l.b16 %v189
  %v881 = vunpack.c.h.b16 %v189
  %v882 = vunpack.c.l.b16 %v190
  %v883 = vunpack.c.h.b16 %v190
  %v884 = vunpack.c.l.b16 %v191
  %v885 = vunpack.c.h.b16 %v191
  %v886 = vunpack.c.l.b16 %v192
  %v887 = vunpack.c.h.b16 %v192
  %v888 = vunpack.c.l.b16 %v193
  %v889 = vunpack.c.h.b16 %v193
  %v890 = vunpack.c.l.b16 %v194
  %v891 = vunpack.c.h.b16 %v194
  %v892 = vunpack.c.l.b16 %v195
  %v893 = vunpack.c.h.b16 %v195
  %v894 = vunpack.c.l.b16 %v196
  %v895 = vunpack.c.h.b16 %v196
  %v896 = vunpack.c.l.b16 %v197
  %v897 = vunpack.c.h.b16 %v197
  %v898 = vunpack.c.l.b16 %v198
  %v899 = vunpack.c.h.b16 %v198
  %v900 = vunpack.c.l.b16 %v199
  %v901 = vunpack.c.h.b16 %v199
  %v902 = vunpack.c.l.b16 %v200
  %v903 = vunpack.c.h.b16 %v200
  %v904 = vunpack.c.l.b16 %v201
  %v905 = vunpack.c.h.b16 %v201
  %v906 = vunpack.c.l.b16 %v202
  %v907 = vunpack.c.h.b16 %v202
  %v908 = vunpack.c.l.b16 %v203
  %v909 = vunpack.c.h.b16 %v203
  %v910 = vunpack.c.l.b16 %v204
  %v911 = vunpack.c.h.b16 %v204
  %v912 = vunpack.c.l.b16 %v205
  %v913 = vunpack.c.h.b16 %v205
  %v914 = vunpack.c.l.b16 %v206
  %v915 = vunpack.c.h.b16 %v206
  %v916 = vunpack.c.l.b16 %v207
  %v917 = vunpack.c.h.b16 %v207
  %v918 = vunpack.c.l.b16 %v208
  %v919 = vunpack.c.h.b16 %v208
  %v920 = vunpack.c.l.b16 %v209
  %v921 = vunpack.c.h.b16 %v209
  %v922 = vunpack.c.l.b16 %v210
  %v923 = vunpack.c.h.b16 %v210
  %v924 = vunpack.c.l.b16 %v211
  %v925 = vunpack.c.h.b16 %v211
  %v926 = vunpack.c.l.b16 %v212
  %v927 = vunpack.c.h.b16 %v212
  %v928 = vunpack.c.l.b16 %v213
  %v929 = vunpack.c.h.b16 %v213
  %v930 = vunpack.c.l.b16 %v214
  %v931 = vunpack.c.h.b16 %v214
  %v932 = vunpack.c.l.b16 %v215
  %v933 = vunpack.c.h.b16 %v215
  %v934 = vunpack.c.l.b16 %v216
  %v935 = vunpack.c.h.b16 %v216
  %v936 = vunpack.c.l.b16 %v217
  %v937 = vunpack.c.h.b16 %v217
  %v938 = vunpack.c.l.b16 %v218
  %v939 = vunpack.c.h.b16 %v218
  %v940 = vunpack.c.l.b16 %v219
  %v941 = vunpack.c.h.b16 %v219
  %v942 = vunpack.c.l.b16 %v220
  %v943 = vunpack.c.h.b16 %v220
  %v944 = vunpack.c.l.b16 %v221
  %v945 = vunpack.c.h.b16 %v221
  %v946 = vunpack.c.l.b16 %v222
  %v947 = vunpack.c.h.b16 %v222
  %v948 = vunpack.c.l.b16 %v223
  %v949 = vunpack.c.h.b16 %v223
  %v950 = vunpack.c.l.b16 %v224
  %v951 = vunpack.c.h.b16 %v224
  %v952 = vunpack.c.l.b16 %v225
  %v953 = vunpack.c.h.b16 %v225
  %v954 = vunpack.c.l.b16 %v226
  %v955 = vunpack.c.h.b16 %v226
  %v956 = vunpack.c.l.b16 %v227
  %v957 = vunpack.c.h.b16 %v227
  %v958 = vunpack.c.l.b16 %v228
  %v959 = vunpack.c.h.b16 %v228
  %v960 = vunpack.c.l.b16 %v229
  %v961 = vunpack.c.h.b16 %v229
  %v962 = vunpack.c.l.b16 %v230
  %v963 = vunpack.c.h.b16 %v230
  %v964 = vunpack.c.l.b16 %v231
  %v965 = vunpack.c.h.b16 %v231
  %v966 = vunpack.c.l.b16 %v232
  %v967 = vunpack.c.h.b16 %v232
  %v968 = vunpack.c.l.b16 %v233
  %v969 = vunpack.c.h.b16 %v233
  %v970 = vunpack.c.l.b16 %v234
  %v971 = vunpack.c.h.b16 %v234
  %v972 = vunpack.c.l.b16 %v235
  %v973 = vunpack.c.h.b16 %v235
  %v974 = vunpack.c.l.b16 %v236
  %v975 = vunpack.c.h.b16 %v236
  %v976 = vunpack.c.l.b16 %v237
  %v977 = vunpack.c.h.b16 %v237
  %v978 = vunpack.c.l.b16 %v238
  %v979 = vunpack.c.h.b16 %v238
  %v980 = vunpack.c.l.b16 %v239
  %v981 = vunpack.c.h.b16 %v239
  %v982 = vunpack.c.l.b16 %v240
  %v983 = vunpack.c.h.b16 %v240
  %v984 = vunpack.c.l.b16 %v241
  %v985 = vunpack.c.h.b16 %v241
  %v986 = vunpack.c.l.b16 %v242
  %v987 = vunpack.c.h.b16 %v242
  %v988 = vunpack.c.l.b16 %v243
  %v989 = vunpack.c.h.b16 %v243
  %v990 = vunpack.c.l.b16 %v244
  %v991 = vunpack.c.h.b16 %v244
  %v992 = vunpack.c.l.b16 %v245
  %v993 = vunpack.c.h.b16 %v245
  %v994 = vunpack.c.l.b16 %v246
  %v995 = vunpack.c.h.b16 %v246
  %v996 = vunpack.c.l.b16 %v247
  %v997 = vunpack.c.h.b16 %v247
  %v998 = vunpack.c.l.b16 %v248
  %v999 = vunpack.c.h.b16 %v248
  %v1000 = vpack.c.b16 %v544, %v536
  %v1001 = vpack.c.b16 %v545, %v537
  %v1002 = vpack.c.b16 %v546, %v538
  %v1003 = vpack.c.b16 %v547, %v539
  %v1004 = vpack.c.b16 %v548, %v540
  %v1005 = vpack.c.b16 %v549, %v541
  %v1006 = vpack.c.b16 %v550, %v542
  %v1007 = vpack.c.b16 %v551, %v543
  %v1008 = vpack.c.b16 %v560, %v552
  %v1009 = vpack.c.b16 %v561, %v553
  %v1010 = vpack.c.b16 %v562, %v554
  %v1011 = vpack.c.b16 %v563, %v555
  %v1012 = vpack.c.b16 %v564, %v556
  %v1013 = vpack.c.b16 %v565, %v557
  %v1014 = vpack.c.b16 %v566, %v558
  %v1015 = vpack.c.b16 %v567, %v559
  %v1016 = vpack.c.b16 %v576, %v568
  %v1017 = vpack.c.b16 %v577, %v569
  %v1018 = vpack.c.b16 %v578, %v570
  %v1019 = vpack.c.b16 %v579, %v571
  %v1020 = vpack.c.b16 %v580, %v572
  %v1021 = vpack.c.b16 %v581, %v573
  %v1022 = vpack.c.b16 %v582, %v574
  %v1023 = vpack.c.b16 %v583, %v575
  %v1024 = vpack.c.b16 %v592, %v584
  %v1025 = vpack.c.b16 %v593, %v585
  %v1026 = vpack.c.b16 %v594, %v586
  %v1027 = vpack.c.b16 %v595, %v587
  %v1028 = vpack.c.b16 %v596, %v588
  %v1029 = vpack.c.b16 %v597, %v589
  %v1030 = vpack.c.b16 %v598, %v590
  %v1031 = vpack.c.b16 %v599, %v591
  %v1032 = vpack.c.b16 %v608, %v600
  %v1033 = vpack.c.b16 %v609, %v601
  %v1034 = vpack.c.b16 %v610, %v602
  %v1035 = vpack.c.b16 %v611, %v603
  %v1036 = vpack.c.b16 %v612, %v604
  %v1037 = vpack.c.b16 %v613, %v605
  %v1038 = vpack.c.b16 %v614, %v606
  %v1039 = vpack.c.b16 %v615, %v607
  %v1040 = vpack.c.b16 %v624, %v616
  %v1041 = vpack.c.b16 %v625, %v617
  %v1042 = vpack.c.b16 %v626, %v618
  %v1043 = vpack.c.b16 %v627, %v619
  %v1044 = vpack.c.b16 %v628, %v620
  %v1045 = vpack.c.b16 %v629, %v621
  %v1046 = vpack.c.b16 %v630, %v622
  %v1047 = vpack.c.b16 %v631, %v623
  %v1048 = vpack.c.b16 %v640, %v632
  %v1049 = vpack.c.b16 %v641, %v633
  %v1050 = vpack.c.b16 %v642, %v634
  %v1051 = vpack.c.b16 %v643, %v635
  %v1052 = vpack.c.b16 %v644, %v636
  %v1053 = vpack.c.b16 %v645, %v637
  %v1054 = vpack.c.b16 %v646, %v638
  %v1055 = vpack.c.b16 %v647, %v639
  %v1056 = vpack.c.b16 %v656, %v648
  %v1057 = vpack.c.b16 %v657, %v649
  %v1058 = vpack.c.b16 %v658, %v650
  %v1059 = vpack.c.b16 %v659, %v651
  %v1060 = vpack.c.b16 %v660, %v652
  %v1061 = vpack.c.b16 %v661, %v653
  %v1062 = vpack.c.b16 %v662, %v654
  %v1063 = vpack.c.b16 %v663, %v655
  %v1064 = vpack.c.b16 %v672, %v664
  %v1065 = vpack.c.b16 %v673, %v665
  %v1066 = vpack.c.b16 %v674, %v666
  %v1067 = vpack.c.b16 %v675, %v667
  %v1068 = vpack.c.b16 %v676, %v668
  %v1069 = vpack.c.b16 %v677, %v669
  %v1070 = vpack.c.b16 %v678, %v670
  %v1071 = vpack.c.b16 %v679, %v671
  %v1072 = vpack.c.b16 %v688, %v680
  %v1073 = vpack.c.b16 %v689, %v681
  %v1074 = vpack.c.b16 %v690, %v682
  %v1075 = vpack.c.b16 %v691, %v683
  %v1076 = vpack.c.b16 %v692, %v684
  %v1077 = vpack.c.b16 %v693, %v685
  %v1078 = vpack.c.b16 %v694, %v686
  %v1079 = vpack.c.b16 %v695, %v687
  %v1080 = vpack.c.b16 %v704, %v696
  %v1081 = vpack.c.b16 %v705, %v697
  %v1082 = vpack.c.b16 %v706, %v698
  %v1083 = vpack.c.b16 %v707, %v699
  %v1084 = vpack.c.b16 %v708, %v700
  %v1085 = vpack.c.b16 %v709, %v701
  %v1086 = vpack.c.b16 %v710, %v702
  %v1087 = vpack.c.b16 %v711, %v703
  %v1088 = vpack.c.b16 %v720, %v712
  %v1089 = vpack.c.b16 %v721, %v713
  %v1090 = vpack.c.b16 %v722, %v714
  %v1091 = vpack.c.b16 %v723, %v715
  %v1092 = vpack.c.b16 %v724, %v716
  %v1093 = vpack.c.b16 %v725, %v717
  %v1094 = vpack.c.b16 %v726, %v718
  %v1095 = vpack.c.b16 %v727, %v719
  %v1096 = vpack.c.b16 %v736, %v728
  %v1097 = vpack.c.b16 %v737, %v729
  %v1098 = vpack.c.b16 %v738, %v730
  %v1099 = vpack.c.b16 %v739, %v731
  %v1100 = vpack.c.b16 %v740, %v732
  %v1101 = vpack.c.b16 %v741, %v733
  %v1102 = vpack.c.b16 %v742, %v734
  %v1103 = vpack.c.b16 %v743, %v735
  %v1104 = vpack.c.b16 %v752, %v744
  %v1105 = vpack.c.b16 %v753, %v745
  %v1106 = vpack.c.b16 %v754, %v746
  %v1107 = vpack.c.b16 %v755, %v747
  %v1108 = vpack.c.b16 %v756, %v748
  %v1109 = vpack.c.b16 %v757, %v749
  %v1110 = vpack.c.b16 %v758, %v750
  %v1111 = vpack.c.b16 %v759, %v751
  %v1112 = vpack.c.b16 %v768, %v760
  %v1113 = vpack.c.b16 %v769, %v761
  %v1114 = vpack.c.b16 %v770, %v762
  %v1115 = vpack.c.b16 %v771, %v763
  %v1116 = vpack.c.b16 %v772, %v764
  %v1117 = vpack.c.b16 %v773, %v765
  %v1118 = vpack.c.b16 %v774, %v766
  %v1119 = vpack.c.b16 %v775, %v767
  %v1120 = vpack.c.b16 %v784, %v776
  %v1121 = vpack.c.b16 %v785, %v777
  %v1122 = vpack.c.b16 %v786, %v778
  %v1123 = vpack.c.b16 %v787, %v779
  %v1124 = vpack.c.b16 %v788, %v780
  %v1125 = vpack.c.b16 %v789, %v781
  %v1126 = vpack.c.b16 %v790, %v782
  %v1127 = vpack.c.b16 %v791, %v783
  %v1128 = vpack.c.b16 %v800, %v792
  %v1129 = vpack.c.b16 %v801, %v793
  %v1130 = vpack.c.b16 %v802, %v794
  %v1131 = vpack.c.b16 %v803, %v795
  %v1132 = vpack.c.b16 %v804, %v796
  %v1133 = vpack.c.b16 %v805, %v797
  %v1134 = vpack.c.b16 %v806, %v798
  %v1135 = vpack.c.b16 %v807, %v799
  %v1136 = vpack.c.b16 %v816, %v808
  %v1137 = vpack.c.b16 %v817, %v809
  %v1138 = vpack.c.b16 %v818, %v810
  %v1139 = vpack.c.b16 %v819, %v811
  %v1140 = vpack.c.b16 %v820, %v812
  %v1141 = vpack.c.b16 %v821, %v813
  %v1142 = vpack.c.b16 %v822, %v814
  %v1143 = vpack.c.b16 %v823, %v815
  %v1144 = vpack.c.b16 %v832, %v824
  %v1145 = vpack.c.b16 %v833, %v825
  %v1146 = vpack.c.b16 %v834, %v826
  %v1147 = vpack.c.b16 %v835, %v827
  %v1148 = vpack.c.b16 %v836, %v828
  %v1149 = vpack.c.b16 %v837, %v829
  %v1150 = vpack.c.b16 %v838, %v830
  %v1151 = vpack.c.b16 %v839, %v831
  %v1152 = vpack.c.b16 %v848, %v840
  %v1153 = vpack.c.b16 %v849, %v841
  %v1154 = vpack.c.b16 %v850, %v842
  %v1155 = vpack.c.b16 %v851, %v843
  %v1156 = vpack.c.b16 %v852, %v844
  %v1157 = vpack.c.b16 %v853, %v845
  %v1158 = vpack.c.b16 %v854, %v846
  %v1159 = vpack.c.b16 %v855, %v847
  %v1160 = vpack.c.b16 %v864, %v856
  %v1161 = vpack.c.b16 %v865, %v857
  %v1162 = vpack.c.b16 %v866, %v858
  %v1163 = vpack.c.b16 %v867, %v859
  %v1164 = vpack.c.b16 %v868, %v860
  %v1165 = vpack.c.b16 %v869, %v861
  %v1166 = vpack.c.b16 %v870, %v862
  %v1167 = vpack.c.b16 %v871, %v863
  %v1168 = vpack.c.b16 %v880, %v872
  %v1169 = vpack.c.b16 %v881, %v873
  %v1170 = vpack.c.b16 %v882, %v874
  %v1171 = vpack.c.b16 %v883, %v875
  %v1172 = vpack.c.b16 %v884, %v876
  %v1173 = vpack.c.b16 %v885, %v877
  %v1174 = vpack.c.b16 %v886, %v878
  %v1175 = vpack.c.b16 %v887, %v879
  %v1176 = vpack.c.b16 %v896, %v888
  %v1177 = vpack.c.b16 %v897, %v889
  %v1178 = vpack.c.b16 %v898, %v890
  %v1179 = vpack.c.b16 %v899, %v891
  %v1180 = vpack.c.b16 %v900, %v892
  %v1181 = vpack.c.b16 %v901, %v893
  %v1182 = vpack.c.b16 %v902, %v894
  %v1183 = vpack.c.b16 %v903, %v895
  %v1184 = vpack.c.b16 %v912, %v904
  %v1185 = vpack.c.b16 %v913, %v905
  %v1186 = vpack.c.b16 %v914, %v906
  %v1187 = vpack.c.b16 %v915, %v907
  %v1188 = vpack.c.b16 %v916, %v908
  %v1189 = vpack.c.b16 %v917, %v909
  %v1190 = vpack.c.b16 %v918, %v910
  %v1191 = vpack.c.b16 %v919, %v911
  %v1192 = vpack.c.b16 %v928, %v920
  %v1193 = vpack.c.b16 %v929, %v921
  %v1194 = vpack.c.b16 %v930, %v922
  %v1195 = vpack.c.b16 %v931, %v923
  %v1196 = vpack.c.b16 %v932, %v924
  %v1197 = vpack.c.b16 %v933, %v925
  %v1198 = vpack.c.b16 %v934, %v926
  %v1199 = vpack.c.b16 %v935, %v927
  %v1200 = vpack.c.b16 %v944, %v936
  %v1201 = vpack.c.b16 %v945, %v937
  %v1202 = vpack.c.b16 %v946, %v938
  %v1203 = vpack.c.b16 %v947, %v939
  %v1204 = vpack.c.b16 %v948, %v940
  %v1205 = vpack.c.b16 %v949, %v941
  %v1206 = vpack.c.b16 %v950, %v942
  %v1207 = vpack.c.b16 %v951, %v943
  %v1208 = vpack.c.b16 %v960, %v952
  %v1209 = vpack.c.b16 %v961, %v953
  %v1210 = vpack.c.b16 %v962, %v954
  %v1211 = vpack.c.b16 %v963, %v955
  %v1212 = vpack.c.b16 %v964, %v956
  %v1213 = vpack.c.b16 %v965, %v957
  %v1214 = vpack.c.b16 %v966, %v958
  %v1215 = vpack.c.b16 %v967, %v959
  %v1216 = vpack.c.b16 %v976, %v968
  %v1217 = vpack.c.b16 %v977, %v969
  %v1218 = vpack.c.b16 %v978, %v970
  %v1219 = vpack.c.b16 %v979, %v971
  %v1220 = vpack.c.b16 %v980, %v972
  %v1221 = vpack.c.b16 %v981, %v973
  %v1222 = vpack.c.b16 %v982, %v974
  %v1223 = vpack.c.b16 %v983, %v975
  %v1224 = vpack.c.b16 %v992, %v984
  %v1225 = vpack.c.b16 %v993, %v985
  %v1226 = vpack.c.b16 %v994, %v986
  %v1227 = vpack.c.b16 %v995, %v987
  %v1228 = vpack.c.b16 %v996, %v988
  %v1229 = vpack.c.b16 %v997, %v989
  %v1230 = vpack.c.b16 %v998, %v990
  %v1231 = vpack.c.b16 %v999, %v991
  %vm1464 = vcmask 654336
  %v1466 = vsel %vm1464, %v300, 0
  %1468 = vmatprep.subr.bf16.mxu0 %v1001
  %1469 = vmatpush1.bf16.msra.mxu0 %v1000
  %1470 = vmatprep.subr.bf16.mxu0 %v1009
  %1471 = vmatpush1.bf16.msra.mxu0 %v1008
  %1472 = vmatprep.subr.bf16.mxu0 %v1017
  %1473 = vmatpush1.bf16.msra.mxu0 %v1016
  %1474 = vmatprep.subr.bf16.mxu0 %v1025
  %1475 = vmatpush1.bf16.msra.mxu0 %v1024
  %1476 = vmatprep.subr.bf16.mxu0 %v1033
  %1477 = vmatpush1.bf16.msra.mxu0 %v1032
  %1478 = vmatprep.subr.bf16.mxu0 %v1041
  %1479 = vmatpush1.bf16.msra.mxu0 %v1040
  %1480 = vmatprep.subr.bf16.mxu0 %v1049
  %1481 = vmatpush1.bf16.msra.mxu0 %v1048
  %1482 = vmatprep.subr.bf16.mxu0 %v1057
  %1483 = vmatpush1.bf16.msra.mxu0 %v1056
  %1484 = vmatprep.subr.bf16.mxu0 %v1065
  %1485 = vmatpush1.bf16.msra.mxu0 %v1064
  %1486 = vmatprep.subr.bf16.mxu0 %v1073
  %1487 = vmatpush1.bf16.msra.mxu0 %v1072
  %1488 = vmatprep.subr.bf16.mxu0 %v1081
  %1489 = vmatpush1.bf16.msra.mxu0 %v1080
  %1490 = vmatprep.subr.bf16.mxu0 %v1089
  %1491 = vmatpush1.bf16.msra.mxu0 %v1088
  %1492 = vmatprep.subr.bf16.mxu0 %v1097
  %1493 = vmatpush1.bf16.msra.mxu0 %v1096
  %1494 = vmatprep.subr.bf16.mxu0 %v1105
  %1495 = vmatpush1.bf16.msra.mxu0 %v1104
  %1496 = vmatprep.subr.bf16.mxu0 %v1113
  %1497 = vmatpush1.bf16.msra.mxu0 %v1112
  %1498 = vmatprep.subr.bf16.mxu0 %v1121
  %1499 = vmatpush1.bf16.msra.mxu0 %v1120
  %1500 = vmatprep.mubr.bf16.mxu0 %v298
  %1501 = vmatmul.mubr.bf16.gmra.mrb[0].mxu0 %v297
  %v1502 = vpop.f32.mrb[0].mxu0
  %v1503 = vadd.f32 %v254, %v1502
  %v1504 = vpop.f32.mrb[0].mxu0
  %v1505 = vadd.f32 %v258, %v1504
  %v1506 = vpop.f32.mrb[0].mxu0
  %v1507 = vpop.f32.mrb[0].mxu0
  %1508 = vdwg.mxu0
  %1509 = vmatprep.subr.bf16.mxu0 %v1129
  %1510 = vmatpush1.bf16.msra.mxu0 %v1128
  %1511 = vmatprep.subr.bf16.mxu0 %v1137
  %1512 = vmatpush1.bf16.msra.mxu0 %v1136
  %1513 = vmatprep.subr.bf16.mxu0 %v1145
  %1514 = vmatpush1.bf16.msra.mxu0 %v1144
  %1515 = vmatprep.subr.bf16.mxu0 %v1153
  %1516 = vmatpush1.bf16.msra.mxu0 %v1152
  %1517 = vmatprep.subr.bf16.mxu0 %v1161
  %1518 = vmatpush1.bf16.msra.mxu0 %v1160
  %1519 = vmatprep.subr.bf16.mxu0 %v1169
  %1520 = vmatpush1.bf16.msra.mxu0 %v1168
  %1521 = vmatprep.subr.bf16.mxu0 %v1177
  %1522 = vmatpush1.bf16.msra.mxu0 %v1176
  %1523 = vmatprep.subr.bf16.mxu0 %v1185
  %1524 = vmatpush1.bf16.msra.mxu0 %v1184
  %1525 = vmatprep.subr.bf16.mxu0 %v1193
  %1526 = vmatpush1.bf16.msra.mxu0 %v1192
  %1527 = vmatprep.subr.bf16.mxu0 %v1201
  %1528 = vmatpush1.bf16.msra.mxu0 %v1200
  %1529 = vmatprep.subr.bf16.mxu0 %v1209
  %1530 = vmatpush1.bf16.msra.mxu0 %v1208
  %1531 = vmatprep.subr.bf16.mxu0 %v1217
  %1532 = vmatpush1.bf16.msra.mxu0 %v1216
  %1533 = vmatprep.subr.bf16.mxu0 %v1225
  %1534 = vmatpush1.bf16.msra.mxu0 %v1224
  %1535 = vmatprep.subr.bf16.mxu0 0
  %1536 = vmatpush1.bf16.msra.mxu0 0
  %1537 = vmatprep.subr.bf16.mxu0 0
  %1538 = vmatpush1.bf16.msra.mxu0 0
  %1539 = vmatprep.subr.bf16.mxu0 0
  %1540 = vmatpush1.bf16.msra.mxu0 0
  %1541 = vmatprep.mubr.bf16.mxu0 %v1466
  %1542 = vmatmul.mubr.bf16.gmra.mrb[0].mxu0 %v299
  %v1543 = vpop.f32.mrb[0].mxu0
  %v1544 = vadd.f32 %v1503, %v1543
  %v1545 = vpop.f32.mrb[0].mxu0
  %v1546 = vadd.f32 %v1505, %v1545
  %v1547 = vpop.f32.mrb[0].mxu0
  %v1548 = vpop.f32.mrb[0].mxu0
  %1549 = vdwg.mxu0
  %1550 = vmatprep.subr.bf16.mxu0 %v1003
  %1551 = vmatpush1.bf16.msra.mxu0 %v1002
  %1552 = vmatprep.subr.bf16.mxu0 %v1011
  %1553 = vmatpush1.bf16.msra.mxu0 %v1010
  %1554 = vmatprep.subr.bf16.mxu0 %v1019
  %1555 = vmatpush1.bf16.msra.mxu0 %v1018
  %1556 = vmatprep.subr.bf16.mxu0 %v1027
  %1557 = vmatpush1.bf16.msra.mxu0 %v1026
  %1558 = vmatprep.subr.bf16.mxu0 %v1035
  %1559 = vmatpush1.bf16.msra.mxu0 %v1034
  %1560 = vmatprep.subr.bf16.mxu0 %v1043
  %1561 = vmatpush1.bf16.msra.mxu0 %v1042
  %1562 = vmatprep.subr.bf16.mxu0 %v1051
  %1563 = vmatpush1.bf16.msra.mxu0 %v1050
  %1564 = vmatprep.subr.bf16.mxu0 %v1059
  %1565 = vmatpush1.bf16.msra.mxu0 %v1058
  %1566 = vmatprep.subr.bf16.mxu0 %v1067
  %1567 = vmatpush1.bf16.msra.mxu0 %v1066
  %1568 = vmatprep.subr.bf16.mxu0 %v1075
  %1569 = vmatpush1.bf16.msra.mxu0 %v1074
  %1570 = vmatprep.subr.bf16.mxu0 %v1083
  %1571 = vmatpush1.bf16.msra.mxu0 %v1082
  %1572 = vmatprep.subr.bf16.mxu0 %v1091
  %1573 = vmatpush1.bf16.msra.mxu0 %v1090
  %1574 = vmatprep.subr.bf16.mxu0 %v1099
  %1575 = vmatpush1.bf16.msra.mxu0 %v1098
  %1576 = vmatprep.subr.bf16.mxu0 %v1107
  %1577 = vmatpush1.bf16.msra.mxu0 %v1106
  %1578 = vmatprep.subr.bf16.mxu0 %v1115
  %1579 = vmatpush1.bf16.msra.mxu0 %v1114
  %1580 = vmatprep.subr.bf16.mxu0 %v1123
  %1581 = vmatpush1.bf16.msra.mxu0 %v1122
  %1582 = vmatprep.mubr.bf16.mxu0 %v298
  %1583 = vmatmul.mubr.bf16.gmra.mrb[0].mxu0 %v297
  %v1584 = vpop.f32.mrb[0].mxu0
  %v1585 = vadd.f32 %v262, %v1584
  %v1586 = vpop.f32.mrb[0].mxu0
  %v1587 = vadd.f32 %v266, %v1586
  %v1588 = vpop.f32.mrb[0].mxu0
  %v1589 = vpop.f32.mrb[0].mxu0
  %1590 = vdwg.mxu0
  %1591 = vmatprep.subr.bf16.mxu0 %v1131
  %1592 = vmatpush1.bf16.msra.mxu0 %v1130
  %1593 = vmatprep.subr.bf16.mxu0 %v1139
  %1594 = vmatpush1.bf16.msra.mxu0 %v1138
  %1595 = vmatprep.subr.bf16.mxu0 %v1147
  %1596 = vmatpush1.bf16.msra.mxu0 %v1146
  %1597 = vmatprep.subr.bf16.mxu0 %v1155
  %1598 = vmatpush1.bf16.msra.mxu0 %v1154
  %1599 = vmatprep.subr.bf16.mxu0 %v1163
  %1600 = vmatpush1.bf16.msra.mxu0 %v1162
  %1601 = vmatprep.subr.bf16.mxu0 %v1171
  %1602 = vmatpush1.bf16.msra.mxu0 %v1170
  %1603 = vmatprep.subr.bf16.mxu0 %v1179
  %1604 = vmatpush1.bf16.msra.mxu0 %v1178
  %1605 = vmatprep.subr.bf16.mxu0 %v1187
  %1606 = vmatpush1.bf16.msra.mxu0 %v1186
  %1607 = vmatprep.subr.bf16.mxu0 %v1195
  %1608 = vmatpush1.bf16.msra.mxu0 %v1194
  %1609 = vmatprep.subr.bf16.mxu0 %v1203
  %1610 = vmatpush1.bf16.msra.mxu0 %v1202
  %1611 = vmatprep.subr.bf16.mxu0 %v1211
  %1612 = vmatpush1.bf16.msra.mxu0 %v1210
  %1613 = vmatprep.subr.bf16.mxu0 %v1219
  %1614 = vmatpush1.bf16.msra.mxu0 %v1218
  %1615 = vmatprep.subr.bf16.mxu0 %v1227
  %1616 = vmatpush1.bf16.msra.mxu0 %v1226
  %1617 = vmatprep.subr.bf16.mxu0 0
  %1618 = vmatpush1.bf16.msra.mxu0 0
  %1619 = vmatprep.subr.bf16.mxu0 0
  %1620 = vmatpush1.bf16.msra.mxu0 0
  %1621 = vmatprep.subr.bf16.mxu0 0
  %1622 = vmatpush1.bf16.msra.mxu0 0
  %1623 = vmatprep.mubr.bf16.mxu0 %v1466
  %1624 = vmatmul.mubr.bf16.gmra.mrb[0].mxu0 %v299
  %v1625 = vpop.f32.mrb[0].mxu0
  %v1626 = vadd.f32 %v1585, %v1625
  %v1627 = vpop.f32.mrb[0].mxu0
  %v1628 = vadd.f32 %v1587, %v1627
  %v1629 = vpop.f32.mrb[0].mxu0
  %v1630 = vpop.f32.mrb[0].mxu0
  %1631 = vdwg.mxu0
  %1632 = vmatprep.subr.bf16.mxu0 %v1005
  %1633 = vmatpush1.bf16.msra.mxu0 %v1004
  %1634 = vmatprep.subr.bf16.mxu0 %v1013
  %1635 = vmatpush1.bf16.msra.mxu0 %v1012
  %1636 = vmatprep.subr.bf16.mxu0 %v1021
  %1637 = vmatpush1.bf16.msra.mxu0 %v1020
  %1638 = vmatprep.subr.bf16.mxu0 %v1029
  %1639 = vmatpush1.bf16.msra.mxu0 %v1028
  %1640 = vmatprep.subr.bf16.mxu0 %v1037
  %1641 = vmatpush1.bf16.msra.mxu0 %v1036
  %1642 = vmatprep.subr.bf16.mxu0 %v1045
  %1643 = vmatpush1.bf16.msra.mxu0 %v1044
  %1644 = vmatprep.subr.bf16.mxu0 %v1053
  %1645 = vmatpush1.bf16.msra.mxu0 %v1052
  %1646 = vmatprep.subr.bf16.mxu0 %v1061
  %1647 = vmatpush1.bf16.msra.mxu0 %v1060
  %1648 = vmatprep.subr.bf16.mxu0 %v1069
  %1649 = vmatpush1.bf16.msra.mxu0 %v1068
  %1650 = vmatprep.subr.bf16.mxu0 %v1077
  %1651 = vmatpush1.bf16.msra.mxu0 %v1076
  %1652 = vmatprep.subr.bf16.mxu0 %v1085
  %1653 = vmatpush1.bf16.msra.mxu0 %v1084
  %1654 = vmatprep.subr.bf16.mxu0 %v1093
  %1655 = vmatpush1.bf16.msra.mxu0 %v1092
  %1656 = vmatprep.subr.bf16.mxu0 %v1101
  %1657 = vmatpush1.bf16.msra.mxu0 %v1100
  %1658 = vmatprep.subr.bf16.mxu0 %v1109
  %1659 = vmatpush1.bf16.msra.mxu0 %v1108
  %1660 = vmatprep.subr.bf16.mxu0 %v1117
  %1661 = vmatpush1.bf16.msra.mxu0 %v1116
  %1662 = vmatprep.subr.bf16.mxu0 %v1125
  %1663 = vmatpush1.bf16.msra.mxu0 %v1124
  %1664 = vmatprep.mubr.bf16.mxu0 %v298
  %1665 = vmatmul.mubr.bf16.gmra.mrb[0].mxu0 %v297
  %v1666 = vpop.f32.mrb[0].mxu0
  %v1667 = vadd.f32 %v270, %v1666
  %v1668 = vpop.f32.mrb[0].mxu0
  %v1669 = vadd.f32 %v274, %v1668
  %v1670 = vpop.f32.mrb[0].mxu0
  %v1671 = vpop.f32.mrb[0].mxu0
  %1672 = vdwg.mxu0
  %1673 = vmatprep.subr.bf16.mxu0 %v1133
  %1674 = vmatpush1.bf16.msra.mxu0 %v1132
  %1675 = vmatprep.subr.bf16.mxu0 %v1141
  %1676 = vmatpush1.bf16.msra.mxu0 %v1140
  %1677 = vmatprep.subr.bf16.mxu0 %v1149
  %1678 = vmatpush1.bf16.msra.mxu0 %v1148
  %1679 = vmatprep.subr.bf16.mxu0 %v1157
  %1680 = vmatpush1.bf16.msra.mxu0 %v1156
  %1681 = vmatprep.subr.bf16.mxu0 %v1165
  %1682 = vmatpush1.bf16.msra.mxu0 %v1164
  %1683 = vmatprep.subr.bf16.mxu0 %v1173
  %1684 = vmatpush1.bf16.msra.mxu0 %v1172
  %1685 = vmatprep.subr.bf16.mxu0 %v1181
  %1686 = vmatpush1.bf16.msra.mxu0 %v1180
  %1687 = vmatprep.subr.bf16.mxu0 %v1189
  %1688 = vmatpush1.bf16.msra.mxu0 %v1188
  %1689 = vmatprep.subr.bf16.mxu0 %v1197
  %1690 = vmatpush1.bf16.msra.mxu0 %v1196
  %1691 = vmatprep.subr.bf16.mxu0 %v1205
  %1692 = vmatpush1.bf16.msra.mxu0 %v1204
  %1693 = vmatprep.subr.bf16.mxu0 %v1213
  %1694 = vmatpush1.bf16.msra.mxu0 %v1212
  %1695 = vmatprep.subr.bf16.mxu0 %v1221
  %1696 = vmatpush1.bf16.msra.mxu0 %v1220
  %1697 = vmatprep.subr.bf16.mxu0 %v1229
  %1698 = vmatpush1.bf16.msra.mxu0 %v1228
  %1699 = vmatprep.subr.bf16.mxu0 0
  %1700 = vmatpush1.bf16.msra.mxu0 0
  %1701 = vmatprep.subr.bf16.mxu0 0
  %1702 = vmatpush1.bf16.msra.mxu0 0
  %1703 = vmatprep.subr.bf16.mxu0 0
  %1704 = vmatpush1.bf16.msra.mxu0 0
  %1705 = vmatprep.mubr.bf16.mxu0 %v1466
  %1706 = vmatmul.mubr.bf16.gmra.mrb[0].mxu0 %v299
  %v1707 = vpop.f32.mrb[0].mxu0
  %v1708 = vadd.f32 %v1667, %v1707
  %v1709 = vpop.f32.mrb[0].mxu0
  %v1710 = vadd.f32 %v1669, %v1709
  %v1711 = vpop.f32.mrb[0].mxu0
  %v1712 = vpop.f32.mrb[0].mxu0
  %1713 = vdwg.mxu0
  %1714 = vmatprep.subr.bf16.mxu0 %v1007
  %1715 = vmatpush1.bf16.msra.mxu0 %v1006
  %1716 = vmatprep.subr.bf16.mxu0 %v1015
  %1717 = vmatpush1.bf16.msra.mxu0 %v1014
  %1718 = vmatprep.subr.bf16.mxu0 %v1023
  %1719 = vmatpush1.bf16.msra.mxu0 %v1022
  %1720 = vmatprep.subr.bf16.mxu0 %v1031
  %1721 = vmatpush1.bf16.msra.mxu0 %v1030
  %1722 = vmatprep.subr.bf16.mxu0 %v1039
  %1723 = vmatpush1.bf16.msra.mxu0 %v1038
  %1724 = vmatprep.subr.bf16.mxu0 %v1047
  %1725 = vmatpush1.bf16.msra.mxu0 %v1046
  %1726 = vmatprep.subr.bf16.mxu0 %v1055
  %1727 = vmatpush1.bf16.msra.mxu0 %v1054
  %1728 = vmatprep.subr.bf16.mxu0 %v1063
  %1729 = vmatpush1.bf16.msra.mxu0 %v1062
  %1730 = vmatprep.subr.bf16.mxu0 %v1071
  %1731 = vmatpush1.bf16.msra.mxu0 %v1070
  %1732 = vmatprep.subr.bf16.mxu0 %v1079
  %1733 = vmatpush1.bf16.msra.mxu0 %v1078
  %1734 = vmatprep.subr.bf16.mxu0 %v1087
  %1735 = vmatpush1.bf16.msra.mxu0 %v1086
  %1736 = vmatprep.subr.bf16.mxu0 %v1095
  %1737 = vmatpush1.bf16.msra.mxu0 %v1094
  %1738 = vmatprep.subr.bf16.mxu0 %v1103
  %1739 = vmatpush1.bf16.msra.mxu0 %v1102
  %1740 = vmatprep.subr.bf16.mxu0 %v1111
  %1741 = vmatpush1.bf16.msra.mxu0 %v1110
  %1742 = vmatprep.subr.bf16.mxu0 %v1119
  %1743 = vmatpush1.bf16.msra.mxu0 %v1118
  %1744 = vmatprep.subr.bf16.mxu0 %v1127
  %1745 = vmatpush1.bf16.msra.mxu0 %v1126
  %1746 = vmatprep.mubr.bf16.mxu0 %v298
  %1747 = vmatmul.mubr.bf16.gmra.mrb[0].mxu0 %v297
  %v1748 = vpop.f32.mrb[0].mxu0
  %v1749 = vadd.f32 %v278, %v1748
  %v1750 = vpop.f32.mrb[0].mxu0
  %v1751 = vadd.f32 %v282, %v1750
  %v1752 = vpop.f32.mrb[0].mxu0
  %v1753 = vpop.f32.mrb[0].mxu0
  %1754 = vdwg.mxu0
  %1755 = vmatprep.subr.bf16.mxu0 %v1135
  %1756 = vmatpush1.bf16.msra.mxu0 %v1134
  %1757 = vmatprep.subr.bf16.mxu0 %v1143
  %1758 = vmatpush1.bf16.msra.mxu0 %v1142
  %1759 = vmatprep.subr.bf16.mxu0 %v1151
  %1760 = vmatpush1.bf16.msra.mxu0 %v1150
  %1761 = vmatprep.subr.bf16.mxu0 %v1159
  %1762 = vmatpush1.bf16.msra.mxu0 %v1158
  %1763 = vmatprep.subr.bf16.mxu0 %v1167
  %1764 = vmatpush1.bf16.msra.mxu0 %v1166
  %1765 = vmatprep.subr.bf16.mxu0 %v1175
  %1766 = vmatpush1.bf16.msra.mxu0 %v1174
  %1767 = vmatprep.subr.bf16.mxu0 %v1183
  %1768 = vmatpush1.bf16.msra.mxu0 %v1182
  %1769 = vmatprep.subr.bf16.mxu0 %v1191
  %1770 = vmatpush1.bf16.msra.mxu0 %v1190
  %1771 = vmatprep.subr.bf16.mxu0 %v1199
  %1772 = vmatpush1.bf16.msra.mxu0 %v1198
  %1773 = vmatprep.subr.bf16.mxu0 %v1207
  %1774 = vmatpush1.bf16.msra.mxu0 %v1206
  %1775 = vmatprep.subr.bf16.mxu0 %v1215
  %1776 = vmatpush1.bf16.msra.mxu0 %v1214
  %1777 = vmatprep.subr.bf16.mxu0 %v1223
  %1778 = vmatpush1.bf16.msra.mxu0 %v1222
  %1779 = vmatprep.subr.bf16.mxu0 %v1231
  %1780 = vmatpush1.bf16.msra.mxu0 %v1230
  %1781 = vmatprep.subr.bf16.mxu0 0
  %1782 = vmatpush1.bf16.msra.mxu0 0
  %1783 = vmatprep.subr.bf16.mxu0 0
  %1784 = vmatpush1.bf16.msra.mxu0 0
  %1785 = vmatprep.subr.bf16.mxu0 0
  %1786 = vmatpush1.bf16.msra.mxu0 0
  %1787 = vmatprep.mubr.bf16.mxu0 %v1466
  %1788 = vmatmul.mubr.bf16.gmra.mrb[0].mxu0 %v299
  %v1789 = vpop.f32.mrb[0].mxu0
  %v1790 = vadd.f32 %v1749, %v1789
  %v1791 = vpop.f32.mrb[0].mxu0
  %v1792 = vadd.f32 %v1751, %v1791
  %v1793 = vpop.f32.mrb[0].mxu0
  %v1794 = vpop.f32.mrb[0].mxu0
  %1795 = vdwg.mxu0
  %v1796 = vmax.f32 %v1544, 0.0
  %v1797 = vmax.f32 %v1546, 0.0
  %v1798 = vmax.f32 %v1626, 0.0
  %v1799 = vmax.f32 %v1628, 0.0
  %v1800 = vmax.f32 %v1708, 0.0
  %v1801 = vmax.f32 %v1710, 0.0
  %v1802 = vmax.f32 %v1790, 0.0
  %v1803 = vmax.f32 %v1792, 0.0
  %v1804 = vpack.c.bf16 %v1796, %v1796
  %v1805 = vpack.c.bf16 %v1797, %v1797
  %v1806 = vpack.c.bf16 %v1798, %v1798
  %v1807 = vpack.c.bf16 %v1799, %v1799
  %v1808 = vpack.c.bf16 %v1800, %v1800
  %v1809 = vpack.c.bf16 %v1801, %v1801
  %v1810 = vpack.c.bf16 %v1802, %v1802
  %v1811 = vpack.c.bf16 %v1803, %v1803
  %v1820 = vunpack.c.l.b16 %v1804
  %v1821 = vunpack.c.l.b16 %v1805
  %v1822 = vunpack.c.l.b16 %v1806
  %v1823 = vunpack.c.l.b16 %v1807
  %v1824 = vunpack.c.l.b16 %v1808
  %v1825 = vunpack.c.l.b16 %v1809
  %v1826 = vunpack.c.l.b16 %v1810
  %v1827 = vunpack.c.l.b16 %v1811
  %v1828 = vpack.c.b16 %v1821, %v1820
  %v1829 = vpack.c.b16 %v1823, %v1822
  %v1830 = vpack.c.b16 %v1825, %v1824
  %v1831 = vpack.c.b16 %v1827, %v1826
  %1836 = vst [vmem:[%s3] sm:$0xff] %v1828
  %1837 = vst [vmem:[%s3 + $0x8] sm:$0xff] %v1829
  %1838 = vst [vmem:[%s3 + $0x10] sm:$0xff] %v1830
  %1839 = vst [vmem:[%s3 + $0x18] sm:$0xff] %v1831
  // Predicated region
  $region14: #{reranking_shufflenet_forward.114} parent=0 // pred_check
    _
  $region15: #{reranking_shufflenet_forward.114} parent=0 // pred_check_branch
    %1841 = sbr.rel (0) target = $region17
  $region16: #{reranking_shufflenet_forward.114} parent=0 // pred_region
    _
  $region17: #{reranking_shufflenet_forward.114} parent=0 // pred_fallthru
    _
  // Predicated region
  $region18: #{reranking_shufflenet_forward.114} parent=0 // pred_check
    _
  $region19: #{reranking_shufflenet_forward.114} parent=0 // pred_check_branch
    %1843 = sbr.rel (0) target = $region21
  $region20: #{reranking_shufflenet_forward.114} parent=0 // pred_region
    _
  $region21: #{reranking_shufflenet_forward.114} parent=0 // pred_fallthru
    _

</llo_original>
